<compile_context>
chip_gen: v7x
topology: tpu7x:2x2x1
jax: 0.10.0
libtpu: 0.0.40
codegen_flags: <defaults>
</compile_context>

<pallas_src>
import functools

import jax
import jax.numpy as jnp
from jax.experimental import pallas as pl
from jax.experimental.pallas import tpu as pltpu

LN_EPS = 1e-5  # PyTorch nn.LayerNorm default


def _gelu(x):
    # tanh-form GELU (lowers to EUP tanh).
    # TODO(synk): PyTorch nn.GELU() default is the exact erf form; the tanh
    # approximation differs by <~1e-3 (accepted for inference).
    c = 0.7978845608028654  # sqrt(2/pi)
    return 0.5 * x * (1.0 + jnp.tanh(c * (x + 0.044715 * x * x * x)))


def _layernorm(x, g, b):
    mu = jnp.mean(x, axis=-1, keepdims=True)
    var = jnp.mean(jnp.square(x - mu), axis=-1, keepdims=True)
    return (x - mu) * jax.lax.rsqrt(var + LN_EPS) * g + b


def _softmax(x):
    m = jnp.max(x, axis=-1, keepdims=True)
    e = jnp.exp(x - m)
    return e * pl.reciprocal(jnp.sum(e, axis=-1, keepdims=True), approx=True)


def cattleidnet_kernel(num_heads, gelu_bf16,
                       x_ref, bias_ref, pool_ref,
                       wp_ref, bp_ref,
                       g1_ref, be1_ref,
                       wq_ref, bq_ref, wk_ref, bk_ref, wv_ref, bv_ref,
                       wo_ref, bo_ref,
                       g2_ref, be2_ref,
                       w1_ref, b1_ref, w2_ref, b2_ref,
                       out_ref):
    f32 = jnp.float32
    bf16 = jnp.bfloat16

    tok = x_ref[...]                                     # (M, C) bf16, already flat 2D

    # ---- self.project: 1x1 Conv2d == per-token matmul ----
    x = jnp.dot(tok, wp_ref[...], preferred_element_type=f32) + bp_ref[...]   # (M, D) f32
    D = x.shape[1]
    dh = D // num_heads

    # ---- TransformerBlock ----
    # PyTorch forward reassigns x = self.norm1(x), so the attention residual is added
    # on top of the *normalized* activations (matched here).
    x = _layernorm(x, g1_ref[...], be1_ref[...])
    xb = x.astype(bf16)
    # 1/sqrt(dh) attention scale is pre-folded into wq / bq in the wrapper.
    q = jnp.dot(xb, wq_ref[...], preferred_element_type=f32) + bq_ref[...]
    k = jnp.dot(xb, wk_ref[...], preferred_element_type=f32) + bk_ref[...]
    v = jnp.dot(xb, wv_ref[...], preferred_element_type=f32) + bv_ref[...]
    q_b, v_b = q.astype(bf16), v.astype(bf16)
    k_t = k.astype(bf16).T                               # (D, M): one transpose, rows sliced per head

    bias = bias_ref[...]                                 # (M, M) f32, block-diag 0 / -1e30 (grid-invariant)
    attn = jnp.zeros_like(x)                             # (M, D) f32 accumulator
    for h in range(num_heads):                           # static unroll
        sl = slice(h * dh, (h + 1) * dh)
        s = jnp.dot(q_b[:, sl], k_t[sl, :], preferred_element_type=f32) + bias   # (M, M)
        p = _softmax(s)
        hv = jnp.dot(p.astype(bf16), v_b[:, sl], preferred_element_type=f32)     # (M, dh)
        # Accumulate head_out @ wo[h] directly (wo pre-split to (H, dh, D)) -- no lane concat.
        attn = attn + jnp.dot(hv.astype(bf16), wo_ref[h], preferred_element_type=f32)
    x = x + attn + bo_ref[...]                           # residual 1

    xn2 = _layernorm(x, g2_ref[...], be2_ref[...]).astype(bf16)
    hmid = jnp.dot(xn2, w1_ref[...], preferred_element_type=f32) + b1_ref[...]
    if gelu_bf16:
        hmid = _gelu(hmid.astype(bf16))                  # bf16 VPU/EUP on v6e/v7x
    else:
        hmid = _gelu(hmid).astype(bf16)                  # f32 elementwise on v5e (no bf16 VPU)
    x = x + jnp.dot(hmid, w2_ref[...], preferred_element_type=f32) + b2_ref[...]  # residual 2

    # ---- per-sample mean pool via the precomputed (Bt, M) bf16 pooling matmul ----
    out_ref[...] = jnp.dot(pool_ref[...], x.astype(bf16), preferred_element_type=f32)  # (Bt, D)


def init_params(key, cin, dim=256, heads=4, mlp_dim=512, hidden=128, num_classes=8):
    del heads
    ks = jax.random.split(key, 18)

    def w(k, shape, scale=0.02):
        return (scale * jax.random.normal(k, shape)).astype(jnp.float32)

    return dict(
        wp=w(ks[0], (cin, dim)),        bp=w(ks[1], (1, dim), 0.01),
        g1=jnp.ones((1, dim), jnp.float32), be1=jnp.zeros((1, dim), jnp.float32),
        wq=w(ks[2], (dim, dim)),        bq=w(ks[3], (1, dim), 0.01),
        wk=w(ks[4], (dim, dim)),        bk=w(ks[5], (1, dim), 0.01),
        wv=w(ks[6], (dim, dim)),        bv=w(ks[7], (1, dim), 0.01),
        wo=w(ks[8], (dim, dim)),        bo=w(ks[9], (1, dim), 0.01),
        g2=jnp.ones((1, dim), jnp.float32), be2=jnp.zeros((1, dim), jnp.float32),
        w1=w(ks[10], (dim, mlp_dim)),   b1=w(ks[11], (1, mlp_dim), 0.01),
        w2=w(ks[12], (mlp_dim, dim)),   b2=w(ks[13], (1, dim), 0.01),
        wc1=w(ks[14], (dim, hidden)),   bc1=w(ks[15], (1, hidden), 0.01),
        wc2=w(ks[16], (hidden, num_classes)), bc2=w(ks[17], (1, num_classes), 0.01),
    )


def _device_kind():
    try:
        return jax.devices()[0].device_kind.lower()
    except Exception:
        return ""


def _is_v5e(kind):
    return ("v5e" in kind) or ("v5 lite" in kind) or ("v5lite" in kind)


def _pick_block_batch(batch, seq):
    kind = _device_kind()
    # v5e MXU is 128x128 -> M=128 already saturates; v6e/v7x are 256-wide -> M=256.
    target_m = 128 if _is_v5e(kind) else 256
    bt = max(8, target_m // max(seq, 1))
    # v7x has 2 TensorCores: keep the "parallel" batch axis at >= 2 grid steps when
    # the batch allows it, so the grid actually shards across both TCs.
    if ("v7" in kind) and bt > 8:
        steps_full = -(-batch // bt)
        steps_half = -(-batch // max(bt // 2, 8))
        if steps_full < 2 <= steps_half:
            bt = max(8, bt // 2)
    return bt


def cattleidnet_forward(features, params, heads=4, block_batch=None):
    """features: (B, C, H, W) NCHW backbone feature map (PyTorch convention)."""
    B, _, H, W = features.shape
    if block_batch is None:
        block_batch = _pick_block_batch(B, H * W)
    gelu_bf16 = not _is_v5e(_device_kind())
    return _forward(features, params, heads, block_batch, gelu_bf16)


@functools.partial(jax.jit, static_argnames=("heads", "block_batch", "gelu_bf16"))
def _forward(features, params, heads, block_batch, gelu_bf16):
    B, C, H, W = features.shape
    S = H * W
    D = params["wp"].shape[1]
    dh = D // heads
    bf = jnp.bfloat16

    Bt = block_batch
    M = Bt * S
    B_pad = ((B + Bt - 1) // Bt) * Bt

    # NCHW -> (B, S, C) tokens (rearrange 'b c h w -> b (h w) c'), bf16 MXU operand.
    # TODO(synk): emitting NHWC/bf16 features directly from the backbone would remove
    # this extra HBM round trip (matters most on v5e's lower HBM bandwidth).
    tokens = jnp.transpose(features, (0, 2, 3, 1)).reshape(B, S, C).astype(bf)
    if B_pad != B:
        tokens = jnp.pad(tokens, ((0, B_pad - B), (0, 0), (0, 0)))
    tokens = tokens.reshape(B_pad * S, C)     # flat 2D, lane-contiguous; no in-kernel reshape

    # Fold the 1/sqrt(dh) attention scale into wq / bq (zero in-kernel cost).
    scale = 1.0 / (dh ** 0.5)

    # Grid-invariant constants hoisted out of the kernel:
    #   * block-diagonal additive attention bias (tokens attend only within their sample)
    #   * per-tile mean-pooling matrix (1/S exact in bf16 for S=16)
    sid = jnp.arange(M, dtype=jnp.int32) // S
    attn_bias = jnp.where(sid[:, None] == sid[None, :], 0.0, -1e30).astype(jnp.float32)
    pool = jnp.where(jnp.arange(Bt, dtype=jnp.int32)[:, None] == sid[None, :],
                     1.0 / S, 0.0).astype(bf)

    # bf16 MXU-operand weights (f32 accumulation in-kernel); biases / LN params stay
    # f32. wo is pre-split per head to (H, dh, D); wq/bq carry the folded scale.
    weights = [
        params["wp"].astype(bf), params["bp"],
        params["g1"], params["be1"],
        (params["wq"] * scale).astype(bf), params["bq"] * scale,
        params["wk"].astype(bf), params["bk"],
        params["wv"].astype(bf), params["bv"],
        params["wo"].reshape(heads, dh, D).astype(bf), params["bo"],
        params["g2"], params["be2"],
        params["w1"].astype(bf), params["b1"],
        params["w2"].astype(bf), params["b2"],
    ]

    in_specs = [
        pl.BlockSpec((M, C), lambda b: (b, 0)),       # token tile
        pl.BlockSpec((M, M), lambda b: (0, 0)),       # attention bias (grid-invariant)
        pl.BlockSpec((Bt, M), lambda b: (0, 0)),      # pooling matrix (grid-invariant)
    ]
    # Constant (0, ...) index maps: Pallas revisits the same block each step (no
    # re-DMA); the double-buffered weight working set here is ~1 MiB, far under every
    # generation's VMEM. TODO(synk): at real Cin=1280 / Bt>=16 on v7x (64 MiB VMEM),
    # consider pipeline_mode=pl.Buffered(1) on weights plus an explicit vmem_limit_bytes.
    in_specs += [pl.BlockSpec(wt.shape, (lambda b, n=wt.ndim: (0,) * n))
                 for wt in weights]

    pooled = pl.pallas_call(
        functools.partial(cattleidnet_kernel, heads, gelu_bf16),
        out_shape=jax.ShapeDtypeStruct((B_pad, D), jnp.float32),
        grid=(B_pad // Bt,),
        in_specs=in_specs,
        out_specs=pl.BlockSpec((Bt, D), lambda b: (b, 0)),   # lane-dense D=256 output
        compiler_params=pltpu.CompilerParams(
            # Batch tiles are independent -> "parallel" lets v7x shard the grid across
            # both TensorCores; harmless no-op on single-TC v5e/v6e.
            dimension_semantics=("parallel",),
        ),
    )(tokens, attn_bias, pool, *weights)[:B]

    # ---- classifier as plain XLA over the whole batch (fills M=B rows in one dot
    # instead of M=Bt per grid step; Dropout(0.3) is identity at inference) ----
    hdn = jnp.maximum(jnp.dot(pooled, params["wc1"]) + params["bc1"], 0.0)
    return jnp.dot(hdn, params["wc2"]) + params["bc2"]


if __name__ == "__main__":
    key = jax.random.PRNGKey(0)
    k_feat, k_param = jax.random.split(key)

    # Small stand-in shapes: the real EfficientNet-B0 final feature map is
    # (B, 1280, H/32, W/32); here C_backbone=64, 4x4 spatial -> 16 tokens,
    # dim=256, heads=4, mlp_dim=512, hidden=128, 8 classes.
    B, Cb, Hs, Ws = 4, 64, 4, 4
    features = jax.random.normal(k_feat, (B, Cb, Hs, Ws), dtype=jnp.float32)
    params = init_params(k_param, cin=Cb, dim=256, heads=4, mlp_dim=512,
                         hidden=128, num_classes=8)

    out = cattleidnet_forward(features, params, heads=4)
    jax.block_until_ready(out)
    assert out.shape == (B, 8) and out.dtype == jnp.float32
    assert bool(jnp.all(jnp.isfinite(out)))
    print("KERNEL_OK")
</pallas_src>

<mosaic_0001>
module attributes {stable_mosaic.version = 11 : i64} {
  func.func @cattleidnet_kernel(%arg0: i32, %arg1: memref<256x64xbf16, #tpu.memory_space<vmem>>, %arg2: memref<256x256xf32, #tpu.memory_space<vmem>>, %arg3: memref<16x256xbf16, #tpu.memory_space<vmem>>, %arg4: memref<64x256xbf16, #tpu.memory_space<vmem>>, %arg5: memref<1x256xf32, #tpu.memory_space<vmem>>, %arg6: memref<1x256xf32, #tpu.memory_space<vmem>>, %arg7: memref<1x256xf32, #tpu.memory_space<vmem>>, %arg8: memref<256x256xbf16, #tpu.memory_space<vmem>>, %arg9: memref<1x256xf32, #tpu.memory_space<vmem>>, %arg10: memref<256x256xbf16, #tpu.memory_space<vmem>>, %arg11: memref<1x256xf32, #tpu.memory_space<vmem>>, %arg12: memref<256x256xbf16, #tpu.memory_space<vmem>>, %arg13: memref<1x256xf32, #tpu.memory_space<vmem>>, %arg14: memref<4x64x256xbf16, #tpu.memory_space<vmem>>, %arg15: memref<1x256xf32, #tpu.memory_space<vmem>>, %arg16: memref<1x256xf32, #tpu.memory_space<vmem>>, %arg17: memref<1x256xf32, #tpu.memory_space<vmem>>, %arg18: memref<256x512xbf16, #tpu.memory_space<vmem>>, %arg19: memref<1x512xf32, #tpu.memory_space<vmem>>, %arg20: memref<512x256xbf16, #tpu.memory_space<vmem>>, %arg21: memref<1x256xf32, #tpu.memory_space<vmem>>, %arg22: memref<16x256xf32, #tpu.memory_space<vmem>>) attributes {dimension_semantics = [#tpu.dimension_semantics<parallel>], iteration_bounds = array<i64: 1>, scalar_prefetch = 0 : i64, scratch_operands = 0 : i64, tpu.core_type = #tpu.core_type<tc>, window_params = [{transform_indices = @transform_0, window_bounds = array<i64: 256, 64>}, {pipeline_mode = #tpu.pipeline_mode<synchronous>, transform_indices = @transform_1, window_bounds = array<i64: 256, 256>}, {pipeline_mode = #tpu.pipeline_mode<synchronous>, transform_indices = @transform_2, window_bounds = array<i64: 16, 256>}, {pipeline_mode = #tpu.pipeline_mode<synchronous>, transform_indices = @transform_3, window_bounds = array<i64: 64, 256>}, {pipeline_mode = #tpu.pipeline_mode<synchronous>, transform_indices = @transform_4, window_bounds = array<i64: 1, 256>}, {pipeline_mode = #tpu.pipeline_mode<synchronous>, transform_indices = @transform_5, window_bounds = array<i64: 1, 256>}, {pipeline_mode = #tpu.pipeline_mode<synchronous>, transform_indices = @transform_6, window_bounds = array<i64: 1, 256>}, {pipeline_mode = #tpu.pipeline_mode<synchronous>, transform_indices = @transform_7, window_bounds = array<i64: 256, 256>}, {pipeline_mode = #tpu.pipeline_mode<synchronous>, transform_indices = @transform_8, window_bounds = array<i64: 1, 256>}, {pipeline_mode = #tpu.pipeline_mode<synchronous>, transform_indices = @transform_9, window_bounds = array<i64: 256, 256>}, {pipeline_mode = #tpu.pipeline_mode<synchronous>, transform_indices = @transform_10, window_bounds = array<i64: 1, 256>}, {pipeline_mode = #tpu.pipeline_mode<synchronous>, transform_indices = @transform_11, window_bounds = array<i64: 256, 256>}, {pipeline_mode = #tpu.pipeline_mode<synchronous>, transform_indices = @transform_12, window_bounds = array<i64: 1, 256>}, {pipeline_mode = #tpu.pipeline_mode<synchronous>, transform_indices = @transform_13, window_bounds = array<i64: 4, 64, 256>}, {pipeline_mode = #tpu.pipeline_mode<synchronous>, transform_indices = @transform_14, window_bounds = array<i64: 1, 256>}, {pipeline_mode = #tpu.pipeline_mode<synchronous>, transform_indices = @transform_15, window_bounds = array<i64: 1, 256>}, {pipeline_mode = #tpu.pipeline_mode<synchronous>, transform_indices = @transform_16, window_bounds = array<i64: 1, 256>}, {pipeline_mode = #tpu.pipeline_mode<synchronous>, transform_indices = @transform_17, window_bounds = array<i64: 256, 512>}, {pipeline_mode = #tpu.pipeline_mode<synchronous>, transform_indices = @transform_18, window_bounds = array<i64: 1, 512>}, {pipeline_mode = #tpu.pipeline_mode<synchronous>, transform_indices = @transform_19, window_bounds = array<i64: 512, 256>}, {pipeline_mode = #tpu.pipeline_mode<synchronous>, transform_indices = @transform_20, window_bounds = array<i64: 1, 256>}, {transform_indices = @transform_21, window_bounds = array<i64: 16, 256>}]} {
    %c0 = arith.constant 0 : index
    %c0_0 = arith.constant 0 : index
    %0 = vector.load %arg1[%c0, %c0_0] : memref<256x64xbf16, #tpu.memory_space<vmem>>, vector<256x64xbf16>
    %c0_1 = arith.constant 0 : index
    %c0_2 = arith.constant 0 : index
    %1 = vector.load %arg4[%c0_1, %c0_2] : memref<64x256xbf16, #tpu.memory_space<vmem>>, vector<64x256xbf16>
    %cst = arith.constant dense<0.000000e+00> : vector<256x256xf32>
    %2 = tpu.matmul %0, %1, %cst {dimension_numbers = #tpu.dot_dimension_numbers<[1], [0], [0], [1], [0, 0, 1, 1], [], []>} : vector<256x64xbf16>, vector<64x256xbf16>, vector<256x256xf32> -> vector<256x256xf32>
    %c0_3 = arith.constant 0 : index
    %c0_4 = arith.constant 0 : index
    %3 = vector.load %arg5[%c0_3, %c0_4] : memref<1x256xf32, #tpu.memory_space<vmem>>, vector<1x256xf32>
    %4 = vector.broadcast %3 : vector<1x256xf32> to vector<256x256xf32>
    %5 = arith.addf %2, %4 : vector<256x256xf32>
    %c0_5 = arith.constant 0 : index
    %c0_6 = arith.constant 0 : index
    %6 = vector.load %arg6[%c0_5, %c0_6] : memref<1x256xf32, #tpu.memory_space<vmem>>, vector<1x256xf32>
    %c0_7 = arith.constant 0 : index
    %c0_8 = arith.constant 0 : index
    %7 = vector.load %arg7[%c0_7, %c0_8] : memref<1x256xf32, #tpu.memory_space<vmem>>, vector<1x256xf32>
    %cst_9 = arith.constant dense<0.000000e+00> : vector<256xf32>
    %8 = vector.multi_reduction <add>, %5, %cst_9 [1] : vector<256x256xf32> to vector<256xf32>
    %9 = vector.shape_cast %8 : vector<256xf32> to vector<256x1xf32>
    %cst_10 = arith.constant 2.560000e+02 : f32
    %10 = vector.broadcast %cst_10 : f32 to vector<256x1xf32>
    %11 = arith.divf %9, %10 : vector<256x1xf32>
    %12 = vector.broadcast %11 : vector<256x1xf32> to vector<256x256xf32>
    %13 = arith.subf %5, %12 : vector<256x256xf32>
    %14 = arith.mulf %13, %13 : vector<256x256xf32>
    %cst_11 = arith.constant dense<0.000000e+00> : vector<256xf32>
    %15 = vector.multi_reduction <add>, %14, %cst_11 [1] : vector<256x256xf32> to vector<256xf32>
    %16 = vector.shape_cast %15 : vector<256xf32> to vector<256x1xf32>
    %cst_12 = arith.constant 2.560000e+02 : f32
    %17 = vector.broadcast %cst_12 : f32 to vector<256x1xf32>
    %18 = arith.divf %16, %17 : vector<256x1xf32>
    %19 = vector.broadcast %11 : vector<256x1xf32> to vector<256x256xf32>
    %20 = arith.subf %5, %19 : vector<256x256xf32>
    %cst_13 = arith.constant 9.99999974E-6 : f32
    %21 = vector.broadcast %cst_13 : f32 to vector<256x1xf32>
    %22 = arith.addf %18, %21 : vector<256x1xf32>
    %23 = math.rsqrt %22 : vector<256x1xf32>
    %24 = vector.broadcast %23 : vector<256x1xf32> to vector<256x256xf32>
    %25 = arith.mulf %20, %24 : vector<256x256xf32>
    %26 = vector.broadcast %6 : vector<1x256xf32> to vector<256x256xf32>
    %27 = arith.mulf %25, %26 : vector<256x256xf32>
    %28 = vector.broadcast %7 : vector<1x256xf32> to vector<256x256xf32>
    %29 = arith.addf %27, %28 : vector<256x256xf32>
    %30 = arith.truncf %29 : vector<256x256xf32> to vector<256x256xbf16>
    %c0_14 = arith.constant 0 : index
    %c0_15 = arith.constant 0 : index
    %31 = vector.load %arg8[%c0_14, %c0_15] : memref<256x256xbf16, #tpu.memory_space<vmem>>, vector<256x256xbf16>
    %cst_16 = arith.constant dense<0.000000e+00> : vector<256x256xf32>
    %32 = tpu.matmul %30, %31, %cst_16 {dimension_numbers = #tpu.dot_dimension_numbers<[1], [0], [0], [1], [0, 0, 1, 1], [], []>} : vector<256x256xbf16>, vector<256x256xbf16>, vector<256x256xf32> -> vector<256x256xf32>
    %c0_17 = arith.constant 0 : index
    %c0_18 = arith.constant 0 : index
    %33 = vector.load %arg9[%c0_17, %c0_18] : memref<1x256xf32, #tpu.memory_space<vmem>>, vector<1x256xf32>
    %34 = vector.broadcast %33 : vector<1x256xf32> to vector<256x256xf32>
    %35 = arith.addf %32, %34 : vector<256x256xf32>
    %c0_19 = arith.constant 0 : index
    %c0_20 = arith.constant 0 : index
    %36 = vector.load %arg10[%c0_19, %c0_20] : memref<256x256xbf16, #tpu.memory_space<vmem>>, vector<256x256xbf16>
    %cst_21 = arith.constant dense<0.000000e+00> : vector<256x256xf32>
    %37 = tpu.matmul %30, %36, %cst_21 {dimension_numbers = #tpu.dot_dimension_numbers<[1], [0], [0], [1], [0, 0, 1, 1], [], []>} : vector<256x256xbf16>, vector<256x256xbf16>, vector<256x256xf32> -> vector<256x256xf32>
    %c0_22 = arith.constant 0 : index
    %c0_23 = arith.constant 0 : index
    %38 = vector.load %arg11[%c0_22, %c0_23] : memref<1x256xf32, #tpu.memory_space<vmem>>, vector<1x256xf32>
    %39 = vector.broadcast %38 : vector<1x256xf32> to vector<256x256xf32>
    %40 = arith.addf %37, %39 : vector<256x256xf32>
    %c0_24 = arith.constant 0 : index
    %c0_25 = arith.constant 0 : index
    %41 = vector.load %arg12[%c0_24, %c0_25] : memref<256x256xbf16, #tpu.memory_space<vmem>>, vector<256x256xbf16>
    %cst_26 = arith.constant dense<0.000000e+00> : vector<256x256xf32>
    %42 = tpu.matmul %30, %41, %cst_26 {dimension_numbers = #tpu.dot_dimension_numbers<[1], [0], [0], [1], [0, 0, 1, 1], [], []>} : vector<256x256xbf16>, vector<256x256xbf16>, vector<256x256xf32> -> vector<256x256xf32>
    %c0_27 = arith.constant 0 : index
    %c0_28 = arith.constant 0 : index
    %43 = vector.load %arg13[%c0_27, %c0_28] : memref<1x256xf32, #tpu.memory_space<vmem>>, vector<1x256xf32>
    %44 = vector.broadcast %43 : vector<1x256xf32> to vector<256x256xf32>
    %45 = arith.addf %42, %44 : vector<256x256xf32>
    %46 = arith.truncf %35 : vector<256x256xf32> to vector<256x256xbf16>
    %47 = arith.truncf %45 : vector<256x256xf32> to vector<256x256xbf16>
    %48 = arith.truncf %40 : vector<256x256xf32> to vector<256x256xbf16>
    %49 = tpu.transpose %48, [1, 0] : vector<256x256xbf16> -> vector<256x256xbf16>
    %c0_29 = arith.constant 0 : index
    %c0_30 = arith.constant 0 : index
    %50 = vector.load %arg2[%c0_29, %c0_30] : memref<256x256xf32, #tpu.memory_space<vmem>>, vector<256x256xf32>
    %cst_31 = arith.constant 0.000000e+00 : f32
    %51 = vector.broadcast %cst_31 : f32 to vector<256x256xf32>
    %52 = vector.extract_strided_slice %46 {offsets = [0, 0], sizes = [256, 64], strides = [1, 1]} : vector<256x256xbf16> to vector<256x64xbf16>
    %53 = vector.extract_strided_slice %49 {offsets = [0, 0], sizes = [64, 256], strides = [1, 1]} : vector<256x256xbf16> to vector<64x256xbf16>
    %cst_32 = arith.constant dense<0.000000e+00> : vector<256x256xf32>
    %54 = tpu.matmul %52, %53, %cst_32 {dimension_numbers = #tpu.dot_dimension_numbers<[1], [0], [0], [1], [0, 0, 1, 1], [], []>} : vector<256x64xbf16>, vector<64x256xbf16>, vector<256x256xf32> -> vector<256x256xf32>
    %55 = arith.addf %54, %50 : vector<256x256xf32>
    %cst_33 = arith.constant dense<0xFF800000> : vector<256xf32>
    %56 = vector.multi_reduction <maximumf>, %55, %cst_33 [1] : vector<256x256xf32> to vector<256xf32>
    %57 = vector.shape_cast %56 : vector<256xf32> to vector<256x1xf32>
    %58 = vector.broadcast %57 : vector<256x1xf32> to vector<256x256xf32>
    %59 = arith.subf %55, %58 : vector<256x256xf32>
    %60 = math.exp %59 : vector<256x256xf32>
    %cst_34 = arith.constant dense<0.000000e+00> : vector<256xf32>
    %61 = vector.multi_reduction <add>, %60, %cst_34 [1] : vector<256x256xf32> to vector<256xf32>
    %62 = vector.shape_cast %61 : vector<256xf32> to vector<256x1xf32>
    %63 = tpu.reciprocal %62 {approx = true} : vector<256x1xf32> -> vector<256x1xf32>
    %64 = vector.broadcast %63 : vector<256x1xf32> to vector<256x256xf32>
    %65 = arith.mulf %60, %64 : vector<256x256xf32>
    %66 = arith.truncf %65 : vector<256x256xf32> to vector<256x256xbf16>
    %67 = vector.extract_strided_slice %47 {offsets = [0, 0], sizes = [256, 64], strides = [1, 1]} : vector<256x256xbf16> to vector<256x64xbf16>
    %cst_35 = arith.constant dense<0.000000e+00> : vector<256x64xf32>
    %68 = tpu.matmul %66, %67, %cst_35 {dimension_numbers = #tpu.dot_dimension_numbers<[1], [0], [0], [1], [0, 0, 1, 1], [], []>} : vector<256x256xbf16>, vector<256x64xbf16>, vector<256x64xf32> -> vector<256x64xf32>
    %69 = arith.truncf %68 : vector<256x64xf32> to vector<256x64xbf16>
    %c0_36 = arith.constant 0 : index
    %c0_37 = arith.constant 0 : index
    %c0_38 = arith.constant 0 : index
    %70 = vector.load %arg14[%c0_36, %c0_37, %c0_38] : memref<4x64x256xbf16, #tpu.memory_space<vmem>>, vector<1x64x256xbf16>
    %71 = vector.shape_cast %70 : vector<1x64x256xbf16> to vector<64x256xbf16>
    %cst_39 = arith.constant dense<0.000000e+00> : vector<256x256xf32>
    %72 = tpu.matmul %69, %71, %cst_39 {dimension_numbers = #tpu.dot_dimension_numbers<[1], [0], [0], [1], [0, 0, 1, 1], [], []>} : vector<256x64xbf16>, vector<64x256xbf16>, vector<256x256xf32> -> vector<256x256xf32>
    %73 = arith.addf %51, %72 : vector<256x256xf32>
    %74 = vector.extract_strided_slice %46 {offsets = [0, 64], sizes = [256, 64], strides = [1, 1]} : vector<256x256xbf16> to vector<256x64xbf16>
    %75 = vector.extract_strided_slice %49 {offsets = [64, 0], sizes = [64, 256], strides = [1, 1]} : vector<256x256xbf16> to vector<64x256xbf16>
    %cst_40 = arith.constant dense<0.000000e+00> : vector<256x256xf32>
    %76 = tpu.matmul %74, %75, %cst_40 {dimension_numbers = #tpu.dot_dimension_numbers<[1], [0], [0], [1], [0, 0, 1, 1], [], []>} : vector<256x64xbf16>, vector<64x256xbf16>, vector<256x256xf32> -> vector<256x256xf32>
    %77 = arith.addf %76, %50 : vector<256x256xf32>
    %cst_41 = arith.constant dense<0xFF800000> : vector<256xf32>
    %78 = vector.multi_reduction <maximumf>, %77, %cst_41 [1] : vector<256x256xf32> to vector<256xf32>
    %79 = vector.shape_cast %78 : vector<256xf32> to vector<256x1xf32>
    %80 = vector.broadcast %79 : vector<256x1xf32> to vector<256x256xf32>
    %81 = arith.subf %77, %80 : vector<256x256xf32>
    %82 = math.exp %81 : vector<256x256xf32>
    %cst_42 = arith.constant dense<0.000000e+00> : vector<256xf32>
    %83 = vector.multi_reduction <add>, %82, %cst_42 [1] : vector<256x256xf32> to vector<256xf32>
    %84 = vector.shape_cast %83 : vector<256xf32> to vector<256x1xf32>
    %85 = tpu.reciprocal %84 {approx = true} : vector<256x1xf32> -> vector<256x1xf32>
    %86 = vector.broadcast %85 : vector<256x1xf32> to vector<256x256xf32>
    %87 = arith.mulf %82, %86 : vector<256x256xf32>
    %88 = arith.truncf %87 : vector<256x256xf32> to vector<256x256xbf16>
    %89 = vector.extract_strided_slice %47 {offsets = [0, 64], sizes = [256, 64], strides = [1, 1]} : vector<256x256xbf16> to vector<256x64xbf16>
    %cst_43 = arith.constant dense<0.000000e+00> : vector<256x64xf32>
    %90 = tpu.matmul %88, %89, %cst_43 {dimension_numbers = #tpu.dot_dimension_numbers<[1], [0], [0], [1], [0, 0, 1, 1], [], []>} : vector<256x256xbf16>, vector<256x64xbf16>, vector<256x64xf32> -> vector<256x64xf32>
    %91 = arith.truncf %90 : vector<256x64xf32> to vector<256x64xbf16>
    %c1 = arith.constant 1 : index
    %c0_44 = arith.constant 0 : index
    %c0_45 = arith.constant 0 : index
    %92 = vector.load %arg14[%c1, %c0_44, %c0_45] : memref<4x64x256xbf16, #tpu.memory_space<vmem>>, vector<1x64x256xbf16>
    %93 = vector.shape_cast %92 : vector<1x64x256xbf16> to vector<64x256xbf16>
    %cst_46 = arith.constant dense<0.000000e+00> : vector<256x256xf32>
    %94 = tpu.matmul %91, %93, %cst_46 {dimension_numbers = #tpu.dot_dimension_numbers<[1], [0], [0], [1], [0, 0, 1, 1], [], []>} : vector<256x64xbf16>, vector<64x256xbf16>, vector<256x256xf32> -> vector<256x256xf32>
    %95 = arith.addf %73, %94 : vector<256x256xf32>
    %96 = vector.extract_strided_slice %46 {offsets = [0, 128], sizes = [256, 64], strides = [1, 1]} : vector<256x256xbf16> to vector<256x64xbf16>
    %97 = vector.extract_strided_slice %49 {offsets = [128, 0], sizes = [64, 256], strides = [1, 1]} : vector<256x256xbf16> to vector<64x256xbf16>
    %cst_47 = arith.constant dense<0.000000e+00> : vector<256x256xf32>
    %98 = tpu.matmul %96, %97, %cst_47 {dimension_numbers = #tpu.dot_dimension_numbers<[1], [0], [0], [1], [0, 0, 1, 1], [], []>} : vector<256x64xbf16>, vector<64x256xbf16>, vector<256x256xf32> -> vector<256x256xf32>
    %99 = arith.addf %98, %50 : vector<256x256xf32>
    %cst_48 = arith.constant dense<0xFF800000> : vector<256xf32>
    %100 = vector.multi_reduction <maximumf>, %99, %cst_48 [1] : vector<256x256xf32> to vector<256xf32>
    %101 = vector.shape_cast %100 : vector<256xf32> to vector<256x1xf32>
    %102 = vector.broadcast %101 : vector<256x1xf32> to vector<256x256xf32>
    %103 = arith.subf %99, %102 : vector<256x256xf32>
    %104 = math.exp %103 : vector<256x256xf32>
    %cst_49 = arith.constant dense<0.000000e+00> : vector<256xf32>
    %105 = vector.multi_reduction <add>, %104, %cst_49 [1] : vector<256x256xf32> to vector<256xf32>
    %106 = vector.shape_cast %105 : vector<256xf32> to vector<256x1xf32>
    %107 = tpu.reciprocal %106 {approx = true} : vector<256x1xf32> -> vector<256x1xf32>
    %108 = vector.broadcast %107 : vector<256x1xf32> to vector<256x256xf32>
    %109 = arith.mulf %104, %108 : vector<256x256xf32>
    %110 = arith.truncf %109 : vector<256x256xf32> to vector<256x256xbf16>
    %111 = vector.extract_strided_slice %47 {offsets = [0, 128], sizes = [256, 64], strides = [1, 1]} : vector<256x256xbf16> to vector<256x64xbf16>
    %cst_50 = arith.constant dense<0.000000e+00> : vector<256x64xf32>
    %112 = tpu.matmul %110, %111, %cst_50 {dimension_numbers = #tpu.dot_dimension_numbers<[1], [0], [0], [1], [0, 0, 1, 1], [], []>} : vector<256x256xbf16>, vector<256x64xbf16>, vector<256x64xf32> -> vector<256x64xf32>
    %113 = arith.truncf %112 : vector<256x64xf32> to vector<256x64xbf16>
    %c2 = arith.constant 2 : index
    %c0_51 = arith.constant 0 : index
    %c0_52 = arith.constant 0 : index
    %114 = vector.load %arg14[%c2, %c0_51, %c0_52] : memref<4x64x256xbf16, #tpu.memory_space<vmem>>, vector<1x64x256xbf16>
    %115 = vector.shape_cast %114 : vector<1x64x256xbf16> to vector<64x256xbf16>
    %cst_53 = arith.constant dense<0.000000e+00> : vector<256x256xf32>
    %116 = tpu.matmul %113, %115, %cst_53 {dimension_numbers = #tpu.dot_dimension_numbers<[1], [0], [0], [1], [0, 0, 1, 1], [], []>} : vector<256x64xbf16>, vector<64x256xbf16>, vector<256x256xf32> -> vector<256x256xf32>
    %117 = arith.addf %95, %116 : vector<256x256xf32>
    %118 = vector.extract_strided_slice %46 {offsets = [0, 192], sizes = [256, 64], strides = [1, 1]} : vector<256x256xbf16> to vector<256x64xbf16>
    %119 = vector.extract_strided_slice %49 {offsets = [192, 0], sizes = [64, 256], strides = [1, 1]} : vector<256x256xbf16> to vector<64x256xbf16>
    %cst_54 = arith.constant dense<0.000000e+00> : vector<256x256xf32>
    %120 = tpu.matmul %118, %119, %cst_54 {dimension_numbers = #tpu.dot_dimension_numbers<[1], [0], [0], [1], [0, 0, 1, 1], [], []>} : vector<256x64xbf16>, vector<64x256xbf16>, vector<256x256xf32> -> vector<256x256xf32>
    %121 = arith.addf %120, %50 : vector<256x256xf32>
    %cst_55 = arith.constant dense<0xFF800000> : vector<256xf32>
    %122 = vector.multi_reduction <maximumf>, %121, %cst_55 [1] : vector<256x256xf32> to vector<256xf32>
    %123 = vector.shape_cast %122 : vector<256xf32> to vector<256x1xf32>
    %124 = vector.broadcast %123 : vector<256x1xf32> to vector<256x256xf32>
    %125 = arith.subf %121, %124 : vector<256x256xf32>
    %126 = math.exp %125 : vector<256x256xf32>
    %cst_56 = arith.constant dense<0.000000e+00> : vector<256xf32>
    %127 = vector.multi_reduction <add>, %126, %cst_56 [1] : vector<256x256xf32> to vector<256xf32>
    %128 = vector.shape_cast %127 : vector<256xf32> to vector<256x1xf32>
    %129 = tpu.reciprocal %128 {approx = true} : vector<256x1xf32> -> vector<256x1xf32>
    %130 = vector.broadcast %129 : vector<256x1xf32> to vector<256x256xf32>
    %131 = arith.mulf %126, %130 : vector<256x256xf32>
    %132 = arith.truncf %131 : vector<256x256xf32> to vector<256x256xbf16>
    %133 = vector.extract_strided_slice %47 {offsets = [0, 192], sizes = [256, 64], strides = [1, 1]} : vector<256x256xbf16> to vector<256x64xbf16>
    %cst_57 = arith.constant dense<0.000000e+00> : vector<256x64xf32>
    %134 = tpu.matmul %132, %133, %cst_57 {dimension_numbers = #tpu.dot_dimension_numbers<[1], [0], [0], [1], [0, 0, 1, 1], [], []>} : vector<256x256xbf16>, vector<256x64xbf16>, vector<256x64xf32> -> vector<256x64xf32>
    %135 = arith.truncf %134 : vector<256x64xf32> to vector<256x64xbf16>
    %c3 = arith.constant 3 : index
    %c0_58 = arith.constant 0 : index
    %c0_59 = arith.constant 0 : index
    %136 = vector.load %arg14[%c3, %c0_58, %c0_59] : memref<4x64x256xbf16, #tpu.memory_space<vmem>>, vector<1x64x256xbf16>
    %137 = vector.shape_cast %136 : vector<1x64x256xbf16> to vector<64x256xbf16>
    %cst_60 = arith.constant dense<0.000000e+00> : vector<256x256xf32>
    %138 = tpu.matmul %135, %137, %cst_60 {dimension_numbers = #tpu.dot_dimension_numbers<[1], [0], [0], [1], [0, 0, 1, 1], [], []>} : vector<256x64xbf16>, vector<64x256xbf16>, vector<256x256xf32> -> vector<256x256xf32>
    %139 = arith.addf %117, %138 : vector<256x256xf32>
    %140 = arith.addf %29, %139 : vector<256x256xf32>
    %c0_61 = arith.constant 0 : index
    %c0_62 = arith.constant 0 : index
    %141 = vector.load %arg15[%c0_61, %c0_62] : memref<1x256xf32, #tpu.memory_space<vmem>>, vector<1x256xf32>
    %142 = vector.broadcast %141 : vector<1x256xf32> to vector<256x256xf32>
    %143 = arith.addf %140, %142 : vector<256x256xf32>
    %c0_63 = arith.constant 0 : index
    %c0_64 = arith.constant 0 : index
    %144 = vector.load %arg16[%c0_63, %c0_64] : memref<1x256xf32, #tpu.memory_space<vmem>>, vector<1x256xf32>
    %c0_65 = arith.constant 0 : index
    %c0_66 = arith.constant 0 : index
    %145 = vector.load %arg17[%c0_65, %c0_66] : memref<1x256xf32, #tpu.memory_space<vmem>>, vector<1x256xf32>
    %cst_67 = arith.constant dense<0.000000e+00> : vector<256xf32>
    %146 = vector.multi_reduction <add>, %143, %cst_67 [1] : vector<256x256xf32> to vector<256xf32>
    %147 = vector.shape_cast %146 : vector<256xf32> to vector<256x1xf32>
    %cst_68 = arith.constant 2.560000e+02 : f32
    %148 = vector.broadcast %cst_68 : f32 to vector<256x1xf32>
    %149 = arith.divf %147, %148 : vector<256x1xf32>
    %150 = vector.broadcast %149 : vector<256x1xf32> to vector<256x256xf32>
    %151 = arith.subf %143, %150 : vector<256x256xf32>
    %152 = arith.mulf %151, %151 : vector<256x256xf32>
    %cst_69 = arith.constant dense<0.000000e+00> : vector<256xf32>
    %153 = vector.multi_reduction <add>, %152, %cst_69 [1] : vector<256x256xf32> to vector<256xf32>
    %154 = vector.shape_cast %153 : vector<256xf32> to vector<256x1xf32>
    %cst_70 = arith.constant 2.560000e+02 : f32
    %155 = vector.broadcast %cst_70 : f32 to vector<256x1xf32>
    %156 = arith.divf %154, %155 : vector<256x1xf32>
    %157 = vector.broadcast %149 : vector<256x1xf32> to vector<256x256xf32>
    %158 = arith.subf %143, %157 : vector<256x256xf32>
    %cst_71 = arith.constant 9.99999974E-6 : f32
    %159 = vector.broadcast %cst_71 : f32 to vector<256x1xf32>
    %160 = arith.addf %156, %159 : vector<256x1xf32>
    %161 = math.rsqrt %160 : vector<256x1xf32>
    %162 = vector.broadcast %161 : vector<256x1xf32> to vector<256x256xf32>
    %163 = arith.mulf %158, %162 : vector<256x256xf32>
    %164 = vector.broadcast %144 : vector<1x256xf32> to vector<256x256xf32>
    %165 = arith.mulf %163, %164 : vector<256x256xf32>
    %166 = vector.broadcast %145 : vector<1x256xf32> to vector<256x256xf32>
    %167 = arith.addf %165, %166 : vector<256x256xf32>
    %168 = arith.truncf %167 : vector<256x256xf32> to vector<256x256xbf16>
    %c0_72 = arith.constant 0 : index
    %c0_73 = arith.constant 0 : index
    %169 = vector.load %arg18[%c0_72, %c0_73] : memref<256x512xbf16, #tpu.memory_space<vmem>>, vector<256x512xbf16>
    %cst_74 = arith.constant dense<0.000000e+00> : vector<256x512xf32>
    %170 = tpu.matmul %168, %169, %cst_74 {dimension_numbers = #tpu.dot_dimension_numbers<[1], [0], [0], [1], [0, 0, 1, 1], [], []>} : vector<256x256xbf16>, vector<256x512xbf16>, vector<256x512xf32> -> vector<256x512xf32>
    %c0_75 = arith.constant 0 : index
    %c0_76 = arith.constant 0 : index
    %171 = vector.load %arg19[%c0_75, %c0_76] : memref<1x512xf32, #tpu.memory_space<vmem>>, vector<1x512xf32>
    %172 = vector.broadcast %171 : vector<1x512xf32> to vector<256x512xf32>
    %173 = arith.addf %170, %172 : vector<256x512xf32>
    %174 = arith.truncf %173 : vector<256x512xf32> to vector<256x512xbf16>
    %cst_77 = arith.constant 5.000000e-01 : bf16
    %175 = vector.broadcast %cst_77 : bf16 to vector<256x512xbf16>
    %176 = arith.mulf %175, %174 : vector<256x512xbf16>
    %cst_78 = arith.constant 4.467770e-02 : bf16
    %177 = vector.broadcast %cst_78 : bf16 to vector<256x512xbf16>
    %178 = arith.mulf %177, %174 : vector<256x512xbf16>
    %179 = arith.mulf %178, %174 : vector<256x512xbf16>
    %180 = arith.mulf %179, %174 : vector<256x512xbf16>
    %181 = arith.addf %174, %180 : vector<256x512xbf16>
    %cst_79 = arith.constant 7.968750e-01 : bf16
    %182 = vector.broadcast %cst_79 : bf16 to vector<256x512xbf16>
    %183 = arith.mulf %182, %181 : vector<256x512xbf16>
    %184 = math.tanh %183 : vector<256x512xbf16>
    %cst_80 = arith.constant 1.000000e+00 : bf16
    %185 = vector.broadcast %cst_80 : bf16 to vector<256x512xbf16>
    %186 = arith.addf %185, %184 : vector<256x512xbf16>
    %187 = arith.mulf %176, %186 : vector<256x512xbf16>
    %c0_81 = arith.constant 0 : index
    %c0_82 = arith.constant 0 : index
    %188 = vector.load %arg20[%c0_81, %c0_82] : memref<512x256xbf16, #tpu.memory_space<vmem>>, vector<512x256xbf16>
    %cst_83 = arith.constant dense<0.000000e+00> : vector<256x256xf32>
    %189 = tpu.matmul %187, %188, %cst_83 {dimension_numbers = #tpu.dot_dimension_numbers<[1], [0], [0], [1], [0, 0, 1, 1], [], []>} : vector<256x512xbf16>, vector<512x256xbf16>, vector<256x256xf32> -> vector<256x256xf32>
    %190 = arith.addf %143, %189 : vector<256x256xf32>
    %c0_84 = arith.constant 0 : index
    %c0_85 = arith.constant 0 : index
    %191 = vector.load %arg21[%c0_84, %c0_85] : memref<1x256xf32, #tpu.memory_space<vmem>>, vector<1x256xf32>
    %192 = vector.broadcast %191 : vector<1x256xf32> to vector<256x256xf32>
    %193 = arith.addf %190, %192 : vector<256x256xf32>
    %c0_86 = arith.constant 0 : index
    %c0_87 = arith.constant 0 : index
    %194 = vector.load %arg3[%c0_86, %c0_87] : memref<16x256xbf16, #tpu.memory_space<vmem>>, vector<16x256xbf16>
    %195 = arith.truncf %193 : vector<256x256xf32> to vector<256x256xbf16>
    %cst_88 = arith.constant dense<0.000000e+00> : vector<16x256xf32>
    %196 = tpu.matmul %194, %195, %cst_88 {dimension_numbers = #tpu.dot_dimension_numbers<[1], [0], [0], [1], [0, 0, 1, 1], [], []>} : vector<16x256xbf16>, vector<256x256xbf16>, vector<16x256xf32> -> vector<16x256xf32>
    %c0_89 = arith.constant 0 : index
    %c0_90 = arith.constant 0 : index
    %197 = vector.load %arg22[%c0_89, %c0_90] : memref<16x256xf32, #tpu.memory_space<vmem>>, vector<16x256xf32>
    tpu.vector_store %arg22[%c0_89, %c0_90], %196 {strides = array<i32>} : memref<16x256xf32, #tpu.memory_space<vmem>>, vector<16x256xf32>,
    return
  }
  func.func @transform_0(%arg0: i32) -> (i32, i32) {
    %c0_i32 = arith.constant 0 : i32
    %c0_i32_0 = arith.constant 0 : i32
    return %arg0, %c0_i32 : i32, i32
  }
  func.func @transform_1(%arg0: i32) -> (i32, i32) {
    %c0_i32 = arith.constant 0 : i32
    %c0_i32_0 = arith.constant 0 : i32
    %c0_i32_1 = arith.constant 0 : i32
    return %c0_i32, %c0_i32_0 : i32, i32
  }
  func.func @transform_2(%arg0: i32) -> (i32, i32) {
    %c0_i32 = arith.constant 0 : i32
    %c0_i32_0 = arith.constant 0 : i32
    %c0_i32_1 = arith.constant 0 : i32
    return %c0_i32, %c0_i32_0 : i32, i32
  }
  func.func @transform_3(%arg0: i32) -> (i32, i32) {
    %c0_i32 = arith.constant 0 : i32
    %c0_i32_0 = arith.constant 0 : i32
    %c0_i32_1 = arith.constant 0 : i32
    return %c0_i32, %c0_i32_0 : i32, i32
  }
  func.func @transform_4(%arg0: i32) -> (i32, i32) {
    %c0_i32 = arith.constant 0 : i32
    %c0_i32_0 = arith.constant 0 : i32
    %c0_i32_1 = arith.constant 0 : i32
    return %c0_i32, %c0_i32_0 : i32, i32
  }
  func.func @transform_5(%arg0: i32) -> (i32, i32) {
    %c0_i32 = arith.constant 0 : i32
    %c0_i32_0 = arith.constant 0 : i32
    %c0_i32_1 = arith.constant 0 : i32
    return %c0_i32, %c0_i32_0 : i32, i32
  }
  func.func @transform_6(%arg0: i32) -> (i32, i32) {
    %c0_i32 = arith.constant 0 : i32
    %c0_i32_0 = arith.constant 0 : i32
    %c0_i32_1 = arith.constant 0 : i32
    return %c0_i32, %c0_i32_0 : i32, i32
  }
  func.func @transform_7(%arg0: i32) -> (i32, i32) {
    %c0_i32 = arith.constant 0 : i32
    %c0_i32_0 = arith.constant 0 : i32
    %c0_i32_1 = arith.constant 0 : i32
    return %c0_i32, %c0_i32_0 : i32, i32
  }
  func.func @transform_8(%arg0: i32) -> (i32, i32) {
    %c0_i32 = arith.constant 0 : i32
    %c0_i32_0 = arith.constant 0 : i32
    %c0_i32_1 = arith.constant 0 : i32
    return %c0_i32, %c0_i32_0 : i32, i32
  }
  func.func @transform_9(%arg0: i32) -> (i32, i32) {
    %c0_i32 = arith.constant 0 : i32
    %c0_i32_0 = arith.constant 0 : i32
    %c0_i32_1 = arith.constant 0 : i32
    return %c0_i32, %c0_i32_0 : i32, i32
  }
  func.func @transform_10(%arg0: i32) -> (i32, i32) {
    %c0_i32 = arith.constant 0 : i32
    %c0_i32_0 = arith.constant 0 : i32
    %c0_i32_1 = arith.constant 0 : i32
    return %c0_i32, %c0_i32_0 : i32, i32
  }
  func.func @transform_11(%arg0: i32) -> (i32, i32) {
    %c0_i32 = arith.constant 0 : i32
    %c0_i32_0 = arith.constant 0 : i32
    %c0_i32_1 = arith.constant 0 : i32
    return %c0_i32, %c0_i32_0 : i32, i32
  }
  func.func @transform_12(%arg0: i32) -> (i32, i32) {
    %c0_i32 = arith.constant 0 : i32
    %c0_i32_0 = arith.constant 0 : i32
    %c0_i32_1 = arith.constant 0 : i32
    return %c0_i32, %c0_i32_0 : i32, i32
  }
  func.func @transform_13(%arg0: i32) -> (i32, i32, i32) {
    %c0_i32 = arith.constant 0 : i32
    %c0_i32_0 = arith.constant 0 : i32
    %c0_i32_1 = arith.constant 0 : i32
    %c0_i32_2 = arith.constant 0 : i32
    return %c0_i32, %c0_i32_0, %c0_i32_1 : i32, i32, i32
  }
  func.func @transform_14(%arg0: i32) -> (i32, i32) {
    %c0_i32 = arith.constant 0 : i32
    %c0_i32_0 = arith.constant 0 : i32
    %c0_i32_1 = arith.constant 0 : i32
    return %c0_i32, %c0_i32_0 : i32, i32
  }
  func.func @transform_15(%arg0: i32) -> (i32, i32) {
    %c0_i32 = arith.constant 0 : i32
    %c0_i32_0 = arith.constant 0 : i32
    %c0_i32_1 = arith.constant 0 : i32
    return %c0_i32, %c0_i32_0 : i32, i32
  }
  func.func @transform_16(%arg0: i32) -> (i32, i32) {
    %c0_i32 = arith.constant 0 : i32
    %c0_i32_0 = arith.constant 0 : i32
    %c0_i32_1 = arith.constant 0 : i32
    return %c0_i32, %c0_i32_0 : i32, i32
  }
  func.func @transform_17(%arg0: i32) -> (i32, i32) {
    %c0_i32 = arith.constant 0 : i32
    %c0_i32_0 = arith.constant 0 : i32
    %c0_i32_1 = arith.constant 0 : i32
    return %c0_i32, %c0_i32_0 : i32, i32
  }
  func.func @transform_18(%arg0: i32) -> (i32, i32) {
    %c0_i32 = arith.constant 0 : i32
    %c0_i32_0 = arith.constant 0 : i32
    %c0_i32_1 = arith.constant 0 : i32
    return %c0_i32, %c0_i32_0 : i32, i32
  }
  func.func @transform_19(%arg0: i32) -> (i32, i32) {
    %c0_i32 = arith.constant 0 : i32
    %c0_i32_0 = arith.constant 0 : i32
    %c0_i32_1 = arith.constant 0 : i32
    return %c0_i32, %c0_i32_0 : i32, i32
  }
  func.func @transform_20(%arg0: i32) -> (i32, i32) {
    %c0_i32 = arith.constant 0 : i32
    %c0_i32_0 = arith.constant 0 : i32
    %c0_i32_1 = arith.constant 0 : i32
    return %c0_i32, %c0_i32_0 : i32, i32
  }
  func.func @transform_21(%arg0: i32) -> (i32, i32) {
    %c0_i32 = arith.constant 0 : i32
    %c0_i32_0 = arith.constant 0 : i32
    return %arg0, %c0_i32 : i32, i32
  }
}

</mosaic_0001>

<llo_original>
// kernel: _forward.1
$region0: #{_forward.1}
  #allocation0 [shape = 'u32[]', space=smem, size = 0x4, offset = 0x4, fixed_abs, tag = 'smem constant byte address 0x4 - core index']
  #allocation1 [shape = 'u32[144,128]{1,0:T(1,128)}', space=vmem, size = 0x12000, scoped, tag = 'internal scratch']
  %s0 = inlined_call_operand.vmem [shape: bf16[256,64], index: 0, kind: input, shape index: {}]
  %s1 = inlined_call_operand.vmem [shape: f32[256,256], index: 1, kind: input, shape index: {}]
  %s2 = inlined_call_operand.vmem [shape: bf16[16,256], index: 2, kind: input, shape index: {}]
  %s3 = inlined_call_operand.vmem [shape: bf16[64,256], index: 3, kind: input, shape index: {}]
  %s4 = inlined_call_operand.vmem [shape: f32[1,256], index: 4, kind: input, shape index: {}]
  %s5 = inlined_call_operand.vmem [shape: f32[1,256], index: 5, kind: input, shape index: {}]
  %s6 = inlined_call_operand.vmem [shape: f32[1,256], index: 6, kind: input, shape index: {}]
  %s7 = inlined_call_operand.vmem [shape: bf16[256,256], index: 7, kind: input, shape index: {}]
  %s8 = inlined_call_operand.vmem [shape: f32[1,256], index: 8, kind: input, shape index: {}]
  %s9 = inlined_call_operand.vmem [shape: bf16[256,256], index: 9, kind: input, shape index: {}]
  %s10 = inlined_call_operand.vmem [shape: f32[1,256], index: 10, kind: input, shape index: {}]
  %s11 = inlined_call_operand.vmem [shape: bf16[256,256], index: 11, kind: input, shape index: {}]
  %s12 = inlined_call_operand.vmem [shape: f32[1,256], index: 12, kind: input, shape index: {}]
  %s13 = inlined_call_operand.vmem [shape: bf16[4,64,256], index: 13, kind: input, shape index: {}]
  %s14 = inlined_call_operand.vmem [shape: f32[1,256], index: 14, kind: input, shape index: {}]
  %s15 = inlined_call_operand.vmem [shape: f32[1,256], index: 15, kind: input, shape index: {}]
  %s16 = inlined_call_operand.vmem [shape: f32[1,256], index: 16, kind: input, shape index: {}]
  %s17 = inlined_call_operand.vmem [shape: bf16[256,512], index: 17, kind: input, shape index: {}]
  %s18 = inlined_call_operand.vmem [shape: f32[1,512], index: 18, kind: input, shape index: {}]
  %s19 = inlined_call_operand.vmem [shape: bf16[512,256], index: 19, kind: input, shape index: {}]
  %s20 = inlined_call_operand.vmem [shape: f32[1,256], index: 20, kind: input, shape index: {}]
  %s21 = inlined_call_operand.vmem [shape: f32[16,256], index: 21, kind: output, shape index: {}]
  %s22 = sld [smem:[#allocation0]]
  $region94: #{_forward.1} parent=0
    _
  %s24 = ssub.s32 1, %s22
  %s25 = scalar_select 0, %s24, %s22
  // Predicated region
  $region2: #{_forward.1} parent=0 // pred_check
    _
  $region3: #{_forward.1} parent=0 // pred_check_branch
    %27 = sbr.rel (0) target = $region5
  $region4: #{_forward.1} parent=0 // pred_region
    _
  $region5: #{_forward.1} parent=0 // pred_fallthru
    _
  // Predicated region
  $region6: #{_forward.1} parent=0 // pred_check
    _
  $region7: #{_forward.1} parent=0 // pred_check_branch
    %29 = sbr.rel (0) target = $region9
  $region8: #{_forward.1} parent=0 // pred_region
    _
  $region9: #{_forward.1} parent=0 // pred_fallthru
    _
  // Predicated region
  $region10: #{_forward.1} parent=0 // pred_check
    _
  $region11: #{_forward.1} parent=0 // pred_check_branch
    %31 = sbr.rel (0) target = $region13
  $region12: #{_forward.1} parent=0 // pred_region
    _
  $region13: #{_forward.1} parent=0 // pred_fallthru
    _
  // Predicated region
  $region14: #{_forward.1} parent=0 // pred_check
    _
  $region15: #{_forward.1} parent=0 // pred_check_branch
    %33 = sbr.rel (0) target = $region17
  $region16: #{_forward.1} parent=0 // pred_region
    _
  $region17: #{_forward.1} parent=0 // pred_fallthru
    _
  // Predicated region
  $region18: #{_forward.1} parent=0 // pred_check
    _
  $region19: #{_forward.1} parent=0 // pred_check_branch
    %35 = sbr.rel (0) target = $region21
  $region20: #{_forward.1} parent=0 // pred_region
    _
  $region21: #{_forward.1} parent=0 // pred_fallthru
    _
  // Predicated region
  $region22: #{_forward.1} parent=0 // pred_check
    _
  $region23: #{_forward.1} parent=0 // pred_check_branch
    %37 = sbr.rel (0) target = $region25
  $region24: #{_forward.1} parent=0 // pred_region
    _
  $region25: #{_forward.1} parent=0 // pred_fallthru
    _
  // Predicated region
  $region26: #{_forward.1} parent=0 // pred_check
    _
  $region27: #{_forward.1} parent=0 // pred_check_branch
    %39 = sbr.rel (0) target = $region29
  $region28: #{_forward.1} parent=0 // pred_region
    _
  $region29: #{_forward.1} parent=0 // pred_fallthru
    _
  // Predicated region
  $region30: #{_forward.1} parent=0 // pred_check
    _
  $region31: #{_forward.1} parent=0 // pred_check_branch
    %41 = sbr.rel (0) target = $region33
  $region32: #{_forward.1} parent=0 // pred_region
    _
  $region33: #{_forward.1} parent=0 // pred_fallthru
    _
  // Predicated region
  $region34: #{_forward.1} parent=0 // pred_check
    _
  $region35: #{_forward.1} parent=0 // pred_check_branch
    %43 = sbr.rel (0) target = $region37
  $region36: #{_forward.1} parent=0 // pred_region
    _
  $region37: #{_forward.1} parent=0 // pred_fallthru
    _
  // Predicated region
  $region38: #{_forward.1} parent=0 // pred_check
    _
  $region39: #{_forward.1} parent=0 // pred_check_branch
    %45 = sbr.rel (0) target = $region41
  $region40: #{_forward.1} parent=0 // pred_region
    _
  $region41: #{_forward.1} parent=0 // pred_fallthru
    _
  // Predicated region
  $region42: #{_forward.1} parent=0 // pred_check
    _
  $region43: #{_forward.1} parent=0 // pred_check_branch
    %47 = sbr.rel (0) target = $region45
  $region44: #{_forward.1} parent=0 // pred_region
    _
  $region45: #{_forward.1} parent=0 // pred_fallthru
    _
  // Predicated region
  $region46: #{_forward.1} parent=0 // pred_check
    _
  $region47: #{_forward.1} parent=0 // pred_check_branch
    %49 = sbr.rel (0) target = $region49
  $region48: #{_forward.1} parent=0 // pred_region
    _
  $region49: #{_forward.1} parent=0 // pred_fallthru
    _
  // Predicated region
  $region50: #{_forward.1} parent=0 // pred_check
    _
  $region51: #{_forward.1} parent=0 // pred_check_branch
    %51 = sbr.rel (0) target = $region53
  $region52: #{_forward.1} parent=0 // pred_region
    _
  $region53: #{_forward.1} parent=0 // pred_fallthru
    _
  // Predicated region
  $region54: #{_forward.1} parent=0 // pred_check
    _
  $region55: #{_forward.1} parent=0 // pred_check_branch
    %53 = sbr.rel (0) target = $region57
  $region56: #{_forward.1} parent=0 // pred_region
    _
  $region57: #{_forward.1} parent=0 // pred_fallthru
    _
  // Predicated region
  $region58: #{_forward.1} parent=0 // pred_check
    _
  $region59: #{_forward.1} parent=0 // pred_check_branch
    %55 = sbr.rel (0) target = $region61
  $region60: #{_forward.1} parent=0 // pred_region
    _
  $region61: #{_forward.1} parent=0 // pred_fallthru
    _
  // Predicated region
  $region62: #{_forward.1} parent=0 // pred_check
    _
  $region63: #{_forward.1} parent=0 // pred_check_branch
    %57 = sbr.rel (0) target = $region65
  $region64: #{_forward.1} parent=0 // pred_region
    _
  $region65: #{_forward.1} parent=0 // pred_fallthru
    _
  // Predicated region
  $region66: #{_forward.1} parent=0 // pred_check
    _
  $region67: #{_forward.1} parent=0 // pred_check_branch
    %59 = sbr.rel (0) target = $region69
  $region68: #{_forward.1} parent=0 // pred_region
    _
  $region69: #{_forward.1} parent=0 // pred_fallthru
    _
  // Predicated region
  $region70: #{_forward.1} parent=0 // pred_check
    _
  $region71: #{_forward.1} parent=0 // pred_check_branch
    %61 = sbr.rel (0) target = $region73
  $region72: #{_forward.1} parent=0 // pred_region
    _
  $region73: #{_forward.1} parent=0 // pred_fallthru
    _
  // Predicated region
  $region74: #{_forward.1} parent=0 // pred_check
    _
  $region75: #{_forward.1} parent=0 // pred_check_branch
    %63 = sbr.rel (0) target = $region77
  $region76: #{_forward.1} parent=0 // pred_region
    _
  $region77: #{_forward.1} parent=0 // pred_fallthru
    _
  // Predicated region
  $region78: #{_forward.1} parent=0 // pred_check
    _
  $region79: #{_forward.1} parent=0 // pred_check_branch
    %65 = sbr.rel (0) target = $region81
  $region80: #{_forward.1} parent=0 // pred_region
    _
  $region81: #{_forward.1} parent=0 // pred_fallthru
    _
  // Predicated region
  $region82: #{_forward.1} parent=0 // pred_check
    _
  $region83: #{_forward.1} parent=0 // pred_check_branch
    %67 = sbr.rel (0) target = $region85
  $region84: #{_forward.1} parent=0 // pred_region
    _
  $region85: #{_forward.1} parent=0 // pred_fallthru
    _
  %v73 = vld [vmem:[%s0] sm:$0xf]
  %v74 = vld [vmem:[%s0 + $0x4] sm:$0xf]
  %v75 = vld [vmem:[%s0 + $0x8] sm:$0xf]
  %v76 = vld [vmem:[%s0 + $0xc] sm:$0xf]
  %v77 = vld [vmem:[%s0 + $0x10] sm:$0xf]
  %v78 = vld [vmem:[%s0 + $0x14] sm:$0xf]
  %v79 = vld [vmem:[%s0 + $0x18] sm:$0xf]
  %v80 = vld [vmem:[%s0 + $0x1c] sm:$0xf]
  %v81 = vld [vmem:[%s0 + $0x20] sm:$0xf]
  %v82 = vld [vmem:[%s0 + $0x24] sm:$0xf]
  %v83 = vld [vmem:[%s0 + $0x28] sm:$0xf]
  %v84 = vld [vmem:[%s0 + $0x2c] sm:$0xf]
  %v85 = vld [vmem:[%s0 + $0x30] sm:$0xf]
  %v86 = vld [vmem:[%s0 + $0x34] sm:$0xf]
  %v87 = vld [vmem:[%s0 + $0x38] sm:$0xf]
  %v88 = vld [vmem:[%s0 + $0x3c] sm:$0xf]
  %v89 = vld [vmem:[%s0 + $0x40] sm:$0xf]
  %v90 = vld [vmem:[%s0 + $0x44] sm:$0xf]
  %v91 = vld [vmem:[%s0 + $0x48] sm:$0xf]
  %v92 = vld [vmem:[%s0 + $0x4c] sm:$0xf]
  %v93 = vld [vmem:[%s0 + $0x50] sm:$0xf]
  %v94 = vld [vmem:[%s0 + $0x54] sm:$0xf]
  %v95 = vld [vmem:[%s0 + $0x58] sm:$0xf]
  %v96 = vld [vmem:[%s0 + $0x5c] sm:$0xf]
  %v97 = vld [vmem:[%s0 + $0x60] sm:$0xf]
  %v98 = vld [vmem:[%s0 + $0x64] sm:$0xf]
  %v99 = vld [vmem:[%s0 + $0x68] sm:$0xf]
  %v100 = vld [vmem:[%s0 + $0x6c] sm:$0xf]
  %v101 = vld [vmem:[%s0 + $0x70] sm:$0xf]
  %v102 = vld [vmem:[%s0 + $0x74] sm:$0xf]
  %v103 = vld [vmem:[%s0 + $0x78] sm:$0xf]
  %v104 = vld [vmem:[%s0 + $0x7c] sm:$0xf]
  %v105 = vld [vmem:[%s3] sm:$0xff]
  %v106 = vld [vmem:[%s3 + $0x8] sm:$0xff]
  %v107 = vld [vmem:[%s3 + $0x10] sm:$0xff]
  %v108 = vld [vmem:[%s3 + $0x18] sm:$0xff]
  %v109 = vld [vmem:[%s3 + $0x20] sm:$0xff]
  %v110 = vld [vmem:[%s3 + $0x28] sm:$0xff]
  %v111 = vld [vmem:[%s3 + $0x30] sm:$0xff]
  %v112 = vld [vmem:[%s3 + $0x38] sm:$0xff]
  %v113 = vld [vmem:[%s4] sm:$0x3]
  %v115 = vlaneseq
  %v116 = vshrl.u32 %v115, 7
  %v117 = vsub.s32 0, %v116
  %v118 = vrot.slane %v113, %v117
  %v119 = vlaneseq
  %v120 = vshrl.u32 %v119, 7
  %v121 = vsub.s32 1, %v120
  %v122 = vrot.slane %v113, %v121
  %v157 = vunpack.c.l.b16 %v73
  %v158 = vunpack.c.l.b16 %v74
  %v159 = vunpack.c.l.b16 %v75
  %v160 = vunpack.c.l.b16 %v76
  %v161 = vunpack.c.l.b16 %v77
  %v162 = vunpack.c.l.b16 %v78
  %v163 = vunpack.c.l.b16 %v79
  %v164 = vunpack.c.l.b16 %v80
  %v165 = vunpack.c.l.b16 %v81
  %v166 = vunpack.c.l.b16 %v82
  %v167 = vunpack.c.l.b16 %v83
  %v168 = vunpack.c.l.b16 %v84
  %v169 = vunpack.c.l.b16 %v85
  %v170 = vunpack.c.l.b16 %v86
  %v171 = vunpack.c.l.b16 %v87
  %v172 = vunpack.c.l.b16 %v88
  %v173 = vunpack.c.l.b16 %v89
  %v174 = vunpack.c.l.b16 %v90
  %v175 = vunpack.c.l.b16 %v91
  %v176 = vunpack.c.l.b16 %v92
  %v177 = vunpack.c.l.b16 %v93
  %v178 = vunpack.c.l.b16 %v94
  %v179 = vunpack.c.l.b16 %v95
  %v180 = vunpack.c.l.b16 %v96
  %v181 = vunpack.c.l.b16 %v97
  %v182 = vunpack.c.l.b16 %v98
  %v183 = vunpack.c.l.b16 %v99
  %v184 = vunpack.c.l.b16 %v100
  %v185 = vunpack.c.l.b16 %v101
  %v186 = vunpack.c.l.b16 %v102
  %v187 = vunpack.c.l.b16 %v103
  %v188 = vunpack.c.l.b16 %v104
  %v189 = vpack.c.b16 %v158, %v157
  %v190 = vpack.c.b16 %v160, %v159
  %v191 = vpack.c.b16 %v162, %v161
  %v192 = vpack.c.b16 %v164, %v163
  %v193 = vpack.c.b16 %v166, %v165
  %v194 = vpack.c.b16 %v168, %v167
  %v195 = vpack.c.b16 %v170, %v169
  %v196 = vpack.c.b16 %v172, %v171
  %v197 = vpack.c.b16 %v174, %v173
  %v198 = vpack.c.b16 %v176, %v175
  %v199 = vpack.c.b16 %v178, %v177
  %v200 = vpack.c.b16 %v180, %v179
  %v201 = vpack.c.b16 %v182, %v181
  %v202 = vpack.c.b16 %v184, %v183
  %v203 = vpack.c.b16 %v186, %v185
  %v204 = vpack.c.b16 %v188, %v187
  %v213 = vunpack.c.l.b16 %v105
  %v214 = vunpack.c.h.b16 %v105
  %v215 = vunpack.c.l.b16 %v106
  %v216 = vunpack.c.h.b16 %v106
  %v217 = vunpack.c.l.b16 %v107
  %v218 = vunpack.c.h.b16 %v107
  %v219 = vunpack.c.l.b16 %v108
  %v220 = vunpack.c.h.b16 %v108
  %v221 = vunpack.c.l.b16 %v109
  %v222 = vunpack.c.h.b16 %v109
  %v223 = vunpack.c.l.b16 %v110
  %v224 = vunpack.c.h.b16 %v110
  %v225 = vunpack.c.l.b16 %v111
  %v226 = vunpack.c.h.b16 %v111
  %v227 = vunpack.c.l.b16 %v112
  %v228 = vunpack.c.h.b16 %v112
  %v229 = vpack.c.b16 %v215, %v213
  %v230 = vpack.c.b16 %v216, %v214
  %v231 = vpack.c.b16 %v219, %v217
  %v232 = vpack.c.b16 %v220, %v218
  %v233 = vpack.c.b16 %v223, %v221
  %v234 = vpack.c.b16 %v224, %v222
  %v235 = vpack.c.b16 %v227, %v225
  %v236 = vpack.c.b16 %v228, %v226
  %vm245 = vcmask 523264
  %v247 = vsel %vm245, %v189, 0
  %v250 = vsel %vm245, %v190, 0
  %v253 = vsel %vm245, %v191, 0
  %v256 = vsel %vm245, %v192, 0
  %v259 = vsel %vm245, %v193, 0
  %v262 = vsel %vm245, %v194, 0
  %v265 = vsel %vm245, %v195, 0
  %v268 = vsel %vm245, %v196, 0
  %v271 = vsel %vm245, %v197, 0
  %v274 = vsel %vm245, %v198, 0
  %v277 = vsel %vm245, %v199, 0
  %v280 = vsel %vm245, %v200, 0
  %v283 = vsel %vm245, %v201, 0
  %v286 = vsel %vm245, %v202, 0
  %v289 = vsel %vm245, %v203, 0
  %v292 = vsel %vm245, %v204, 0
  %294 = vmatprep.subr.bf16.mxu0 %v230
  %295 = vmatpush1.bf16.msra.mxu0 %v229
  %296 = vmatprep.subr.bf16.mxu0 %v232
  %297 = vmatpush1.bf16.msra.mxu0 %v231
  %298 = vmatprep.subr.bf16.mxu0 %v234
  %299 = vmatpush1.bf16.msra.mxu0 %v233
  %300 = vmatprep.subr.bf16.mxu0 %v236
  %301 = vmatpush1.bf16.msra.mxu0 %v235
  %302 = vmatprep.subr.bf16.mxu0 0
  %303 = vmatpush1.bf16.msra.mxu0 0
  %304 = vmatprep.subr.bf16.mxu0 0
  %305 = vmatpush1.bf16.msra.mxu0 0
  %306 = vmatprep.subr.bf16.mxu0 0
  %307 = vmatpush1.bf16.msra.mxu0 0
  %308 = vmatprep.subr.bf16.mxu0 0
  %309 = vmatpush1.bf16.msra.mxu0 0
  %310 = vmatprep.subr.bf16.mxu0 0
  %311 = vmatpush1.bf16.msra.mxu0 0
  %312 = vmatprep.subr.bf16.mxu0 0
  %313 = vmatpush1.bf16.msra.mxu0 0
  %314 = vmatprep.subr.bf16.mxu0 0
  %315 = vmatpush1.bf16.msra.mxu0 0
  %316 = vmatprep.subr.bf16.mxu0 0
  %317 = vmatpush1.bf16.msra.mxu0 0
  %318 = vmatprep.subr.bf16.mxu0 0
  %319 = vmatpush1.bf16.msra.mxu0 0
  %320 = vmatprep.subr.bf16.mxu0 0
  %321 = vmatpush1.bf16.msra.mxu0 0
  %322 = vmatprep.subr.bf16.mxu0 0
  %323 = vmatpush1.bf16.msra.mxu0 0
  %324 = vmatprep.subr.bf16.mxu0 0
  %325 = vmatpush1.bf16.msra.mxu0 0
  %326 = vmatprep.mubr.bf16.mxu0 0
  %327 = vmatmul.mubr.bf16.gmra.mrb[0].mxu0 %v247
  %v328 = vpop.f32.mrb[0].mxu0
  %v329 = vadd.f32 %v118, %v328
  %v330 = vpop.f32.mrb[0].mxu0
  %v331 = vadd.f32 %v122, %v330
  %v332 = vpop.f32.mrb[0].mxu0
  %v333 = vadd.f32 %v118, %v332
  %v334 = vpop.f32.mrb[0].mxu0
  %v335 = vadd.f32 %v122, %v334
  %336 = vmatprep.mubr.bf16.mxu0 0
  %337 = vmatmul.mubr.bf16.gmra.mrb[0].mxu0 %v250
  %v338 = vpop.f32.mrb[0].mxu0
  %v339 = vadd.f32 %v118, %v338
  %v340 = vpop.f32.mrb[0].mxu0
  %v341 = vadd.f32 %v122, %v340
  %v342 = vpop.f32.mrb[0].mxu0
  %v343 = vadd.f32 %v118, %v342
  %v344 = vpop.f32.mrb[0].mxu0
  %v345 = vadd.f32 %v122, %v344
  %346 = vmatprep.mubr.bf16.mxu0 0
  %347 = vmatmul.mubr.bf16.gmra.mrb[0].mxu0 %v253
  %v348 = vpop.f32.mrb[0].mxu0
  %v349 = vadd.f32 %v118, %v348
  %v350 = vpop.f32.mrb[0].mxu0
  %v351 = vadd.f32 %v122, %v350
  %v352 = vpop.f32.mrb[0].mxu0
  %v353 = vadd.f32 %v118, %v352
  %v354 = vpop.f32.mrb[0].mxu0
  %v355 = vadd.f32 %v122, %v354
  %356 = vmatprep.mubr.bf16.mxu0 0
  %357 = vmatmul.mubr.bf16.gmra.mrb[0].mxu0 %v256
  %v358 = vpop.f32.mrb[0].mxu0
  %v359 = vadd.f32 %v118, %v358
  %v360 = vpop.f32.mrb[0].mxu0
  %v361 = vadd.f32 %v122, %v360
  %v362 = vpop.f32.mrb[0].mxu0
  %v363 = vadd.f32 %v118, %v362
  %v364 = vpop.f32.mrb[0].mxu0
  %v365 = vadd.f32 %v122, %v364
  %366 = vmatprep.mubr.bf16.mxu0 0
  %367 = vmatmul.mubr.bf16.gmra.mrb[0].mxu0 %v259
  %v368 = vpop.f32.mrb[0].mxu0
  %v369 = vadd.f32 %v118, %v368
  %v370 = vpop.f32.mrb[0].mxu0
  %v371 = vadd.f32 %v122, %v370
  %v372 = vpop.f32.mrb[0].mxu0
  %v373 = vadd.f32 %v118, %v372
  %v374 = vpop.f32.mrb[0].mxu0
  %v375 = vadd.f32 %v122, %v374
  %376 = vmatprep.mubr.bf16.mxu0 0
  %377 = vmatmul.mubr.bf16.gmra.mrb[0].mxu0 %v262
  %v378 = vpop.f32.mrb[0].mxu0
  %v379 = vadd.f32 %v118, %v378
  %v380 = vpop.f32.mrb[0].mxu0
  %v381 = vadd.f32 %v122, %v380
  %v382 = vpop.f32.mrb[0].mxu0
  %v383 = vadd.f32 %v118, %v382
  %v384 = vpop.f32.mrb[0].mxu0
  %v385 = vadd.f32 %v122, %v384
  %386 = vmatprep.mubr.bf16.mxu0 0
  %387 = vmatmul.mubr.bf16.gmra.mrb[0].mxu0 %v265
  %v388 = vpop.f32.mrb[0].mxu0
  %v389 = vadd.f32 %v118, %v388
  %v390 = vpop.f32.mrb[0].mxu0
  %v391 = vadd.f32 %v122, %v390
  %v392 = vpop.f32.mrb[0].mxu0
  %v393 = vadd.f32 %v118, %v392
  %v394 = vpop.f32.mrb[0].mxu0
  %v395 = vadd.f32 %v122, %v394
  %396 = vmatprep.mubr.bf16.mxu0 0
  %397 = vmatmul.mubr.bf16.gmra.mrb[0].mxu0 %v268
  %v398 = vpop.f32.mrb[0].mxu0
  %v399 = vadd.f32 %v118, %v398
  %v400 = vpop.f32.mrb[0].mxu0
  %v401 = vadd.f32 %v122, %v400
  %v402 = vpop.f32.mrb[0].mxu0
  %v403 = vadd.f32 %v118, %v402
  %v404 = vpop.f32.mrb[0].mxu0
  %v405 = vadd.f32 %v122, %v404
  %406 = vmatprep.mubr.bf16.mxu0 0
  %407 = vmatmul.mubr.bf16.gmra.mrb[0].mxu0 %v271
  %v408 = vpop.f32.mrb[0].mxu0
  %v409 = vadd.f32 %v118, %v408
  %v410 = vpop.f32.mrb[0].mxu0
  %v411 = vadd.f32 %v122, %v410
  %v412 = vpop.f32.mrb[0].mxu0
  %v413 = vadd.f32 %v118, %v412
  %v414 = vpop.f32.mrb[0].mxu0
  %v415 = vadd.f32 %v122, %v414
  %416 = vmatprep.mubr.bf16.mxu0 0
  %417 = vmatmul.mubr.bf16.gmra.mrb[0].mxu0 %v274
  %v418 = vpop.f32.mrb[0].mxu0
  %v419 = vadd.f32 %v118, %v418
  %v420 = vpop.f32.mrb[0].mxu0
  %v421 = vadd.f32 %v122, %v420
  %v422 = vpop.f32.mrb[0].mxu0
  %v423 = vadd.f32 %v118, %v422
  %v424 = vpop.f32.mrb[0].mxu0
  %v425 = vadd.f32 %v122, %v424
  %426 = vmatprep.mubr.bf16.mxu0 0
  %427 = vmatmul.mubr.bf16.gmra.mrb[0].mxu0 %v277
  %v428 = vpop.f32.mrb[0].mxu0
  %v429 = vadd.f32 %v118, %v428
  %v430 = vpop.f32.mrb[0].mxu0
  %v431 = vadd.f32 %v122, %v430
  %v432 = vpop.f32.mrb[0].mxu0
  %v433 = vadd.f32 %v118, %v432
  %v434 = vpop.f32.mrb[0].mxu0
  %v435 = vadd.f32 %v122, %v434
  %436 = vmatprep.mubr.bf16.mxu0 0
  %437 = vmatmul.mubr.bf16.gmra.mrb[0].mxu0 %v280
  %v438 = vpop.f32.mrb[0].mxu0
  %v439 = vadd.f32 %v118, %v438
  %v440 = vpop.f32.mrb[0].mxu0
  %v441 = vadd.f32 %v122, %v440
  %v442 = vpop.f32.mrb[0].mxu0
  %v443 = vadd.f32 %v118, %v442
  %v444 = vpop.f32.mrb[0].mxu0
  %v445 = vadd.f32 %v122, %v444
  %446 = vmatprep.mubr.bf16.mxu0 0
  %447 = vmatmul.mubr.bf16.gmra.mrb[0].mxu0 %v283
  %v448 = vpop.f32.mrb[0].mxu0
  %v449 = vadd.f32 %v118, %v448
  %v450 = vpop.f32.mrb[0].mxu0
  %v451 = vadd.f32 %v122, %v450
  %v452 = vpop.f32.mrb[0].mxu0
  %v453 = vadd.f32 %v118, %v452
  %v454 = vpop.f32.mrb[0].mxu0
  %v455 = vadd.f32 %v122, %v454
  %456 = vmatprep.mubr.bf16.mxu0 0
  %457 = vmatmul.mubr.bf16.gmra.mrb[0].mxu0 %v286
  %v458 = vpop.f32.mrb[0].mxu0
  %v459 = vadd.f32 %v118, %v458
  %v460 = vpop.f32.mrb[0].mxu0
  %v461 = vadd.f32 %v122, %v460
  %v462 = vpop.f32.mrb[0].mxu0
  %v463 = vadd.f32 %v118, %v462
  %v464 = vpop.f32.mrb[0].mxu0
  %v465 = vadd.f32 %v122, %v464
  %466 = vmatprep.mubr.bf16.mxu0 0
  %467 = vmatmul.mubr.bf16.gmra.mrb[0].mxu0 %v289
  %v468 = vpop.f32.mrb[0].mxu0
  %v469 = vadd.f32 %v118, %v468
  %v470 = vpop.f32.mrb[0].mxu0
  %v471 = vadd.f32 %v122, %v470
  %v472 = vpop.f32.mrb[0].mxu0
  %v473 = vadd.f32 %v118, %v472
  %v474 = vpop.f32.mrb[0].mxu0
  %v475 = vadd.f32 %v122, %v474
  %476 = vmatprep.mubr.bf16.mxu0 0
  %477 = vmatmul.mubr.bf16.gmra.mrb[0].mxu0 %v292
  %v478 = vpop.f32.mrb[0].mxu0
  %v479 = vadd.f32 %v118, %v478
  %v480 = vpop.f32.mrb[0].mxu0
  %v481 = vadd.f32 %v122, %v480
  %v482 = vpop.f32.mrb[0].mxu0
  %v483 = vadd.f32 %v118, %v482
  %v484 = vpop.f32.mrb[0].mxu0
  %v485 = vadd.f32 %v122, %v484
  %486 = vdwg.mxu0
  %v487 = vld [vmem:[%s5] sm:$0x3]
  %v488 = vld [vmem:[%s6] sm:$0x3]
  %v489 = vadd.f32 %v329, %v331
  %490 = vadd.xlane.f32.xlu0 %v489
  %v491 = vpop.xlane.xlu0 %490
  %v492 = vadd.f32 %v333, %v335
  %493 = vadd.xlane.f32.xlu0 %v492
  %v494 = vpop.xlane.xlu0 %493
  %v495 = vadd.f32 %v339, %v341
  %496 = vadd.xlane.f32.xlu0 %v495
  %v497 = vpop.xlane.xlu0 %496
  %v498 = vadd.f32 %v343, %v345
  %499 = vadd.xlane.f32.xlu0 %v498
  %v500 = vpop.xlane.xlu0 %499
  %v501 = vadd.f32 %v349, %v351
  %502 = vadd.xlane.f32.xlu0 %v501
  %v503 = vpop.xlane.xlu0 %502
  %v504 = vadd.f32 %v353, %v355
  %505 = vadd.xlane.f32.xlu0 %v504
  %v506 = vpop.xlane.xlu0 %505
  %v507 = vadd.f32 %v359, %v361
  %508 = vadd.xlane.f32.xlu0 %v507
  %v509 = vpop.xlane.xlu0 %508
  %v510 = vadd.f32 %v363, %v365
  %511 = vadd.xlane.f32.xlu0 %v510
  %v512 = vpop.xlane.xlu0 %511
  %v513 = vadd.f32 %v369, %v371
  %514 = vadd.xlane.f32.xlu0 %v513
  %v515 = vpop.xlane.xlu0 %514
  %v516 = vadd.f32 %v373, %v375
  %517 = vadd.xlane.f32.xlu0 %v516
  %v518 = vpop.xlane.xlu0 %517
  %v519 = vadd.f32 %v379, %v381
  %520 = vadd.xlane.f32.xlu0 %v519
  %v521 = vpop.xlane.xlu0 %520
  %v522 = vadd.f32 %v383, %v385
  %523 = vadd.xlane.f32.xlu0 %v522
  %v524 = vpop.xlane.xlu0 %523
  %v525 = vadd.f32 %v389, %v391
  %526 = vadd.xlane.f32.xlu0 %v525
  %v527 = vpop.xlane.xlu0 %526
  %v528 = vadd.f32 %v393, %v395
  %529 = vadd.xlane.f32.xlu0 %v528
  %v530 = vpop.xlane.xlu0 %529
  %v531 = vadd.f32 %v399, %v401
  %532 = vadd.xlane.f32.xlu0 %v531
  %v533 = vpop.xlane.xlu0 %532
  %v534 = vadd.f32 %v403, %v405
  %535 = vadd.xlane.f32.xlu0 %v534
  %v536 = vpop.xlane.xlu0 %535
  %v537 = vadd.f32 %v409, %v411
  %538 = vadd.xlane.f32.xlu0 %v537
  %v539 = vpop.xlane.xlu0 %538
  %v540 = vadd.f32 %v413, %v415
  %541 = vadd.xlane.f32.xlu0 %v540
  %v542 = vpop.xlane.xlu0 %541
  %v543 = vadd.f32 %v419, %v421
  %544 = vadd.xlane.f32.xlu0 %v543
  %v545 = vpop.xlane.xlu0 %544
  %v546 = vadd.f32 %v423, %v425
  %547 = vadd.xlane.f32.xlu0 %v546
  %v548 = vpop.xlane.xlu0 %547
  %v549 = vadd.f32 %v429, %v431
  %550 = vadd.xlane.f32.xlu0 %v549
  %v551 = vpop.xlane.xlu0 %550
  %v552 = vadd.f32 %v433, %v435
  %553 = vadd.xlane.f32.xlu0 %v552
  %v554 = vpop.xlane.xlu0 %553
  %v555 = vadd.f32 %v439, %v441
  %556 = vadd.xlane.f32.xlu0 %v555
  %v557 = vpop.xlane.xlu0 %556
  %v558 = vadd.f32 %v443, %v445
  %559 = vadd.xlane.f32.xlu0 %v558
  %v560 = vpop.xlane.xlu0 %559
  %v561 = vadd.f32 %v449, %v451
  %562 = vadd.xlane.f32.xlu0 %v561
  %v563 = vpop.xlane.xlu0 %562
  %v564 = vadd.f32 %v453, %v455
  %565 = vadd.xlane.f32.xlu0 %v564
  %v566 = vpop.xlane.xlu0 %565
  %v567 = vadd.f32 %v459, %v461
  %568 = vadd.xlane.f32.xlu0 %v567
  %v569 = vpop.xlane.xlu0 %568
  %v570 = vadd.f32 %v463, %v465
  %571 = vadd.xlane.f32.xlu0 %v570
  %v572 = vpop.xlane.xlu0 %571
  %v573 = vadd.f32 %v469, %v471
  %574 = vadd.xlane.f32.xlu0 %v573
  %v575 = vpop.xlane.xlu0 %574
  %v576 = vadd.f32 %v473, %v475
  %577 = vadd.xlane.f32.xlu0 %v576
  %v578 = vpop.xlane.xlu0 %577
  %v579 = vadd.f32 %v479, %v481
  %580 = vadd.xlane.f32.xlu0 %v579
  %v581 = vpop.xlane.xlu0 %580
  %v582 = vadd.f32 %v483, %v485
  %583 = vadd.xlane.f32.xlu0 %v582
  %v584 = vpop.xlane.xlu0 %583
  %v585 = vrcp.pop 256.0
  %v586 = vmul.f32 %v491, %v585
  %v587 = vmul.f32 %v494, %v585
  %v588 = vmul.f32 %v497, %v585
  %v589 = vmul.f32 %v500, %v585
  %v590 = vmul.f32 %v503, %v585
  %v591 = vmul.f32 %v506, %v585
  %v592 = vmul.f32 %v509, %v585
  %v593 = vmul.f32 %v512, %v585
  %v594 = vmul.f32 %v515, %v585
  %v595 = vmul.f32 %v518, %v585
  %v596 = vmul.f32 %v521, %v585
  %v597 = vmul.f32 %v524, %v585
  %v598 = vmul.f32 %v527, %v585
  %v599 = vmul.f32 %v530, %v585
  %v600 = vmul.f32 %v533, %v585
  %v601 = vmul.f32 %v536, %v585
  %v602 = vmul.f32 %v539, %v585
  %v603 = vmul.f32 %v542, %v585
  %v604 = vmul.f32 %v545, %v585
  %v605 = vmul.f32 %v548, %v585
  %v606 = vmul.f32 %v551, %v585
  %v607 = vmul.f32 %v554, %v585
  %v608 = vmul.f32 %v557, %v585
  %v609 = vmul.f32 %v560, %v585
  %v610 = vmul.f32 %v563, %v585
  %v611 = vmul.f32 %v566, %v585
  %v612 = vmul.f32 %v569, %v585
  %v613 = vmul.f32 %v572, %v585
  %v614 = vmul.f32 %v575, %v585
  %v615 = vmul.f32 %v578, %v585
  %v616 = vmul.f32 %v581, %v585
  %v617 = vmul.f32 %v584, %v585
  %v618 = vsub.f32 %v329, %v586
  %v619 = vsub.f32 %v331, %v586
  %v620 = vsub.f32 %v333, %v587
  %v621 = vsub.f32 %v335, %v587
  %v622 = vsub.f32 %v339, %v588
  %v623 = vsub.f32 %v341, %v588
  %v624 = vsub.f32 %v343, %v589
  %v625 = vsub.f32 %v345, %v589
  %v626 = vsub.f32 %v349, %v590
  %v627 = vsub.f32 %v351, %v590
  %v628 = vsub.f32 %v353, %v591
  %v629 = vsub.f32 %v355, %v591
  %v630 = vsub.f32 %v359, %v592
  %v631 = vsub.f32 %v361, %v592
  %v632 = vsub.f32 %v363, %v593
  %v633 = vsub.f32 %v365, %v593
  %v634 = vsub.f32 %v369, %v594
  %v635 = vsub.f32 %v371, %v594
  %v636 = vsub.f32 %v373, %v595
  %v637 = vsub.f32 %v375, %v595
  %v638 = vsub.f32 %v379, %v596
  %v639 = vsub.f32 %v381, %v596
  %v640 = vsub.f32 %v383, %v597
  %v641 = vsub.f32 %v385, %v597
  %v642 = vsub.f32 %v389, %v598
  %v643 = vsub.f32 %v391, %v598
  %v644 = vsub.f32 %v393, %v599
  %v645 = vsub.f32 %v395, %v599
  %v646 = vsub.f32 %v399, %v600
  %v647 = vsub.f32 %v401, %v600
  %v648 = vsub.f32 %v403, %v601
  %v649 = vsub.f32 %v405, %v601
  %v650 = vsub.f32 %v409, %v602
  %v651 = vsub.f32 %v411, %v602
  %v652 = vsub.f32 %v413, %v603
  %v653 = vsub.f32 %v415, %v603
  %v654 = vsub.f32 %v419, %v604
  %v655 = vsub.f32 %v421, %v604
  %v656 = vsub.f32 %v423, %v605
  %v657 = vsub.f32 %v425, %v605
  %v658 = vsub.f32 %v429, %v606
  %v659 = vsub.f32 %v431, %v606
  %v660 = vsub.f32 %v433, %v607
  %v661 = vsub.f32 %v435, %v607
  %v662 = vsub.f32 %v439, %v608
  %v663 = vsub.f32 %v441, %v608
  %v664 = vsub.f32 %v443, %v609
  %v665 = vsub.f32 %v445, %v609
  %v666 = vsub.f32 %v449, %v610
  %v667 = vsub.f32 %v451, %v610
  %v668 = vsub.f32 %v453, %v611
  %v669 = vsub.f32 %v455, %v611
  %v670 = vsub.f32 %v459, %v612
  %v671 = vsub.f32 %v461, %v612
  %v672 = vsub.f32 %v463, %v613
  %v673 = vsub.f32 %v465, %v613
  %v674 = vsub.f32 %v469, %v614
  %v675 = vsub.f32 %v471, %v614
  %v676 = vsub.f32 %v473, %v615
  %v677 = vsub.f32 %v475, %v615
  %v678 = vsub.f32 %v479, %v616
  %v679 = vsub.f32 %v481, %v616
  %v680 = vsub.f32 %v483, %v617
  %v681 = vsub.f32 %v485, %v617
  %v682 = vmul.f32 %v618, %v618
  %v683 = vmul.f32 %v619, %v619
  %v684 = vmul.f32 %v620, %v620
  %v685 = vmul.f32 %v621, %v621
  %v686 = vmul.f32 %v622, %v622
  %v687 = vmul.f32 %v623, %v623
  %v688 = vmul.f32 %v624, %v624
  %v689 = vmul.f32 %v625, %v625
  %v690 = vmul.f32 %v626, %v626
  %v691 = vmul.f32 %v627, %v627
  %v692 = vmul.f32 %v628, %v628
  %v693 = vmul.f32 %v629, %v629
  %v694 = vmul.f32 %v630, %v630
  %v695 = vmul.f32 %v631, %v631
  %v696 = vmul.f32 %v632, %v632
  %v697 = vmul.f32 %v633, %v633
  %v698 = vmul.f32 %v634, %v634
  %v699 = vmul.f32 %v635, %v635
  %v700 = vmul.f32 %v636, %v636
  %v701 = vmul.f32 %v637, %v637
  %v702 = vmul.f32 %v638, %v638
  %v703 = vmul.f32 %v639, %v639
  %v704 = vmul.f32 %v640, %v640
  %v705 = vmul.f32 %v641, %v641
  %v706 = vmul.f32 %v642, %v642
  %v707 = vmul.f32 %v643, %v643
  %v708 = vmul.f32 %v644, %v644
  %v709 = vmul.f32 %v645, %v645
  %v710 = vmul.f32 %v646, %v646
  %v711 = vmul.f32 %v647, %v647
  %v712 = vmul.f32 %v648, %v648
  %v713 = vmul.f32 %v649, %v649
  %v714 = vmul.f32 %v650, %v650
  %v715 = vmul.f32 %v651, %v651
  %v716 = vmul.f32 %v652, %v652
  %v717 = vmul.f32 %v653, %v653
  %v718 = vmul.f32 %v654, %v654
  %v719 = vmul.f32 %v655, %v655
  %v720 = vmul.f32 %v656, %v656
  %v721 = vmul.f32 %v657, %v657
  %v722 = vmul.f32 %v658, %v658
  %v723 = vmul.f32 %v659, %v659
  %v724 = vmul.f32 %v660, %v660
  %v725 = vmul.f32 %v661, %v661
  %v726 = vmul.f32 %v662, %v662
  %v727 = vmul.f32 %v663, %v663
  %v728 = vmul.f32 %v664, %v664
  %v729 = vmul.f32 %v665, %v665
  %v730 = vmul.f32 %v666, %v666
  %v731 = vmul.f32 %v667, %v667
  %v732 = vmul.f32 %v668, %v668
  %v733 = vmul.f32 %v669, %v669
  %v734 = vmul.f32 %v670, %v670
  %v735 = vmul.f32 %v671, %v671
  %v736 = vmul.f32 %v672, %v672
  %v737 = vmul.f32 %v673, %v673
  %v738 = vmul.f32 %v674, %v674
  %v739 = vmul.f32 %v675, %v675
  %v740 = vmul.f32 %v676, %v676
  %v741 = vmul.f32 %v677, %v677
  %v742 = vmul.f32 %v678, %v678
  %v743 = vmul.f32 %v679, %v679
  %v744 = vmul.f32 %v680, %v680
  %v745 = vmul.f32 %v681, %v681
  %v746 = vadd.f32 %v682, %v683
  %747 = vadd.xlane.f32.xlu0 %v746
  %v748 = vpop.xlane.xlu0 %747
  %v749 = vadd.f32 %v684, %v685
  %750 = vadd.xlane.f32.xlu0 %v749
  %v751 = vpop.xlane.xlu0 %750
  %v752 = vadd.f32 %v686, %v687
  %753 = vadd.xlane.f32.xlu0 %v752
  %v754 = vpop.xlane.xlu0 %753
  %v755 = vadd.f32 %v688, %v689
  %756 = vadd.xlane.f32.xlu0 %v755
  %v757 = vpop.xlane.xlu0 %756
  %v758 = vadd.f32 %v690, %v691
  %759 = vadd.xlane.f32.xlu0 %v758
  %v760 = vpop.xlane.xlu0 %759
  %v761 = vadd.f32 %v692, %v693
  %762 = vadd.xlane.f32.xlu0 %v761
  %v763 = vpop.xlane.xlu0 %762
  %v764 = vadd.f32 %v694, %v695
  %765 = vadd.xlane.f32.xlu0 %v764
  %v766 = vpop.xlane.xlu0 %765
  %v767 = vadd.f32 %v696, %v697
  %768 = vadd.xlane.f32.xlu0 %v767
  %v769 = vpop.xlane.xlu0 %768
  %v770 = vadd.f32 %v698, %v699
  %771 = vadd.xlane.f32.xlu0 %v770
  %v772 = vpop.xlane.xlu0 %771
  %v773 = vadd.f32 %v700, %v701
  %774 = vadd.xlane.f32.xlu0 %v773
  %v775 = vpop.xlane.xlu0 %774
  %v776 = vadd.f32 %v702, %v703
  %777 = vadd.xlane.f32.xlu0 %v776
  %v778 = vpop.xlane.xlu0 %777
  %v779 = vadd.f32 %v704, %v705
  %780 = vadd.xlane.f32.xlu0 %v779
  %v781 = vpop.xlane.xlu0 %780
  %v782 = vadd.f32 %v706, %v707
  %783 = vadd.xlane.f32.xlu0 %v782
  %v784 = vpop.xlane.xlu0 %783
  %v785 = vadd.f32 %v708, %v709
  %786 = vadd.xlane.f32.xlu0 %v785
  %v787 = vpop.xlane.xlu0 %786
  %v788 = vadd.f32 %v710, %v711
  %789 = vadd.xlane.f32.xlu0 %v788
  %v790 = vpop.xlane.xlu0 %789
  %v791 = vadd.f32 %v712, %v713
  %792 = vadd.xlane.f32.xlu0 %v791
  %v793 = vpop.xlane.xlu0 %792
  %v794 = vadd.f32 %v714, %v715
  %795 = vadd.xlane.f32.xlu0 %v794
  %v796 = vpop.xlane.xlu0 %795
  %v797 = vadd.f32 %v716, %v717
  %798 = vadd.xlane.f32.xlu0 %v797
  %v799 = vpop.xlane.xlu0 %798
  %v800 = vadd.f32 %v718, %v719
  %801 = vadd.xlane.f32.xlu0 %v800
  %v802 = vpop.xlane.xlu0 %801
  %v803 = vadd.f32 %v720, %v721
  %804 = vadd.xlane.f32.xlu0 %v803
  %v805 = vpop.xlane.xlu0 %804
  %v806 = vadd.f32 %v722, %v723
  %807 = vadd.xlane.f32.xlu0 %v806
  %v808 = vpop.xlane.xlu0 %807
  %v809 = vadd.f32 %v724, %v725
  %810 = vadd.xlane.f32.xlu0 %v809
  %v811 = vpop.xlane.xlu0 %810
  %v812 = vadd.f32 %v726, %v727
  %813 = vadd.xlane.f32.xlu0 %v812
  %v814 = vpop.xlane.xlu0 %813
  %v815 = vadd.f32 %v728, %v729
  %816 = vadd.xlane.f32.xlu0 %v815
  %v817 = vpop.xlane.xlu0 %816
  %v818 = vadd.f32 %v730, %v731
  %819 = vadd.xlane.f32.xlu0 %v818
  %v820 = vpop.xlane.xlu0 %819
  %v821 = vadd.f32 %v732, %v733
  %822 = vadd.xlane.f32.xlu0 %v821
  %v823 = vpop.xlane.xlu0 %822
  %v824 = vadd.f32 %v734, %v735
  %825 = vadd.xlane.f32.xlu0 %v824
  %v826 = vpop.xlane.xlu0 %825
  %v827 = vadd.f32 %v736, %v737
  %828 = vadd.xlane.f32.xlu0 %v827
  %v829 = vpop.xlane.xlu0 %828
  %v830 = vadd.f32 %v738, %v739
  %831 = vadd.xlane.f32.xlu0 %v830
  %v832 = vpop.xlane.xlu0 %831
  %v833 = vadd.f32 %v740, %v741
  %834 = vadd.xlane.f32.xlu0 %v833
  %v835 = vpop.xlane.xlu0 %834
  %v836 = vadd.f32 %v742, %v743
  %837 = vadd.xlane.f32.xlu0 %v836
  %v838 = vpop.xlane.xlu0 %837
  %v839 = vadd.f32 %v744, %v745
  %840 = vadd.xlane.f32.xlu0 %v839
  %v841 = vpop.xlane.xlu0 %840
  %v842 = vmul.f32 %v748, %v585
  %v843 = vmul.f32 %v751, %v585
  %v844 = vmul.f32 %v754, %v585
  %v845 = vmul.f32 %v757, %v585
  %v846 = vmul.f32 %v760, %v585
  %v847 = vmul.f32 %v763, %v585
  %v848 = vmul.f32 %v766, %v585
  %v849 = vmul.f32 %v769, %v585
  %v850 = vmul.f32 %v772, %v585
  %v851 = vmul.f32 %v775, %v585
  %v852 = vmul.f32 %v778, %v585
  %v853 = vmul.f32 %v781, %v585
  %v854 = vmul.f32 %v784, %v585
  %v855 = vmul.f32 %v787, %v585
  %v856 = vmul.f32 %v790, %v585
  %v857 = vmul.f32 %v793, %v585
  %v858 = vmul.f32 %v796, %v585
  %v859 = vmul.f32 %v799, %v585
  %v860 = vmul.f32 %v802, %v585
  %v861 = vmul.f32 %v805, %v585
  %v862 = vmul.f32 %v808, %v585
  %v863 = vmul.f32 %v811, %v585
  %v864 = vmul.f32 %v814, %v585
  %v865 = vmul.f32 %v817, %v585
  %v866 = vmul.f32 %v820, %v585
  %v867 = vmul.f32 %v823, %v585
  %v868 = vmul.f32 %v826, %v585
  %v869 = vmul.f32 %v829, %v585
  %v870 = vmul.f32 %v832, %v585
  %v871 = vmul.f32 %v835, %v585
  %v872 = vmul.f32 %v838, %v585
  %v873 = vmul.f32 %v841, %v585
  %v874 = vadd.f32 %v842, 1e-05
  %v875 = vadd.f32 %v843, 1e-05
  %v876 = vadd.f32 %v844, 1e-05
  %v877 = vadd.f32 %v845, 1e-05
  %v878 = vadd.f32 %v846, 1e-05
  %v879 = vadd.f32 %v847, 1e-05
  %v880 = vadd.f32 %v848, 1e-05
  %v881 = vadd.f32 %v849, 1e-05
  %v882 = vadd.f32 %v850, 1e-05
  %v883 = vadd.f32 %v851, 1e-05
  %v884 = vadd.f32 %v852, 1e-05
  %v885 = vadd.f32 %v853, 1e-05
  %v886 = vadd.f32 %v854, 1e-05
  %v887 = vadd.f32 %v855, 1e-05
  %v888 = vadd.f32 %v856, 1e-05
  %v889 = vadd.f32 %v857, 1e-05
  %v890 = vadd.f32 %v858, 1e-05
  %v891 = vadd.f32 %v859, 1e-05
  %v892 = vadd.f32 %v860, 1e-05
  %v893 = vadd.f32 %v861, 1e-05
  %v894 = vadd.f32 %v862, 1e-05
  %v895 = vadd.f32 %v863, 1e-05
  %v896 = vadd.f32 %v864, 1e-05
  %v897 = vadd.f32 %v865, 1e-05
  %v898 = vadd.f32 %v866, 1e-05
  %v899 = vadd.f32 %v867, 1e-05
  %v900 = vadd.f32 %v868, 1e-05
  %v901 = vadd.f32 %v869, 1e-05
  %v902 = vadd.f32 %v870, 1e-05
  %v903 = vadd.f32 %v871, 1e-05
  %v904 = vadd.f32 %v872, 1e-05
  %v905 = vadd.f32 %v873, 1e-05
  %v906 = vrsqrt.pop %v874
  %v907 = vrsqrt.pop %v875
  %v908 = vrsqrt.pop %v876
  %v909 = vrsqrt.pop %v877
  %v910 = vrsqrt.pop %v878
  %v911 = vrsqrt.pop %v879
  %v912 = vrsqrt.pop %v880
  %v913 = vrsqrt.pop %v881
  %v914 = vrsqrt.pop %v882
  %v915 = vrsqrt.pop %v883
  %v916 = vrsqrt.pop %v884
  %v917 = vrsqrt.pop %v885
  %v918 = vrsqrt.pop %v886
  %v919 = vrsqrt.pop %v887
  %v920 = vrsqrt.pop %v888
  %v921 = vrsqrt.pop %v889
  %v922 = vrsqrt.pop %v890
  %v923 = vrsqrt.pop %v891
  %v924 = vrsqrt.pop %v892
  %v925 = vrsqrt.pop %v893
  %v926 = vrsqrt.pop %v894
  %v927 = vrsqrt.pop %v895
  %v928 = vrsqrt.pop %v896
  %v929 = vrsqrt.pop %v897
  %v930 = vrsqrt.pop %v898
  %v931 = vrsqrt.pop %v899
  %v932 = vrsqrt.pop %v900
  %v933 = vrsqrt.pop %v901
  %v934 = vrsqrt.pop %v902
  %v935 = vrsqrt.pop %v903
  %v936 = vrsqrt.pop %v904
  %v937 = vrsqrt.pop %v905
  %v938 = vmul.f32 %v618, %v906
  %v939 = vmul.f32 %v619, %v906
  %v940 = vmul.f32 %v620, %v907
  %v941 = vmul.f32 %v621, %v907
  %v942 = vmul.f32 %v622, %v908
  %v943 = vmul.f32 %v623, %v908
  %v944 = vmul.f32 %v624, %v909
  %v945 = vmul.f32 %v625, %v909
  %v946 = vmul.f32 %v626, %v910
  %v947 = vmul.f32 %v627, %v910
  %v948 = vmul.f32 %v628, %v911
  %v949 = vmul.f32 %v629, %v911
  %v950 = vmul.f32 %v630, %v912
  %v951 = vmul.f32 %v631, %v912
  %v952 = vmul.f32 %v632, %v913
  %v953 = vmul.f32 %v633, %v913
  %v954 = vmul.f32 %v634, %v914
  %v955 = vmul.f32 %v635, %v914
  %v956 = vmul.f32 %v636, %v915
  %v957 = vmul.f32 %v637, %v915
  %v958 = vmul.f32 %v638, %v916
  %v959 = vmul.f32 %v639, %v916
  %v960 = vmul.f32 %v640, %v917
  %v961 = vmul.f32 %v641, %v917
  %v962 = vmul.f32 %v642, %v918
  %v963 = vmul.f32 %v643, %v918
  %v964 = vmul.f32 %v644, %v919
  %v965 = vmul.f32 %v645, %v919
  %v966 = vmul.f32 %v646, %v920
  %v967 = vmul.f32 %v647, %v920
  %v968 = vmul.f32 %v648, %v921
  %v969 = vmul.f32 %v649, %v921
  %v970 = vmul.f32 %v650, %v922
  %v971 = vmul.f32 %v651, %v922
  %v972 = vmul.f32 %v652, %v923
  %v973 = vmul.f32 %v653, %v923
  %v974 = vmul.f32 %v654, %v924
  %v975 = vmul.f32 %v655, %v924
  %v976 = vmul.f32 %v656, %v925
  %v977 = vmul.f32 %v657, %v925
  %v978 = vmul.f32 %v658, %v926
  %v979 = vmul.f32 %v659, %v926
  %v980 = vmul.f32 %v660, %v927
  %v981 = vmul.f32 %v661, %v927
  %v982 = vmul.f32 %v662, %v928
  %v983 = vmul.f32 %v663, %v928
  %v984 = vmul.f32 %v664, %v929
  %v985 = vmul.f32 %v665, %v929
  %v986 = vmul.f32 %v666, %v930
  %v987 = vmul.f32 %v667, %v930
  %v988 = vmul.f32 %v668, %v931
  %v989 = vmul.f32 %v669, %v931
  %v990 = vmul.f32 %v670, %v932
  %v991 = vmul.f32 %v671, %v932
  %v992 = vmul.f32 %v672, %v933
  %v993 = vmul.f32 %v673, %v933
  %v994 = vmul.f32 %v674, %v934
  %v995 = vmul.f32 %v675, %v934
  %v996 = vmul.f32 %v676, %v935
  %v997 = vmul.f32 %v677, %v935
  %v998 = vmul.f32 %v678, %v936
  %v999 = vmul.f32 %v679, %v936
  %v1000 = vmul.f32 %v680, %v937
  %v1001 = vmul.f32 %v681, %v937
  %v1003 = vlaneseq
  %v1004 = vshrl.u32 %v1003, 7
  %v1005 = vsub.s32 0, %v1004
  %v1006 = vrot.slane %v487, %v1005
  %v1007 = vlaneseq
  %v1008 = vshrl.u32 %v1007, 7
  %v1009 = vsub.s32 1, %v1008
  %v1010 = vrot.slane %v487, %v1009
  %v1013 = vmul.f32 %v938, %v1006
  %v1014 = vmul.f32 %v939, %v1010
  %v1015 = vmul.f32 %v940, %v1006
  %v1016 = vmul.f32 %v941, %v1010
  %v1017 = vmul.f32 %v942, %v1006
  %v1018 = vmul.f32 %v943, %v1010
  %v1019 = vmul.f32 %v944, %v1006
  %v1020 = vmul.f32 %v945, %v1010
  %v1021 = vmul.f32 %v946, %v1006
  %v1022 = vmul.f32 %v947, %v1010
  %v1023 = vmul.f32 %v948, %v1006
  %v1024 = vmul.f32 %v949, %v1010
  %v1025 = vmul.f32 %v950, %v1006
  %v1026 = vmul.f32 %v951, %v1010
  %v1027 = vmul.f32 %v952, %v1006
  %v1028 = vmul.f32 %v953, %v1010
  %v1029 = vmul.f32 %v954, %v1006
  %v1030 = vmul.f32 %v955, %v1010
  %v1031 = vmul.f32 %v956, %v1006
  %v1032 = vmul.f32 %v957, %v1010
  %v1033 = vmul.f32 %v958, %v1006
  %v1034 = vmul.f32 %v959, %v1010
  %v1035 = vmul.f32 %v960, %v1006
  %v1036 = vmul.f32 %v961, %v1010
  %v1037 = vmul.f32 %v962, %v1006
  %v1038 = vmul.f32 %v963, %v1010
  %v1039 = vmul.f32 %v964, %v1006
  %v1040 = vmul.f32 %v965, %v1010
  %v1041 = vmul.f32 %v966, %v1006
  %v1042 = vmul.f32 %v967, %v1010
  %v1043 = vmul.f32 %v968, %v1006
  %v1044 = vmul.f32 %v969, %v1010
  %v1045 = vmul.f32 %v970, %v1006
  %v1046 = vmul.f32 %v971, %v1010
  %v1047 = vmul.f32 %v972, %v1006
  %v1048 = vmul.f32 %v973, %v1010
  %v1049 = vmul.f32 %v974, %v1006
  %v1050 = vmul.f32 %v975, %v1010
  %v1051 = vmul.f32 %v976, %v1006
  %v1052 = vmul.f32 %v977, %v1010
  %v1053 = vmul.f32 %v978, %v1006
  %v1054 = vmul.f32 %v979, %v1010
  %v1055 = vmul.f32 %v980, %v1006
  %v1056 = vmul.f32 %v981, %v1010
  %v1057 = vmul.f32 %v982, %v1006
  %v1058 = vmul.f32 %v983, %v1010
  %v1059 = vmul.f32 %v984, %v1006
  %v1060 = vmul.f32 %v985, %v1010
  %v1061 = vmul.f32 %v986, %v1006
  %v1062 = vmul.f32 %v987, %v1010
  %v1063 = vmul.f32 %v988, %v1006
  %v1064 = vmul.f32 %v989, %v1010
  %v1065 = vmul.f32 %v990, %v1006
  %v1066 = vmul.f32 %v991, %v1010
  %v1067 = vmul.f32 %v992, %v1006
  %v1068 = vmul.f32 %v993, %v1010
  %v1069 = vmul.f32 %v994, %v1006
  %v1070 = vmul.f32 %v995, %v1010
  %v1071 = vmul.f32 %v996, %v1006
  %v1072 = vmul.f32 %v997, %v1010
  %v1073 = vmul.f32 %v998, %v1006
  %v1074 = vmul.f32 %v999, %v1010
  %v1075 = vmul.f32 %v1000, %v1006
  %v1076 = vmul.f32 %v1001, %v1010
  %v1078 = vlaneseq
  %v1079 = vshrl.u32 %v1078, 7
  %v1080 = vsub.s32 0, %v1079
  %v1081 = vrot.slane %v488, %v1080
  %v1082 = vlaneseq
  %v1083 = vshrl.u32 %v1082, 7
  %v1084 = vsub.s32 1, %v1083
  %v1085 = vrot.slane %v488, %v1084
  %v1088 = vadd.f32 %v1013, %v1081
  %v1089 = vadd.f32 %v1014, %v1085
  %v1090 = vadd.f32 %v1015, %v1081
  %v1091 = vadd.f32 %v1016, %v1085
  %v1092 = vadd.f32 %v1017, %v1081
  %v1093 = vadd.f32 %v1018, %v1085
  %v1094 = vadd.f32 %v1019, %v1081
  %v1095 = vadd.f32 %v1020, %v1085
  %v1096 = vadd.f32 %v1021, %v1081
  %v1097 = vadd.f32 %v1022, %v1085
  %v1098 = vadd.f32 %v1023, %v1081
  %v1099 = vadd.f32 %v1024, %v1085
  %v1100 = vadd.f32 %v1025, %v1081
  %v1101 = vadd.f32 %v1026, %v1085
  %v1102 = vadd.f32 %v1027, %v1081
  %v1103 = vadd.f32 %v1028, %v1085
  %v1104 = vadd.f32 %v1029, %v1081
  %v1105 = vadd.f32 %v1030, %v1085
  %v1106 = vadd.f32 %v1031, %v1081
  %v1107 = vadd.f32 %v1032, %v1085
  %v1108 = vadd.f32 %v1033, %v1081
  %v1109 = vadd.f32 %v1034, %v1085
  %v1110 = vadd.f32 %v1035, %v1081
  %v1111 = vadd.f32 %v1036, %v1085
  %v1112 = vadd.f32 %v1037, %v1081
  %v1113 = vadd.f32 %v1038, %v1085
  %v1114 = vadd.f32 %v1039, %v1081
  %v1115 = vadd.f32 %v1040, %v1085
  %v1116 = vadd.f32 %v1041, %v1081
  %v1117 = vadd.f32 %v1042, %v1085
  %v1118 = vadd.f32 %v1043, %v1081
  %v1119 = vadd.f32 %v1044, %v1085
  %v1120 = vadd.f32 %v1045, %v1081
  %v1121 = vadd.f32 %v1046, %v1085
  %v1122 = vadd.f32 %v1047, %v1081
  %v1123 = vadd.f32 %v1048, %v1085
  %v1124 = vadd.f32 %v1049, %v1081
  %v1125 = vadd.f32 %v1050, %v1085
  %v1126 = vadd.f32 %v1051, %v1081
  %v1127 = vadd.f32 %v1052, %v1085
  %v1128 = vadd.f32 %v1053, %v1081
  %v1129 = vadd.f32 %v1054, %v1085
  %v1130 = vadd.f32 %v1055, %v1081
  %v1131 = vadd.f32 %v1056, %v1085
  %v1132 = vadd.f32 %v1057, %v1081
  %v1133 = vadd.f32 %v1058, %v1085
  %v1134 = vadd.f32 %v1059, %v1081
  %v1135 = vadd.f32 %v1060, %v1085
  %v1136 = vadd.f32 %v1061, %v1081
  %v1137 = vadd.f32 %v1062, %v1085
  %v1138 = vadd.f32 %v1063, %v1081
  %v1139 = vadd.f32 %v1064, %v1085
  %v1140 = vadd.f32 %v1065, %v1081
  %v1141 = vadd.f32 %v1066, %v1085
  %v1142 = vadd.f32 %v1067, %v1081
  %v1143 = vadd.f32 %v1068, %v1085
  %v1144 = vadd.f32 %v1069, %v1081
  %v1145 = vadd.f32 %v1070, %v1085
  %v1146 = vadd.f32 %v1071, %v1081
  %v1147 = vadd.f32 %v1072, %v1085
  %v1148 = vadd.f32 %v1073, %v1081
  %v1149 = vadd.f32 %v1074, %v1085
  %v1150 = vadd.f32 %v1075, %v1081
  %v1151 = vadd.f32 %v1076, %v1085
  %v1152 = vpack.c.bf16 %v1090, %v1088
  %v1153 = vpack.c.bf16 %v1091, %v1089
  %v1154 = vpack.c.bf16 %v1094, %v1092
  %v1155 = vpack.c.bf16 %v1095, %v1093
  %v1156 = vpack.c.bf16 %v1098, %v1096
  %v1157 = vpack.c.bf16 %v1099, %v1097
  %v1158 = vpack.c.bf16 %v1102, %v1100
  %v1159 = vpack.c.bf16 %v1103, %v1101
  %v1160 = vpack.c.bf16 %v1106, %v1104
  %v1161 = vpack.c.bf16 %v1107, %v1105
  %v1162 = vpack.c.bf16 %v1110, %v1108
  %v1163 = vpack.c.bf16 %v1111, %v1109
  %v1164 = vpack.c.bf16 %v1114, %v1112
  %v1165 = vpack.c.bf16 %v1115, %v1113
  %v1166 = vpack.c.bf16 %v1118, %v1116
  %v1167 = vpack.c.bf16 %v1119, %v1117
  %v1168 = vpack.c.bf16 %v1122, %v1120
  %v1169 = vpack.c.bf16 %v1123, %v1121
  %v1170 = vpack.c.bf16 %v1126, %v1124
  %v1171 = vpack.c.bf16 %v1127, %v1125
  %v1172 = vpack.c.bf16 %v1130, %v1128
  %v1173 = vpack.c.bf16 %v1131, %v1129
  %v1174 = vpack.c.bf16 %v1134, %v1132
  %v1175 = vpack.c.bf16 %v1135, %v1133
  %v1176 = vpack.c.bf16 %v1138, %v1136
  %v1177 = vpack.c.bf16 %v1139, %v1137
  %v1178 = vpack.c.bf16 %v1142, %v1140
  %v1179 = vpack.c.bf16 %v1143, %v1141
  %v1180 = vpack.c.bf16 %v1146, %v1144
  %v1181 = vpack.c.bf16 %v1147, %v1145
  %v1182 = vpack.c.bf16 %v1150, %v1148
  %v1183 = vpack.c.bf16 %v1151, %v1149
  %v1184 = vld [vmem:[%s7] sm:$0xff]
  %v1185 = vld [vmem:[%s7 + $0x8] sm:$0xff]
  %v1186 = vld [vmem:[%s7 + $0x10] sm:$0xff]
  %v1187 = vld [vmem:[%s7 + $0x18] sm:$0xff]
  %v1188 = vld [vmem:[%s7 + $0x20] sm:$0xff]
  %v1189 = vld [vmem:[%s7 + $0x28] sm:$0xff]
  %v1190 = vld [vmem:[%s7 + $0x30] sm:$0xff]
  %v1191 = vld [vmem:[%s7 + $0x38] sm:$0xff]
  %v1192 = vld [vmem:[%s7 + $0x40] sm:$0xff]
  %v1193 = vld [vmem:[%s7 + $0x48] sm:$0xff]
  %v1194 = vld [vmem:[%s7 + $0x50] sm:$0xff]
  %v1195 = vld [vmem:[%s7 + $0x58] sm:$0xff]
  %v1196 = vld [vmem:[%s7 + $0x60] sm:$0xff]
  %v1197 = vld [vmem:[%s7 + $0x68] sm:$0xff]
  %v1198 = vld [vmem:[%s7 + $0x70] sm:$0xff]
  %v1199 = vld [vmem:[%s7 + $0x78] sm:$0xff]
  %v1200 = vld [vmem:[%s7 + $0x80] sm:$0xff]
  %v1201 = vld [vmem:[%s7 + $0x88] sm:$0xff]
  %v1202 = vld [vmem:[%s7 + $0x90] sm:$0xff]
  %v1203 = vld [vmem:[%s7 + $0x98] sm:$0xff]
  %v1204 = vld [vmem:[%s7 + $0xa0] sm:$0xff]
  %v1205 = vld [vmem:[%s7 + $0xa8] sm:$0xff]
  %v1206 = vld [vmem:[%s7 + $0xb0] sm:$0xff]
  %v1207 = vld [vmem:[%s7 + $0xb8] sm:$0xff]
  %v1208 = vld [vmem:[%s7 + $0xc0] sm:$0xff]
  %v1209 = vld [vmem:[%s7 + $0xc8] sm:$0xff]
  %v1210 = vld [vmem:[%s7 + $0xd0] sm:$0xff]
  %v1211 = vld [vmem:[%s7 + $0xd8] sm:$0xff]
  %v1212 = vld [vmem:[%s7 + $0xe0] sm:$0xff]
  %v1213 = vld [vmem:[%s7 + $0xe8] sm:$0xff]
  %v1214 = vld [vmem:[%s7 + $0xf0] sm:$0xff]
  %v1215 = vld [vmem:[%s7 + $0xf8] sm:$0xff]
  %v1216 = vld [vmem:[%s8] sm:$0x3]
  %v1218 = vlaneseq
  %v1219 = vshrl.u32 %v1218, 7
  %v1220 = vsub.s32 0, %v1219
  %v1221 = vrot.slane %v1216, %v1220
  %v1222 = vlaneseq
  %v1223 = vshrl.u32 %v1222, 7
  %v1224 = vsub.s32 1, %v1223
  %v1225 = vrot.slane %v1216, %v1224
  %v1260 = vunpack.c.l.b16 %v1184
  %v1261 = vunpack.c.h.b16 %v1184
  %v1262 = vunpack.c.l.b16 %v1185
  %v1263 = vunpack.c.h.b16 %v1185
  %v1264 = vunpack.c.l.b16 %v1186
  %v1265 = vunpack.c.h.b16 %v1186
  %v1266 = vunpack.c.l.b16 %v1187
  %v1267 = vunpack.c.h.b16 %v1187
  %v1268 = vunpack.c.l.b16 %v1188
  %v1269 = vunpack.c.h.b16 %v1188
  %v1270 = vunpack.c.l.b16 %v1189
  %v1271 = vunpack.c.h.b16 %v1189
  %v1272 = vunpack.c.l.b16 %v1190
  %v1273 = vunpack.c.h.b16 %v1190
  %v1274 = vunpack.c.l.b16 %v1191
  %v1275 = vunpack.c.h.b16 %v1191
  %v1276 = vunpack.c.l.b16 %v1192
  %v1277 = vunpack.c.h.b16 %v1192
  %v1278 = vunpack.c.l.b16 %v1193
  %v1279 = vunpack.c.h.b16 %v1193
  %v1280 = vunpack.c.l.b16 %v1194
  %v1281 = vunpack.c.h.b16 %v1194
  %v1282 = vunpack.c.l.b16 %v1195
  %v1283 = vunpack.c.h.b16 %v1195
  %v1284 = vunpack.c.l.b16 %v1196
  %v1285 = vunpack.c.h.b16 %v1196
  %v1286 = vunpack.c.l.b16 %v1197
  %v1287 = vunpack.c.h.b16 %v1197
  %v1288 = vunpack.c.l.b16 %v1198
  %v1289 = vunpack.c.h.b16 %v1198
  %v1290 = vunpack.c.l.b16 %v1199
  %v1291 = vunpack.c.h.b16 %v1199
  %v1292 = vunpack.c.l.b16 %v1200
  %v1293 = vunpack.c.h.b16 %v1200
  %v1294 = vunpack.c.l.b16 %v1201
  %v1295 = vunpack.c.h.b16 %v1201
  %v1296 = vunpack.c.l.b16 %v1202
  %v1297 = vunpack.c.h.b16 %v1202
  %v1298 = vunpack.c.l.b16 %v1203
  %v1299 = vunpack.c.h.b16 %v1203
  %v1300 = vunpack.c.l.b16 %v1204
  %v1301 = vunpack.c.h.b16 %v1204
  %v1302 = vunpack.c.l.b16 %v1205
  %v1303 = vunpack.c.h.b16 %v1205
  %v1304 = vunpack.c.l.b16 %v1206
  %v1305 = vunpack.c.h.b16 %v1206
  %v1306 = vunpack.c.l.b16 %v1207
  %v1307 = vunpack.c.h.b16 %v1207
  %v1308 = vunpack.c.l.b16 %v1208
  %v1309 = vunpack.c.h.b16 %v1208
  %v1310 = vunpack.c.l.b16 %v1209
  %v1311 = vunpack.c.h.b16 %v1209
  %v1312 = vunpack.c.l.b16 %v1210
  %v1313 = vunpack.c.h.b16 %v1210
  %v1314 = vunpack.c.l.b16 %v1211
  %v1315 = vunpack.c.h.b16 %v1211
  %v1316 = vunpack.c.l.b16 %v1212
  %v1317 = vunpack.c.h.b16 %v1212
  %v1318 = vunpack.c.l.b16 %v1213
  %v1319 = vunpack.c.h.b16 %v1213
  %v1320 = vunpack.c.l.b16 %v1214
  %v1321 = vunpack.c.h.b16 %v1214
  %v1322 = vunpack.c.l.b16 %v1215
  %v1323 = vunpack.c.h.b16 %v1215
  %v1324 = vpack.c.b16 %v1262, %v1260
  %v1325 = vpack.c.b16 %v1263, %v1261
  %v1326 = vpack.c.b16 %v1266, %v1264
  %v1327 = vpack.c.b16 %v1267, %v1265
  %v1328 = vpack.c.b16 %v1270, %v1268
  %v1329 = vpack.c.b16 %v1271, %v1269
  %v1330 = vpack.c.b16 %v1274, %v1272
  %v1331 = vpack.c.b16 %v1275, %v1273
  %v1332 = vpack.c.b16 %v1278, %v1276
  %v1333 = vpack.c.b16 %v1279, %v1277
  %v1334 = vpack.c.b16 %v1282, %v1280
  %v1335 = vpack.c.b16 %v1283, %v1281
  %v1336 = vpack.c.b16 %v1286, %v1284
  %v1337 = vpack.c.b16 %v1287, %v1285
  %v1338 = vpack.c.b16 %v1290, %v1288
  %v1339 = vpack.c.b16 %v1291, %v1289
  %v1340 = vpack.c.b16 %v1294, %v1292
  %v1341 = vpack.c.b16 %v1295, %v1293
  %v1342 = vpack.c.b16 %v1298, %v1296
  %v1343 = vpack.c.b16 %v1299, %v1297
  %v1344 = vpack.c.b16 %v1302, %v1300
  %v1345 = vpack.c.b16 %v1303, %v1301
  %v1346 = vpack.c.b16 %v1306, %v1304
  %v1347 = vpack.c.b16 %v1307, %v1305
  %v1348 = vpack.c.b16 %v1310, %v1308
  %v1349 = vpack.c.b16 %v1311, %v1309
  %v1350 = vpack.c.b16 %v1314, %v1312
  %v1351 = vpack.c.b16 %v1315, %v1313
  %v1352 = vpack.c.b16 %v1318, %v1316
  %v1353 = vpack.c.b16 %v1319, %v1317
  %v1354 = vpack.c.b16 %v1322, %v1320
  %v1355 = vpack.c.b16 %v1323, %v1321
  %1388 = vmatprep.subr.bf16.mxu0 %v1325
  %1389 = vmatpush1.bf16.msra.mxu0 %v1324
  %1390 = vmatprep.subr.bf16.mxu0 %v1327
  %1391 = vmatpush1.bf16.msra.mxu0 %v1326
  %1392 = vmatprep.subr.bf16.mxu0 %v1329
  %1393 = vmatpush1.bf16.msra.mxu0 %v1328
  %1394 = vmatprep.subr.bf16.mxu0 %v1331
  %1395 = vmatpush1.bf16.msra.mxu0 %v1330
  %1396 = vmatprep.subr.bf16.mxu0 %v1333
  %1397 = vmatpush1.bf16.msra.mxu0 %v1332
  %1398 = vmatprep.subr.bf16.mxu0 %v1335
  %1399 = vmatpush1.bf16.msra.mxu0 %v1334
  %1400 = vmatprep.subr.bf16.mxu0 %v1337
  %1401 = vmatpush1.bf16.msra.mxu0 %v1336
  %1402 = vmatprep.subr.bf16.mxu0 %v1339
  %1403 = vmatpush1.bf16.msra.mxu0 %v1338
  %1404 = vmatprep.subr.bf16.mxu0 %v1341
  %1405 = vmatpush1.bf16.msra.mxu0 %v1340
  %1406 = vmatprep.subr.bf16.mxu0 %v1343
  %1407 = vmatpush1.bf16.msra.mxu0 %v1342
  %1408 = vmatprep.subr.bf16.mxu0 %v1345
  %1409 = vmatpush1.bf16.msra.mxu0 %v1344
  %1410 = vmatprep.subr.bf16.mxu0 %v1347
  %1411 = vmatpush1.bf16.msra.mxu0 %v1346
  %1412 = vmatprep.subr.bf16.mxu0 %v1349
  %1413 = vmatpush1.bf16.msra.mxu0 %v1348
  %1414 = vmatprep.subr.bf16.mxu0 %v1351
  %1415 = vmatpush1.bf16.msra.mxu0 %v1350
  %1416 = vmatprep.subr.bf16.mxu0 %v1353
  %1417 = vmatpush1.bf16.msra.mxu0 %v1352
  %1418 = vmatprep.subr.bf16.mxu0 %v1355
  %1419 = vmatpush1.bf16.msra.mxu0 %v1354
  %1420 = vmatprep.mubr.bf16.mxu0 %v1153
  %1421 = vmatmul.mubr.bf16.gmra.mrb[0].mxu0 %v1152
  %v1422 = vpop.f32.mrb[0].mxu0
  %v1423 = vadd.f32 %v1221, %v1422
  %v1424 = vpop.f32.mrb[0].mxu0
  %v1425 = vadd.f32 %v1225, %v1424
  %v1426 = vpop.f32.mrb[0].mxu0
  %v1427 = vadd.f32 %v1221, %v1426
  %v1428 = vpop.f32.mrb[0].mxu0
  %v1429 = vadd.f32 %v1225, %v1428
  %1430 = vmatprep.mubr.bf16.mxu0 %v1155
  %1431 = vmatmul.mubr.bf16.gmra.mrb[0].mxu0 %v1154
  %v1432 = vpop.f32.mrb[0].mxu0
  %v1433 = vadd.f32 %v1221, %v1432
  %v1434 = vpop.f32.mrb[0].mxu0
  %v1435 = vadd.f32 %v1225, %v1434
  %v1436 = vpop.f32.mrb[0].mxu0
  %v1437 = vadd.f32 %v1221, %v1436
  %v1438 = vpop.f32.mrb[0].mxu0
  %v1439 = vadd.f32 %v1225, %v1438
  %1440 = vmatprep.mubr.bf16.mxu0 %v1157
  %1441 = vmatmul.mubr.bf16.gmra.mrb[0].mxu0 %v1156
  %v1442 = vpop.f32.mrb[0].mxu0
  %v1443 = vadd.f32 %v1221, %v1442
  %v1444 = vpop.f32.mrb[0].mxu0
  %v1445 = vadd.f32 %v1225, %v1444
  %v1446 = vpop.f32.mrb[0].mxu0
  %v1447 = vadd.f32 %v1221, %v1446
  %v1448 = vpop.f32.mrb[0].mxu0
  %v1449 = vadd.f32 %v1225, %v1448
  %1450 = vmatprep.mubr.bf16.mxu0 %v1159
  %1451 = vmatmul.mubr.bf16.gmra.mrb[0].mxu0 %v1158
  %v1452 = vpop.f32.mrb[0].mxu0
  %v1453 = vadd.f32 %v1221, %v1452
  %v1454 = vpop.f32.mrb[0].mxu0
  %v1455 = vadd.f32 %v1225, %v1454
  %v1456 = vpop.f32.mrb[0].mxu0
  %v1457 = vadd.f32 %v1221, %v1456
  %v1458 = vpop.f32.mrb[0].mxu0
  %v1459 = vadd.f32 %v1225, %v1458
  %1460 = vmatprep.mubr.bf16.mxu0 %v1161
  %1461 = vmatmul.mubr.bf16.gmra.mrb[0].mxu0 %v1160
  %v1462 = vpop.f32.mrb[0].mxu0
  %v1463 = vadd.f32 %v1221, %v1462
  %v1464 = vpop.f32.mrb[0].mxu0
  %v1465 = vadd.f32 %v1225, %v1464
  %v1466 = vpop.f32.mrb[0].mxu0
  %v1467 = vadd.f32 %v1221, %v1466
  %v1468 = vpop.f32.mrb[0].mxu0
  %v1469 = vadd.f32 %v1225, %v1468
  %1470 = vmatprep.mubr.bf16.mxu0 %v1163
  %1471 = vmatmul.mubr.bf16.gmra.mrb[0].mxu0 %v1162
  %v1472 = vpop.f32.mrb[0].mxu0
  %v1473 = vadd.f32 %v1221, %v1472
  %v1474 = vpop.f32.mrb[0].mxu0
  %v1475 = vadd.f32 %v1225, %v1474
  %v1476 = vpop.f32.mrb[0].mxu0
  %v1477 = vadd.f32 %v1221, %v1476
  %v1478 = vpop.f32.mrb[0].mxu0
  %v1479 = vadd.f32 %v1225, %v1478
  %1480 = vmatprep.mubr.bf16.mxu0 %v1165
  %1481 = vmatmul.mubr.bf16.gmra.mrb[0].mxu0 %v1164
  %v1482 = vpop.f32.mrb[0].mxu0
  %v1483 = vadd.f32 %v1221, %v1482
  %v1484 = vpop.f32.mrb[0].mxu0
  %v1485 = vadd.f32 %v1225, %v1484
  %v1486 = vpop.f32.mrb[0].mxu0
  %v1487 = vadd.f32 %v1221, %v1486
  %v1488 = vpop.f32.mrb[0].mxu0
  %v1489 = vadd.f32 %v1225, %v1488
  %1490 = vmatprep.mubr.bf16.mxu0 %v1167
  %1491 = vmatmul.mubr.bf16.gmra.mrb[0].mxu0 %v1166
  %v1492 = vpop.f32.mrb[0].mxu0
  %v1493 = vadd.f32 %v1221, %v1492
  %v1494 = vpop.f32.mrb[0].mxu0
  %v1495 = vadd.f32 %v1225, %v1494
  %v1496 = vpop.f32.mrb[0].mxu0
  %v1497 = vadd.f32 %v1221, %v1496
  %v1498 = vpop.f32.mrb[0].mxu0
  %v1499 = vadd.f32 %v1225, %v1498
  %1500 = vmatprep.mubr.bf16.mxu0 %v1169
  %1501 = vmatmul.mubr.bf16.gmra.mrb[0].mxu0 %v1168
  %v1502 = vpop.f32.mrb[0].mxu0
  %v1503 = vadd.f32 %v1221, %v1502
  %v1504 = vpop.f32.mrb[0].mxu0
  %v1505 = vadd.f32 %v1225, %v1504
  %v1506 = vpop.f32.mrb[0].mxu0
  %v1507 = vadd.f32 %v1221, %v1506
  %v1508 = vpop.f32.mrb[0].mxu0
  %v1509 = vadd.f32 %v1225, %v1508
  %1510 = vmatprep.mubr.bf16.mxu0 %v1171
  %1511 = vmatmul.mubr.bf16.gmra.mrb[0].mxu0 %v1170
  %v1512 = vpop.f32.mrb[0].mxu0
  %v1513 = vadd.f32 %v1221, %v1512
  %v1514 = vpop.f32.mrb[0].mxu0
  %v1515 = vadd.f32 %v1225, %v1514
  %v1516 = vpop.f32.mrb[0].mxu0
  %v1517 = vadd.f32 %v1221, %v1516
  %v1518 = vpop.f32.mrb[0].mxu0
  %v1519 = vadd.f32 %v1225, %v1518
  %1520 = vmatprep.mubr.bf16.mxu0 %v1173
  %1521 = vmatmul.mubr.bf16.gmra.mrb[0].mxu0 %v1172
  %v1522 = vpop.f32.mrb[0].mxu0
  %v1523 = vadd.f32 %v1221, %v1522
  %v1524 = vpop.f32.mrb[0].mxu0
  %v1525 = vadd.f32 %v1225, %v1524
  %v1526 = vpop.f32.mrb[0].mxu0
  %v1527 = vadd.f32 %v1221, %v1526
  %v1528 = vpop.f32.mrb[0].mxu0
  %v1529 = vadd.f32 %v1225, %v1528
  %1530 = vmatprep.mubr.bf16.mxu0 %v1175
  %1531 = vmatmul.mubr.bf16.gmra.mrb[0].mxu0 %v1174
  %v1532 = vpop.f32.mrb[0].mxu0
  %v1533 = vadd.f32 %v1221, %v1532
  %v1534 = vpop.f32.mrb[0].mxu0
  %v1535 = vadd.f32 %v1225, %v1534
  %v1536 = vpop.f32.mrb[0].mxu0
  %v1537 = vadd.f32 %v1221, %v1536
  %v1538 = vpop.f32.mrb[0].mxu0
  %v1539 = vadd.f32 %v1225, %v1538
  %1540 = vmatprep.mubr.bf16.mxu0 %v1177
  %1541 = vmatmul.mubr.bf16.gmra.mrb[0].mxu0 %v1176
  %v1542 = vpop.f32.mrb[0].mxu0
  %v1543 = vadd.f32 %v1221, %v1542
  %v1544 = vpop.f32.mrb[0].mxu0
  %v1545 = vadd.f32 %v1225, %v1544
  %v1546 = vpop.f32.mrb[0].mxu0
  %v1547 = vadd.f32 %v1221, %v1546
  %v1548 = vpop.f32.mrb[0].mxu0
  %v1549 = vadd.f32 %v1225, %v1548
  %1550 = vmatprep.mubr.bf16.mxu0 %v1179
  %1551 = vmatmul.mubr.bf16.gmra.mrb[0].mxu0 %v1178
  %v1552 = vpop.f32.mrb[0].mxu0
  %v1553 = vadd.f32 %v1221, %v1552
  %v1554 = vpop.f32.mrb[0].mxu0
  %v1555 = vadd.f32 %v1225, %v1554
  %v1556 = vpop.f32.mrb[0].mxu0
  %v1557 = vadd.f32 %v1221, %v1556
  %v1558 = vpop.f32.mrb[0].mxu0
  %v1559 = vadd.f32 %v1225, %v1558
  %1560 = vmatprep.mubr.bf16.mxu0 %v1181
  %1561 = vmatmul.mubr.bf16.gmra.mrb[0].mxu0 %v1180
  %v1562 = vpop.f32.mrb[0].mxu0
  %v1563 = vadd.f32 %v1221, %v1562
  %v1564 = vpop.f32.mrb[0].mxu0
  %v1565 = vadd.f32 %v1225, %v1564
  %v1566 = vpop.f32.mrb[0].mxu0
  %v1567 = vadd.f32 %v1221, %v1566
  %v1568 = vpop.f32.mrb[0].mxu0
  %v1569 = vadd.f32 %v1225, %v1568
  %1570 = vmatprep.mubr.bf16.mxu0 %v1183
  %1571 = vmatmul.mubr.bf16.gmra.mrb[0].mxu0 %v1182
  %v1572 = vpop.f32.mrb[0].mxu0
  %v1573 = vadd.f32 %v1221, %v1572
  %v1574 = vpop.f32.mrb[0].mxu0
  %v1575 = vadd.f32 %v1225, %v1574
  %v1576 = vpop.f32.mrb[0].mxu0
  %v1577 = vadd.f32 %v1221, %v1576
  %v1578 = vpop.f32.mrb[0].mxu0
  %v1579 = vadd.f32 %v1225, %v1578
  %1580 = vdwg.mxu0
  %v1581 = vld [vmem:[%s9] sm:$0xff]
  %v1582 = vld [vmem:[%s9 + $0x8] sm:$0xff]
  %v1583 = vld [vmem:[%s9 + $0x10] sm:$0xff]
  %v1584 = vld [vmem:[%s9 + $0x18] sm:$0xff]
  %v1585 = vld [vmem:[%s9 + $0x20] sm:$0xff]
  %v1586 = vld [vmem:[%s9 + $0x28] sm:$0xff]
  %v1587 = vld [vmem:[%s9 + $0x30] sm:$0xff]
  %v1588 = vld [vmem:[%s9 + $0x38] sm:$0xff]
  %v1589 = vld [vmem:[%s9 + $0x40] sm:$0xff]
  %v1590 = vld [vmem:[%s9 + $0x48] sm:$0xff]
  %v1591 = vld [vmem:[%s9 + $0x50] sm:$0xff]
  %v1592 = vld [vmem:[%s9 + $0x58] sm:$0xff]
  %v1593 = vld [vmem:[%s9 + $0x60] sm:$0xff]
  %v1594 = vld [vmem:[%s9 + $0x68] sm:$0xff]
  %v1595 = vld [vmem:[%s9 + $0x70] sm:$0xff]
  %v1596 = vld [vmem:[%s9 + $0x78] sm:$0xff]
  %v1597 = vld [vmem:[%s9 + $0x80] sm:$0xff]
  %v1598 = vld [vmem:[%s9 + $0x88] sm:$0xff]
  %v1599 = vld [vmem:[%s9 + $0x90] sm:$0xff]
  %v1600 = vld [vmem:[%s9 + $0x98] sm:$0xff]
  %v1601 = vld [vmem:[%s9 + $0xa0] sm:$0xff]
  %v1602 = vld [vmem:[%s9 + $0xa8] sm:$0xff]
  %v1603 = vld [vmem:[%s9 + $0xb0] sm:$0xff]
  %v1604 = vld [vmem:[%s9 + $0xb8] sm:$0xff]
  %v1605 = vld [vmem:[%s9 + $0xc0] sm:$0xff]
  %v1606 = vld [vmem:[%s9 + $0xc8] sm:$0xff]
  %v1607 = vld [vmem:[%s9 + $0xd0] sm:$0xff]
  %v1608 = vld [vmem:[%s9 + $0xd8] sm:$0xff]
  %v1609 = vld [vmem:[%s9 + $0xe0] sm:$0xff]
  %v1610 = vld [vmem:[%s9 + $0xe8] sm:$0xff]
  %v1611 = vld [vmem:[%s9 + $0xf0] sm:$0xff]
  %v1612 = vld [vmem:[%s9 + $0xf8] sm:$0xff]
  %v1613 = vld [vmem:[%s10] sm:$0x3]
  %v1615 = vlaneseq
  %v1616 = vshrl.u32 %v1615, 7
  %v1617 = vsub.s32 0, %v1616
  %v1618 = vrot.slane %v1613, %v1617
  %v1619 = vlaneseq
  %v1620 = vshrl.u32 %v1619, 7
  %v1621 = vsub.s32 1, %v1620
  %v1622 = vrot.slane %v1613, %v1621
  %v1657 = vunpack.c.l.b16 %v1581
  %v1658 = vunpack.c.h.b16 %v1581
  %v1659 = vunpack.c.l.b16 %v1582
  %v1660 = vunpack.c.h.b16 %v1582
  %v1661 = vunpack.c.l.b16 %v1583
  %v1662 = vunpack.c.h.b16 %v1583
  %v1663 = vunpack.c.l.b16 %v1584
  %v1664 = vunpack.c.h.b16 %v1584
  %v1665 = vunpack.c.l.b16 %v1585
  %v1666 = vunpack.c.h.b16 %v1585
  %v1667 = vunpack.c.l.b16 %v1586
  %v1668 = vunpack.c.h.b16 %v1586
  %v1669 = vunpack.c.l.b16 %v1587
  %v1670 = vunpack.c.h.b16 %v1587
  %v1671 = vunpack.c.l.b16 %v1588
  %v1672 = vunpack.c.h.b16 %v1588
  %v1673 = vunpack.c.l.b16 %v1589
  %v1674 = vunpack.c.h.b16 %v1589
  %v1675 = vunpack.c.l.b16 %v1590
  %v1676 = vunpack.c.h.b16 %v1590
  %v1677 = vunpack.c.l.b16 %v1591
  %v1678 = vunpack.c.h.b16 %v1591
  %v1679 = vunpack.c.l.b16 %v1592
  %v1680 = vunpack.c.h.b16 %v1592
  %v1681 = vunpack.c.l.b16 %v1593
  %v1682 = vunpack.c.h.b16 %v1593
  %v1683 = vunpack.c.l.b16 %v1594
  %v1684 = vunpack.c.h.b16 %v1594
  %v1685 = vunpack.c.l.b16 %v1595
  %v1686 = vunpack.c.h.b16 %v1595
  %v1687 = vunpack.c.l.b16 %v1596
  %v1688 = vunpack.c.h.b16 %v1596
  %v1689 = vunpack.c.l.b16 %v1597
  %v1690 = vunpack.c.h.b16 %v1597
  %v1691 = vunpack.c.l.b16 %v1598
  %v1692 = vunpack.c.h.b16 %v1598
  %v1693 = vunpack.c.l.b16 %v1599
  %v1694 = vunpack.c.h.b16 %v1599
  %v1695 = vunpack.c.l.b16 %v1600
  %v1696 = vunpack.c.h.b16 %v1600
  %v1697 = vunpack.c.l.b16 %v1601
  %v1698 = vunpack.c.h.b16 %v1601
  %v1699 = vunpack.c.l.b16 %v1602
  %v1700 = vunpack.c.h.b16 %v1602
  %v1701 = vunpack.c.l.b16 %v1603
  %v1702 = vunpack.c.h.b16 %v1603
  %v1703 = vunpack.c.l.b16 %v1604
  %v1704 = vunpack.c.h.b16 %v1604
  %v1705 = vunpack.c.l.b16 %v1605
  %v1706 = vunpack.c.h.b16 %v1605
  %v1707 = vunpack.c.l.b16 %v1606
  %v1708 = vunpack.c.h.b16 %v1606
  %v1709 = vunpack.c.l.b16 %v1607
  %v1710 = vunpack.c.h.b16 %v1607
  %v1711 = vunpack.c.l.b16 %v1608
  %v1712 = vunpack.c.h.b16 %v1608
  %v1713 = vunpack.c.l.b16 %v1609
  %v1714 = vunpack.c.h.b16 %v1609
  %v1715 = vunpack.c.l.b16 %v1610
  %v1716 = vunpack.c.h.b16 %v1610
  %v1717 = vunpack.c.l.b16 %v1611
  %v1718 = vunpack.c.h.b16 %v1611
  %v1719 = vunpack.c.l.b16 %v1612
  %v1720 = vunpack.c.h.b16 %v1612
  %v1721 = vpack.c.b16 %v1659, %v1657
  %v1722 = vpack.c.b16 %v1660, %v1658
  %v1723 = vpack.c.b16 %v1663, %v1661
  %v1724 = vpack.c.b16 %v1664, %v1662
  %v1725 = vpack.c.b16 %v1667, %v1665
  %v1726 = vpack.c.b16 %v1668, %v1666
  %v1727 = vpack.c.b16 %v1671, %v1669
  %v1728 = vpack.c.b16 %v1672, %v1670
  %v1729 = vpack.c.b16 %v1675, %v1673
  %v1730 = vpack.c.b16 %v1676, %v1674
  %v1731 = vpack.c.b16 %v1679, %v1677
  %v1732 = vpack.c.b16 %v1680, %v1678
  %v1733 = vpack.c.b16 %v1683, %v1681
  %v1734 = vpack.c.b16 %v1684, %v1682
  %v1735 = vpack.c.b16 %v1687, %v1685
  %v1736 = vpack.c.b16 %v1688, %v1686
  %v1737 = vpack.c.b16 %v1691, %v1689
  %v1738 = vpack.c.b16 %v1692, %v1690
  %v1739 = vpack.c.b16 %v1695, %v1693
  %v1740 = vpack.c.b16 %v1696, %v1694
  %v1741 = vpack.c.b16 %v1699, %v1697
  %v1742 = vpack.c.b16 %v1700, %v1698
  %v1743 = vpack.c.b16 %v1703, %v1701
  %v1744 = vpack.c.b16 %v1704, %v1702
  %v1745 = vpack.c.b16 %v1707, %v1705
  %v1746 = vpack.c.b16 %v1708, %v1706
  %v1747 = vpack.c.b16 %v1711, %v1709
  %v1748 = vpack.c.b16 %v1712, %v1710
  %v1749 = vpack.c.b16 %v1715, %v1713
  %v1750 = vpack.c.b16 %v1716, %v1714
  %v1751 = vpack.c.b16 %v1719, %v1717
  %v1752 = vpack.c.b16 %v1720, %v1718
  %1785 = vmatprep.subr.bf16.mxu0 %v1722
  %1786 = vmatpush1.bf16.msra.mxu0 %v1721
  %1787 = vmatprep.subr.bf16.mxu0 %v1724
  %1788 = vmatpush1.bf16.msra.mxu0 %v1723
  %1789 = vmatprep.subr.bf16.mxu0 %v1726
  %1790 = vmatpush1.bf16.msra.mxu0 %v1725
  %1791 = vmatprep.subr.bf16.mxu0 %v1728
  %1792 = vmatpush1.bf16.msra.mxu0 %v1727
  %1793 = vmatprep.subr.bf16.mxu0 %v1730
  %1794 = vmatpush1.bf16.msra.mxu0 %v1729
  %1795 = vmatprep.subr.bf16.mxu0 %v1732
  %1796 = vmatpush1.bf16.msra.mxu0 %v1731
  %1797 = vmatprep.subr.bf16.mxu0 %v1734
  %1798 = vmatpush1.bf16.msra.mxu0 %v1733
  %1799 = vmatprep.subr.bf16.mxu0 %v1736
  %1800 = vmatpush1.bf16.msra.mxu0 %v1735
  %1801 = vmatprep.subr.bf16.mxu0 %v1738
  %1802 = vmatpush1.bf16.msra.mxu0 %v1737
  %1803 = vmatprep.subr.bf16.mxu0 %v1740
  %1804 = vmatpush1.bf16.msra.mxu0 %v1739
  %1805 = vmatprep.subr.bf16.mxu0 %v1742
  %1806 = vmatpush1.bf16.msra.mxu0 %v1741
  %1807 = vmatprep.subr.bf16.mxu0 %v1744
  %1808 = vmatpush1.bf16.msra.mxu0 %v1743
  %1809 = vmatprep.subr.bf16.mxu0 %v1746
  %1810 = vmatpush1.bf16.msra.mxu0 %v1745
  %1811 = vmatprep.subr.bf16.mxu0 %v1748
  %1812 = vmatpush1.bf16.msra.mxu0 %v1747
  %1813 = vmatprep.subr.bf16.mxu0 %v1750
  %1814 = vmatpush1.bf16.msra.mxu0 %v1749
  %1815 = vmatprep.subr.bf16.mxu0 %v1752
  %1816 = vmatpush1.bf16.msra.mxu0 %v1751
  %1817 = vmatprep.mubr.bf16.mxu0 %v1153
  %1818 = vmatmul.mubr.bf16.gmra.mrb[0].mxu0 %v1152
  %v1819 = vpop.f32.mrb[0].mxu0
  %v1820 = vadd.f32 %v1618, %v1819
  %v1821 = vpop.f32.mrb[0].mxu0
  %v1822 = vadd.f32 %v1622, %v1821
  %v1823 = vpop.f32.mrb[0].mxu0
  %v1824 = vadd.f32 %v1618, %v1823
  %v1825 = vpop.f32.mrb[0].mxu0
  %v1826 = vadd.f32 %v1622, %v1825
  %1827 = vmatprep.mubr.bf16.mxu0 %v1155
  %1828 = vmatmul.mubr.bf16.gmra.mrb[0].mxu0 %v1154
  %v1829 = vpop.f32.mrb[0].mxu0
  %v1830 = vadd.f32 %v1618, %v1829
  %v1831 = vpop.f32.mrb[0].mxu0
  %v1832 = vadd.f32 %v1622, %v1831
  %v1833 = vpop.f32.mrb[0].mxu0
  %v1834 = vadd.f32 %v1618, %v1833
  %v1835 = vpop.f32.mrb[0].mxu0
  %v1836 = vadd.f32 %v1622, %v1835
  %1837 = vmatprep.mubr.bf16.mxu0 %v1157
  %1838 = vmatmul.mubr.bf16.gmra.mrb[0].mxu0 %v1156
  %v1839 = vpop.f32.mrb[0].mxu0
  %v1840 = vadd.f32 %v1618, %v1839
  %v1841 = vpop.f32.mrb[0].mxu0
  %v1842 = vadd.f32 %v1622, %v1841
  %v1843 = vpop.f32.mrb[0].mxu0
  %v1844 = vadd.f32 %v1618, %v1843
  %v1845 = vpop.f32.mrb[0].mxu0
  %v1846 = vadd.f32 %v1622, %v1845
  %1847 = vmatprep.mubr.bf16.mxu0 %v1159
  %1848 = vmatmul.mubr.bf16.gmra.mrb[0].mxu0 %v1158
  %v1849 = vpop.f32.mrb[0].mxu0
  %v1850 = vadd.f32 %v1618, %v1849
  %v1851 = vpop.f32.mrb[0].mxu0
  %v1852 = vadd.f32 %v1622, %v1851
  %v1853 = vpop.f32.mrb[0].mxu0
  %v1854 = vadd.f32 %v1618, %v1853
  %v1855 = vpop.f32.mrb[0].mxu0
  %v1856 = vadd.f32 %v1622, %v1855
  %1857 = vmatprep.mubr.bf16.mxu0 %v1161
  %1858 = vmatmul.mubr.bf16.gmra.mrb[0].mxu0 %v1160
  %v1859 = vpop.f32.mrb[0].mxu0
  %v1860 = vadd.f32 %v1618, %v1859
  %v1861 = vpop.f32.mrb[0].mxu0
  %v1862 = vadd.f32 %v1622, %v1861
  %v1863 = vpop.f32.mrb[0].mxu0
  %v1864 = vadd.f32 %v1618, %v1863
  %v1865 = vpop.f32.mrb[0].mxu0
  %v1866 = vadd.f32 %v1622, %v1865
  %1867 = vmatprep.mubr.bf16.mxu0 %v1163
  %1868 = vmatmul.mubr.bf16.gmra.mrb[0].mxu0 %v1162
  %v1869 = vpop.f32.mrb[0].mxu0
  %v1870 = vadd.f32 %v1618, %v1869
  %v1871 = vpop.f32.mrb[0].mxu0
  %v1872 = vadd.f32 %v1622, %v1871
  %v1873 = vpop.f32.mrb[0].mxu0
  %v1874 = vadd.f32 %v1618, %v1873
  %v1875 = vpop.f32.mrb[0].mxu0
  %v1876 = vadd.f32 %v1622, %v1875
  %1877 = vmatprep.mubr.bf16.mxu0 %v1165
  %1878 = vmatmul.mubr.bf16.gmra.mrb[0].mxu0 %v1164
  %v1879 = vpop.f32.mrb[0].mxu0
  %v1880 = vadd.f32 %v1618, %v1879
  %v1881 = vpop.f32.mrb[0].mxu0
  %v1882 = vadd.f32 %v1622, %v1881
  %v1883 = vpop.f32.mrb[0].mxu0
  %v1884 = vadd.f32 %v1618, %v1883
  %v1885 = vpop.f32.mrb[0].mxu0
  %v1886 = vadd.f32 %v1622, %v1885
  %1887 = vmatprep.mubr.bf16.mxu0 %v1167
  %1888 = vmatmul.mubr.bf16.gmra.mrb[0].mxu0 %v1166
  %v1889 = vpop.f32.mrb[0].mxu0
  %v1890 = vadd.f32 %v1618, %v1889
  %v1891 = vpop.f32.mrb[0].mxu0
  %v1892 = vadd.f32 %v1622, %v1891
  %v1893 = vpop.f32.mrb[0].mxu0
  %v1894 = vadd.f32 %v1618, %v1893
  %v1895 = vpop.f32.mrb[0].mxu0
  %v1896 = vadd.f32 %v1622, %v1895
  %1897 = vmatprep.mubr.bf16.mxu0 %v1169
  %1898 = vmatmul.mubr.bf16.gmra.mrb[0].mxu0 %v1168
  %v1899 = vpop.f32.mrb[0].mxu0
  %v1900 = vadd.f32 %v1618, %v1899
  %v1901 = vpop.f32.mrb[0].mxu0
  %v1902 = vadd.f32 %v1622, %v1901
  %v1903 = vpop.f32.mrb[0].mxu0
  %v1904 = vadd.f32 %v1618, %v1903
  %v1905 = vpop.f32.mrb[0].mxu0
  %v1906 = vadd.f32 %v1622, %v1905
  %1907 = vmatprep.mubr.bf16.mxu0 %v1171
  %1908 = vmatmul.mubr.bf16.gmra.mrb[0].mxu0 %v1170
  %v1909 = vpop.f32.mrb[0].mxu0
  %v1910 = vadd.f32 %v1618, %v1909
  %v1911 = vpop.f32.mrb[0].mxu0
  %v1912 = vadd.f32 %v1622, %v1911
  %v1913 = vpop.f32.mrb[0].mxu0
  %v1914 = vadd.f32 %v1618, %v1913
  %v1915 = vpop.f32.mrb[0].mxu0
  %v1916 = vadd.f32 %v1622, %v1915
  %1917 = vmatprep.mubr.bf16.mxu0 %v1173
  %1918 = vmatmul.mubr.bf16.gmra.mrb[0].mxu0 %v1172
  %v1919 = vpop.f32.mrb[0].mxu0
  %v1920 = vadd.f32 %v1618, %v1919
  %v1921 = vpop.f32.mrb[0].mxu0
  %v1922 = vadd.f32 %v1622, %v1921
  %v1923 = vpop.f32.mrb[0].mxu0
  %v1924 = vadd.f32 %v1618, %v1923
  %v1925 = vpop.f32.mrb[0].mxu0
  %v1926 = vadd.f32 %v1622, %v1925
  %1927 = vmatprep.mubr.bf16.mxu0 %v1175
  %1928 = vmatmul.mubr.bf16.gmra.mrb[0].mxu0 %v1174
  %v1929 = vpop.f32.mrb[0].mxu0
  %v1930 = vadd.f32 %v1618, %v1929
  %v1931 = vpop.f32.mrb[0].mxu0
  %v1932 = vadd.f32 %v1622, %v1931
  %v1933 = vpop.f32.mrb[0].mxu0
  %v1934 = vadd.f32 %v1618, %v1933
  %v1935 = vpop.f32.mrb[0].mxu0
  %v1936 = vadd.f32 %v1622, %v1935
  %1937 = vmatprep.mubr.bf16.mxu0 %v1177
  %1938 = vmatmul.mubr.bf16.gmra.mrb[0].mxu0 %v1176
  %v1939 = vpop.f32.mrb[0].mxu0
  %v1940 = vadd.f32 %v1618, %v1939
  %v1941 = vpop.f32.mrb[0].mxu0
  %v1942 = vadd.f32 %v1622, %v1941
  %v1943 = vpop.f32.mrb[0].mxu0
  %v1944 = vadd.f32 %v1618, %v1943
  %v1945 = vpop.f32.mrb[0].mxu0
  %v1946 = vadd.f32 %v1622, %v1945
  %1947 = vmatprep.mubr.bf16.mxu0 %v1179
  %1948 = vmatmul.mubr.bf16.gmra.mrb[0].mxu0 %v1178
  %v1949 = vpop.f32.mrb[0].mxu0
  %v1950 = vadd.f32 %v1618, %v1949
  %v1951 = vpop.f32.mrb[0].mxu0
  %v1952 = vadd.f32 %v1622, %v1951
  %v1953 = vpop.f32.mrb[0].mxu0
  %v1954 = vadd.f32 %v1618, %v1953
  %v1955 = vpop.f32.mrb[0].mxu0
  %v1956 = vadd.f32 %v1622, %v1955
  %1957 = vmatprep.mubr.bf16.mxu0 %v1181
  %1958 = vmatmul.mubr.bf16.gmra.mrb[0].mxu0 %v1180
  %v1959 = vpop.f32.mrb[0].mxu0
  %v1960 = vadd.f32 %v1618, %v1959
  %v1961 = vpop.f32.mrb[0].mxu0
  %v1962 = vadd.f32 %v1622, %v1961
  %v1963 = vpop.f32.mrb[0].mxu0
  %v1964 = vadd.f32 %v1618, %v1963
  %v1965 = vpop.f32.mrb[0].mxu0
  %v1966 = vadd.f32 %v1622, %v1965
  %1967 = vmatprep.mubr.bf16.mxu0 %v1183
  %1968 = vmatmul.mubr.bf16.gmra.mrb[0].mxu0 %v1182
  %v1969 = vpop.f32.mrb[0].mxu0
  %v1970 = vadd.f32 %v1618, %v1969
  %v1971 = vpop.f32.mrb[0].mxu0
  %v1972 = vadd.f32 %v1622, %v1971
  %v1973 = vpop.f32.mrb[0].mxu0
  %v1974 = vadd.f32 %v1618, %v1973
  %v1975 = vpop.f32.mrb[0].mxu0
  %v1976 = vadd.f32 %v1622, %v1975
  %1977 = vdwg.mxu0
  %v1978 = vld [vmem:[%s11] sm:$0xff]
  %v1979 = vld [vmem:[%s11 + $0x8] sm:$0xff]
  %v1980 = vld [vmem:[%s11 + $0x10] sm:$0xff]
  %v1981 = vld [vmem:[%s11 + $0x18] sm:$0xff]
  %v1982 = vld [vmem:[%s11 + $0x20] sm:$0xff]
  %v1983 = vld [vmem:[%s11 + $0x28] sm:$0xff]
  %v1984 = vld [vmem:[%s11 + $0x30] sm:$0xff]
  %v1985 = vld [vmem:[%s11 + $0x38] sm:$0xff]
  %v1986 = vld [vmem:[%s11 + $0x40] sm:$0xff]
  %v1987 = vld [vmem:[%s11 + $0x48] sm:$0xff]
  %v1988 = vld [vmem:[%s11 + $0x50] sm:$0xff]
  %v1989 = vld [vmem:[%s11 + $0x58] sm:$0xff]
  %v1990 = vld [vmem:[%s11 + $0x60] sm:$0xff]
  %v1991 = vld [vmem:[%s11 + $0x68] sm:$0xff]
  %v1992 = vld [vmem:[%s11 + $0x70] sm:$0xff]
  %v1993 = vld [vmem:[%s11 + $0x78] sm:$0xff]
  %v1994 = vld [vmem:[%s11 + $0x80] sm:$0xff]
  %v1995 = vld [vmem:[%s11 + $0x88] sm:$0xff]
  %v1996 = vld [vmem:[%s11 + $0x90] sm:$0xff]
  %v1997 = vld [vmem:[%s11 + $0x98] sm:$0xff]
  %v1998 = vld [vmem:[%s11 + $0xa0] sm:$0xff]
  %v1999 = vld [vmem:[%s11 + $0xa8] sm:$0xff]
  %v2000 = vld [vmem:[%s11 + $0xb0] sm:$0xff]
  %v2001 = vld [vmem:[%s11 + $0xb8] sm:$0xff]
  %v2002 = vld [vmem:[%s11 + $0xc0] sm:$0xff]
  %v2003 = vld [vmem:[%s11 + $0xc8] sm:$0xff]
  %v2004 = vld [vmem:[%s11 + $0xd0] sm:$0xff]
  %v2005 = vld [vmem:[%s11 + $0xd8] sm:$0xff]
  %v2006 = vld [vmem:[%s11 + $0xe0] sm:$0xff]
  %v2007 = vld [vmem:[%s11 + $0xe8] sm:$0xff]
  %v2008 = vld [vmem:[%s11 + $0xf0] sm:$0xff]
  %v2009 = vld [vmem:[%s11 + $0xf8] sm:$0xff]
  %v2010 = vld [vmem:[%s12] sm:$0x3]
  %v2012 = vlaneseq
  %v2013 = vshrl.u32 %v2012, 7
  %v2014 = vsub.s32 0, %v2013
  %v2015 = vrot.slane %v2010, %v2014
  %v2016 = vlaneseq
  %v2017 = vshrl.u32 %v2016, 7
  %v2018 = vsub.s32 1, %v2017
  %v2019 = vrot.slane %v2010, %v2018
  %v2054 = vunpack.c.l.b16 %v1978
  %v2055 = vunpack.c.h.b16 %v1978
  %v2056 = vunpack.c.l.b16 %v1979
  %v2057 = vunpack.c.h.b16 %v1979
  %v2058 = vunpack.c.l.b16 %v1980
  %v2059 = vunpack.c.h.b16 %v1980
  %v2060 = vunpack.c.l.b16 %v1981
  %v2061 = vunpack.c.h.b16 %v1981
  %v2062 = vunpack.c.l.b16 %v1982
  %v2063 = vunpack.c.h.b16 %v1982
  %v2064 = vunpack.c.l.b16 %v1983
  %v2065 = vunpack.c.h.b16 %v1983
  %v2066 = vunpack.c.l.b16 %v1984
  %v2067 = vunpack.c.h.b16 %v1984
  %v2068 = vunpack.c.l.b16 %v1985
  %v2069 = vunpack.c.h.b16 %v1985
  %v2070 = vunpack.c.l.b16 %v1986
  %v2071 = vunpack.c.h.b16 %v1986
  %v2072 = vunpack.c.l.b16 %v1987
  %v2073 = vunpack.c.h.b16 %v1987
  %v2074 = vunpack.c.l.b16 %v1988
  %v2075 = vunpack.c.h.b16 %v1988
  %v2076 = vunpack.c.l.b16 %v1989
  %v2077 = vunpack.c.h.b16 %v1989
  %v2078 = vunpack.c.l.b16 %v1990
  %v2079 = vunpack.c.h.b16 %v1990
  %v2080 = vunpack.c.l.b16 %v1991
  %v2081 = vunpack.c.h.b16 %v1991
  %v2082 = vunpack.c.l.b16 %v1992
  %v2083 = vunpack.c.h.b16 %v1992
  %v2084 = vunpack.c.l.b16 %v1993
  %v2085 = vunpack.c.h.b16 %v1993
  %v2086 = vunpack.c.l.b16 %v1994
  %v2087 = vunpack.c.h.b16 %v1994
  %v2088 = vunpack.c.l.b16 %v1995
  %v2089 = vunpack.c.h.b16 %v1995
  %v2090 = vunpack.c.l.b16 %v1996
  %v2091 = vunpack.c.h.b16 %v1996
  %v2092 = vunpack.c.l.b16 %v1997
  %v2093 = vunpack.c.h.b16 %v1997
  %v2094 = vunpack.c.l.b16 %v1998
  %v2095 = vunpack.c.h.b16 %v1998
  %v2096 = vunpack.c.l.b16 %v1999
  %v2097 = vunpack.c.h.b16 %v1999
  %v2098 = vunpack.c.l.b16 %v2000
  %v2099 = vunpack.c.h.b16 %v2000
  %v2100 = vunpack.c.l.b16 %v2001
  %v2101 = vunpack.c.h.b16 %v2001
  %v2102 = vunpack.c.l.b16 %v2002
  %v2103 = vunpack.c.h.b16 %v2002
  %v2104 = vunpack.c.l.b16 %v2003
  %v2105 = vunpack.c.h.b16 %v2003
  %v2106 = vunpack.c.l.b16 %v2004
  %v2107 = vunpack.c.h.b16 %v2004
  %v2108 = vunpack.c.l.b16 %v2005
  %v2109 = vunpack.c.h.b16 %v2005
  %v2110 = vunpack.c.l.b16 %v2006
  %v2111 = vunpack.c.h.b16 %v2006
  %v2112 = vunpack.c.l.b16 %v2007
  %v2113 = vunpack.c.h.b16 %v2007
  %v2114 = vunpack.c.l.b16 %v2008
  %v2115 = vunpack.c.h.b16 %v2008
  %v2116 = vunpack.c.l.b16 %v2009
  %v2117 = vunpack.c.h.b16 %v2009
  %v2118 = vpack.c.b16 %v2056, %v2054
  %v2119 = vpack.c.b16 %v2057, %v2055
  %v2120 = vpack.c.b16 %v2060, %v2058
  %v2121 = vpack.c.b16 %v2061, %v2059
  %v2122 = vpack.c.b16 %v2064, %v2062
  %v2123 = vpack.c.b16 %v2065, %v2063
  %v2124 = vpack.c.b16 %v2068, %v2066
  %v2125 = vpack.c.b16 %v2069, %v2067
  %v2126 = vpack.c.b16 %v2072, %v2070
  %v2127 = vpack.c.b16 %v2073, %v2071
  %v2128 = vpack.c.b16 %v2076, %v2074
  %v2129 = vpack.c.b16 %v2077, %v2075
  %v2130 = vpack.c.b16 %v2080, %v2078
  %v2131 = vpack.c.b16 %v2081, %v2079
  %v2132 = vpack.c.b16 %v2084, %v2082
  %v2133 = vpack.c.b16 %v2085, %v2083
  %v2134 = vpack.c.b16 %v2088, %v2086
  %v2135 = vpack.c.b16 %v2089, %v2087
  %v2136 = vpack.c.b16 %v2092, %v2090
  %v2137 = vpack.c.b16 %v2093, %v2091
  %v2138 = vpack.c.b16 %v2096, %v2094
  %v2139 = vpack.c.b16 %v2097, %v2095
  %v2140 = vpack.c.b16 %v2100, %v2098
  %v2141 = vpack.c.b16 %v2101, %v2099
  %v2142 = vpack.c.b16 %v2104, %v2102
  %v2143 = vpack.c.b16 %v2105, %v2103
  %v2144 = vpack.c.b16 %v2108, %v2106
  %v2145 = vpack.c.b16 %v2109, %v2107
  %v2146 = vpack.c.b16 %v2112, %v2110
  %v2147 = vpack.c.b16 %v2113, %v2111
  %v2148 = vpack.c.b16 %v2116, %v2114
  %v2149 = vpack.c.b16 %v2117, %v2115
  %2182 = vmatprep.subr.bf16.mxu0 %v2119
  %2183 = vmatpush1.bf16.msra.mxu0 %v2118
  %2184 = vmatprep.subr.bf16.mxu0 %v2121
  %2185 = vmatpush1.bf16.msra.mxu0 %v2120
  %2186 = vmatprep.subr.bf16.mxu0 %v2123
  %2187 = vmatpush1.bf16.msra.mxu0 %v2122
  %2188 = vmatprep.subr.bf16.mxu0 %v2125
  %2189 = vmatpush1.bf16.msra.mxu0 %v2124
  %2190 = vmatprep.subr.bf16.mxu0 %v2127
  %2191 = vmatpush1.bf16.msra.mxu0 %v2126
  %2192 = vmatprep.subr.bf16.mxu0 %v2129
  %2193 = vmatpush1.bf16.msra.mxu0 %v2128
  %2194 = vmatprep.subr.bf16.mxu0 %v2131
  %2195 = vmatpush1.bf16.msra.mxu0 %v2130
  %2196 = vmatprep.subr.bf16.mxu0 %v2133
  %2197 = vmatpush1.bf16.msra.mxu0 %v2132
  %2198 = vmatprep.subr.bf16.mxu0 %v2135
  %2199 = vmatpush1.bf16.msra.mxu0 %v2134
  %2200 = vmatprep.subr.bf16.mxu0 %v2137
  %2201 = vmatpush1.bf16.msra.mxu0 %v2136
  %2202 = vmatprep.subr.bf16.mxu0 %v2139
  %2203 = vmatpush1.bf16.msra.mxu0 %v2138
  %2204 = vmatprep.subr.bf16.mxu0 %v2141
  %2205 = vmatpush1.bf16.msra.mxu0 %v2140
  %2206 = vmatprep.subr.bf16.mxu0 %v2143
  %2207 = vmatpush1.bf16.msra.mxu0 %v2142
  %2208 = vmatprep.subr.bf16.mxu0 %v2145
  %2209 = vmatpush1.bf16.msra.mxu0 %v2144
  %2210 = vmatprep.subr.bf16.mxu0 %v2147
  %2211 = vmatpush1.bf16.msra.mxu0 %v2146
  %2212 = vmatprep.subr.bf16.mxu0 %v2149
  %2213 = vmatpush1.bf16.msra.mxu0 %v2148
  %2214 = vmatprep.mubr.bf16.mxu0 %v1153
  %2215 = vmatmul.mubr.bf16.gmra.mrb[0].mxu0 %v1152
  %v2216 = vpop.f32.mrb[0].mxu0
  %v2217 = vadd.f32 %v2015, %v2216
  %v2218 = vpop.f32.mrb[0].mxu0
  %v2219 = vadd.f32 %v2019, %v2218
  %v2220 = vpop.f32.mrb[0].mxu0
  %v2221 = vadd.f32 %v2015, %v2220
  %v2222 = vpop.f32.mrb[0].mxu0
  %v2223 = vadd.f32 %v2019, %v2222
  %2224 = vmatprep.mubr.bf16.mxu0 %v1155
  %2225 = vmatmul.mubr.bf16.gmra.mrb[0].mxu0 %v1154
  %v2226 = vpop.f32.mrb[0].mxu0
  %v2227 = vadd.f32 %v2015, %v2226
  %v2228 = vpop.f32.mrb[0].mxu0
  %v2229 = vadd.f32 %v2019, %v2228
  %v2230 = vpop.f32.mrb[0].mxu0
  %v2231 = vadd.f32 %v2015, %v2230
  %v2232 = vpop.f32.mrb[0].mxu0
  %v2233 = vadd.f32 %v2019, %v2232
  %2234 = vmatprep.mubr.bf16.mxu0 %v1157
  %2235 = vmatmul.mubr.bf16.gmra.mrb[0].mxu0 %v1156
  %v2236 = vpop.f32.mrb[0].mxu0
  %v2237 = vadd.f32 %v2015, %v2236
  %v2238 = vpop.f32.mrb[0].mxu0
  %v2239 = vadd.f32 %v2019, %v2238
  %v2240 = vpop.f32.mrb[0].mxu0
  %v2241 = vadd.f32 %v2015, %v2240
  %v2242 = vpop.f32.mrb[0].mxu0
  %v2243 = vadd.f32 %v2019, %v2242
  %2244 = vmatprep.mubr.bf16.mxu0 %v1159
  %2245 = vmatmul.mubr.bf16.gmra.mrb[0].mxu0 %v1158
  %v2246 = vpop.f32.mrb[0].mxu0
  %v2247 = vadd.f32 %v2015, %v2246
  %v2248 = vpop.f32.mrb[0].mxu0
  %v2249 = vadd.f32 %v2019, %v2248
  %v2250 = vpop.f32.mrb[0].mxu0
  %v2251 = vadd.f32 %v2015, %v2250
  %v2252 = vpop.f32.mrb[0].mxu0
  %v2253 = vadd.f32 %v2019, %v2252
  %2254 = vmatprep.mubr.bf16.mxu0 %v1161
  %2255 = vmatmul.mubr.bf16.gmra.mrb[0].mxu0 %v1160
  %v2256 = vpop.f32.mrb[0].mxu0
  %v2257 = vadd.f32 %v2015, %v2256
  %v2258 = vpop.f32.mrb[0].mxu0
  %v2259 = vadd.f32 %v2019, %v2258
  %v2260 = vpop.f32.mrb[0].mxu0
  %v2261 = vadd.f32 %v2015, %v2260
  %v2262 = vpop.f32.mrb[0].mxu0
  %v2263 = vadd.f32 %v2019, %v2262
  %2264 = vmatprep.mubr.bf16.mxu0 %v1163
  %2265 = vmatmul.mubr.bf16.gmra.mrb[0].mxu0 %v1162
  %v2266 = vpop.f32.mrb[0].mxu0
  %v2267 = vadd.f32 %v2015, %v2266
  %v2268 = vpop.f32.mrb[0].mxu0
  %v2269 = vadd.f32 %v2019, %v2268
  %v2270 = vpop.f32.mrb[0].mxu0
  %v2271 = vadd.f32 %v2015, %v2270
  %v2272 = vpop.f32.mrb[0].mxu0
  %v2273 = vadd.f32 %v2019, %v2272
  %2274 = vmatprep.mubr.bf16.mxu0 %v1165
  %2275 = vmatmul.mubr.bf16.gmra.mrb[0].mxu0 %v1164
  %v2276 = vpop.f32.mrb[0].mxu0
  %v2277 = vadd.f32 %v2015, %v2276
  %v2278 = vpop.f32.mrb[0].mxu0
  %v2279 = vadd.f32 %v2019, %v2278
  %v2280 = vpop.f32.mrb[0].mxu0
  %v2281 = vadd.f32 %v2015, %v2280
  %v2282 = vpop.f32.mrb[0].mxu0
  %v2283 = vadd.f32 %v2019, %v2282
  %2284 = vmatprep.mubr.bf16.mxu0 %v1167
  %2285 = vmatmul.mubr.bf16.gmra.mrb[0].mxu0 %v1166
  %v2286 = vpop.f32.mrb[0].mxu0
  %v2287 = vadd.f32 %v2015, %v2286
  %v2288 = vpop.f32.mrb[0].mxu0
  %v2289 = vadd.f32 %v2019, %v2288
  %v2290 = vpop.f32.mrb[0].mxu0
  %v2291 = vadd.f32 %v2015, %v2290
  %v2292 = vpop.f32.mrb[0].mxu0
  %v2293 = vadd.f32 %v2019, %v2292
  %2294 = vmatprep.mubr.bf16.mxu0 %v1169
  %2295 = vmatmul.mubr.bf16.gmra.mrb[0].mxu0 %v1168
  %v2296 = vpop.f32.mrb[0].mxu0
  %v2297 = vadd.f32 %v2015, %v2296
  %v2298 = vpop.f32.mrb[0].mxu0
  %v2299 = vadd.f32 %v2019, %v2298
  %v2300 = vpop.f32.mrb[0].mxu0
  %v2301 = vadd.f32 %v2015, %v2300
  %v2302 = vpop.f32.mrb[0].mxu0
  %v2303 = vadd.f32 %v2019, %v2302
  %2304 = vmatprep.mubr.bf16.mxu0 %v1171
  %2305 = vmatmul.mubr.bf16.gmra.mrb[0].mxu0 %v1170
  %v2306 = vpop.f32.mrb[0].mxu0
  %v2307 = vadd.f32 %v2015, %v2306
  %v2308 = vpop.f32.mrb[0].mxu0
  %v2309 = vadd.f32 %v2019, %v2308
  %v2310 = vpop.f32.mrb[0].mxu0
  %v2311 = vadd.f32 %v2015, %v2310
  %v2312 = vpop.f32.mrb[0].mxu0
  %v2313 = vadd.f32 %v2019, %v2312
  %2314 = vmatprep.mubr.bf16.mxu0 %v1173
  %2315 = vmatmul.mubr.bf16.gmra.mrb[0].mxu0 %v1172
  %v2316 = vpop.f32.mrb[0].mxu0
  %v2317 = vadd.f32 %v2015, %v2316
  %v2318 = vpop.f32.mrb[0].mxu0
  %v2319 = vadd.f32 %v2019, %v2318
  %v2320 = vpop.f32.mrb[0].mxu0
  %v2321 = vadd.f32 %v2015, %v2320
  %v2322 = vpop.f32.mrb[0].mxu0
  %v2323 = vadd.f32 %v2019, %v2322
  %2324 = vmatprep.mubr.bf16.mxu0 %v1175
  %2325 = vmatmul.mubr.bf16.gmra.mrb[0].mxu0 %v1174
  %v2326 = vpop.f32.mrb[0].mxu0
  %v2327 = vadd.f32 %v2015, %v2326
  %v2328 = vpop.f32.mrb[0].mxu0
  %v2329 = vadd.f32 %v2019, %v2328
  %v2330 = vpop.f32.mrb[0].mxu0
  %v2331 = vadd.f32 %v2015, %v2330
  %v2332 = vpop.f32.mrb[0].mxu0
  %v2333 = vadd.f32 %v2019, %v2332
  %2334 = vmatprep.mubr.bf16.mxu0 %v1177
  %2335 = vmatmul.mubr.bf16.gmra.mrb[0].mxu0 %v1176
  %v2336 = vpop.f32.mrb[0].mxu0
  %v2337 = vadd.f32 %v2015, %v2336
  %v2338 = vpop.f32.mrb[0].mxu0
  %v2339 = vadd.f32 %v2019, %v2338
  %v2340 = vpop.f32.mrb[0].mxu0
  %v2341 = vadd.f32 %v2015, %v2340
  %v2342 = vpop.f32.mrb[0].mxu0
  %v2343 = vadd.f32 %v2019, %v2342
  %2344 = vmatprep.mubr.bf16.mxu0 %v1179
  %2345 = vmatmul.mubr.bf16.gmra.mrb[0].mxu0 %v1178
  %v2346 = vpop.f32.mrb[0].mxu0
  %v2347 = vadd.f32 %v2015, %v2346
  %v2348 = vpop.f32.mrb[0].mxu0
  %v2349 = vadd.f32 %v2019, %v2348
  %v2350 = vpop.f32.mrb[0].mxu0
  %v2351 = vadd.f32 %v2015, %v2350
  %v2352 = vpop.f32.mrb[0].mxu0
  %v2353 = vadd.f32 %v2019, %v2352
  %2354 = vmatprep.mubr.bf16.mxu0 %v1181
  %2355 = vmatmul.mubr.bf16.gmra.mrb[0].mxu0 %v1180
  %v2356 = vpop.f32.mrb[0].mxu0
  %v2357 = vadd.f32 %v2015, %v2356
  %v2358 = vpop.f32.mrb[0].mxu0
  %v2359 = vadd.f32 %v2019, %v2358
  %v2360 = vpop.f32.mrb[0].mxu0
  %v2361 = vadd.f32 %v2015, %v2360
  %v2362 = vpop.f32.mrb[0].mxu0
  %v2363 = vadd.f32 %v2019, %v2362
  %2364 = vmatprep.mubr.bf16.mxu0 %v1183
  %2365 = vmatmul.mubr.bf16.gmra.mrb[0].mxu0 %v1182
  %v2366 = vpop.f32.mrb[0].mxu0
  %v2367 = vadd.f32 %v2015, %v2366
  %v2368 = vpop.f32.mrb[0].mxu0
  %v2369 = vadd.f32 %v2019, %v2368
  %v2370 = vpop.f32.mrb[0].mxu0
  %v2371 = vadd.f32 %v2015, %v2370
  %v2372 = vpop.f32.mrb[0].mxu0
  %v2373 = vadd.f32 %v2019, %v2372
  %2374 = vdwg.mxu0
  %v2375 = vpack.c.bf16 %v1427, %v1423
  %v2376 = vpack.c.bf16 %v1429, %v1425
  %v2377 = vpack.c.bf16 %v1437, %v1433
  %v2378 = vpack.c.bf16 %v1439, %v1435
  %v2379 = vpack.c.bf16 %v1447, %v1443
  %v2380 = vpack.c.bf16 %v1449, %v1445
  %v2381 = vpack.c.bf16 %v1457, %v1453
  %v2382 = vpack.c.bf16 %v1459, %v1455
  %v2383 = vpack.c.bf16 %v1467, %v1463
  %v2384 = vpack.c.bf16 %v1469, %v1465
  %v2385 = vpack.c.bf16 %v1477, %v1473
  %v2386 = vpack.c.bf16 %v1479, %v1475
  %v2387 = vpack.c.bf16 %v1487, %v1483
  %v2388 = vpack.c.bf16 %v1489, %v1485
  %v2389 = vpack.c.bf16 %v1497, %v1493
  %v2390 = vpack.c.bf16 %v1499, %v1495
  %v2391 = vpack.c.bf16 %v1507, %v1503
  %v2392 = vpack.c.bf16 %v1509, %v1505
  %v2393 = vpack.c.bf16 %v1517, %v1513
  %v2394 = vpack.c.bf16 %v1519, %v1515
  %v2395 = vpack.c.bf16 %v1527, %v1523
  %v2396 = vpack.c.bf16 %v1529, %v1525
  %v2397 = vpack.c.bf16 %v1537, %v1533
  %v2398 = vpack.c.bf16 %v1539, %v1535
  %v2399 = vpack.c.bf16 %v1547, %v1543
  %v2400 = vpack.c.bf16 %v1549, %v1545
  %v2401 = vpack.c.bf16 %v1557, %v1553
  %v2402 = vpack.c.bf16 %v1559, %v1555
  %v2403 = vpack.c.bf16 %v1567, %v1563
  %v2404 = vpack.c.bf16 %v1569, %v1565
  %v2405 = vpack.c.bf16 %v1577, %v1573
  %v2406 = vpack.c.bf16 %v1579, %v1575
  %v2407 = vpack.c.bf16 %v2221, %v2217
  %v2408 = vpack.c.bf16 %v2223, %v2219
  %v2409 = vpack.c.bf16 %v2231, %v2227
  %v2410 = vpack.c.bf16 %v2233, %v2229
  %v2411 = vpack.c.bf16 %v2241, %v2237
  %v2412 = vpack.c.bf16 %v2243, %v2239
  %v2413 = vpack.c.bf16 %v2251, %v2247
  %v2414 = vpack.c.bf16 %v2253, %v2249
  %v2415 = vpack.c.bf16 %v2261, %v2257
  %v2416 = vpack.c.bf16 %v2263, %v2259
  %v2417 = vpack.c.bf16 %v2271, %v2267
  %v2418 = vpack.c.bf16 %v2273, %v2269
  %v2419 = vpack.c.bf16 %v2281, %v2277
  %v2420 = vpack.c.bf16 %v2283, %v2279
  %v2421 = vpack.c.bf16 %v2291, %v2287
  %v2422 = vpack.c.bf16 %v2293, %v2289
  %v2423 = vpack.c.bf16 %v2301, %v2297
  %v2424 = vpack.c.bf16 %v2303, %v2299
  %v2425 = vpack.c.bf16 %v2311, %v2307
  %v2426 = vpack.c.bf16 %v2313, %v2309
  %v2427 = vpack.c.bf16 %v2321, %v2317
  %v2428 = vpack.c.bf16 %v2323, %v2319
  %v2429 = vpack.c.bf16 %v2331, %v2327
  %v2430 = vpack.c.bf16 %v2333, %v2329
  %v2431 = vpack.c.bf16 %v2341, %v2337
  %v2432 = vpack.c.bf16 %v2343, %v2339
  %v2433 = vpack.c.bf16 %v2351, %v2347
  %v2434 = vpack.c.bf16 %v2353, %v2349
  %v2435 = vpack.c.bf16 %v2361, %v2357
  %v2436 = vpack.c.bf16 %v2363, %v2359
  %v2437 = vpack.c.bf16 %v2371, %v2367
  %v2438 = vpack.c.bf16 %v2373, %v2369
  %v2439 = vpack.c.bf16 %v1824, %v1820
  %v2440 = vpack.c.bf16 %v1826, %v1822
  %v2441 = vpack.c.bf16 %v1834, %v1830
  %v2442 = vpack.c.bf16 %v1836, %v1832
  %v2443 = vpack.c.bf16 %v1844, %v1840
  %v2444 = vpack.c.bf16 %v1846, %v1842
  %v2445 = vpack.c.bf16 %v1854, %v1850
  %v2446 = vpack.c.bf16 %v1856, %v1852
  %v2447 = vpack.c.bf16 %v1864, %v1860
  %v2448 = vpack.c.bf16 %v1866, %v1862
  %v2449 = vpack.c.bf16 %v1874, %v1870
  %v2450 = vpack.c.bf16 %v1876, %v1872
  %v2451 = vpack.c.bf16 %v1884, %v1880
  %v2452 = vpack.c.bf16 %v1886, %v1882
  %v2453 = vpack.c.bf16 %v1894, %v1890
  %v2454 = vpack.c.bf16 %v1896, %v1892
  %v2455 = vpack.c.bf16 %v1904, %v1900
  %v2456 = vpack.c.bf16 %v1906, %v1902
  %v2457 = vpack.c.bf16 %v1914, %v1910
  %v2458 = vpack.c.bf16 %v1916, %v1912
  %v2459 = vpack.c.bf16 %v1924, %v1920
  %v2460 = vpack.c.bf16 %v1926, %v1922
  %v2461 = vpack.c.bf16 %v1934, %v1930
  %v2462 = vpack.c.bf16 %v1936, %v1932
  %v2463 = vpack.c.bf16 %v1944, %v1940
  %v2464 = vpack.c.bf16 %v1946, %v1942
  %v2465 = vpack.c.bf16 %v1954, %v1950
  %v2466 = vpack.c.bf16 %v1956, %v1952
  %v2467 = vpack.c.bf16 %v1964, %v1960
  %v2468 = vpack.c.bf16 %v1966, %v1962
  %v2469 = vpack.c.bf16 %v1974, %v1970
  %v2470 = vpack.c.bf16 %v1976, %v1972
  %v2471 = vld [vmem:[%s1] sm:$0xff]
  %v2472 = vld [vmem:[%s1 + $0x8] sm:$0xff]
  %v2473 = vld [vmem:[%s1 + $0x10] sm:$0xff]
  %v2474 = vld [vmem:[%s1 + $0x18] sm:$0xff]
  %v2475 = vld [vmem:[%s1 + $0x20] sm:$0xff]
  %v2476 = vld [vmem:[%s1 + $0x28] sm:$0xff]
  %v2477 = vld [vmem:[%s1 + $0x30] sm:$0xff]
  %v2478 = vld [vmem:[%s1 + $0x38] sm:$0xff]
  %v2479 = vld [vmem:[%s1 + $0x40] sm:$0xff]
  %v2480 = vld [vmem:[%s1 + $0x48] sm:$0xff]
  %v2481 = vld [vmem:[%s1 + $0x50] sm:$0xff]
  %v2482 = vld [vmem:[%s1 + $0x58] sm:$0xff]
  %v2483 = vld [vmem:[%s1 + $0x60] sm:$0xff]
  %v2484 = vld [vmem:[%s1 + $0x68] sm:$0xff]
  %v2485 = vld [vmem:[%s1 + $0x70] sm:$0xff]
  %v2486 = vld [vmem:[%s1 + $0x78] sm:$0xff]
  %v2487 = vld [vmem:[%s1 + $0x80] sm:$0xff]
  %v2488 = vld [vmem:[%s1 + $0x88] sm:$0xff]
  %v2489 = vld [vmem:[%s1 + $0x90] sm:$0xff]
  %v2490 = vld [vmem:[%s1 + $0x98] sm:$0xff]
  %v2491 = vld [vmem:[%s1 + $0xa0] sm:$0xff]
  %v2492 = vld [vmem:[%s1 + $0xa8] sm:$0xff]
  %v2493 = vld [vmem:[%s1 + $0xb0] sm:$0xff]
  %v2494 = vld [vmem:[%s1 + $0xb8] sm:$0xff]
  %v2495 = vld [vmem:[%s1 + $0xc0] sm:$0xff]
  %v2496 = vld [vmem:[%s1 + $0xc8] sm:$0xff]
  %v2497 = vld [vmem:[%s1 + $0xd0] sm:$0xff]
  %v2498 = vld [vmem:[%s1 + $0xd8] sm:$0xff]
  %v2499 = vld [vmem:[%s1 + $0xe0] sm:$0xff]
  %v2500 = vld [vmem:[%s1 + $0xe8] sm:$0xff]
  %v2501 = vld [vmem:[%s1 + $0xf0] sm:$0xff]
  %v2502 = vld [vmem:[%s1 + $0xf8] sm:$0xff]
  %v2503 = vld [vmem:[%s1 + $0x100] sm:$0xff]
  %v2504 = vld [vmem:[%s1 + $0x108] sm:$0xff]
  %v2505 = vld [vmem:[%s1 + $0x110] sm:$0xff]
  %v2506 = vld [vmem:[%s1 + $0x118] sm:$0xff]
  %v2507 = vld [vmem:[%s1 + $0x120] sm:$0xff]
  %v2508 = vld [vmem:[%s1 + $0x128] sm:$0xff]
  %v2509 = vld [vmem:[%s1 + $0x130] sm:$0xff]
  %v2510 = vld [vmem:[%s1 + $0x138] sm:$0xff]
  %v2511 = vld [vmem:[%s1 + $0x140] sm:$0xff]
  %v2512 = vld [vmem:[%s1 + $0x148] sm:$0xff]
  %v2513 = vld [vmem:[%s1 + $0x150] sm:$0xff]
  %v2514 = vld [vmem:[%s1 + $0x158] sm:$0xff]
  %v2515 = vld [vmem:[%s1 + $0x160] sm:$0xff]
  %v2516 = vld [vmem:[%s1 + $0x168] sm:$0xff]
  %v2517 = vld [vmem:[%s1 + $0x170] sm:$0xff]
  %v2518 = vld [vmem:[%s1 + $0x178] sm:$0xff]
  %v2519 = vld [vmem:[%s1 + $0x180] sm:$0xff]
  %v2520 = vld [vmem:[%s1 + $0x188] sm:$0xff]
  %v2521 = vld [vmem:[%s1 + $0x190] sm:$0xff]
  %v2522 = vld [vmem:[%s1 + $0x198] sm:$0xff]
  %v2523 = vld [vmem:[%s1 + $0x1a0] sm:$0xff]
  %v2524 = vld [vmem:[%s1 + $0x1a8] sm:$0xff]
  %v2525 = vld [vmem:[%s1 + $0x1b0] sm:$0xff]
  %v2526 = vld [vmem:[%s1 + $0x1b8] sm:$0xff]
  %v2527 = vld [vmem:[%s1 + $0x1c0] sm:$0xff]
  %v2528 = vld [vmem:[%s1 + $0x1c8] sm:$0xff]
  %v2529 = vld [vmem:[%s1 + $0x1d0] sm:$0xff]
  %v2530 = vld [vmem:[%s1 + $0x1d8] sm:$0xff]
  %v2531 = vld [vmem:[%s1 + $0x1e0] sm:$0xff]
  %v2532 = vld [vmem:[%s1 + $0x1e8] sm:$0xff]
  %v2533 = vld [vmem:[%s1 + $0x1f0] sm:$0xff]
  %v2534 = vld [vmem:[%s1 + $0x1f8] sm:$0xff]
  %v2536 = vsel %vm245, %v2375, 0
  %v2539 = vsel %vm245, %v2377, 0
  %v2542 = vsel %vm245, %v2379, 0
  %v2545 = vsel %vm245, %v2381, 0
  %v2548 = vsel %vm245, %v2383, 0
  %v2551 = vsel %vm245, %v2385, 0
  %v2554 = vsel %vm245, %v2387, 0
  %v2557 = vsel %vm245, %v2389, 0
  %v2560 = vsel %vm245, %v2391, 0
  %v2563 = vsel %vm245, %v2393, 0
  %v2566 = vsel %vm245, %v2395, 0
  %v2569 = vsel %vm245, %v2397, 0
  %v2572 = vsel %vm245, %v2399, 0
  %v2575 = vsel %vm245, %v2401, 0
  %v2578 = vsel %vm245, %v2403, 0
  %v2581 = vsel %vm245, %v2405, 0
  %v2584 = vsel %vm245, %v2439, 0
  %v2587 = vsel %vm245, %v2441, 0
  %v2590 = vsel %vm245, %v2443, 0
  %v2593 = vsel %vm245, %v2445, 0
  %v2596 = vsel %vm245, %v2447, 0
  %v2599 = vsel %vm245, %v2449, 0
  %v2602 = vsel %vm245, %v2451, 0
  %v2605 = vsel %vm245, %v2453, 0
  %v2608 = vsel %vm245, %v2455, 0
  %v2611 = vsel %vm245, %v2457, 0
  %v2614 = vsel %vm245, %v2459, 0
  %v2617 = vsel %vm245, %v2461, 0
  %v2620 = vsel %vm245, %v2463, 0
  %v2623 = vsel %vm245, %v2465, 0
  %v2626 = vsel %vm245, %v2467, 0
  %v2629 = vsel %vm245, %v2469, 0
  %2631 = vmatprep.subr.bf16.mxu0 0
  %2632 = vmatpush1.bf16.xpose.msra.mxu0 %v2584
  %2633 = vmatprep.subr.bf16.mxu0 0
  %2634 = vmatpush1.bf16.xpose.msra.mxu0 %v2587
  %2635 = vmatprep.subr.bf16.mxu0 0
  %2636 = vmatpush1.bf16.xpose.msra.mxu0 %v2590
  %2637 = vmatprep.subr.bf16.mxu0 0
  %2638 = vmatpush1.bf16.xpose.msra.mxu0 %v2593
  %2639 = vmatprep.subr.bf16.mxu0 0
  %2640 = vmatpush1.bf16.xpose.msra.mxu0 %v2596
  %2641 = vmatprep.subr.bf16.mxu0 0
  %2642 = vmatpush1.bf16.xpose.msra.mxu0 %v2599
  %2643 = vmatprep.subr.bf16.mxu0 0
  %2644 = vmatpush1.bf16.xpose.msra.mxu0 %v2602
  %2645 = vmatprep.subr.bf16.mxu0 0
  %2646 = vmatpush1.bf16.xpose.msra.mxu0 %v2605
  %2647 = vmatprep.subr.bf16.mxu0 0
  %2648 = vmatpush1.bf16.xpose.msra.mxu0 %v2608
  %2649 = vmatprep.subr.bf16.mxu0 0
  %2650 = vmatpush1.bf16.xpose.msra.mxu0 %v2611
  %2651 = vmatprep.subr.bf16.mxu0 0
  %2652 = vmatpush1.bf16.xpose.msra.mxu0 %v2614
  %2653 = vmatprep.subr.bf16.mxu0 0
  %2654 = vmatpush1.bf16.xpose.msra.mxu0 %v2617
  %2655 = vmatprep.subr.bf16.mxu0 0
  %2656 = vmatpush1.bf16.xpose.msra.mxu0 %v2620
  %2657 = vmatprep.subr.bf16.mxu0 0
  %2658 = vmatpush1.bf16.xpose.msra.mxu0 %v2623
  %2659 = vmatprep.subr.bf16.mxu0 0
  %2660 = vmatpush1.bf16.xpose.msra.mxu0 %v2626
  %2661 = vmatprep.subr.bf16.mxu0 0
  %2662 = vmatpush1.bf16.xpose.msra.mxu0 %v2629
  %2663 = vmatprep.mubr.bf16.mxu0 0
  %2664 = vmatmul.mubr.bf16.gmra.mrb[0].mxu0 %v2536
  %v2665 = vpop.f32.mrb[0].mxu0
  %v2666 = vadd.f32 %v2471, %v2665
  %v2667 = vpop.f32.mrb[0].mxu0
  %v2668 = vadd.f32 %v2472, %v2667
  %v2669 = vpop.f32.mrb[0].mxu0
  %v2670 = vadd.f32 %v2473, %v2669
  %v2671 = vpop.f32.mrb[0].mxu0
  %v2672 = vadd.f32 %v2474, %v2671
  %2673 = vmatprep.mubr.bf16.mxu0 0
  %2674 = vmatmul.mubr.bf16.gmra.mrb[0].mxu0 %v2539
  %v2675 = vpop.f32.mrb[0].mxu0
  %v2676 = vadd.f32 %v2475, %v2675
  %v2677 = vpop.f32.mrb[0].mxu0
  %v2678 = vadd.f32 %v2476, %v2677
  %v2679 = vpop.f32.mrb[0].mxu0
  %v2680 = vadd.f32 %v2477, %v2679
  %v2681 = vpop.f32.mrb[0].mxu0
  %v2682 = vadd.f32 %v2478, %v2681
  %2683 = vmatprep.mubr.bf16.mxu0 0
  %2684 = vmatmul.mubr.bf16.gmra.mrb[0].mxu0 %v2542
  %v2685 = vpop.f32.mrb[0].mxu0
  %v2686 = vadd.f32 %v2479, %v2685
  %v2687 = vpop.f32.mrb[0].mxu0
  %v2688 = vadd.f32 %v2480, %v2687
  %v2689 = vpop.f32.mrb[0].mxu0
  %v2690 = vadd.f32 %v2481, %v2689
  %v2691 = vpop.f32.mrb[0].mxu0
  %v2692 = vadd.f32 %v2482, %v2691
  %2693 = vmatprep.mubr.bf16.mxu0 0
  %2694 = vmatmul.mubr.bf16.gmra.mrb[0].mxu0 %v2545
  %v2695 = vpop.f32.mrb[0].mxu0
  %v2696 = vadd.f32 %v2483, %v2695
  %v2697 = vpop.f32.mrb[0].mxu0
  %v2698 = vadd.f32 %v2484, %v2697
  %v2699 = vpop.f32.mrb[0].mxu0
  %v2700 = vadd.f32 %v2485, %v2699
  %v2701 = vpop.f32.mrb[0].mxu0
  %v2702 = vadd.f32 %v2486, %v2701
  %2703 = vmatprep.mubr.bf16.mxu0 0
  %2704 = vmatmul.mubr.bf16.gmra.mrb[0].mxu0 %v2548
  %v2705 = vpop.f32.mrb[0].mxu0
  %v2706 = vadd.f32 %v2487, %v2705
  %v2707 = vpop.f32.mrb[0].mxu0
  %v2708 = vadd.f32 %v2488, %v2707
  %v2709 = vpop.f32.mrb[0].mxu0
  %v2710 = vadd.f32 %v2489, %v2709
  %v2711 = vpop.f32.mrb[0].mxu0
  %v2712 = vadd.f32 %v2490, %v2711
  %2713 = vmatprep.mubr.bf16.mxu0 0
  %2714 = vmatmul.mubr.bf16.gmra.mrb[0].mxu0 %v2551
  %v2715 = vpop.f32.mrb[0].mxu0
  %v2716 = vadd.f32 %v2491, %v2715
  %v2717 = vpop.f32.mrb[0].mxu0
  %v2718 = vadd.f32 %v2492, %v2717
  %v2719 = vpop.f32.mrb[0].mxu0
  %v2720 = vadd.f32 %v2493, %v2719
  %v2721 = vpop.f32.mrb[0].mxu0
  %v2722 = vadd.f32 %v2494, %v2721
  %2723 = vmatprep.mubr.bf16.mxu0 0
  %2724 = vmatmul.mubr.bf16.gmra.mrb[0].mxu0 %v2554
  %v2725 = vpop.f32.mrb[0].mxu0
  %v2726 = vadd.f32 %v2495, %v2725
  %v2727 = vpop.f32.mrb[0].mxu0
  %v2728 = vadd.f32 %v2496, %v2727
  %v2729 = vpop.f32.mrb[0].mxu0
  %v2730 = vadd.f32 %v2497, %v2729
  %v2731 = vpop.f32.mrb[0].mxu0
  %v2732 = vadd.f32 %v2498, %v2731
  %2733 = vmatprep.mubr.bf16.mxu0 0
  %2734 = vmatmul.mubr.bf16.gmra.mrb[0].mxu0 %v2557
  %v2735 = vpop.f32.mrb[0].mxu0
  %v2736 = vadd.f32 %v2499, %v2735
  %v2737 = vpop.f32.mrb[0].mxu0
  %v2738 = vadd.f32 %v2500, %v2737
  %v2739 = vpop.f32.mrb[0].mxu0
  %v2740 = vadd.f32 %v2501, %v2739
  %v2741 = vpop.f32.mrb[0].mxu0
  %v2742 = vadd.f32 %v2502, %v2741
  %2743 = vmatprep.mubr.bf16.mxu0 0
  %2744 = vmatmul.mubr.bf16.gmra.mrb[0].mxu0 %v2560
  %v2745 = vpop.f32.mrb[0].mxu0
  %v2746 = vadd.f32 %v2503, %v2745
  %v2747 = vpop.f32.mrb[0].mxu0
  %v2748 = vadd.f32 %v2504, %v2747
  %v2749 = vpop.f32.mrb[0].mxu0
  %v2750 = vadd.f32 %v2505, %v2749
  %v2751 = vpop.f32.mrb[0].mxu0
  %v2752 = vadd.f32 %v2506, %v2751
  %2753 = vmatprep.mubr.bf16.mxu0 0
  %2754 = vmatmul.mubr.bf16.gmra.mrb[0].mxu0 %v2563
  %v2755 = vpop.f32.mrb[0].mxu0
  %v2756 = vadd.f32 %v2507, %v2755
  %v2757 = vpop.f32.mrb[0].mxu0
  %v2758 = vadd.f32 %v2508, %v2757
  %v2759 = vpop.f32.mrb[0].mxu0
  %v2760 = vadd.f32 %v2509, %v2759
  %v2761 = vpop.f32.mrb[0].mxu0
  %v2762 = vadd.f32 %v2510, %v2761
  %2763 = vmatprep.mubr.bf16.mxu0 0
  %2764 = vmatmul.mubr.bf16.gmra.mrb[0].mxu0 %v2566
  %v2765 = vpop.f32.mrb[0].mxu0
  %v2766 = vadd.f32 %v2511, %v2765
  %v2767 = vpop.f32.mrb[0].mxu0
  %v2768 = vadd.f32 %v2512, %v2767
  %v2769 = vpop.f32.mrb[0].mxu0
  %v2770 = vadd.f32 %v2513, %v2769
  %v2771 = vpop.f32.mrb[0].mxu0
  %v2772 = vadd.f32 %v2514, %v2771
  %2773 = vmatprep.mubr.bf16.mxu0 0
  %2774 = vmatmul.mubr.bf16.gmra.mrb[0].mxu0 %v2569
  %v2775 = vpop.f32.mrb[0].mxu0
  %v2776 = vadd.f32 %v2515, %v2775
  %v2777 = vpop.f32.mrb[0].mxu0
  %v2778 = vadd.f32 %v2516, %v2777
  %v2779 = vpop.f32.mrb[0].mxu0
  %v2780 = vadd.f32 %v2517, %v2779
  %v2781 = vpop.f32.mrb[0].mxu0
  %v2782 = vadd.f32 %v2518, %v2781
  %2783 = vmatprep.mubr.bf16.mxu0 0
  %2784 = vmatmul.mubr.bf16.gmra.mrb[0].mxu0 %v2572
  %v2785 = vpop.f32.mrb[0].mxu0
  %v2786 = vadd.f32 %v2519, %v2785
  %v2787 = vpop.f32.mrb[0].mxu0
  %v2788 = vadd.f32 %v2520, %v2787
  %v2789 = vpop.f32.mrb[0].mxu0
  %v2790 = vadd.f32 %v2521, %v2789
  %v2791 = vpop.f32.mrb[0].mxu0
  %v2792 = vadd.f32 %v2522, %v2791
  %2793 = vmatprep.mubr.bf16.mxu0 0
  %2794 = vmatmul.mubr.bf16.gmra.mrb[0].mxu0 %v2575
  %v2795 = vpop.f32.mrb[0].mxu0
  %v2796 = vadd.f32 %v2523, %v2795
  %v2797 = vpop.f32.mrb[0].mxu0
  %v2798 = vadd.f32 %v2524, %v2797
  %v2799 = vpop.f32.mrb[0].mxu0
  %v2800 = vadd.f32 %v2525, %v2799
  %v2801 = vpop.f32.mrb[0].mxu0
  %v2802 = vadd.f32 %v2526, %v2801
  %2803 = vmatprep.mubr.bf16.mxu0 0
  %2804 = vmatmul.mubr.bf16.gmra.mrb[0].mxu0 %v2578
  %v2805 = vpop.f32.mrb[0].mxu0
  %v2806 = vadd.f32 %v2527, %v2805
  %v2807 = vpop.f32.mrb[0].mxu0
  %v2808 = vadd.f32 %v2528, %v2807
  %v2809 = vpop.f32.mrb[0].mxu0
  %v2810 = vadd.f32 %v2529, %v2809
  %v2811 = vpop.f32.mrb[0].mxu0
  %v2812 = vadd.f32 %v2530, %v2811
  %2813 = vmatprep.mubr.bf16.mxu0 0
  %2814 = vmatmul.mubr.bf16.gmra.mrb[0].mxu0 %v2581
  %v2815 = vpop.f32.mrb[0].mxu0
  %v2816 = vadd.f32 %v2531, %v2815
  %v2817 = vpop.f32.mrb[0].mxu0
  %v2818 = vadd.f32 %v2532, %v2817
  %v2819 = vpop.f32.mrb[0].mxu0
  %v2820 = vadd.f32 %v2533, %v2819
  %v2821 = vpop.f32.mrb[0].mxu0
  %v2822 = vadd.f32 %v2534, %v2821
  %2823 = vdwg.mxu0
  %v2824 = vmax.f32 %v2666, %v2668
  %2825 = vmax.xlane.f32.xlu0 %v2824
  %v2826 = vpop.xlane.xlu0 %2825
  %v2827 = vmax.f32 %v2670, %v2672
  %2828 = vmax.xlane.f32.xlu0 %v2827
  %v2829 = vpop.xlane.xlu0 %2828
  %v2830 = vmax.f32 %v2676, %v2678
  %2831 = vmax.xlane.f32.xlu0 %v2830
  %v2832 = vpop.xlane.xlu0 %2831
  %v2833 = vmax.f32 %v2680, %v2682
  %2834 = vmax.xlane.f32.xlu0 %v2833
  %v2835 = vpop.xlane.xlu0 %2834
  %v2836 = vmax.f32 %v2686, %v2688
  %2837 = vmax.xlane.f32.xlu0 %v2836
  %v2838 = vpop.xlane.xlu0 %2837
  %v2839 = vmax.f32 %v2690, %v2692
  %2840 = vmax.xlane.f32.xlu0 %v2839
  %v2841 = vpop.xlane.xlu0 %2840
  %v2842 = vmax.f32 %v2696, %v2698
  %2843 = vmax.xlane.f32.xlu0 %v2842
  %v2844 = vpop.xlane.xlu0 %2843
  %v2845 = vmax.f32 %v2700, %v2702
  %2846 = vmax.xlane.f32.xlu0 %v2845
  %v2847 = vpop.xlane.xlu0 %2846
  %v2848 = vmax.f32 %v2706, %v2708
  %2849 = vmax.xlane.f32.xlu0 %v2848
  %v2850 = vpop.xlane.xlu0 %2849
  %v2851 = vmax.f32 %v2710, %v2712
  %2852 = vmax.xlane.f32.xlu0 %v2851
  %v2853 = vpop.xlane.xlu0 %2852
  %v2854 = vmax.f32 %v2716, %v2718
  %2855 = vmax.xlane.f32.xlu0 %v2854
  %v2856 = vpop.xlane.xlu0 %2855
  %v2857 = vmax.f32 %v2720, %v2722
  %2858 = vmax.xlane.f32.xlu0 %v2857
  %v2859 = vpop.xlane.xlu0 %2858
  %v2860 = vmax.f32 %v2726, %v2728
  %2861 = vmax.xlane.f32.xlu0 %v2860
  %v2862 = vpop.xlane.xlu0 %2861
  %v2863 = vmax.f32 %v2730, %v2732
  %2864 = vmax.xlane.f32.xlu0 %v2863
  %v2865 = vpop.xlane.xlu0 %2864
  %v2866 = vmax.f32 %v2736, %v2738
  %2867 = vmax.xlane.f32.xlu0 %v2866
  %v2868 = vpop.xlane.xlu0 %2867
  %v2869 = vmax.f32 %v2740, %v2742
  %2870 = vmax.xlane.f32.xlu0 %v2869
  %v2871 = vpop.xlane.xlu0 %2870
  %v2872 = vmax.f32 %v2746, %v2748
  %2873 = vmax.xlane.f32.xlu0 %v2872
  %v2874 = vpop.xlane.xlu0 %2873
  %v2875 = vmax.f32 %v2750, %v2752
  %2876 = vmax.xlane.f32.xlu0 %v2875
  %v2877 = vpop.xlane.xlu0 %2876
  %v2878 = vmax.f32 %v2756, %v2758
  %2879 = vmax.xlane.f32.xlu0 %v2878
  %v2880 = vpop.xlane.xlu0 %2879
  %v2881 = vmax.f32 %v2760, %v2762
  %2882 = vmax.xlane.f32.xlu0 %v2881
  %v2883 = vpop.xlane.xlu0 %2882
  %v2884 = vmax.f32 %v2766, %v2768
  %2885 = vmax.xlane.f32.xlu0 %v2884
  %v2886 = vpop.xlane.xlu0 %2885
  %v2887 = vmax.f32 %v2770, %v2772
  %2888 = vmax.xlane.f32.xlu0 %v2887
  %v2889 = vpop.xlane.xlu0 %2888
  %v2890 = vmax.f32 %v2776, %v2778
  %2891 = vmax.xlane.f32.xlu0 %v2890
  %v2892 = vpop.xlane.xlu0 %2891
  %v2893 = vmax.f32 %v2780, %v2782
  %2894 = vmax.xlane.f32.xlu0 %v2893
  %v2895 = vpop.xlane.xlu0 %2894
  %v2896 = vmax.f32 %v2786, %v2788
  %2897 = vmax.xlane.f32.xlu0 %v2896
  %v2898 = vpop.xlane.xlu0 %2897
  %v2899 = vmax.f32 %v2790, %v2792
  %2900 = vmax.xlane.f32.xlu0 %v2899
  %v2901 = vpop.xlane.xlu0 %2900
  %v2902 = vmax.f32 %v2796, %v2798
  %2903 = vmax.xlane.f32.xlu0 %v2902
  %v2904 = vpop.xlane.xlu0 %2903
  %v2905 = vmax.f32 %v2800, %v2802
  %2906 = vmax.xlane.f32.xlu0 %v2905
  %v2907 = vpop.xlane.xlu0 %2906
  %v2908 = vmax.f32 %v2806, %v2808
  %2909 = vmax.xlane.f32.xlu0 %v2908
  %v2910 = vpop.xlane.xlu0 %2909
  %v2911 = vmax.f32 %v2810, %v2812
  %2912 = vmax.xlane.f32.xlu0 %v2911
  %v2913 = vpop.xlane.xlu0 %2912
  %v2914 = vmax.f32 %v2816, %v2818
  %2915 = vmax.xlane.f32.xlu0 %v2914
  %v2916 = vpop.xlane.xlu0 %2915
  %v2917 = vmax.f32 %v2820, %v2822
  %2918 = vmax.xlane.f32.xlu0 %v2917
  %v2919 = vpop.xlane.xlu0 %2918
  %v2920 = vsub.f32 %v2666, %v2826
  %v2921 = vsub.f32 %v2668, %v2826
  %v2922 = vsub.f32 %v2670, %v2829
  %v2923 = vsub.f32 %v2672, %v2829
  %v2924 = vsub.f32 %v2676, %v2832
  %v2925 = vsub.f32 %v2678, %v2832
  %v2926 = vsub.f32 %v2680, %v2835
  %v2927 = vsub.f32 %v2682, %v2835
  %v2928 = vsub.f32 %v2686, %v2838
  %v2929 = vsub.f32 %v2688, %v2838
  %v2930 = vsub.f32 %v2690, %v2841
  %v2931 = vsub.f32 %v2692, %v2841
  %v2932 = vsub.f32 %v2696, %v2844
  %v2933 = vsub.f32 %v2698, %v2844
  %v2934 = vsub.f32 %v2700, %v2847
  %v2935 = vsub.f32 %v2702, %v2847
  %v2936 = vsub.f32 %v2706, %v2850
  %v2937 = vsub.f32 %v2708, %v2850
  %v2938 = vsub.f32 %v2710, %v2853
  %v2939 = vsub.f32 %v2712, %v2853
  %v2940 = vsub.f32 %v2716, %v2856
  %v2941 = vsub.f32 %v2718, %v2856
  %v2942 = vsub.f32 %v2720, %v2859
  %v2943 = vsub.f32 %v2722, %v2859
  %v2944 = vsub.f32 %v2726, %v2862
  %v2945 = vsub.f32 %v2728, %v2862
  %v2946 = vsub.f32 %v2730, %v2865
  %v2947 = vsub.f32 %v2732, %v2865
  %v2948 = vsub.f32 %v2736, %v2868
  %v2949 = vsub.f32 %v2738, %v2868
  %v2950 = vsub.f32 %v2740, %v2871
  %v2951 = vsub.f32 %v2742, %v2871
  %v2952 = vsub.f32 %v2746, %v2874
  %v2953 = vsub.f32 %v2748, %v2874
  %v2954 = vsub.f32 %v2750, %v2877
  %v2955 = vsub.f32 %v2752, %v2877
  %v2956 = vsub.f32 %v2756, %v2880
  %v2957 = vsub.f32 %v2758, %v2880
  %v2958 = vsub.f32 %v2760, %v2883
  %v2959 = vsub.f32 %v2762, %v2883
  %v2960 = vsub.f32 %v2766, %v2886
  %v2961 = vsub.f32 %v2768, %v2886
  %v2962 = vsub.f32 %v2770, %v2889
  %v2963 = vsub.f32 %v2772, %v2889
  %v2964 = vsub.f32 %v2776, %v2892
  %v2965 = vsub.f32 %v2778, %v2892
  %v2966 = vsub.f32 %v2780, %v2895
  %v2967 = vsub.f32 %v2782, %v2895
  %v2968 = vsub.f32 %v2786, %v2898
  %v2969 = vsub.f32 %v2788, %v2898
  %v2970 = vsub.f32 %v2790, %v2901
  %v2971 = vsub.f32 %v2792, %v2901
  %v2972 = vsub.f32 %v2796, %v2904
  %v2973 = vsub.f32 %v2798, %v2904
  %v2974 = vsub.f32 %v2800, %v2907
  %v2975 = vsub.f32 %v2802, %v2907
  %v2976 = vsub.f32 %v2806, %v2910
  %v2977 = vsub.f32 %v2808, %v2910
  %v2978 = vsub.f32 %v2810, %v2913
  %v2979 = vsub.f32 %v2812, %v2913
  %v2980 = vsub.f32 %v2816, %v2916
  %v2981 = vsub.f32 %v2818, %v2916
  %v2982 = vsub.f32 %v2820, %v2919
  %v2983 = vsub.f32 %v2822, %v2919
  %v2984 = vmul.f32 %v2920, 1.442695
  %v2985 = vpow.pop %v2984
  %v2986 = vmul.f32 %v2921, 1.442695
  %v2987 = vpow.pop %v2986
  %v2988 = vmul.f32 %v2922, 1.442695
  %v2989 = vpow.pop %v2988
  %v2990 = vmul.f32 %v2923, 1.442695
  %v2991 = vpow.pop %v2990
  %v2992 = vmul.f32 %v2924, 1.442695
  %v2993 = vpow.pop %v2992
  %v2994 = vmul.f32 %v2925, 1.442695
  %v2995 = vpow.pop %v2994
  %v2996 = vmul.f32 %v2926, 1.442695
  %v2997 = vpow.pop %v2996
  %v2998 = vmul.f32 %v2927, 1.442695
  %v2999 = vpow.pop %v2998
  %v3000 = vmul.f32 %v2928, 1.442695
  %v3001 = vpow.pop %v3000
  %v3002 = vmul.f32 %v2929, 1.442695
  %v3003 = vpow.pop %v3002
  %v3004 = vmul.f32 %v2930, 1.442695
  %v3005 = vpow.pop %v3004
  %v3006 = vmul.f32 %v2931, 1.442695
  %v3007 = vpow.pop %v3006
  %v3008 = vmul.f32 %v2932, 1.442695
  %v3009 = vpow.pop %v3008
  %v3010 = vmul.f32 %v2933, 1.442695
  %v3011 = vpow.pop %v3010
  %v3012 = vmul.f32 %v2934, 1.442695
  %v3013 = vpow.pop %v3012
  %v3014 = vmul.f32 %v2935, 1.442695
  %v3015 = vpow.pop %v3014
  %v3016 = vmul.f32 %v2936, 1.442695
  %v3017 = vpow.pop %v3016
  %v3018 = vmul.f32 %v2937, 1.442695
  %v3019 = vpow.pop %v3018
  %v3020 = vmul.f32 %v2938, 1.442695
  %v3021 = vpow.pop %v3020
  %v3022 = vmul.f32 %v2939, 1.442695
  %v3023 = vpow.pop %v3022
  %v3024 = vmul.f32 %v2940, 1.442695
  %v3025 = vpow.pop %v3024
  %v3026 = vmul.f32 %v2941, 1.442695
  %v3027 = vpow.pop %v3026
  %v3028 = vmul.f32 %v2942, 1.442695
  %v3029 = vpow.pop %v3028
  %v3030 = vmul.f32 %v2943, 1.442695
  %v3031 = vpow.pop %v3030
  %v3032 = vmul.f32 %v2944, 1.442695
  %v3033 = vpow.pop %v3032
  %v3034 = vmul.f32 %v2945, 1.442695
  %v3035 = vpow.pop %v3034
  %v3036 = vmul.f32 %v2946, 1.442695
  %v3037 = vpow.pop %v3036
  %v3038 = vmul.f32 %v2947, 1.442695
  %v3039 = vpow.pop %v3038
  %v3040 = vmul.f32 %v2948, 1.442695
  %v3041 = vpow.pop %v3040
  %v3042 = vmul.f32 %v2949, 1.442695
  %v3043 = vpow.pop %v3042
  %v3044 = vmul.f32 %v2950, 1.442695
  %v3045 = vpow.pop %v3044
  %v3046 = vmul.f32 %v2951, 1.442695
  %v3047 = vpow.pop %v3046
  %v3048 = vmul.f32 %v2952, 1.442695
  %v3049 = vpow.pop %v3048
  %v3050 = vmul.f32 %v2953, 1.442695
  %v3051 = vpow.pop %v3050
  %v3052 = vmul.f32 %v2954, 1.442695
  %v3053 = vpow.pop %v3052
  %v3054 = vmul.f32 %v2955, 1.442695
  %v3055 = vpow.pop %v3054
  %v3056 = vmul.f32 %v2956, 1.442695
  %v3057 = vpow.pop %v3056
  %v3058 = vmul.f32 %v2957, 1.442695
  %v3059 = vpow.pop %v3058
  %v3060 = vmul.f32 %v2958, 1.442695
  %v3061 = vpow.pop %v3060
  %v3062 = vmul.f32 %v2959, 1.442695
  %v3063 = vpow.pop %v3062
  %v3064 = vmul.f32 %v2960, 1.442695
  %v3065 = vpow.pop %v3064
  %v3066 = vmul.f32 %v2961, 1.442695
  %v3067 = vpow.pop %v3066
  %v3068 = vmul.f32 %v2962, 1.442695
  %v3069 = vpow.pop %v3068
  %v3070 = vmul.f32 %v2963, 1.442695
  %v3071 = vpow.pop %v3070
  %v3072 = vmul.f32 %v2964, 1.442695
  %v3073 = vpow.pop %v3072
  %v3074 = vmul.f32 %v2965, 1.442695
  %v3075 = vpow.pop %v3074
  %v3076 = vmul.f32 %v2966, 1.442695
  %v3077 = vpow.pop %v3076
  %v3078 = vmul.f32 %v2967, 1.442695
  %v3079 = vpow.pop %v3078
  %v3080 = vmul.f32 %v2968, 1.442695
  %v3081 = vpow.pop %v3080
  %v3082 = vmul.f32 %v2969, 1.442695
  %v3083 = vpow.pop %v3082
  %v3084 = vmul.f32 %v2970, 1.442695
  %v3085 = vpow.pop %v3084
  %v3086 = vmul.f32 %v2971, 1.442695
  %v3087 = vpow.pop %v3086
  %v3088 = vmul.f32 %v2972, 1.442695
  %v3089 = vpow.pop %v3088
  %v3090 = vmul.f32 %v2973, 1.442695
  %v3091 = vpow.pop %v3090
  %v3092 = vmul.f32 %v2974, 1.442695
  %v3093 = vpow.pop %v3092
  %v3094 = vmul.f32 %v2975, 1.442695
  %v3095 = vpow.pop %v3094
  %v3096 = vmul.f32 %v2976, 1.442695
  %v3097 = vpow.pop %v3096
  %v3098 = vmul.f32 %v2977, 1.442695
  %v3099 = vpow.pop %v3098
  %v3100 = vmul.f32 %v2978, 1.442695
  %v3101 = vpow.pop %v3100
  %v3102 = vmul.f32 %v2979, 1.442695
  %v3103 = vpow.pop %v3102
  %v3104 = vmul.f32 %v2980, 1.442695
  %v3105 = vpow.pop %v3104
  %v3106 = vmul.f32 %v2981, 1.442695
  %v3107 = vpow.pop %v3106
  %v3108 = vmul.f32 %v2982, 1.442695
  %v3109 = vpow.pop %v3108
  %v3110 = vmul.f32 %v2983, 1.442695
  %v3111 = vpow.pop %v3110
  %v3112 = vadd.f32 %v2985, %v2987
  %3113 = vadd.xlane.f32.xlu0 %v3112
  %v3114 = vpop.xlane.xlu0 %3113
  %v3115 = vadd.f32 %v2989, %v2991
  %3116 = vadd.xlane.f32.xlu0 %v3115
  %v3117 = vpop.xlane.xlu0 %3116
  %v3118 = vadd.f32 %v2993, %v2995
  %3119 = vadd.xlane.f32.xlu0 %v3118
  %v3120 = vpop.xlane.xlu0 %3119
  %v3121 = vadd.f32 %v2997, %v2999
  %3122 = vadd.xlane.f32.xlu0 %v3121
  %v3123 = vpop.xlane.xlu0 %3122
  %v3124 = vadd.f32 %v3001, %v3003
  %3125 = vadd.xlane.f32.xlu0 %v3124
  %v3126 = vpop.xlane.xlu0 %3125
  %v3127 = vadd.f32 %v3005, %v3007
  %3128 = vadd.xlane.f32.xlu0 %v3127
  %v3129 = vpop.xlane.xlu0 %3128
  %v3130 = vadd.f32 %v3009, %v3011
  %3131 = vadd.xlane.f32.xlu0 %v3130
  %v3132 = vpop.xlane.xlu0 %3131
  %v3133 = vadd.f32 %v3013, %v3015
  %3134 = vadd.xlane.f32.xlu0 %v3133
  %v3135 = vpop.xlane.xlu0 %3134
  %v3136 = vadd.f32 %v3017, %v3019
  %3137 = vadd.xlane.f32.xlu0 %v3136
  %v3138 = vpop.xlane.xlu0 %3137
  %v3139 = vadd.f32 %v3021, %v3023
  %3140 = vadd.xlane.f32.xlu0 %v3139
  %v3141 = vpop.xlane.xlu0 %3140
  %v3142 = vadd.f32 %v3025, %v3027
  %3143 = vadd.xlane.f32.xlu0 %v3142
  %v3144 = vpop.xlane.xlu0 %3143
  %v3145 = vadd.f32 %v3029, %v3031
  %3146 = vadd.xlane.f32.xlu0 %v3145
  %v3147 = vpop.xlane.xlu0 %3146
  %v3148 = vadd.f32 %v3033, %v3035
  %3149 = vadd.xlane.f32.xlu0 %v3148
  %v3150 = vpop.xlane.xlu0 %3149
  %v3151 = vadd.f32 %v3037, %v3039
  %3152 = vadd.xlane.f32.xlu0 %v3151
  %v3153 = vpop.xlane.xlu0 %3152
  %v3154 = vadd.f32 %v3041, %v3043
  %3155 = vadd.xlane.f32.xlu0 %v3154
  %v3156 = vpop.xlane.xlu0 %3155
  %v3157 = vadd.f32 %v3045, %v3047
  %3158 = vadd.xlane.f32.xlu0 %v3157
  %v3159 = vpop.xlane.xlu0 %3158
  %v3160 = vadd.f32 %v3049, %v3051
  %3161 = vadd.xlane.f32.xlu0 %v3160
  %v3162 = vpop.xlane.xlu0 %3161
  %v3163 = vadd.f32 %v3053, %v3055
  %3164 = vadd.xlane.f32.xlu0 %v3163
  %v3165 = vpop.xlane.xlu0 %3164
  %v3166 = vadd.f32 %v3057, %v3059
  %3167 = vadd.xlane.f32.xlu0 %v3166
  %v3168 = vpop.xlane.xlu0 %3167
  %v3169 = vadd.f32 %v3061, %v3063
  %3170 = vadd.xlane.f32.xlu0 %v3169
  %v3171 = vpop.xlane.xlu0 %3170
  %v3172 = vadd.f32 %v3065, %v3067
  %3173 = vadd.xlane.f32.xlu0 %v3172
  %v3174 = vpop.xlane.xlu0 %3173
  %v3175 = vadd.f32 %v3069, %v3071
  %3176 = vadd.xlane.f32.xlu0 %v3175
  %v3177 = vpop.xlane.xlu0 %3176
  %v3178 = vadd.f32 %v3073, %v3075
  %3179 = vadd.xlane.f32.xlu0 %v3178
  %v3180 = vpop.xlane.xlu0 %3179
  %v3181 = vadd.f32 %v3077, %v3079
  %3182 = vadd.xlane.f32.xlu0 %v3181
  %v3183 = vpop.xlane.xlu0 %3182
  %v3184 = vadd.f32 %v3081, %v3083
  %3185 = vadd.xlane.f32.xlu0 %v3184
  %v3186 = vpop.xlane.xlu0 %3185
  %v3187 = vadd.f32 %v3085, %v3087
  %3188 = vadd.xlane.f32.xlu0 %v3187
  %v3189 = vpop.xlane.xlu0 %3188
  %v3190 = vadd.f32 %v3089, %v3091
  %3191 = vadd.xlane.f32.xlu0 %v3190
  %v3192 = vpop.xlane.xlu0 %3191
  %v3193 = vadd.f32 %v3093, %v3095
  %3194 = vadd.xlane.f32.xlu0 %v3193
  %v3195 = vpop.xlane.xlu0 %3194
  %v3196 = vadd.f32 %v3097, %v3099
  %3197 = vadd.xlane.f32.xlu0 %v3196
  %v3198 = vpop.xlane.xlu0 %3197
  %v3199 = vadd.f32 %v3101, %v3103
  %3200 = vadd.xlane.f32.xlu0 %v3199
  %v3201 = vpop.xlane.xlu0 %3200
  %v3202 = vadd.f32 %v3105, %v3107
  %3203 = vadd.xlane.f32.xlu0 %v3202
  %v3204 = vpop.xlane.xlu0 %3203
  %v3205 = vadd.f32 %v3109, %v3111
  %3206 = vadd.xlane.f32.xlu0 %v3205
  %v3207 = vpop.xlane.xlu0 %3206
  %v3208 = vrcp.pop %v3114
  %v3209 = vrcp.pop %v3117
  %v3210 = vrcp.pop %v3120
  %v3211 = vrcp.pop %v3123
  %v3212 = vrcp.pop %v3126
  %v3213 = vrcp.pop %v3129
  %v3214 = vrcp.pop %v3132
  %v3215 = vrcp.pop %v3135
  %v3216 = vrcp.pop %v3138
  %v3217 = vrcp.pop %v3141
  %v3218 = vrcp.pop %v3144
  %v3219 = vrcp.pop %v3147
  %v3220 = vrcp.pop %v3150
  %v3221 = vrcp.pop %v3153
  %v3222 = vrcp.pop %v3156
  %v3223 = vrcp.pop %v3159
  %v3224 = vrcp.pop %v3162
  %v3225 = vrcp.pop %v3165
  %v3226 = vrcp.pop %v3168
  %v3227 = vrcp.pop %v3171
  %v3228 = vrcp.pop %v3174
  %v3229 = vrcp.pop %v3177
  %v3230 = vrcp.pop %v3180
  %v3231 = vrcp.pop %v3183
  %v3232 = vrcp.pop %v3186
  %v3233 = vrcp.pop %v3189
  %v3234 = vrcp.pop %v3192
  %v3235 = vrcp.pop %v3195
  %v3236 = vrcp.pop %v3198
  %v3237 = vrcp.pop %v3201
  %v3238 = vrcp.pop %v3204
  %v3239 = vrcp.pop %v3207
  %v3240 = vmul.f32 %v2985, %v3208
  %v3241 = vmul.f32 %v2987, %v3208
  %v3242 = vmul.f32 %v2989, %v3209
  %v3243 = vmul.f32 %v2991, %v3209
  %v3244 = vmul.f32 %v2993, %v3210
  %v3245 = vmul.f32 %v2995, %v3210
  %v3246 = vmul.f32 %v2997, %v3211
  %v3247 = vmul.f32 %v2999, %v3211
  %v3248 = vmul.f32 %v3001, %v3212
  %v3249 = vmul.f32 %v3003, %v3212
  %v3250 = vmul.f32 %v3005, %v3213
  %v3251 = vmul.f32 %v3007, %v3213
  %v3252 = vmul.f32 %v3009, %v3214
  %v3253 = vmul.f32 %v3011, %v3214
  %v3254 = vmul.f32 %v3013, %v3215
  %v3255 = vmul.f32 %v3015, %v3215
  %v3256 = vmul.f32 %v3017, %v3216
  %v3257 = vmul.f32 %v3019, %v3216
  %v3258 = vmul.f32 %v3021, %v3217
  %v3259 = vmul.f32 %v3023, %v3217
  %v3260 = vmul.f32 %v3025, %v3218
  %v3261 = vmul.f32 %v3027, %v3218
  %v3262 = vmul.f32 %v3029, %v3219
  %v3263 = vmul.f32 %v3031, %v3219
  %v3264 = vmul.f32 %v3033, %v3220
  %v3265 = vmul.f32 %v3035, %v3220
  %v3266 = vmul.f32 %v3037, %v3221
  %v3267 = vmul.f32 %v3039, %v3221
  %v3268 = vmul.f32 %v3041, %v3222
  %v3269 = vmul.f32 %v3043, %v3222
  %v3270 = vmul.f32 %v3045, %v3223
  %v3271 = vmul.f32 %v3047, %v3223
  %v3272 = vmul.f32 %v3049, %v3224
  %v3273 = vmul.f32 %v3051, %v3224
  %v3274 = vmul.f32 %v3053, %v3225
  %v3275 = vmul.f32 %v3055, %v3225
  %v3276 = vmul.f32 %v3057, %v3226
  %v3277 = vmul.f32 %v3059, %v3226
  %v3278 = vmul.f32 %v3061, %v3227
  %v3279 = vmul.f32 %v3063, %v3227
  %v3280 = vmul.f32 %v3065, %v3228
  %v3281 = vmul.f32 %v3067, %v3228
  %v3282 = vmul.f32 %v3069, %v3229
  %v3283 = vmul.f32 %v3071, %v3229
  %v3284 = vmul.f32 %v3073, %v3230
  %v3285 = vmul.f32 %v3075, %v3230
  %v3286 = vmul.f32 %v3077, %v3231
  %v3287 = vmul.f32 %v3079, %v3231
  %v3288 = vmul.f32 %v3081, %v3232
  %v3289 = vmul.f32 %v3083, %v3232
  %v3290 = vmul.f32 %v3085, %v3233
  %v3291 = vmul.f32 %v3087, %v3233
  %v3292 = vmul.f32 %v3089, %v3234
  %v3293 = vmul.f32 %v3091, %v3234
  %v3294 = vmul.f32 %v3093, %v3235
  %v3295 = vmul.f32 %v3095, %v3235
  %v3296 = vmul.f32 %v3097, %v3236
  %v3297 = vmul.f32 %v3099, %v3236
  %v3298 = vmul.f32 %v3101, %v3237
  %v3299 = vmul.f32 %v3103, %v3237
  %v3300 = vmul.f32 %v3105, %v3238
  %v3301 = vmul.f32 %v3107, %v3238
  %v3302 = vmul.f32 %v3109, %v3239
  %v3303 = vmul.f32 %v3111, %v3239
  %v3304 = vpack.c.bf16 %v3242, %v3240
  %v3305 = vpack.c.bf16 %v3243, %v3241
  %v3306 = vpack.c.bf16 %v3246, %v3244
  %v3307 = vpack.c.bf16 %v3247, %v3245
  %v3308 = vpack.c.bf16 %v3250, %v3248
  %v3309 = vpack.c.bf16 %v3251, %v3249
  %v3310 = vpack.c.bf16 %v3254, %v3252
  %v3311 = vpack.c.bf16 %v3255, %v3253
  %v3312 = vpack.c.bf16 %v3258, %v3256
  %v3313 = vpack.c.bf16 %v3259, %v3257
  %v3314 = vpack.c.bf16 %v3262, %v3260
  %v3315 = vpack.c.bf16 %v3263, %v3261
  %v3316 = vpack.c.bf16 %v3266, %v3264
  %v3317 = vpack.c.bf16 %v3267, %v3265
  %v3318 = vpack.c.bf16 %v3270, %v3268
  %v3319 = vpack.c.bf16 %v3271, %v3269
  %v3320 = vpack.c.bf16 %v3274, %v3272
  %v3321 = vpack.c.bf16 %v3275, %v3273
  %v3322 = vpack.c.bf16 %v3278, %v3276
  %v3323 = vpack.c.bf16 %v3279, %v3277
  %v3324 = vpack.c.bf16 %v3282, %v3280
  %v3325 = vpack.c.bf16 %v3283, %v3281
  %v3326 = vpack.c.bf16 %v3286, %v3284
  %v3327 = vpack.c.bf16 %v3287, %v3285
  %v3328 = vpack.c.bf16 %v3290, %v3288
  %v3329 = vpack.c.bf16 %v3291, %v3289
  %v3330 = vpack.c.bf16 %v3294, %v3292
  %v3331 = vpack.c.bf16 %v3295, %v3293
  %v3332 = vpack.c.bf16 %v3298, %v3296
  %v3333 = vpack.c.bf16 %v3299, %v3297
  %v3334 = vpack.c.bf16 %v3302, %v3300
  %v3335 = vpack.c.bf16 %v3303, %v3301
  %3336 = vmatprep.subr.bf16.mxu0 0
  %3337 = vmatpush1.bf16.msra.mxu0 %v2407
  %3338 = vmatprep.subr.bf16.mxu0 0
  %3339 = vmatpush1.bf16.msra.mxu0 %v2409
  %3340 = vmatprep.subr.bf16.mxu0 0
  %3341 = vmatpush1.bf16.msra.mxu0 %v2411
  %3342 = vmatprep.subr.bf16.mxu0 0
  %3343 = vmatpush1.bf16.msra.mxu0 %v2413
  %3344 = vmatprep.subr.bf16.mxu0 0
  %3345 = vmatpush1.bf16.msra.mxu0 %v2415
  %3346 = vmatprep.subr.bf16.mxu0 0
  %3347 = vmatpush1.bf16.msra.mxu0 %v2417
  %3348 = vmatprep.subr.bf16.mxu0 0
  %3349 = vmatpush1.bf16.msra.mxu0 %v2419
  %3350 = vmatprep.subr.bf16.mxu0 0
  %3351 = vmatpush1.bf16.msra.mxu0 %v2421
  %3352 = vmatprep.subr.bf16.mxu0 0
  %3353 = vmatpush1.bf16.msra.mxu0 %v2423
  %3354 = vmatprep.subr.bf16.mxu0 0
  %3355 = vmatpush1.bf16.msra.mxu0 %v2425
  %3356 = vmatprep.subr.bf16.mxu0 0
  %3357 = vmatpush1.bf16.msra.mxu0 %v2427
  %3358 = vmatprep.subr.bf16.mxu0 0
  %3359 = vmatpush1.bf16.msra.mxu0 %v2429
  %3360 = vmatprep.subr.bf16.mxu0 0
  %3361 = vmatpush1.bf16.msra.mxu0 %v2431
  %3362 = vmatprep.subr.bf16.mxu0 0
  %3363 = vmatpush1.bf16.msra.mxu0 %v2433
  %3364 = vmatprep.subr.bf16.mxu0 0
  %3365 = vmatpush1.bf16.msra.mxu0 %v2435
  %3366 = vmatprep.subr.bf16.mxu0 0
  %3367 = vmatpush1.bf16.msra.mxu0 %v2437
  %3368 = vmatprep.mubr.bf16.mxu0 %v3305
  %3369 = vmatmul.mubr.bf16.gmra.mrb[0].mxu0 %v3304
  %v3370 = vpop.f32.mrb[0].mxu0
  %v3371 = vadd.f32 0.0, %v3370
  %v3372 = vpop.f32.mrb[0].mxu0
  %v3373 = vpop.f32.mrb[0].mxu0
  %v3374 = vadd.f32 0.0, %v3373
  %v3375 = vpop.f32.mrb[0].mxu0
  %3376 = vmatprep.mubr.bf16.mxu0 %v3307
  %3377 = vmatmul.mubr.bf16.gmra.mrb[0].mxu0 %v3306
  %v3378 = vpop.f32.mrb[0].mxu0
  %v3379 = vadd.f32 0.0, %v3378
  %v3380 = vpop.f32.mrb[0].mxu0
  %v3381 = vpop.f32.mrb[0].mxu0
  %v3382 = vadd.f32 0.0, %v3381
  %v3383 = vpop.f32.mrb[0].mxu0
  %3384 = vmatprep.mubr.bf16.mxu0 %v3309
  %3385 = vmatmul.mubr.bf16.gmra.mrb[0].mxu0 %v3308
  %v3386 = vpop.f32.mrb[0].mxu0
  %v3387 = vadd.f32 0.0, %v3386
  %v3388 = vpop.f32.mrb[0].mxu0
  %v3389 = vpop.f32.mrb[0].mxu0
  %v3390 = vadd.f32 0.0, %v3389
  %v3391 = vpop.f32.mrb[0].mxu0
  %3392 = vmatprep.mubr.bf16.mxu0 %v3311
  %3393 = vmatmul.mubr.bf16.gmra.mrb[0].mxu0 %v3310
  %v3394 = vpop.f32.mrb[0].mxu0
  %v3395 = vadd.f32 0.0, %v3394
  %v3396 = vpop.f32.mrb[0].mxu0
  %v3397 = vpop.f32.mrb[0].mxu0
  %v3398 = vadd.f32 0.0, %v3397
  %v3399 = vpop.f32.mrb[0].mxu0
  %3400 = vmatprep.mubr.bf16.mxu0 %v3313
  %3401 = vmatmul.mubr.bf16.gmra.mrb[0].mxu0 %v3312
  %v3402 = vpop.f32.mrb[0].mxu0
  %v3403 = vadd.f32 0.0, %v3402
  %v3404 = vpop.f32.mrb[0].mxu0
  %v3405 = vpop.f32.mrb[0].mxu0
  %v3406 = vadd.f32 0.0, %v3405
  %v3407 = vpop.f32.mrb[0].mxu0
  %3408 = vmatprep.mubr.bf16.mxu0 %v3315
  %3409 = vmatmul.mubr.bf16.gmra.mrb[0].mxu0 %v3314
  %v3410 = vpop.f32.mrb[0].mxu0
  %v3411 = vadd.f32 0.0, %v3410
  %v3412 = vpop.f32.mrb[0].mxu0
  %v3413 = vpop.f32.mrb[0].mxu0
  %v3414 = vadd.f32 0.0, %v3413
  %v3415 = vpop.f32.mrb[0].mxu0
  %3416 = vmatprep.mubr.bf16.mxu0 %v3317
  %3417 = vmatmul.mubr.bf16.gmra.mrb[0].mxu0 %v3316
  %v3418 = vpop.f32.mrb[0].mxu0
  %v3419 = vadd.f32 0.0, %v3418
  %v3420 = vpop.f32.mrb[0].mxu0
  %v3421 = vpop.f32.mrb[0].mxu0
  %v3422 = vadd.f32 0.0, %v3421
  %v3423 = vpop.f32.mrb[0].mxu0
  %3424 = vmatprep.mubr.bf16.mxu0 %v3319
  %3425 = vmatmul.mubr.bf16.gmra.mrb[0].mxu0 %v3318
  %v3426 = vpop.f32.mrb[0].mxu0
  %v3427 = vadd.f32 0.0, %v3426
  %v3428 = vpop.f32.mrb[0].mxu0
  %v3429 = vpop.f32.mrb[0].mxu0
  %v3430 = vadd.f32 0.0, %v3429
  %v3431 = vpop.f32.mrb[0].mxu0
  %3432 = vmatprep.mubr.bf16.mxu0 %v3321
  %3433 = vmatmul.mubr.bf16.gmra.mrb[0].mxu0 %v3320
  %v3434 = vpop.f32.mrb[0].mxu0
  %v3435 = vadd.f32 0.0, %v3434
  %v3436 = vpop.f32.mrb[0].mxu0
  %v3437 = vpop.f32.mrb[0].mxu0
  %v3438 = vadd.f32 0.0, %v3437
  %v3439 = vpop.f32.mrb[0].mxu0
  %3440 = vmatprep.mubr.bf16.mxu0 %v3323
  %3441 = vmatmul.mubr.bf16.gmra.mrb[0].mxu0 %v3322
  %v3442 = vpop.f32.mrb[0].mxu0
  %v3443 = vadd.f32 0.0, %v3442
  %v3444 = vpop.f32.mrb[0].mxu0
  %v3445 = vpop.f32.mrb[0].mxu0
  %v3446 = vadd.f32 0.0, %v3445
  %v3447 = vpop.f32.mrb[0].mxu0
  %3448 = vmatprep.mubr.bf16.mxu0 %v3325
  %3449 = vmatmul.mubr.bf16.gmra.mrb[0].mxu0 %v3324
  %v3450 = vpop.f32.mrb[0].mxu0
  %v3451 = vadd.f32 0.0, %v3450
  %v3452 = vpop.f32.mrb[0].mxu0
  %v3453 = vpop.f32.mrb[0].mxu0
  %v3454 = vadd.f32 0.0, %v3453
  %v3455 = vpop.f32.mrb[0].mxu0
  %3456 = vmatprep.mubr.bf16.mxu0 %v3327
  %3457 = vmatmul.mubr.bf16.gmra.mrb[0].mxu0 %v3326
  %v3458 = vpop.f32.mrb[0].mxu0
  %v3459 = vadd.f32 0.0, %v3458
  %v3460 = vpop.f32.mrb[0].mxu0
  %v3461 = vpop.f32.mrb[0].mxu0
  %v3462 = vadd.f32 0.0, %v3461
  %v3463 = vpop.f32.mrb[0].mxu0
  %3464 = vmatprep.mubr.bf16.mxu0 %v3329
  %3465 = vmatmul.mubr.bf16.gmra.mrb[0].mxu0 %v3328
  %v3466 = vpop.f32.mrb[0].mxu0
  %v3467 = vadd.f32 0.0, %v3466
  %v3468 = vpop.f32.mrb[0].mxu0
  %v3469 = vpop.f32.mrb[0].mxu0
  %v3470 = vadd.f32 0.0, %v3469
  %v3471 = vpop.f32.mrb[0].mxu0
  %3472 = vmatprep.mubr.bf16.mxu0 %v3331
  %3473 = vmatmul.mubr.bf16.gmra.mrb[0].mxu0 %v3330
  %v3474 = vpop.f32.mrb[0].mxu0
  %v3475 = vadd.f32 0.0, %v3474
  %v3476 = vpop.f32.mrb[0].mxu0
  %v3477 = vpop.f32.mrb[0].mxu0
  %v3478 = vadd.f32 0.0, %v3477
  %v3479 = vpop.f32.mrb[0].mxu0
  %3480 = vmatprep.mubr.bf16.mxu0 %v3333
  %3481 = vmatmul.mubr.bf16.gmra.mrb[0].mxu0 %v3332
  %v3482 = vpop.f32.mrb[0].mxu0
  %v3483 = vadd.f32 0.0, %v3482
  %v3484 = vpop.f32.mrb[0].mxu0
  %v3485 = vpop.f32.mrb[0].mxu0
  %v3486 = vadd.f32 0.0, %v3485
  %v3487 = vpop.f32.mrb[0].mxu0
  %3488 = vmatprep.mubr.bf16.mxu0 %v3335
  %3489 = vmatmul.mubr.bf16.gmra.mrb[0].mxu0 %v3334
  %v3490 = vpop.f32.mrb[0].mxu0
  %v3491 = vadd.f32 0.0, %v3490
  %v3492 = vpop.f32.mrb[0].mxu0
  %v3493 = vpop.f32.mrb[0].mxu0
  %v3494 = vadd.f32 0.0, %v3493
  %v3495 = vpop.f32.mrb[0].mxu0
  %3496 = vdwg.mxu0
  %v3497 = vpack.c.bf16 %v3374, %v3371
  %v3498 = vpack.c.bf16 %v3382, %v3379
  %v3499 = vpack.c.bf16 %v3390, %v3387
  %v3500 = vpack.c.bf16 %v3398, %v3395
  %v3501 = vpack.c.bf16 %v3406, %v3403
  %v3502 = vpack.c.bf16 %v3414, %v3411
  %v3503 = vpack.c.bf16 %v3422, %v3419
  %v3504 = vpack.c.bf16 %v3430, %v3427
  %v3505 = vpack.c.bf16 %v3438, %v3435
  %v3506 = vpack.c.bf16 %v3446, %v3443
  %v3507 = vpack.c.bf16 %v3454, %v3451
  %v3508 = vpack.c.bf16 %v3462, %v3459
  %v3509 = vpack.c.bf16 %v3470, %v3467
  %v3510 = vpack.c.bf16 %v3478, %v3475
  %v3511 = vpack.c.bf16 %v3486, %v3483
  %v3512 = vpack.c.bf16 %v3494, %v3491
  %v3513 = vld [vmem:[%s13] sm:$0xff]
  %v3514 = vld [vmem:[%s13 + $0x8] sm:$0xff]
  %v3515 = vld [vmem:[%s13 + $0x10] sm:$0xff]
  %v3516 = vld [vmem:[%s13 + $0x18] sm:$0xff]
  %v3517 = vld [vmem:[%s13 + $0x20] sm:$0xff]
  %v3518 = vld [vmem:[%s13 + $0x28] sm:$0xff]
  %v3519 = vld [vmem:[%s13 + $0x30] sm:$0xff]
  %v3520 = vld [vmem:[%s13 + $0x38] sm:$0xff]
  %3537 = vrot.lane.b32.xlu0 %v2375, 64
  %v3538 = vpop.permute.xlu0 %3537
  %3539 = vrot.lane.b32.xlu0 %v2377, 64
  %v3540 = vpop.permute.xlu0 %3539
  %3541 = vrot.lane.b32.xlu0 %v2379, 64
  %v3542 = vpop.permute.xlu0 %3541
  %3543 = vrot.lane.b32.xlu0 %v2381, 64
  %v3544 = vpop.permute.xlu0 %3543
  %3545 = vrot.lane.b32.xlu0 %v2383, 64
  %v3546 = vpop.permute.xlu0 %3545
  %3547 = vrot.lane.b32.xlu0 %v2385, 64
  %v3548 = vpop.permute.xlu0 %3547
  %3549 = vrot.lane.b32.xlu0 %v2387, 64
  %v3550 = vpop.permute.xlu0 %3549
  %3551 = vrot.lane.b32.xlu0 %v2389, 64
  %v3552 = vpop.permute.xlu0 %3551
  %3553 = vrot.lane.b32.xlu0 %v2391, 64
  %v3554 = vpop.permute.xlu0 %3553
  %3555 = vrot.lane.b32.xlu0 %v2393, 64
  %v3556 = vpop.permute.xlu0 %3555
  %3557 = vrot.lane.b32.xlu0 %v2395, 64
  %v3558 = vpop.permute.xlu0 %3557
  %3559 = vrot.lane.b32.xlu0 %v2397, 64
  %v3560 = vpop.permute.xlu0 %3559
  %3561 = vrot.lane.b32.xlu0 %v2399, 64
  %v3562 = vpop.permute.xlu0 %3561
  %3563 = vrot.lane.b32.xlu0 %v2401, 64
  %v3564 = vpop.permute.xlu0 %3563
  %3565 = vrot.lane.b32.xlu0 %v2403, 64
  %v3566 = vpop.permute.xlu0 %3565
  %3567 = vrot.lane.b32.xlu0 %v2405, 64
  %v3568 = vpop.permute.xlu0 %3567
  %3585 = vrot.lane.b32.xlu0 %v2439, 64
  %v3586 = vpop.permute.xlu0 %3585
  %3587 = vrot.lane.b32.xlu0 %v2441, 64
  %v3588 = vpop.permute.xlu0 %3587
  %3589 = vrot.lane.b32.xlu0 %v2443, 64
  %v3590 = vpop.permute.xlu0 %3589
  %3591 = vrot.lane.b32.xlu0 %v2445, 64
  %v3592 = vpop.permute.xlu0 %3591
  %3593 = vrot.lane.b32.xlu0 %v2447, 64
  %v3594 = vpop.permute.xlu0 %3593
  %3595 = vrot.lane.b32.xlu0 %v2449, 64
  %v3596 = vpop.permute.xlu0 %3595
  %3597 = vrot.lane.b32.xlu0 %v2451, 64
  %v3598 = vpop.permute.xlu0 %3597
  %3599 = vrot.lane.b32.xlu0 %v2453, 64
  %v3600 = vpop.permute.xlu0 %3599
  %3601 = vrot.lane.b32.xlu0 %v2455, 64
  %v3602 = vpop.permute.xlu0 %3601
  %3603 = vrot.lane.b32.xlu0 %v2457, 64
  %v3604 = vpop.permute.xlu0 %3603
  %3605 = vrot.lane.b32.xlu0 %v2459, 64
  %v3606 = vpop.permute.xlu0 %3605
  %3607 = vrot.lane.b32.xlu0 %v2461, 64
  %v3608 = vpop.permute.xlu0 %3607
  %3609 = vrot.lane.b32.xlu0 %v2463, 64
  %v3610 = vpop.permute.xlu0 %3609
  %3611 = vrot.lane.b32.xlu0 %v2465, 64
  %v3612 = vpop.permute.xlu0 %3611
  %3613 = vrot.lane.b32.xlu0 %v2467, 64
  %v3614 = vpop.permute.xlu0 %3613
  %3615 = vrot.lane.b32.xlu0 %v2469, 64
  %v3616 = vpop.permute.xlu0 %3615
  %v3618 = vsel %vm245, %v3538, 0
  %v3621 = vsel %vm245, %v3540, 0
  %v3624 = vsel %vm245, %v3542, 0
  %v3627 = vsel %vm245, %v3544, 0
  %v3630 = vsel %vm245, %v3546, 0
  %v3633 = vsel %vm245, %v3548, 0
  %v3636 = vsel %vm245, %v3550, 0
  %v3639 = vsel %vm245, %v3552, 0
  %v3642 = vsel %vm245, %v3554, 0
  %v3645 = vsel %vm245, %v3556, 0
  %v3648 = vsel %vm245, %v3558, 0
  %v3651 = vsel %vm245, %v3560, 0
  %v3654 = vsel %vm245, %v3562, 0
  %v3657 = vsel %vm245, %v3564, 0
  %v3660 = vsel %vm245, %v3566, 0
  %v3663 = vsel %vm245, %v3568, 0
  %v3666 = vsel %vm245, %v3586, 0
  %v3669 = vsel %vm245, %v3588, 0
  %v3672 = vsel %vm245, %v3590, 0
  %v3675 = vsel %vm245, %v3592, 0
  %v3678 = vsel %vm245, %v3594, 0
  %v3681 = vsel %vm245, %v3596, 0
  %v3684 = vsel %vm245, %v3598, 0
  %v3687 = vsel %vm245, %v3600, 0
  %v3690 = vsel %vm245, %v3602, 0
  %v3693 = vsel %vm245, %v3604, 0
  %v3696 = vsel %vm245, %v3606, 0
  %v3699 = vsel %vm245, %v3608, 0
  %v3702 = vsel %vm245, %v3610, 0
  %v3705 = vsel %vm245, %v3612, 0
  %v3708 = vsel %vm245, %v3614, 0
  %v3711 = vsel %vm245, %v3616, 0
  %3713 = vmatprep.subr.bf16.mxu0 0
  %3714 = vmatpush1.bf16.xpose.msra.mxu0 %v3666
  %3715 = vmatprep.subr.bf16.mxu0 0
  %3716 = vmatpush1.bf16.xpose.msra.mxu0 %v3669
  %3717 = vmatprep.subr.bf16.mxu0 0
  %3718 = vmatpush1.bf16.xpose.msra.mxu0 %v3672
  %3719 = vmatprep.subr.bf16.mxu0 0
  %3720 = vmatpush1.bf16.xpose.msra.mxu0 %v3675
  %3721 = vmatprep.subr.bf16.mxu0 0
  %3722 = vmatpush1.bf16.xpose.msra.mxu0 %v3678
  %3723 = vmatprep.subr.bf16.mxu0 0
  %3724 = vmatpush1.bf16.xpose.msra.mxu0 %v3681
  %3725 = vmatprep.subr.bf16.mxu0 0
  %3726 = vmatpush1.bf16.xpose.msra.mxu0 %v3684
  %3727 = vmatprep.subr.bf16.mxu0 0
  %3728 = vmatpush1.bf16.xpose.msra.mxu0 %v3687
  %3729 = vmatprep.subr.bf16.mxu0 0
  %3730 = vmatpush1.bf16.xpose.msra.mxu0 %v3690
  %3731 = vmatprep.subr.bf16.mxu0 0
  %3732 = vmatpush1.bf16.xpose.msra.mxu0 %v3693
  %3733 = vmatprep.subr.bf16.mxu0 0
  %3734 = vmatpush1.bf16.xpose.msra.mxu0 %v3696
  %3735 = vmatprep.subr.bf16.mxu0 0
  %3736 = vmatpush1.bf16.xpose.msra.mxu0 %v3699
  %3737 = vmatprep.subr.bf16.mxu0 0
  %3738 = vmatpush1.bf16.xpose.msra.mxu0 %v3702
  %3739 = vmatprep.subr.bf16.mxu0 0
  %3740 = vmatpush1.bf16.xpose.msra.mxu0 %v3705
  %3741 = vmatprep.subr.bf16.mxu0 0
  %3742 = vmatpush1.bf16.xpose.msra.mxu0 %v3708
  %3743 = vmatprep.subr.bf16.mxu0 0
  %3744 = vmatpush1.bf16.xpose.msra.mxu0 %v3711
  %3745 = vmatprep.mubr.bf16.mxu0 0
  %3746 = vmatmul.mubr.bf16.gmra.mrb[0].mxu0 %v3618
  %v3747 = vpop.f32.mrb[0].mxu0
  %v3748 = vadd.f32 %v2471, %v3747
  %v3749 = vpop.f32.mrb[0].mxu0
  %v3750 = vadd.f32 %v2472, %v3749
  %v3751 = vpop.f32.mrb[0].mxu0
  %v3752 = vadd.f32 %v2473, %v3751
  %v3753 = vpop.f32.mrb[0].mxu0
  %v3754 = vadd.f32 %v2474, %v3753
  %3755 = vmatprep.mubr.bf16.mxu0 0
  %3756 = vmatmul.mubr.bf16.gmra.mrb[0].mxu0 %v3621
  %v3757 = vpop.f32.mrb[0].mxu0
  %v3758 = vadd.f32 %v2475, %v3757
  %v3759 = vpop.f32.mrb[0].mxu0
  %v3760 = vadd.f32 %v2476, %v3759
  %v3761 = vpop.f32.mrb[0].mxu0
  %v3762 = vadd.f32 %v2477, %v3761
  %v3763 = vpop.f32.mrb[0].mxu0
  %v3764 = vadd.f32 %v2478, %v3763
  %3765 = vmatprep.mubr.bf16.mxu0 0
  %3766 = vmatmul.mubr.bf16.gmra.mrb[0].mxu0 %v3624
  %v3767 = vpop.f32.mrb[0].mxu0
  %v3768 = vadd.f32 %v2479, %v3767
  %v3769 = vpop.f32.mrb[0].mxu0
  %v3770 = vadd.f32 %v2480, %v3769
  %v3771 = vpop.f32.mrb[0].mxu0
  %v3772 = vadd.f32 %v2481, %v3771
  %v3773 = vpop.f32.mrb[0].mxu0
  %v3774 = vadd.f32 %v2482, %v3773
  %3775 = vmatprep.mubr.bf16.mxu0 0
  %3776 = vmatmul.mubr.bf16.gmra.mrb[0].mxu0 %v3627
  %v3777 = vpop.f32.mrb[0].mxu0
  %v3778 = vadd.f32 %v2483, %v3777
  %v3779 = vpop.f32.mrb[0].mxu0
  %v3780 = vadd.f32 %v2484, %v3779
  %v3781 = vpop.f32.mrb[0].mxu0
  %v3782 = vadd.f32 %v2485, %v3781
  %v3783 = vpop.f32.mrb[0].mxu0
  %v3784 = vadd.f32 %v2486, %v3783
  %3785 = vmatprep.mubr.bf16.mxu0 0
  %3786 = vmatmul.mubr.bf16.gmra.mrb[0].mxu0 %v3630
  %v3787 = vpop.f32.mrb[0].mxu0
  %v3788 = vadd.f32 %v2487, %v3787
  %v3789 = vpop.f32.mrb[0].mxu0
  %v3790 = vadd.f32 %v2488, %v3789
  %v3791 = vpop.f32.mrb[0].mxu0
  %v3792 = vadd.f32 %v2489, %v3791
  %v3793 = vpop.f32.mrb[0].mxu0
  %v3794 = vadd.f32 %v2490, %v3793
  %3795 = vmatprep.mubr.bf16.mxu0 0
  %3796 = vmatmul.mubr.bf16.gmra.mrb[0].mxu0 %v3633
  %v3797 = vpop.f32.mrb[0].mxu0
  %v3798 = vadd.f32 %v2491, %v3797
  %v3799 = vpop.f32.mrb[0].mxu0
  %v3800 = vadd.f32 %v2492, %v3799
  %v3801 = vpop.f32.mrb[0].mxu0
  %v3802 = vadd.f32 %v2493, %v3801
  %v3803 = vpop.f32.mrb[0].mxu0
  %v3804 = vadd.f32 %v2494, %v3803
  %3805 = vmatprep.mubr.bf16.mxu0 0
  %3806 = vmatmul.mubr.bf16.gmra.mrb[0].mxu0 %v3636
  %v3807 = vpop.f32.mrb[0].mxu0
  %v3808 = vadd.f32 %v2495, %v3807
  %v3809 = vpop.f32.mrb[0].mxu0
  %v3810 = vadd.f32 %v2496, %v3809
  %v3811 = vpop.f32.mrb[0].mxu0
  %v3812 = vadd.f32 %v2497, %v3811
  %v3813 = vpop.f32.mrb[0].mxu0
  %v3814 = vadd.f32 %v2498, %v3813
  %3815 = vmatprep.mubr.bf16.mxu0 0
  %3816 = vmatmul.mubr.bf16.gmra.mrb[0].mxu0 %v3639
  %v3817 = vpop.f32.mrb[0].mxu0
  %v3818 = vadd.f32 %v2499, %v3817
  %v3819 = vpop.f32.mrb[0].mxu0
  %v3820 = vadd.f32 %v2500, %v3819
  %v3821 = vpop.f32.mrb[0].mxu0
  %v3822 = vadd.f32 %v2501, %v3821
  %v3823 = vpop.f32.mrb[0].mxu0
  %v3824 = vadd.f32 %v2502, %v3823
  %3825 = vmatprep.mubr.bf16.mxu0 0
  %3826 = vmatmul.mubr.bf16.gmra.mrb[0].mxu0 %v3642
  %v3827 = vpop.f32.mrb[0].mxu0
  %v3828 = vadd.f32 %v2503, %v3827
  %v3829 = vpop.f32.mrb[0].mxu0
  %v3830 = vadd.f32 %v2504, %v3829
  %v3831 = vpop.f32.mrb[0].mxu0
  %v3832 = vadd.f32 %v2505, %v3831
  %v3833 = vpop.f32.mrb[0].mxu0
  %v3834 = vadd.f32 %v2506, %v3833
  %3835 = vmatprep.mubr.bf16.mxu0 0
  %3836 = vmatmul.mubr.bf16.gmra.mrb[0].mxu0 %v3645
  %v3837 = vpop.f32.mrb[0].mxu0
  %v3838 = vadd.f32 %v2507, %v3837
  %v3839 = vpop.f32.mrb[0].mxu0
  %v3840 = vadd.f32 %v2508, %v3839
  %v3841 = vpop.f32.mrb[0].mxu0
  %v3842 = vadd.f32 %v2509, %v3841
  %v3843 = vpop.f32.mrb[0].mxu0
  %v3844 = vadd.f32 %v2510, %v3843
  %3845 = vmatprep.mubr.bf16.mxu0 0
  %3846 = vmatmul.mubr.bf16.gmra.mrb[0].mxu0 %v3648
  %v3847 = vpop.f32.mrb[0].mxu0
  %v3848 = vadd.f32 %v2511, %v3847
  %v3849 = vpop.f32.mrb[0].mxu0
  %v3850 = vadd.f32 %v2512, %v3849
  %v3851 = vpop.f32.mrb[0].mxu0
  %v3852 = vadd.f32 %v2513, %v3851
  %v3853 = vpop.f32.mrb[0].mxu0
  %v3854 = vadd.f32 %v2514, %v3853
  %3855 = vmatprep.mubr.bf16.mxu0 0
  %3856 = vmatmul.mubr.bf16.gmra.mrb[0].mxu0 %v3651
  %v3857 = vpop.f32.mrb[0].mxu0
  %v3858 = vadd.f32 %v2515, %v3857
  %v3859 = vpop.f32.mrb[0].mxu0
  %v3860 = vadd.f32 %v2516, %v3859
  %v3861 = vpop.f32.mrb[0].mxu0
  %v3862 = vadd.f32 %v2517, %v3861
  %v3863 = vpop.f32.mrb[0].mxu0
  %v3864 = vadd.f32 %v2518, %v3863
  %3865 = vmatprep.mubr.bf16.mxu0 0
  %3866 = vmatmul.mubr.bf16.gmra.mrb[0].mxu0 %v3654
  %v3867 = vpop.f32.mrb[0].mxu0
  %v3868 = vadd.f32 %v2519, %v3867
  %v3869 = vpop.f32.mrb[0].mxu0
  %v3870 = vadd.f32 %v2520, %v3869
  %v3871 = vpop.f32.mrb[0].mxu0
  %v3872 = vadd.f32 %v2521, %v3871
  %v3873 = vpop.f32.mrb[0].mxu0
  %v3874 = vadd.f32 %v2522, %v3873
  %3875 = vmatprep.mubr.bf16.mxu0 0
  %3876 = vmatmul.mubr.bf16.gmra.mrb[0].mxu0 %v3657
  %v3877 = vpop.f32.mrb[0].mxu0
  %v3878 = vadd.f32 %v2523, %v3877
  %v3879 = vpop.f32.mrb[0].mxu0
  %v3880 = vadd.f32 %v2524, %v3879
  %v3881 = vpop.f32.mrb[0].mxu0
  %v3882 = vadd.f32 %v2525, %v3881
  %v3883 = vpop.f32.mrb[0].mxu0
  %v3884 = vadd.f32 %v2526, %v3883
  %3885 = vmatprep.mubr.bf16.mxu0 0
  %3886 = vmatmul.mubr.bf16.gmra.mrb[0].mxu0 %v3660
  %v3887 = vpop.f32.mrb[0].mxu0
  %v3888 = vadd.f32 %v2527, %v3887
  %v3889 = vpop.f32.mrb[0].mxu0
  %v3890 = vadd.f32 %v2528, %v3889
  %v3891 = vpop.f32.mrb[0].mxu0
  %v3892 = vadd.f32 %v2529, %v3891
  %v3893 = vpop.f32.mrb[0].mxu0
  %v3894 = vadd.f32 %v2530, %v3893
  %3895 = vmatprep.mubr.bf16.mxu0 0
  %3896 = vmatmul.mubr.bf16.gmra.mrb[0].mxu0 %v3663
  %v3897 = vpop.f32.mrb[0].mxu0
  %v3898 = vadd.f32 %v2531, %v3897
  %v3899 = vpop.f32.mrb[0].mxu0
  %v3900 = vadd.f32 %v2532, %v3899
  %v3901 = vpop.f32.mrb[0].mxu0
  %v3902 = vadd.f32 %v2533, %v3901
  %v3903 = vpop.f32.mrb[0].mxu0
  %v3904 = vadd.f32 %v2534, %v3903
  %3905 = vdwg.mxu0
  %v3906 = vmax.f32 %v3748, %v3750
  %3907 = vmax.xlane.f32.xlu0 %v3906
  %v3908 = vpop.xlane.xlu0 %3907
  %v3909 = vmax.f32 %v3752, %v3754
  %3910 = vmax.xlane.f32.xlu0 %v3909
  %v3911 = vpop.xlane.xlu0 %3910
  %v3912 = vmax.f32 %v3758, %v3760
  %3913 = vmax.xlane.f32.xlu0 %v3912
  %v3914 = vpop.xlane.xlu0 %3913
  %v3915 = vmax.f32 %v3762, %v3764
  %3916 = vmax.xlane.f32.xlu0 %v3915
  %v3917 = vpop.xlane.xlu0 %3916
  %v3918 = vmax.f32 %v3768, %v3770
  %3919 = vmax.xlane.f32.xlu0 %v3918
  %v3920 = vpop.xlane.xlu0 %3919
  %v3921 = vmax.f32 %v3772, %v3774
  %3922 = vmax.xlane.f32.xlu0 %v3921
  %v3923 = vpop.xlane.xlu0 %3922
  %v3924 = vmax.f32 %v3778, %v3780
  %3925 = vmax.xlane.f32.xlu0 %v3924
  %v3926 = vpop.xlane.xlu0 %3925
  %v3927 = vmax.f32 %v3782, %v3784
  %3928 = vmax.xlane.f32.xlu0 %v3927
  %v3929 = vpop.xlane.xlu0 %3928
  %v3930 = vmax.f32 %v3788, %v3790
  %3931 = vmax.xlane.f32.xlu0 %v3930
  %v3932 = vpop.xlane.xlu0 %3931
  %v3933 = vmax.f32 %v3792, %v3794
  %3934 = vmax.xlane.f32.xlu0 %v3933
  %v3935 = vpop.xlane.xlu0 %3934
  %v3936 = vmax.f32 %v3798, %v3800
  %3937 = vmax.xlane.f32.xlu0 %v3936
  %v3938 = vpop.xlane.xlu0 %3937
  %v3939 = vmax.f32 %v3802, %v3804
  %3940 = vmax.xlane.f32.xlu0 %v3939
  %v3941 = vpop.xlane.xlu0 %3940
  %v3942 = vmax.f32 %v3808, %v3810
  %3943 = vmax.xlane.f32.xlu0 %v3942
  %v3944 = vpop.xlane.xlu0 %3943
  %v3945 = vmax.f32 %v3812, %v3814
  %3946 = vmax.xlane.f32.xlu0 %v3945
  %v3947 = vpop.xlane.xlu0 %3946
  %v3948 = vmax.f32 %v3818, %v3820
  %3949 = vmax.xlane.f32.xlu0 %v3948
  %v3950 = vpop.xlane.xlu0 %3949
  %v3951 = vmax.f32 %v3822, %v3824
  %3952 = vmax.xlane.f32.xlu0 %v3951
  %v3953 = vpop.xlane.xlu0 %3952
  %v3954 = vmax.f32 %v3828, %v3830
  %3955 = vmax.xlane.f32.xlu0 %v3954
  %v3956 = vpop.xlane.xlu0 %3955
  %v3957 = vmax.f32 %v3832, %v3834
  %3958 = vmax.xlane.f32.xlu0 %v3957
  %v3959 = vpop.xlane.xlu0 %3958
  %v3960 = vmax.f32 %v3838, %v3840
  %3961 = vmax.xlane.f32.xlu0 %v3960
  %v3962 = vpop.xlane.xlu0 %3961
  %v3963 = vmax.f32 %v3842, %v3844
  %3964 = vmax.xlane.f32.xlu0 %v3963
  %v3965 = vpop.xlane.xlu0 %3964
  %v3966 = vmax.f32 %v3848, %v3850
  %3967 = vmax.xlane.f32.xlu0 %v3966
  %v3968 = vpop.xlane.xlu0 %3967
  %v3969 = vmax.f32 %v3852, %v3854
  %3970 = vmax.xlane.f32.xlu0 %v3969
  %v3971 = vpop.xlane.xlu0 %3970
  %v3972 = vmax.f32 %v3858, %v3860
  %3973 = vmax.xlane.f32.xlu0 %v3972
  %v3974 = vpop.xlane.xlu0 %3973
  %v3975 = vmax.f32 %v3862, %v3864
  %3976 = vmax.xlane.f32.xlu0 %v3975
  %v3977 = vpop.xlane.xlu0 %3976
  %v3978 = vmax.f32 %v3868, %v3870
  %3979 = vmax.xlane.f32.xlu0 %v3978
  %v3980 = vpop.xlane.xlu0 %3979
  %v3981 = vmax.f32 %v3872, %v3874
  %3982 = vmax.xlane.f32.xlu0 %v3981
  %v3983 = vpop.xlane.xlu0 %3982
  %v3984 = vmax.f32 %v3878, %v3880
  %3985 = vmax.xlane.f32.xlu0 %v3984
  %v3986 = vpop.xlane.xlu0 %3985
  %v3987 = vmax.f32 %v3882, %v3884
  %3988 = vmax.xlane.f32.xlu0 %v3987
  %v3989 = vpop.xlane.xlu0 %3988
  %v3990 = vmax.f32 %v3888, %v3890
  %3991 = vmax.xlane.f32.xlu0 %v3990
  %v3992 = vpop.xlane.xlu0 %3991
  %v3993 = vmax.f32 %v3892, %v3894
  %3994 = vmax.xlane.f32.xlu0 %v3993
  %v3995 = vpop.xlane.xlu0 %3994
  %v3996 = vmax.f32 %v3898, %v3900
  %3997 = vmax.xlane.f32.xlu0 %v3996
  %v3998 = vpop.xlane.xlu0 %3997
  %v3999 = vmax.f32 %v3902, %v3904
  %4000 = vmax.xlane.f32.xlu0 %v3999
  %v4001 = vpop.xlane.xlu0 %4000
  %v4002 = vsub.f32 %v3748, %v3908
  %v4003 = vsub.f32 %v3750, %v3908
  %v4004 = vsub.f32 %v3752, %v3911
  %v4005 = vsub.f32 %v3754, %v3911
  %v4006 = vsub.f32 %v3758, %v3914
  %v4007 = vsub.f32 %v3760, %v3914
  %v4008 = vsub.f32 %v3762, %v3917
  %v4009 = vsub.f32 %v3764, %v3917
  %v4010 = vsub.f32 %v3768, %v3920
  %v4011 = vsub.f32 %v3770, %v3920
  %v4012 = vsub.f32 %v3772, %v3923
  %v4013 = vsub.f32 %v3774, %v3923
  %v4014 = vsub.f32 %v3778, %v3926
  %v4015 = vsub.f32 %v3780, %v3926
  %v4016 = vsub.f32 %v3782, %v3929
  %v4017 = vsub.f32 %v3784, %v3929
  %v4018 = vsub.f32 %v3788, %v3932
  %v4019 = vsub.f32 %v3790, %v3932
  %v4020 = vsub.f32 %v3792, %v3935
  %v4021 = vsub.f32 %v3794, %v3935
  %v4022 = vsub.f32 %v3798, %v3938
  %v4023 = vsub.f32 %v3800, %v3938
  %v4024 = vsub.f32 %v3802, %v3941
  %v4025 = vsub.f32 %v3804, %v3941
  %v4026 = vsub.f32 %v3808, %v3944
  %v4027 = vsub.f32 %v3810, %v3944
  %v4028 = vsub.f32 %v3812, %v3947
  %v4029 = vsub.f32 %v3814, %v3947
  %v4030 = vsub.f32 %v3818, %v3950
  %v4031 = vsub.f32 %v3820, %v3950
  %v4032 = vsub.f32 %v3822, %v3953
  %v4033 = vsub.f32 %v3824, %v3953
  %v4034 = vsub.f32 %v3828, %v3956
  %v4035 = vsub.f32 %v3830, %v3956
  %v4036 = vsub.f32 %v3832, %v3959
  %v4037 = vsub.f32 %v3834, %v3959
  %v4038 = vsub.f32 %v3838, %v3962
  %v4039 = vsub.f32 %v3840, %v3962
  %v4040 = vsub.f32 %v3842, %v3965
  %v4041 = vsub.f32 %v3844, %v3965
  %v4042 = vsub.f32 %v3848, %v3968
  %v4043 = vsub.f32 %v3850, %v3968
  %v4044 = vsub.f32 %v3852, %v3971
  %v4045 = vsub.f32 %v3854, %v3971
  %v4046 = vsub.f32 %v3858, %v3974
  %v4047 = vsub.f32 %v3860, %v3974
  %v4048 = vsub.f32 %v3862, %v3977
  %v4049 = vsub.f32 %v3864, %v3977
  %v4050 = vsub.f32 %v3868, %v3980
  %v4051 = vsub.f32 %v3870, %v3980
  %v4052 = vsub.f32 %v3872, %v3983
  %v4053 = vsub.f32 %v3874, %v3983
  %v4054 = vsub.f32 %v3878, %v3986
  %v4055 = vsub.f32 %v3880, %v3986
  %v4056 = vsub.f32 %v3882, %v3989
  %v4057 = vsub.f32 %v3884, %v3989
  %v4058 = vsub.f32 %v3888, %v3992
  %v4059 = vsub.f32 %v3890, %v3992
  %v4060 = vsub.f32 %v3892, %v3995
  %v4061 = vsub.f32 %v3894, %v3995
  %v4062 = vsub.f32 %v3898, %v3998
  %v4063 = vsub.f32 %v3900, %v3998
  %v4064 = vsub.f32 %v3902, %v4001
  %v4065 = vsub.f32 %v3904, %v4001
  %v4066 = vmul.f32 %v4002, 1.442695
  %v4067 = vpow.pop %v4066
  %v4068 = vmul.f32 %v4003, 1.442695
  %v4069 = vpow.pop %v4068
  %v4070 = vmul.f32 %v4004, 1.442695
  %v4071 = vpow.pop %v4070
  %v4072 = vmul.f32 %v4005, 1.442695
  %v4073 = vpow.pop %v4072
  %v4074 = vmul.f32 %v4006, 1.442695
  %v4075 = vpow.pop %v4074
  %v4076 = vmul.f32 %v4007, 1.442695
  %v4077 = vpow.pop %v4076
  %v4078 = vmul.f32 %v4008, 1.442695
  %v4079 = vpow.pop %v4078
  %v4080 = vmul.f32 %v4009, 1.442695
  %v4081 = vpow.pop %v4080
  %v4082 = vmul.f32 %v4010, 1.442695
  %v4083 = vpow.pop %v4082
  %v4084 = vmul.f32 %v4011, 1.442695
  %v4085 = vpow.pop %v4084
  %v4086 = vmul.f32 %v4012, 1.442695
  %v4087 = vpow.pop %v4086
  %v4088 = vmul.f32 %v4013, 1.442695
  %v4089 = vpow.pop %v4088
  %v4090 = vmul.f32 %v4014, 1.442695
  %v4091 = vpow.pop %v4090
  %v4092 = vmul.f32 %v4015, 1.442695
  %v4093 = vpow.pop %v4092
  %v4094 = vmul.f32 %v4016, 1.442695
  %v4095 = vpow.pop %v4094
  %v4096 = vmul.f32 %v4017, 1.442695
  %v4097 = vpow.pop %v4096
  %v4098 = vmul.f32 %v4018, 1.442695
  %v4099 = vpow.pop %v4098
  %v4100 = vmul.f32 %v4019, 1.442695
  %v4101 = vpow.pop %v4100
  %v4102 = vmul.f32 %v4020, 1.442695
  %v4103 = vpow.pop %v4102
  %v4104 = vmul.f32 %v4021, 1.442695
  %v4105 = vpow.pop %v4104
  %v4106 = vmul.f32 %v4022, 1.442695
  %v4107 = vpow.pop %v4106
  %v4108 = vmul.f32 %v4023, 1.442695
  %v4109 = vpow.pop %v4108
  %v4110 = vmul.f32 %v4024, 1.442695
  %v4111 = vpow.pop %v4110
  %v4112 = vmul.f32 %v4025, 1.442695
  %v4113 = vpow.pop %v4112
  %v4114 = vmul.f32 %v4026, 1.442695
  %v4115 = vpow.pop %v4114
  %v4116 = vmul.f32 %v4027, 1.442695
  %v4117 = vpow.pop %v4116
  %v4118 = vmul.f32 %v4028, 1.442695
  %v4119 = vpow.pop %v4118
  %v4120 = vmul.f32 %v4029, 1.442695
  %v4121 = vpow.pop %v4120
  %v4122 = vmul.f32 %v4030, 1.442695
  %v4123 = vpow.pop %v4122
  %v4124 = vmul.f32 %v4031, 1.442695
  %v4125 = vpow.pop %v4124
  %v4126 = vmul.f32 %v4032, 1.442695
  %v4127 = vpow.pop %v4126
  %v4128 = vmul.f32 %v4033, 1.442695
  %v4129 = vpow.pop %v4128
  %v4130 = vmul.f32 %v4034, 1.442695
  %v4131 = vpow.pop %v4130
  %v4132 = vmul.f32 %v4035, 1.442695
  %v4133 = vpow.pop %v4132
  %v4134 = vmul.f32 %v4036, 1.442695
  %v4135 = vpow.pop %v4134
  %v4136 = vmul.f32 %v4037, 1.442695
  %v4137 = vpow.pop %v4136
  %v4138 = vmul.f32 %v4038, 1.442695
  %v4139 = vpow.pop %v4138
  %v4140 = vmul.f32 %v4039, 1.442695
  %v4141 = vpow.pop %v4140
  %v4142 = vmul.f32 %v4040, 1.442695
  %v4143 = vpow.pop %v4142
  %v4144 = vmul.f32 %v4041, 1.442695
  %v4145 = vpow.pop %v4144
  %v4146 = vmul.f32 %v4042, 1.442695
  %v4147 = vpow.pop %v4146
  %v4148 = vmul.f32 %v4043, 1.442695
  %v4149 = vpow.pop %v4148
  %v4150 = vmul.f32 %v4044, 1.442695
  %v4151 = vpow.pop %v4150
  %v4152 = vmul.f32 %v4045, 1.442695
  %v4153 = vpow.pop %v4152
  %v4154 = vmul.f32 %v4046, 1.442695
  %v4155 = vpow.pop %v4154
  %v4156 = vmul.f32 %v4047, 1.442695
  %v4157 = vpow.pop %v4156
  %v4158 = vmul.f32 %v4048, 1.442695
  %v4159 = vpow.pop %v4158
  %v4160 = vmul.f32 %v4049, 1.442695
  %v4161 = vpow.pop %v4160
  %v4162 = vmul.f32 %v4050, 1.442695
  %v4163 = vpow.pop %v4162
  %v4164 = vmul.f32 %v4051, 1.442695
  %v4165 = vpow.pop %v4164
  %v4166 = vmul.f32 %v4052, 1.442695
  %v4167 = vpow.pop %v4166
  %v4168 = vmul.f32 %v4053, 1.442695
  %v4169 = vpow.pop %v4168
  %v4170 = vmul.f32 %v4054, 1.442695
  %v4171 = vpow.pop %v4170
  %v4172 = vmul.f32 %v4055, 1.442695
  %v4173 = vpow.pop %v4172
  %v4174 = vmul.f32 %v4056, 1.442695
  %v4175 = vpow.pop %v4174
  %v4176 = vmul.f32 %v4057, 1.442695
  %v4177 = vpow.pop %v4176
  %v4178 = vmul.f32 %v4058, 1.442695
  %v4179 = vpow.pop %v4178
  %v4180 = vmul.f32 %v4059, 1.442695
  %v4181 = vpow.pop %v4180
  %v4182 = vmul.f32 %v4060, 1.442695
  %v4183 = vpow.pop %v4182
  %v4184 = vmul.f32 %v4061, 1.442695
  %v4185 = vpow.pop %v4184
  %v4186 = vmul.f32 %v4062, 1.442695
  %v4187 = vpow.pop %v4186
  %v4188 = vmul.f32 %v4063, 1.442695
  %v4189 = vpow.pop %v4188
  %v4190 = vmul.f32 %v4064, 1.442695
  %v4191 = vpow.pop %v4190
  %v4192 = vmul.f32 %v4065, 1.442695
  %v4193 = vpow.pop %v4192
  %v4194 = vadd.f32 %v4067, %v4069
  %4195 = vadd.xlane.f32.xlu0 %v4194
  %v4196 = vpop.xlane.xlu0 %4195
  %v4197 = vadd.f32 %v4071, %v4073
  %4198 = vadd.xlane.f32.xlu0 %v4197
  %v4199 = vpop.xlane.xlu0 %4198
  %v4200 = vadd.f32 %v4075, %v4077
  %4201 = vadd.xlane.f32.xlu0 %v4200
  %v4202 = vpop.xlane.xlu0 %4201
  %v4203 = vadd.f32 %v4079, %v4081
  %4204 = vadd.xlane.f32.xlu0 %v4203
  %v4205 = vpop.xlane.xlu0 %4204
  %v4206 = vadd.f32 %v4083, %v4085
  %4207 = vadd.xlane.f32.xlu0 %v4206
  %v4208 = vpop.xlane.xlu0 %4207
  %v4209 = vadd.f32 %v4087, %v4089
  %4210 = vadd.xlane.f32.xlu0 %v4209
  %v4211 = vpop.xlane.xlu0 %4210
  %v4212 = vadd.f32 %v4091, %v4093
  %4213 = vadd.xlane.f32.xlu0 %v4212
  %v4214 = vpop.xlane.xlu0 %4213
  %v4215 = vadd.f32 %v4095, %v4097
  %4216 = vadd.xlane.f32.xlu0 %v4215
  %v4217 = vpop.xlane.xlu0 %4216
  %v4218 = vadd.f32 %v4099, %v4101
  %4219 = vadd.xlane.f32.xlu0 %v4218
  %v4220 = vpop.xlane.xlu0 %4219
  %v4221 = vadd.f32 %v4103, %v4105
  %4222 = vadd.xlane.f32.xlu0 %v4221
  %v4223 = vpop.xlane.xlu0 %4222
  %v4224 = vadd.f32 %v4107, %v4109
  %4225 = vadd.xlane.f32.xlu0 %v4224
  %v4226 = vpop.xlane.xlu0 %4225
  %v4227 = vadd.f32 %v4111, %v4113
  %4228 = vadd.xlane.f32.xlu0 %v4227
  %v4229 = vpop.xlane.xlu0 %4228
  %v4230 = vadd.f32 %v4115, %v4117
  %4231 = vadd.xlane.f32.xlu0 %v4230
  %v4232 = vpop.xlane.xlu0 %4231
  %v4233 = vadd.f32 %v4119, %v4121
  %4234 = vadd.xlane.f32.xlu0 %v4233
  %v4235 = vpop.xlane.xlu0 %4234
  %v4236 = vadd.f32 %v4123, %v4125
  %4237 = vadd.xlane.f32.xlu0 %v4236
  %v4238 = vpop.xlane.xlu0 %4237
  %v4239 = vadd.f32 %v4127, %v4129
  %4240 = vadd.xlane.f32.xlu0 %v4239
  %v4241 = vpop.xlane.xlu0 %4240
  %v4242 = vadd.f32 %v4131, %v4133
  %4243 = vadd.xlane.f32.xlu0 %v4242
  %v4244 = vpop.xlane.xlu0 %4243
  %v4245 = vadd.f32 %v4135, %v4137
  %4246 = vadd.xlane.f32.xlu0 %v4245
  %v4247 = vpop.xlane.xlu0 %4246
  %v4248 = vadd.f32 %v4139, %v4141
  %4249 = vadd.xlane.f32.xlu0 %v4248
  %v4250 = vpop.xlane.xlu0 %4249
  %v4251 = vadd.f32 %v4143, %v4145
  %4252 = vadd.xlane.f32.xlu0 %v4251
  %v4253 = vpop.xlane.xlu0 %4252
  %v4254 = vadd.f32 %v4147, %v4149
  %4255 = vadd.xlane.f32.xlu0 %v4254
  %v4256 = vpop.xlane.xlu0 %4255
  %v4257 = vadd.f32 %v4151, %v4153
  %4258 = vadd.xlane.f32.xlu0 %v4257
  %v4259 = vpop.xlane.xlu0 %4258
  %v4260 = vadd.f32 %v4155, %v4157
  %4261 = vadd.xlane.f32.xlu0 %v4260
  %v4262 = vpop.xlane.xlu0 %4261
  %v4263 = vadd.f32 %v4159, %v4161
  %4264 = vadd.xlane.f32.xlu0 %v4263
  %v4265 = vpop.xlane.xlu0 %4264
  %v4266 = vadd.f32 %v4163, %v4165
  %4267 = vadd.xlane.f32.xlu0 %v4266
  %v4268 = vpop.xlane.xlu0 %4267
  %v4269 = vadd.f32 %v4167, %v4169
  %4270 = vadd.xlane.f32.xlu0 %v4269
  %v4271 = vpop.xlane.xlu0 %4270
  %v4272 = vadd.f32 %v4171, %v4173
  %4273 = vadd.xlane.f32.xlu0 %v4272
  %v4274 = vpop.xlane.xlu0 %4273
  %v4275 = vadd.f32 %v4175, %v4177
  %4276 = vadd.xlane.f32.xlu0 %v4275
  %v4277 = vpop.xlane.xlu0 %4276
  %v4278 = vadd.f32 %v4179, %v4181
  %4279 = vadd.xlane.f32.xlu0 %v4278
  %v4280 = vpop.xlane.xlu0 %4279
  %v4281 = vadd.f32 %v4183, %v4185
  %4282 = vadd.xlane.f32.xlu0 %v4281
  %v4283 = vpop.xlane.xlu0 %4282
  %v4284 = vadd.f32 %v4187, %v4189
  %4285 = vadd.xlane.f32.xlu0 %v4284
  %v4286 = vpop.xlane.xlu0 %4285
  %v4287 = vadd.f32 %v4191, %v4193
  %4288 = vadd.xlane.f32.xlu0 %v4287
  %v4289 = vpop.xlane.xlu0 %4288
  %v4290 = vrcp.pop %v4196
  %v4291 = vrcp.pop %v4199
  %v4292 = vrcp.pop %v4202
  %v4293 = vrcp.pop %v4205
  %v4294 = vrcp.pop %v4208
  %v4295 = vrcp.pop %v4211
  %v4296 = vrcp.pop %v4214
  %v4297 = vrcp.pop %v4217
  %v4298 = vrcp.pop %v4220
  %v4299 = vrcp.pop %v4223
  %v4300 = vrcp.pop %v4226
  %v4301 = vrcp.pop %v4229
  %v4302 = vrcp.pop %v4232
  %v4303 = vrcp.pop %v4235
  %v4304 = vrcp.pop %v4238
  %v4305 = vrcp.pop %v4241
  %v4306 = vrcp.pop %v4244
  %v4307 = vrcp.pop %v4247
  %v4308 = vrcp.pop %v4250
  %v4309 = vrcp.pop %v4253
  %v4310 = vrcp.pop %v4256
  %v4311 = vrcp.pop %v4259
  %v4312 = vrcp.pop %v4262
  %v4313 = vrcp.pop %v4265
  %v4314 = vrcp.pop %v4268
  %v4315 = vrcp.pop %v4271
  %v4316 = vrcp.pop %v4274
  %v4317 = vrcp.pop %v4277
  %v4318 = vrcp.pop %v4280
  %v4319 = vrcp.pop %v4283
  %v4320 = vrcp.pop %v4286
  %v4321 = vrcp.pop %v4289
  %v4322 = vmul.f32 %v4067, %v4290
  %v4323 = vmul.f32 %v4069, %v4290
  %v4324 = vmul.f32 %v4071, %v4291
  %v4325 = vmul.f32 %v4073, %v4291
  %v4326 = vmul.f32 %v4075, %v4292
  %v4327 = vmul.f32 %v4077, %v4292
  %v4328 = vmul.f32 %v4079, %v4293
  %v4329 = vmul.f32 %v4081, %v4293
  %v4330 = vmul.f32 %v4083, %v4294
  %v4331 = vmul.f32 %v4085, %v4294
  %v4332 = vmul.f32 %v4087, %v4295
  %v4333 = vmul.f32 %v4089, %v4295
  %v4334 = vmul.f32 %v4091, %v4296
  %v4335 = vmul.f32 %v4093, %v4296
  %v4336 = vmul.f32 %v4095, %v4297
  %v4337 = vmul.f32 %v4097, %v4297
  %v4338 = vmul.f32 %v4099, %v4298
  %v4339 = vmul.f32 %v4101, %v4298
  %v4340 = vmul.f32 %v4103, %v4299
  %v4341 = vmul.f32 %v4105, %v4299
  %v4342 = vmul.f32 %v4107, %v4300
  %v4343 = vmul.f32 %v4109, %v4300
  %v4344 = vmul.f32 %v4111, %v4301
  %v4345 = vmul.f32 %v4113, %v4301
  %v4346 = vmul.f32 %v4115, %v4302
  %v4347 = vmul.f32 %v4117, %v4302
  %v4348 = vmul.f32 %v4119, %v4303
  %v4349 = vmul.f32 %v4121, %v4303
  %v4350 = vmul.f32 %v4123, %v4304
  %v4351 = vmul.f32 %v4125, %v4304
  %v4352 = vmul.f32 %v4127, %v4305
  %v4353 = vmul.f32 %v4129, %v4305
  %v4354 = vmul.f32 %v4131, %v4306
  %v4355 = vmul.f32 %v4133, %v4306
  %v4356 = vmul.f32 %v4135, %v4307
  %v4357 = vmul.f32 %v4137, %v4307
  %v4358 = vmul.f32 %v4139, %v4308
  %v4359 = vmul.f32 %v4141, %v4308
  %v4360 = vmul.f32 %v4143, %v4309
  %v4361 = vmul.f32 %v4145, %v4309
  %v4362 = vmul.f32 %v4147, %v4310
  %v4363 = vmul.f32 %v4149, %v4310
  %v4364 = vmul.f32 %v4151, %v4311
  %v4365 = vmul.f32 %v4153, %v4311
  %v4366 = vmul.f32 %v4155, %v4312
  %v4367 = vmul.f32 %v4157, %v4312
  %v4368 = vmul.f32 %v4159, %v4313
  %v4369 = vmul.f32 %v4161, %v4313
  %v4370 = vmul.f32 %v4163, %v4314
  %v4371 = vmul.f32 %v4165, %v4314
  %v4372 = vmul.f32 %v4167, %v4315
  %v4373 = vmul.f32 %v4169, %v4315
  %v4374 = vmul.f32 %v4171, %v4316
  %v4375 = vmul.f32 %v4173, %v4316
  %v4376 = vmul.f32 %v4175, %v4317
  %v4377 = vmul.f32 %v4177, %v4317
  %v4378 = vmul.f32 %v4179, %v4318
  %v4379 = vmul.f32 %v4181, %v4318
  %v4380 = vmul.f32 %v4183, %v4319
  %v4381 = vmul.f32 %v4185, %v4319
  %v4382 = vmul.f32 %v4187, %v4320
  %v4383 = vmul.f32 %v4189, %v4320
  %v4384 = vmul.f32 %v4191, %v4321
  %v4385 = vmul.f32 %v4193, %v4321
  %v4386 = vpack.c.bf16 %v4324, %v4322
  %v4387 = vpack.c.bf16 %v4325, %v4323
  %v4388 = vpack.c.bf16 %v4328, %v4326
  %v4389 = vpack.c.bf16 %v4329, %v4327
  %v4390 = vpack.c.bf16 %v4332, %v4330
  %v4391 = vpack.c.bf16 %v4333, %v4331
  %v4392 = vpack.c.bf16 %v4336, %v4334
  %v4393 = vpack.c.bf16 %v4337, %v4335
  %v4394 = vpack.c.bf16 %v4340, %v4338
  %v4395 = vpack.c.bf16 %v4341, %v4339
  %v4396 = vpack.c.bf16 %v4344, %v4342
  %v4397 = vpack.c.bf16 %v4345, %v4343
  %v4398 = vpack.c.bf16 %v4348, %v4346
  %v4399 = vpack.c.bf16 %v4349, %v4347
  %v4400 = vpack.c.bf16 %v4352, %v4350
  %v4401 = vpack.c.bf16 %v4353, %v4351
  %v4402 = vpack.c.bf16 %v4356, %v4354
  %v4403 = vpack.c.bf16 %v4357, %v4355
  %v4404 = vpack.c.bf16 %v4360, %v4358
  %v4405 = vpack.c.bf16 %v4361, %v4359
  %v4406 = vpack.c.bf16 %v4364, %v4362
  %v4407 = vpack.c.bf16 %v4365, %v4363
  %v4408 = vpack.c.bf16 %v4368, %v4366
  %v4409 = vpack.c.bf16 %v4369, %v4367
  %v4410 = vpack.c.bf16 %v4372, %v4370
  %v4411 = vpack.c.bf16 %v4373, %v4371
  %v4412 = vpack.c.bf16 %v4376, %v4374
  %v4413 = vpack.c.bf16 %v4377, %v4375
  %v4414 = vpack.c.bf16 %v4380, %v4378
  %v4415 = vpack.c.bf16 %v4381, %v4379
  %v4416 = vpack.c.bf16 %v4384, %v4382
  %v4417 = vpack.c.bf16 %v4385, %v4383
  %4434 = vrot.lane.b32.xlu0 %v2407, 64
  %v4435 = vpop.permute.xlu0 %4434
  %4436 = vrot.lane.b32.xlu0 %v2409, 64
  %v4437 = vpop.permute.xlu0 %4436
  %4438 = vrot.lane.b32.xlu0 %v2411, 64
  %v4439 = vpop.permute.xlu0 %4438
  %4440 = vrot.lane.b32.xlu0 %v2413, 64
  %v4441 = vpop.permute.xlu0 %4440
  %4442 = vrot.lane.b32.xlu0 %v2415, 64
  %v4443 = vpop.permute.xlu0 %4442
  %4444 = vrot.lane.b32.xlu0 %v2417, 64
  %v4445 = vpop.permute.xlu0 %4444
  %4446 = vrot.lane.b32.xlu0 %v2419, 64
  %v4447 = vpop.permute.xlu0 %4446
  %4448 = vrot.lane.b32.xlu0 %v2421, 64
  %v4449 = vpop.permute.xlu0 %4448
  %4450 = vrot.lane.b32.xlu0 %v2423, 64
  %v4451 = vpop.permute.xlu0 %4450
  %4452 = vrot.lane.b32.xlu0 %v2425, 64
  %v4453 = vpop.permute.xlu0 %4452
  %4454 = vrot.lane.b32.xlu0 %v2427, 64
  %v4455 = vpop.permute.xlu0 %4454
  %4456 = vrot.lane.b32.xlu0 %v2429, 64
  %v4457 = vpop.permute.xlu0 %4456
  %4458 = vrot.lane.b32.xlu0 %v2431, 64
  %v4459 = vpop.permute.xlu0 %4458
  %4460 = vrot.lane.b32.xlu0 %v2433, 64
  %v4461 = vpop.permute.xlu0 %4460
  %4462 = vrot.lane.b32.xlu0 %v2435, 64
  %v4463 = vpop.permute.xlu0 %4462
  %4464 = vrot.lane.b32.xlu0 %v2437, 64
  %v4465 = vpop.permute.xlu0 %4464
  %4482 = vmatprep.subr.bf16.mxu0 0
  %4483 = vmatpush1.bf16.msra.mxu0 %v4435
  %4484 = vmatprep.subr.bf16.mxu0 0
  %4485 = vmatpush1.bf16.msra.mxu0 %v4437
  %4486 = vmatprep.subr.bf16.mxu0 0
  %4487 = vmatpush1.bf16.msra.mxu0 %v4439
  %4488 = vmatprep.subr.bf16.mxu0 0
  %4489 = vmatpush1.bf16.msra.mxu0 %v4441
  %4490 = vmatprep.subr.bf16.mxu0 0
  %4491 = vmatpush1.bf16.msra.mxu0 %v4443
  %4492 = vmatprep.subr.bf16.mxu0 0
  %4493 = vmatpush1.bf16.msra.mxu0 %v4445
  %4494 = vmatprep.subr.bf16.mxu0 0
  %4495 = vmatpush1.bf16.msra.mxu0 %v4447
  %4496 = vmatprep.subr.bf16.mxu0 0
  %4497 = vmatpush1.bf16.msra.mxu0 %v4449
  %4498 = vmatprep.subr.bf16.mxu0 0
  %4499 = vmatpush1.bf16.msra.mxu0 %v4451
  %4500 = vmatprep.subr.bf16.mxu0 0
  %4501 = vmatpush1.bf16.msra.mxu0 %v4453
  %4502 = vmatprep.subr.bf16.mxu0 0
  %4503 = vmatpush1.bf16.msra.mxu0 %v4455
  %4504 = vmatprep.subr.bf16.mxu0 0
  %4505 = vmatpush1.bf16.msra.mxu0 %v4457
  %4506 = vmatprep.subr.bf16.mxu0 0
  %4507 = vmatpush1.bf16.msra.mxu0 %v4459
  %4508 = vmatprep.subr.bf16.mxu0 0
  %4509 = vmatpush1.bf16.msra.mxu0 %v4461
  %4510 = vmatprep.subr.bf16.mxu0 0
  %4511 = vmatpush1.bf16.msra.mxu0 %v4463
  %4512 = vmatprep.subr.bf16.mxu0 0
  %4513 = vmatpush1.bf16.msra.mxu0 %v4465
  %4514 = vmatprep.mubr.bf16.mxu0 %v4387
  %4515 = vmatmul.mubr.bf16.gmra.mrb[0].mxu0 %v4386
  %v4516 = vpop.f32.mrb[0].mxu0
  %v4517 = vadd.f32 0.0, %v4516
  %v4518 = vpop.f32.mrb[0].mxu0
  %v4519 = vpop.f32.mrb[0].mxu0
  %v4520 = vadd.f32 0.0, %v4519
  %v4521 = vpop.f32.mrb[0].mxu0
  %4522 = vmatprep.mubr.bf16.mxu0 %v4389
  %4523 = vmatmul.mubr.bf16.gmra.mrb[0].mxu0 %v4388
  %v4524 = vpop.f32.mrb[0].mxu0
  %v4525 = vadd.f32 0.0, %v4524
  %v4526 = vpop.f32.mrb[0].mxu0
  %v4527 = vpop.f32.mrb[0].mxu0
  %v4528 = vadd.f32 0.0, %v4527
  %v4529 = vpop.f32.mrb[0].mxu0
  %4530 = vmatprep.mubr.bf16.mxu0 %v4391
  %4531 = vmatmul.mubr.bf16.gmra.mrb[0].mxu0 %v4390
  %v4532 = vpop.f32.mrb[0].mxu0
  %v4533 = vadd.f32 0.0, %v4532
  %v4534 = vpop.f32.mrb[0].mxu0
  %v4535 = vpop.f32.mrb[0].mxu0
  %v4536 = vadd.f32 0.0, %v4535
  %v4537 = vpop.f32.mrb[0].mxu0
  %4538 = vmatprep.mubr.bf16.mxu0 %v4393
  %4539 = vmatmul.mubr.bf16.gmra.mrb[0].mxu0 %v4392
  %v4540 = vpop.f32.mrb[0].mxu0
  %v4541 = vadd.f32 0.0, %v4540
  %v4542 = vpop.f32.mrb[0].mxu0
  %v4543 = vpop.f32.mrb[0].mxu0
  %v4544 = vadd.f32 0.0, %v4543
  %v4545 = vpop.f32.mrb[0].mxu0
  %4546 = vmatprep.mubr.bf16.mxu0 %v4395
  %4547 = vmatmul.mubr.bf16.gmra.mrb[0].mxu0 %v4394
  %v4548 = vpop.f32.mrb[0].mxu0
  %v4549 = vadd.f32 0.0, %v4548
  %v4550 = vpop.f32.mrb[0].mxu0
  %v4551 = vpop.f32.mrb[0].mxu0
  %v4552 = vadd.f32 0.0, %v4551
  %v4553 = vpop.f32.mrb[0].mxu0
  %4554 = vmatprep.mubr.bf16.mxu0 %v4397
  %4555 = vmatmul.mubr.bf16.gmra.mrb[0].mxu0 %v4396
  %v4556 = vpop.f32.mrb[0].mxu0
  %v4557 = vadd.f32 0.0, %v4556
  %v4558 = vpop.f32.mrb[0].mxu0
  %v4559 = vpop.f32.mrb[0].mxu0
  %v4560 = vadd.f32 0.0, %v4559
  %v4561 = vpop.f32.mrb[0].mxu0
  %4562 = vmatprep.mubr.bf16.mxu0 %v4399
  %4563 = vmatmul.mubr.bf16.gmra.mrb[0].mxu0 %v4398
  %v4564 = vpop.f32.mrb[0].mxu0
  %v4565 = vadd.f32 0.0, %v4564
  %v4566 = vpop.f32.mrb[0].mxu0
  %v4567 = vpop.f32.mrb[0].mxu0
  %v4568 = vadd.f32 0.0, %v4567
  %v4569 = vpop.f32.mrb[0].mxu0
  %4570 = vmatprep.mubr.bf16.mxu0 %v4401
  %4571 = vmatmul.mubr.bf16.gmra.mrb[0].mxu0 %v4400
  %v4572 = vpop.f32.mrb[0].mxu0
  %v4573 = vadd.f32 0.0, %v4572
  %v4574 = vpop.f32.mrb[0].mxu0
  %v4575 = vpop.f32.mrb[0].mxu0
  %v4576 = vadd.f32 0.0, %v4575
  %v4577 = vpop.f32.mrb[0].mxu0
  %4578 = vmatprep.mubr.bf16.mxu0 %v4403
  %4579 = vmatmul.mubr.bf16.gmra.mrb[0].mxu0 %v4402
  %v4580 = vpop.f32.mrb[0].mxu0
  %v4581 = vadd.f32 0.0, %v4580
  %v4582 = vpop.f32.mrb[0].mxu0
  %v4583 = vpop.f32.mrb[0].mxu0
  %v4584 = vadd.f32 0.0, %v4583
  %v4585 = vpop.f32.mrb[0].mxu0
  %4586 = vmatprep.mubr.bf16.mxu0 %v4405
  %4587 = vmatmul.mubr.bf16.gmra.mrb[0].mxu0 %v4404
  %v4588 = vpop.f32.mrb[0].mxu0
  %v4589 = vadd.f32 0.0, %v4588
  %v4590 = vpop.f32.mrb[0].mxu0
  %v4591 = vpop.f32.mrb[0].mxu0
  %v4592 = vadd.f32 0.0, %v4591
  %v4593 = vpop.f32.mrb[0].mxu0
  %4594 = vmatprep.mubr.bf16.mxu0 %v4407
  %4595 = vmatmul.mubr.bf16.gmra.mrb[0].mxu0 %v4406
  %v4596 = vpop.f32.mrb[0].mxu0
  %v4597 = vadd.f32 0.0, %v4596
  %v4598 = vpop.f32.mrb[0].mxu0
  %v4599 = vpop.f32.mrb[0].mxu0
  %v4600 = vadd.f32 0.0, %v4599
  %v4601 = vpop.f32.mrb[0].mxu0
  %4602 = vmatprep.mubr.bf16.mxu0 %v4409
  %4603 = vmatmul.mubr.bf16.gmra.mrb[0].mxu0 %v4408
  %v4604 = vpop.f32.mrb[0].mxu0
  %v4605 = vadd.f32 0.0, %v4604
  %v4606 = vpop.f32.mrb[0].mxu0
  %v4607 = vpop.f32.mrb[0].mxu0
  %v4608 = vadd.f32 0.0, %v4607
  %v4609 = vpop.f32.mrb[0].mxu0
  %4610 = vmatprep.mubr.bf16.mxu0 %v4411
  %4611 = vmatmul.mubr.bf16.gmra.mrb[0].mxu0 %v4410
  %v4612 = vpop.f32.mrb[0].mxu0
  %v4613 = vadd.f32 0.0, %v4612
  %v4614 = vpop.f32.mrb[0].mxu0
  %v4615 = vpop.f32.mrb[0].mxu0
  %v4616 = vadd.f32 0.0, %v4615
  %v4617 = vpop.f32.mrb[0].mxu0
  %4618 = vmatprep.mubr.bf16.mxu0 %v4413
  %4619 = vmatmul.mubr.bf16.gmra.mrb[0].mxu0 %v4412
  %v4620 = vpop.f32.mrb[0].mxu0
  %v4621 = vadd.f32 0.0, %v4620
  %v4622 = vpop.f32.mrb[0].mxu0
  %v4623 = vpop.f32.mrb[0].mxu0
  %v4624 = vadd.f32 0.0, %v4623
  %v4625 = vpop.f32.mrb[0].mxu0
  %4626 = vmatprep.mubr.bf16.mxu0 %v4415
  %4627 = vmatmul.mubr.bf16.gmra.mrb[0].mxu0 %v4414
  %v4628 = vpop.f32.mrb[0].mxu0
  %v4629 = vadd.f32 0.0, %v4628
  %v4630 = vpop.f32.mrb[0].mxu0
  %v4631 = vpop.f32.mrb[0].mxu0
  %v4632 = vadd.f32 0.0, %v4631
  %v4633 = vpop.f32.mrb[0].mxu0
  %4634 = vmatprep.mubr.bf16.mxu0 %v4417
  %4635 = vmatmul.mubr.bf16.gmra.mrb[0].mxu0 %v4416
  %v4636 = vpop.f32.mrb[0].mxu0
  %v4637 = vadd.f32 0.0, %v4636
  %v4638 = vpop.f32.mrb[0].mxu0
  %v4639 = vpop.f32.mrb[0].mxu0
  %v4640 = vadd.f32 0.0, %v4639
  %v4641 = vpop.f32.mrb[0].mxu0
  %4642 = vdwg.mxu0
  %v4643 = vpack.c.bf16 %v4520, %v4517
  %v4644 = vpack.c.bf16 %v4528, %v4525
  %v4645 = vpack.c.bf16 %v4536, %v4533
  %v4646 = vpack.c.bf16 %v4544, %v4541
  %v4647 = vpack.c.bf16 %v4552, %v4549
  %v4648 = vpack.c.bf16 %v4560, %v4557
  %v4649 = vpack.c.bf16 %v4568, %v4565
  %v4650 = vpack.c.bf16 %v4576, %v4573
  %v4651 = vpack.c.bf16 %v4584, %v4581
  %v4652 = vpack.c.bf16 %v4592, %v4589
  %v4653 = vpack.c.bf16 %v4600, %v4597
  %v4654 = vpack.c.bf16 %v4608, %v4605
  %v4655 = vpack.c.bf16 %v4616, %v4613
  %v4656 = vpack.c.bf16 %v4624, %v4621
  %v4657 = vpack.c.bf16 %v4632, %v4629
  %v4658 = vpack.c.bf16 %v4640, %v4637
  %s4659 = scalar_lea.vmem %s13, 64
  %v4660 = vld [vmem:[%s4659] sm:$0xff]
  %v4661 = vld [vmem:[%s4659 + $0x8] sm:$0xff]
  %v4662 = vld [vmem:[%s4659 + $0x10] sm:$0xff]
  %v4663 = vld [vmem:[%s4659 + $0x18] sm:$0xff]
  %v4664 = vld [vmem:[%s4659 + $0x20] sm:$0xff]
  %v4665 = vld [vmem:[%s4659 + $0x28] sm:$0xff]
  %v4666 = vld [vmem:[%s4659 + $0x30] sm:$0xff]
  %v4667 = vld [vmem:[%s4659 + $0x38] sm:$0xff]
  %v4676 = vunpack.c.l.b16 %v4660
  %v4677 = vunpack.c.h.b16 %v4660
  %v4678 = vunpack.c.l.b16 %v4661
  %v4679 = vunpack.c.h.b16 %v4661
  %v4680 = vunpack.c.l.b16 %v4662
  %v4681 = vunpack.c.h.b16 %v4662
  %v4682 = vunpack.c.l.b16 %v4663
  %v4683 = vunpack.c.h.b16 %v4663
  %v4684 = vunpack.c.l.b16 %v4664
  %v4685 = vunpack.c.h.b16 %v4664
  %v4686 = vunpack.c.l.b16 %v4665
  %v4687 = vunpack.c.h.b16 %v4665
  %v4688 = vunpack.c.l.b16 %v4666
  %v4689 = vunpack.c.h.b16 %v4666
  %v4690 = vunpack.c.l.b16 %v4667
  %v4691 = vunpack.c.h.b16 %v4667
  %v4692 = vpack.c.b16 %v4678, %v4676
  %v4693 = vpack.c.b16 %v4679, %v4677
  %v4694 = vpack.c.b16 %v4682, %v4680
  %v4695 = vpack.c.b16 %v4683, %v4681
  %v4696 = vpack.c.b16 %v4686, %v4684
  %v4697 = vpack.c.b16 %v4687, %v4685
  %v4698 = vpack.c.b16 %v4690, %v4688
  %v4699 = vpack.c.b16 %v4691, %v4689
  %v4709 = vsel %vm245, %v4643, 0
  %v4712 = vsel %vm245, %v4644, 0
  %v4715 = vsel %vm245, %v4645, 0
  %v4718 = vsel %vm245, %v4646, 0
  %v4721 = vsel %vm245, %v4647, 0
  %v4724 = vsel %vm245, %v4648, 0
  %v4727 = vsel %vm245, %v4649, 0
  %v4730 = vsel %vm245, %v4650, 0
  %v4733 = vsel %vm245, %v4651, 0
  %v4736 = vsel %vm245, %v4652, 0
  %v4739 = vsel %vm245, %v4653, 0
  %v4742 = vsel %vm245, %v4654, 0
  %v4745 = vsel %vm245, %v4655, 0
  %v4748 = vsel %vm245, %v4656, 0
  %v4751 = vsel %vm245, %v4657, 0
  %v4754 = vsel %vm245, %v4658, 0
  %4756 = vmatprep.subr.bf16.mxu0 %v4693
  %4757 = vmatpush1.bf16.msra.mxu0 %v4692
  %4758 = vmatprep.subr.bf16.mxu0 %v4695
  %4759 = vmatpush1.bf16.msra.mxu0 %v4694
  %4760 = vmatprep.subr.bf16.mxu0 %v4697
  %4761 = vmatpush1.bf16.msra.mxu0 %v4696
  %4762 = vmatprep.subr.bf16.mxu0 %v4699
  %4763 = vmatpush1.bf16.msra.mxu0 %v4698
  %4764 = vmatprep.subr.bf16.mxu0 0
  %4765 = vmatpush1.bf16.msra.mxu0 0
  %4766 = vmatprep.subr.bf16.mxu0 0
  %4767 = vmatpush1.bf16.msra.mxu0 0
  %4768 = vmatprep.subr.bf16.mxu0 0
  %4769 = vmatpush1.bf16.msra.mxu0 0
  %4770 = vmatprep.subr.bf16.mxu0 0
  %4771 = vmatpush1.bf16.msra.mxu0 0
  %4772 = vmatprep.subr.bf16.mxu0 0
  %4773 = vmatpush1.bf16.msra.mxu0 0
  %4774 = vmatprep.subr.bf16.mxu0 0
  %4775 = vmatpush1.bf16.msra.mxu0 0
  %4776 = vmatprep.subr.bf16.mxu0 0
  %4777 = vmatpush1.bf16.msra.mxu0 0
  %4778 = vmatprep.subr.bf16.mxu0 0
  %4779 = vmatpush1.bf16.msra.mxu0 0
  %4780 = vmatprep.subr.bf16.mxu0 0
  %4781 = vmatpush1.bf16.msra.mxu0 0
  %4782 = vmatprep.subr.bf16.mxu0 0
  %4783 = vmatpush1.bf16.msra.mxu0 0
  %4784 = vmatprep.subr.bf16.mxu0 0
  %4785 = vmatpush1.bf16.msra.mxu0 0
  %4786 = vmatprep.subr.bf16.mxu0 0
  %4787 = vmatpush1.bf16.msra.mxu0 0
  %4788 = vmatprep.mubr.bf16.mxu0 0
  %4789 = vmatmul.mubr.bf16.gmra.mrb[0].mxu0 %v4709
  %v4790 = vpop.f32.mrb[0].mxu0
  %v4791 = vadd.f32 0.0, %v4790
  %v4792 = vpop.f32.mrb[0].mxu0
  %v4793 = vadd.f32 0.0, %v4792
  %v4794 = vpop.f32.mrb[0].mxu0
  %v4795 = vadd.f32 0.0, %v4794
  %v4796 = vpop.f32.mrb[0].mxu0
  %v4797 = vadd.f32 0.0, %v4796
  %4798 = vmatprep.mubr.bf16.mxu0 0
  %4799 = vmatmul.mubr.bf16.gmra.mrb[0].mxu0 %v4712
  %v4800 = vpop.f32.mrb[0].mxu0
  %v4801 = vadd.f32 0.0, %v4800
  %v4802 = vpop.f32.mrb[0].mxu0
  %v4803 = vadd.f32 0.0, %v4802
  %v4804 = vpop.f32.mrb[0].mxu0
  %v4805 = vadd.f32 0.0, %v4804
  %v4806 = vpop.f32.mrb[0].mxu0
  %v4807 = vadd.f32 0.0, %v4806
  %4808 = vmatprep.mubr.bf16.mxu0 0
  %4809 = vmatmul.mubr.bf16.gmra.mrb[0].mxu0 %v4715
  %v4810 = vpop.f32.mrb[0].mxu0
  %v4811 = vadd.f32 0.0, %v4810
  %v4812 = vpop.f32.mrb[0].mxu0
  %v4813 = vadd.f32 0.0, %v4812
  %v4814 = vpop.f32.mrb[0].mxu0
  %v4815 = vadd.f32 0.0, %v4814
  %v4816 = vpop.f32.mrb[0].mxu0
  %v4817 = vadd.f32 0.0, %v4816
  %4818 = vmatprep.mubr.bf16.mxu0 0
  %4819 = vmatmul.mubr.bf16.gmra.mrb[0].mxu0 %v4718
  %v4820 = vpop.f32.mrb[0].mxu0
  %v4821 = vadd.f32 0.0, %v4820
  %v4822 = vpop.f32.mrb[0].mxu0
  %v4823 = vadd.f32 0.0, %v4822
  %v4824 = vpop.f32.mrb[0].mxu0
  %v4825 = vadd.f32 0.0, %v4824
  %v4826 = vpop.f32.mrb[0].mxu0
  %v4827 = vadd.f32 0.0, %v4826
  %4828 = vmatprep.mubr.bf16.mxu0 0
  %4829 = vmatmul.mubr.bf16.gmra.mrb[0].mxu0 %v4721
  %v4830 = vpop.f32.mrb[0].mxu0
  %v4831 = vadd.f32 0.0, %v4830
  %v4832 = vpop.f32.mrb[0].mxu0
  %v4833 = vadd.f32 0.0, %v4832
  %v4834 = vpop.f32.mrb[0].mxu0
  %v4835 = vadd.f32 0.0, %v4834
  %v4836 = vpop.f32.mrb[0].mxu0
  %v4837 = vadd.f32 0.0, %v4836
  %4838 = vmatprep.mubr.bf16.mxu0 0
  %4839 = vmatmul.mubr.bf16.gmra.mrb[0].mxu0 %v4724
  %v4840 = vpop.f32.mrb[0].mxu0
  %v4841 = vadd.f32 0.0, %v4840
  %v4842 = vpop.f32.mrb[0].mxu0
  %v4843 = vadd.f32 0.0, %v4842
  %v4844 = vpop.f32.mrb[0].mxu0
  %v4845 = vadd.f32 0.0, %v4844
  %v4846 = vpop.f32.mrb[0].mxu0
  %v4847 = vadd.f32 0.0, %v4846
  %4848 = vmatprep.mubr.bf16.mxu0 0
  %4849 = vmatmul.mubr.bf16.gmra.mrb[0].mxu0 %v4727
  %v4850 = vpop.f32.mrb[0].mxu0
  %v4851 = vadd.f32 0.0, %v4850
  %v4852 = vpop.f32.mrb[0].mxu0
  %v4853 = vadd.f32 0.0, %v4852
  %v4854 = vpop.f32.mrb[0].mxu0
  %v4855 = vadd.f32 0.0, %v4854
  %v4856 = vpop.f32.mrb[0].mxu0
  %v4857 = vadd.f32 0.0, %v4856
  %4858 = vmatprep.mubr.bf16.mxu0 0
  %4859 = vmatmul.mubr.bf16.gmra.mrb[0].mxu0 %v4730
  %v4860 = vpop.f32.mrb[0].mxu0
  %v4861 = vadd.f32 0.0, %v4860
  %v4862 = vpop.f32.mrb[0].mxu0
  %v4863 = vadd.f32 0.0, %v4862
  %v4864 = vpop.f32.mrb[0].mxu0
  %v4865 = vadd.f32 0.0, %v4864
  %v4866 = vpop.f32.mrb[0].mxu0
  %v4867 = vadd.f32 0.0, %v4866
  %4868 = vmatprep.mubr.bf16.mxu0 0
  %4869 = vmatmul.mubr.bf16.gmra.mrb[0].mxu0 %v4733
  %v4870 = vpop.f32.mrb[0].mxu0
  %v4871 = vadd.f32 0.0, %v4870
  %v4872 = vpop.f32.mrb[0].mxu0
  %v4873 = vadd.f32 0.0, %v4872
  %v4874 = vpop.f32.mrb[0].mxu0
  %v4875 = vadd.f32 0.0, %v4874
  %v4876 = vpop.f32.mrb[0].mxu0
  %v4877 = vadd.f32 0.0, %v4876
  %4878 = vmatprep.mubr.bf16.mxu0 0
  %4879 = vmatmul.mubr.bf16.gmra.mrb[0].mxu0 %v4736
  %v4880 = vpop.f32.mrb[0].mxu0
  %v4881 = vadd.f32 0.0, %v4880
  %v4882 = vpop.f32.mrb[0].mxu0
  %v4883 = vadd.f32 0.0, %v4882
  %v4884 = vpop.f32.mrb[0].mxu0
  %v4885 = vadd.f32 0.0, %v4884
  %v4886 = vpop.f32.mrb[0].mxu0
  %v4887 = vadd.f32 0.0, %v4886
  %4888 = vmatprep.mubr.bf16.mxu0 0
  %4889 = vmatmul.mubr.bf16.gmra.mrb[0].mxu0 %v4739
  %v4890 = vpop.f32.mrb[0].mxu0
  %v4891 = vadd.f32 0.0, %v4890
  %v4892 = vpop.f32.mrb[0].mxu0
  %v4893 = vadd.f32 0.0, %v4892
  %v4894 = vpop.f32.mrb[0].mxu0
  %v4895 = vadd.f32 0.0, %v4894
  %v4896 = vpop.f32.mrb[0].mxu0
  %v4897 = vadd.f32 0.0, %v4896
  %4898 = vmatprep.mubr.bf16.mxu0 0
  %4899 = vmatmul.mubr.bf16.gmra.mrb[0].mxu0 %v4742
  %v4900 = vpop.f32.mrb[0].mxu0
  %v4901 = vadd.f32 0.0, %v4900
  %v4902 = vpop.f32.mrb[0].mxu0
  %v4903 = vadd.f32 0.0, %v4902
  %v4904 = vpop.f32.mrb[0].mxu0
  %v4905 = vadd.f32 0.0, %v4904
  %v4906 = vpop.f32.mrb[0].mxu0
  %v4907 = vadd.f32 0.0, %v4906
  %4908 = vmatprep.mubr.bf16.mxu0 0
  %4909 = vmatmul.mubr.bf16.gmra.mrb[0].mxu0 %v4745
  %v4910 = vpop.f32.mrb[0].mxu0
  %v4911 = vadd.f32 0.0, %v4910
  %v4912 = vpop.f32.mrb[0].mxu0
  %v4913 = vadd.f32 0.0, %v4912
  %v4914 = vpop.f32.mrb[0].mxu0
  %v4915 = vadd.f32 0.0, %v4914
  %v4916 = vpop.f32.mrb[0].mxu0
  %v4917 = vadd.f32 0.0, %v4916
  %4918 = vmatprep.mubr.bf16.mxu0 0
  %4919 = vmatmul.mubr.bf16.gmra.mrb[0].mxu0 %v4748
  %v4920 = vpop.f32.mrb[0].mxu0
  %v4921 = vadd.f32 0.0, %v4920
  %v4922 = vpop.f32.mrb[0].mxu0
  %v4923 = vadd.f32 0.0, %v4922
  %v4924 = vpop.f32.mrb[0].mxu0
  %v4925 = vadd.f32 0.0, %v4924
  %v4926 = vpop.f32.mrb[0].mxu0
  %v4927 = vadd.f32 0.0, %v4926
  %4928 = vmatprep.mubr.bf16.mxu0 0
  %4929 = vmatmul.mubr.bf16.gmra.mrb[0].mxu0 %v4751
  %v4930 = vpop.f32.mrb[0].mxu0
  %v4931 = vadd.f32 0.0, %v4930
  %v4932 = vpop.f32.mrb[0].mxu0
  %v4933 = vadd.f32 0.0, %v4932
  %v4934 = vpop.f32.mrb[0].mxu0
  %v4935 = vadd.f32 0.0, %v4934
  %v4936 = vpop.f32.mrb[0].mxu0
  %v4937 = vadd.f32 0.0, %v4936
  %4938 = vmatprep.mubr.bf16.mxu0 0
  %4939 = vmatmul.mubr.bf16.gmra.mrb[0].mxu0 %v4754
  %v4940 = vpop.f32.mrb[0].mxu0
  %v4941 = vadd.f32 0.0, %v4940
  %v4942 = vpop.f32.mrb[0].mxu0
  %v4943 = vadd.f32 0.0, %v4942
  %v4944 = vpop.f32.mrb[0].mxu0
  %v4945 = vadd.f32 0.0, %v4944
  %v4946 = vpop.f32.mrb[0].mxu0
  %v4947 = vadd.f32 0.0, %v4946
  %4948 = vdwg.mxu0
  %v4957 = vunpack.c.l.b16 %v3513
  %v4958 = vunpack.c.h.b16 %v3513
  %v4959 = vunpack.c.l.b16 %v3514
  %v4960 = vunpack.c.h.b16 %v3514
  %v4961 = vunpack.c.l.b16 %v3515
  %v4962 = vunpack.c.h.b16 %v3515
  %v4963 = vunpack.c.l.b16 %v3516
  %v4964 = vunpack.c.h.b16 %v3516
  %v4965 = vunpack.c.l.b16 %v3517
  %v4966 = vunpack.c.h.b16 %v3517
  %v4967 = vunpack.c.l.b16 %v3518
  %v4968 = vunpack.c.h.b16 %v3518
  %v4969 = vunpack.c.l.b16 %v3519
  %v4970 = vunpack.c.h.b16 %v3519
  %v4971 = vunpack.c.l.b16 %v3520
  %v4972 = vunpack.c.h.b16 %v3520
  %v4973 = vpack.c.b16 %v4959, %v4957
  %v4974 = vpack.c.b16 %v4960, %v4958
  %v4975 = vpack.c.b16 %v4963, %v4961
  %v4976 = vpack.c.b16 %v4964, %v4962
  %v4977 = vpack.c.b16 %v4967, %v4965
  %v4978 = vpack.c.b16 %v4968, %v4966
  %v4979 = vpack.c.b16 %v4971, %v4969
  %v4980 = vpack.c.b16 %v4972, %v4970
  %v4990 = vsel %vm245, %v3497, 0
  %v4993 = vsel %vm245, %v3498, 0
  %v4996 = vsel %vm245, %v3499, 0
  %v4999 = vsel %vm245, %v3500, 0
  %v5002 = vsel %vm245, %v3501, 0
  %v5005 = vsel %vm245, %v3502, 0
  %v5008 = vsel %vm245, %v3503, 0
  %v5011 = vsel %vm245, %v3504, 0
  %v5014 = vsel %vm245, %v3505, 0
  %v5017 = vsel %vm245, %v3506, 0
  %v5020 = vsel %vm245, %v3507, 0
  %v5023 = vsel %vm245, %v3508, 0
  %v5026 = vsel %vm245, %v3509, 0
  %v5029 = vsel %vm245, %v3510, 0
  %v5032 = vsel %vm245, %v3511, 0
  %v5035 = vsel %vm245, %v3512, 0
  %5037 = vmatprep.subr.bf16.mxu0 %v4974
  %5038 = vmatpush1.bf16.msra.mxu0 %v4973
  %5039 = vmatprep.subr.bf16.mxu0 %v4976
  %5040 = vmatpush1.bf16.msra.mxu0 %v4975
  %5041 = vmatprep.subr.bf16.mxu0 %v4978
  %5042 = vmatpush1.bf16.msra.mxu0 %v4977
  %5043 = vmatprep.subr.bf16.mxu0 %v4980
  %5044 = vmatpush1.bf16.msra.mxu0 %v4979
  %5045 = vmatprep.subr.bf16.mxu0 0
  %5046 = vmatpush1.bf16.msra.mxu0 0
  %5047 = vmatprep.subr.bf16.mxu0 0
  %5048 = vmatpush1.bf16.msra.mxu0 0
  %5049 = vmatprep.subr.bf16.mxu0 0
  %5050 = vmatpush1.bf16.msra.mxu0 0
  %5051 = vmatprep.subr.bf16.mxu0 0
  %5052 = vmatpush1.bf16.msra.mxu0 0
  %5053 = vmatprep.subr.bf16.mxu0 0
  %5054 = vmatpush1.bf16.msra.mxu0 0
  %5055 = vmatprep.subr.bf16.mxu0 0
  %5056 = vmatpush1.bf16.msra.mxu0 0
  %5057 = vmatprep.subr.bf16.mxu0 0
  %5058 = vmatpush1.bf16.msra.mxu0 0
  %5059 = vmatprep.subr.bf16.mxu0 0
  %5060 = vmatpush1.bf16.msra.mxu0 0
  %5061 = vmatprep.subr.bf16.mxu0 0
  %5062 = vmatpush1.bf16.msra.mxu0 0
  %5063 = vmatprep.subr.bf16.mxu0 0
  %5064 = vmatpush1.bf16.msra.mxu0 0
  %5065 = vmatprep.subr.bf16.mxu0 0
  %5066 = vmatpush1.bf16.msra.mxu0 0
  %5067 = vmatprep.subr.bf16.mxu0 0
  %5068 = vmatpush1.bf16.msra.mxu0 0
  %5069 = vmatprep.mubr.bf16.mxu0 0
  %5070 = vmatmul.mubr.bf16.gmra.mrb[0].mxu0 %v4990
  %v5071 = vpop.f32.mrb[0].mxu0
  %v5072 = vadd.f32 %v4791, %v5071
  %v5073 = vpop.f32.mrb[0].mxu0
  %v5074 = vadd.f32 %v4793, %v5073
  %v5075 = vpop.f32.mrb[0].mxu0
  %v5076 = vadd.f32 %v4795, %v5075
  %v5077 = vpop.f32.mrb[0].mxu0
  %v5078 = vadd.f32 %v4797, %v5077
  %5079 = vmatprep.mubr.bf16.mxu0 0
  %5080 = vmatmul.mubr.bf16.gmra.mrb[0].mxu0 %v4993
  %v5081 = vpop.f32.mrb[0].mxu0
  %v5082 = vadd.f32 %v4801, %v5081
  %v5083 = vpop.f32.mrb[0].mxu0
  %v5084 = vadd.f32 %v4803, %v5083
  %v5085 = vpop.f32.mrb[0].mxu0
  %v5086 = vadd.f32 %v4805, %v5085
  %v5087 = vpop.f32.mrb[0].mxu0
  %v5088 = vadd.f32 %v4807, %v5087
  %5089 = vmatprep.mubr.bf16.mxu0 0
  %5090 = vmatmul.mubr.bf16.gmra.mrb[0].mxu0 %v4996
  %v5091 = vpop.f32.mrb[0].mxu0
  %v5092 = vadd.f32 %v4811, %v5091
  %v5093 = vpop.f32.mrb[0].mxu0
  %v5094 = vadd.f32 %v4813, %v5093
  %v5095 = vpop.f32.mrb[0].mxu0
  %v5096 = vadd.f32 %v4815, %v5095
  %v5097 = vpop.f32.mrb[0].mxu0
  %v5098 = vadd.f32 %v4817, %v5097
  %5099 = vmatprep.mubr.bf16.mxu0 0
  %5100 = vmatmul.mubr.bf16.gmra.mrb[0].mxu0 %v4999
  %v5101 = vpop.f32.mrb[0].mxu0
  %v5102 = vadd.f32 %v4821, %v5101
  %v5103 = vpop.f32.mrb[0].mxu0
  %v5104 = vadd.f32 %v4823, %v5103
  %v5105 = vpop.f32.mrb[0].mxu0
  %v5106 = vadd.f32 %v4825, %v5105
  %v5107 = vpop.f32.mrb[0].mxu0
  %v5108 = vadd.f32 %v4827, %v5107
  %5109 = vmatprep.mubr.bf16.mxu0 0
  %5110 = vmatmul.mubr.bf16.gmra.mrb[0].mxu0 %v5002
  %v5111 = vpop.f32.mrb[0].mxu0
  %v5112 = vadd.f32 %v4831, %v5111
  %v5113 = vpop.f32.mrb[0].mxu0
  %v5114 = vadd.f32 %v4833, %v5113
  %v5115 = vpop.f32.mrb[0].mxu0
  %v5116 = vadd.f32 %v4835, %v5115
  %v5117 = vpop.f32.mrb[0].mxu0
  %v5118 = vadd.f32 %v4837, %v5117
  %5119 = vmatprep.mubr.bf16.mxu0 0
  %5120 = vmatmul.mubr.bf16.gmra.mrb[0].mxu0 %v5005
  %v5121 = vpop.f32.mrb[0].mxu0
  %v5122 = vadd.f32 %v4841, %v5121
  %v5123 = vpop.f32.mrb[0].mxu0
  %v5124 = vadd.f32 %v4843, %v5123
  %v5125 = vpop.f32.mrb[0].mxu0
  %v5126 = vadd.f32 %v4845, %v5125
  %v5127 = vpop.f32.mrb[0].mxu0
  %v5128 = vadd.f32 %v4847, %v5127
  %5129 = vmatprep.mubr.bf16.mxu0 0
  %5130 = vmatmul.mubr.bf16.gmra.mrb[0].mxu0 %v5008
  %v5131 = vpop.f32.mrb[0].mxu0
  %v5132 = vadd.f32 %v4851, %v5131
  %v5133 = vpop.f32.mrb[0].mxu0
  %v5134 = vadd.f32 %v4853, %v5133
  %v5135 = vpop.f32.mrb[0].mxu0
  %v5136 = vadd.f32 %v4855, %v5135
  %v5137 = vpop.f32.mrb[0].mxu0
  %v5138 = vadd.f32 %v4857, %v5137
  %5139 = vmatprep.mubr.bf16.mxu0 0
  %5140 = vmatmul.mubr.bf16.gmra.mrb[0].mxu0 %v5011
  %v5141 = vpop.f32.mrb[0].mxu0
  %v5142 = vadd.f32 %v4861, %v5141
  %v5143 = vpop.f32.mrb[0].mxu0
  %v5144 = vadd.f32 %v4863, %v5143
  %v5145 = vpop.f32.mrb[0].mxu0
  %v5146 = vadd.f32 %v4865, %v5145
  %v5147 = vpop.f32.mrb[0].mxu0
  %v5148 = vadd.f32 %v4867, %v5147
  %5149 = vmatprep.mubr.bf16.mxu0 0
  %5150 = vmatmul.mubr.bf16.gmra.mrb[0].mxu0 %v5014
  %v5151 = vpop.f32.mrb[0].mxu0
  %v5152 = vadd.f32 %v4871, %v5151
  %v5153 = vpop.f32.mrb[0].mxu0
  %v5154 = vadd.f32 %v4873, %v5153
  %v5155 = vpop.f32.mrb[0].mxu0
  %v5156 = vadd.f32 %v4875, %v5155
  %v5157 = vpop.f32.mrb[0].mxu0
  %v5158 = vadd.f32 %v4877, %v5157
  %5159 = vmatprep.mubr.bf16.mxu0 0
  %5160 = vmatmul.mubr.bf16.gmra.mrb[0].mxu0 %v5017
  %v5161 = vpop.f32.mrb[0].mxu0
  %v5162 = vadd.f32 %v4881, %v5161
  %v5163 = vpop.f32.mrb[0].mxu0
  %v5164 = vadd.f32 %v4883, %v5163
  %v5165 = vpop.f32.mrb[0].mxu0
  %v5166 = vadd.f32 %v4885, %v5165
  %v5167 = vpop.f32.mrb[0].mxu0
  %v5168 = vadd.f32 %v4887, %v5167
  %5169 = vmatprep.mubr.bf16.mxu0 0
  %5170 = vmatmul.mubr.bf16.gmra.mrb[0].mxu0 %v5020
  %v5171 = vpop.f32.mrb[0].mxu0
  %v5172 = vadd.f32 %v4891, %v5171
  %v5173 = vpop.f32.mrb[0].mxu0
  %v5174 = vadd.f32 %v4893, %v5173
  %v5175 = vpop.f32.mrb[0].mxu0
  %v5176 = vadd.f32 %v4895, %v5175
  %v5177 = vpop.f32.mrb[0].mxu0
  %v5178 = vadd.f32 %v4897, %v5177
  %5179 = vmatprep.mubr.bf16.mxu0 0
  %5180 = vmatmul.mubr.bf16.gmra.mrb[0].mxu0 %v5023
  %v5181 = vpop.f32.mrb[0].mxu0
  %v5182 = vadd.f32 %v4901, %v5181
  %v5183 = vpop.f32.mrb[0].mxu0
  %v5184 = vadd.f32 %v4903, %v5183
  %v5185 = vpop.f32.mrb[0].mxu0
  %v5186 = vadd.f32 %v4905, %v5185
  %v5187 = vpop.f32.mrb[0].mxu0
  %v5188 = vadd.f32 %v4907, %v5187
  %5189 = vmatprep.mubr.bf16.mxu0 0
  %5190 = vmatmul.mubr.bf16.gmra.mrb[0].mxu0 %v5026
  %v5191 = vpop.f32.mrb[0].mxu0
  %v5192 = vadd.f32 %v4911, %v5191
  %v5193 = vpop.f32.mrb[0].mxu0
  %v5194 = vadd.f32 %v4913, %v5193
  %v5195 = vpop.f32.mrb[0].mxu0
  %v5196 = vadd.f32 %v4915, %v5195
  %v5197 = vpop.f32.mrb[0].mxu0
  %v5198 = vadd.f32 %v4917, %v5197
  %5199 = vmatprep.mubr.bf16.mxu0 0
  %5200 = vmatmul.mubr.bf16.gmra.mrb[0].mxu0 %v5029
  %v5201 = vpop.f32.mrb[0].mxu0
  %v5202 = vadd.f32 %v4921, %v5201
  %v5203 = vpop.f32.mrb[0].mxu0
  %v5204 = vadd.f32 %v4923, %v5203
  %v5205 = vpop.f32.mrb[0].mxu0
  %v5206 = vadd.f32 %v4925, %v5205
  %v5207 = vpop.f32.mrb[0].mxu0
  %v5208 = vadd.f32 %v4927, %v5207
  %5209 = vmatprep.mubr.bf16.mxu0 0
  %5210 = vmatmul.mubr.bf16.gmra.mrb[0].mxu0 %v5032
  %v5211 = vpop.f32.mrb[0].mxu0
  %v5212 = vadd.f32 %v4931, %v5211
  %v5213 = vpop.f32.mrb[0].mxu0
  %v5214 = vadd.f32 %v4933, %v5213
  %v5215 = vpop.f32.mrb[0].mxu0
  %v5216 = vadd.f32 %v4935, %v5215
  %v5217 = vpop.f32.mrb[0].mxu0
  %v5218 = vadd.f32 %v4937, %v5217
  %5219 = vmatprep.mubr.bf16.mxu0 0
  %5220 = vmatmul.mubr.bf16.gmra.mrb[0].mxu0 %v5035
  %v5221 = vpop.f32.mrb[0].mxu0
  %v5222 = vadd.f32 %v4941, %v5221
  %v5223 = vpop.f32.mrb[0].mxu0
  %v5224 = vadd.f32 %v4943, %v5223
  %v5225 = vpop.f32.mrb[0].mxu0
  %v5226 = vadd.f32 %v4945, %v5225
  %v5227 = vpop.f32.mrb[0].mxu0
  %v5228 = vadd.f32 %v4947, %v5227
  %5229 = vdwg.mxu0
  %v5231 = vsel %vm245, %v2376, 0
  %v5234 = vsel %vm245, %v2378, 0
  %v5237 = vsel %vm245, %v2380, 0
  %v5240 = vsel %vm245, %v2382, 0
  %v5243 = vsel %vm245, %v2384, 0
  %v5246 = vsel %vm245, %v2386, 0
  %v5249 = vsel %vm245, %v2388, 0
  %v5252 = vsel %vm245, %v2390, 0
  %v5255 = vsel %vm245, %v2392, 0
  %v5258 = vsel %vm245, %v2394, 0
  %v5261 = vsel %vm245, %v2396, 0
  %v5264 = vsel %vm245, %v2398, 0
  %v5267 = vsel %vm245, %v2400, 0
  %v5270 = vsel %vm245, %v2402, 0
  %v5273 = vsel %vm245, %v2404, 0
  %v5276 = vsel %vm245, %v2406, 0
  %v5279 = vsel %vm245, %v2440, 0
  %v5282 = vsel %vm245, %v2442, 0
  %v5285 = vsel %vm245, %v2444, 0
  %v5288 = vsel %vm245, %v2446, 0
  %v5291 = vsel %vm245, %v2448, 0
  %v5294 = vsel %vm245, %v2450, 0
  %v5297 = vsel %vm245, %v2452, 0
  %v5300 = vsel %vm245, %v2454, 0
  %v5303 = vsel %vm245, %v2456, 0
  %v5306 = vsel %vm245, %v2458, 0
  %v5309 = vsel %vm245, %v2460, 0
  %v5312 = vsel %vm245, %v2462, 0
  %v5315 = vsel %vm245, %v2464, 0
  %v5318 = vsel %vm245, %v2466, 0
  %v5321 = vsel %vm245, %v2468, 0
  %v5324 = vsel %vm245, %v2470, 0
  %5326 = vmatprep.subr.bf16.mxu0 0
  %5327 = vmatpush1.bf16.xpose.msra.mxu0 %v5279
  %5328 = vmatprep.subr.bf16.mxu0 0
  %5329 = vmatpush1.bf16.xpose.msra.mxu0 %v5282
  %5330 = vmatprep.subr.bf16.mxu0 0
  %5331 = vmatpush1.bf16.xpose.msra.mxu0 %v5285
  %5332 = vmatprep.subr.bf16.mxu0 0
  %5333 = vmatpush1.bf16.xpose.msra.mxu0 %v5288
  %5334 = vmatprep.subr.bf16.mxu0 0
  %5335 = vmatpush1.bf16.xpose.msra.mxu0 %v5291
  %5336 = vmatprep.subr.bf16.mxu0 0
  %5337 = vmatpush1.bf16.xpose.msra.mxu0 %v5294
  %5338 = vmatprep.subr.bf16.mxu0 0
  %5339 = vmatpush1.bf16.xpose.msra.mxu0 %v5297
  %5340 = vmatprep.subr.bf16.mxu0 0
  %5341 = vmatpush1.bf16.xpose.msra.mxu0 %v5300
  %5342 = vmatprep.subr.bf16.mxu0 0
  %5343 = vmatpush1.bf16.xpose.msra.mxu0 %v5303
  %5344 = vmatprep.subr.bf16.mxu0 0
  %5345 = vmatpush1.bf16.xpose.msra.mxu0 %v5306
  %5346 = vmatprep.subr.bf16.mxu0 0
  %5347 = vmatpush1.bf16.xpose.msra.mxu0 %v5309
  %5348 = vmatprep.subr.bf16.mxu0 0
  %5349 = vmatpush1.bf16.xpose.msra.mxu0 %v5312
  %5350 = vmatprep.subr.bf16.mxu0 0
  %5351 = vmatpush1.bf16.xpose.msra.mxu0 %v5315
  %5352 = vmatprep.subr.bf16.mxu0 0
  %5353 = vmatpush1.bf16.xpose.msra.mxu0 %v5318
  %5354 = vmatprep.subr.bf16.mxu0 0
  %5355 = vmatpush1.bf16.xpose.msra.mxu0 %v5321
  %5356 = vmatprep.subr.bf16.mxu0 0
  %5357 = vmatpush1.bf16.xpose.msra.mxu0 %v5324
  %5358 = vmatprep.mubr.bf16.mxu0 0
  %5359 = vmatmul.mubr.bf16.gmra.mrb[0].mxu0 %v5231
  %v5360 = vpop.f32.mrb[0].mxu0
  %v5361 = vadd.f32 %v2471, %v5360
  %v5362 = vpop.f32.mrb[0].mxu0
  %v5363 = vadd.f32 %v2472, %v5362
  %v5364 = vpop.f32.mrb[0].mxu0
  %v5365 = vadd.f32 %v2473, %v5364
  %v5366 = vpop.f32.mrb[0].mxu0
  %v5367 = vadd.f32 %v2474, %v5366
  %5368 = vmatprep.mubr.bf16.mxu0 0
  %5369 = vmatmul.mubr.bf16.gmra.mrb[0].mxu0 %v5234
  %v5370 = vpop.f32.mrb[0].mxu0
  %v5371 = vadd.f32 %v2475, %v5370
  %v5372 = vpop.f32.mrb[0].mxu0
  %v5373 = vadd.f32 %v2476, %v5372
  %v5374 = vpop.f32.mrb[0].mxu0
  %v5375 = vadd.f32 %v2477, %v5374
  %v5376 = vpop.f32.mrb[0].mxu0
  %v5377 = vadd.f32 %v2478, %v5376
  %5378 = vmatprep.mubr.bf16.mxu0 0
  %5379 = vmatmul.mubr.bf16.gmra.mrb[0].mxu0 %v5237
  %v5380 = vpop.f32.mrb[0].mxu0
  %v5381 = vadd.f32 %v2479, %v5380
  %v5382 = vpop.f32.mrb[0].mxu0
  %v5383 = vadd.f32 %v2480, %v5382
  %v5384 = vpop.f32.mrb[0].mxu0
  %v5385 = vadd.f32 %v2481, %v5384
  %v5386 = vpop.f32.mrb[0].mxu0
  %v5387 = vadd.f32 %v2482, %v5386
  %5388 = vmatprep.mubr.bf16.mxu0 0
  %5389 = vmatmul.mubr.bf16.gmra.mrb[0].mxu0 %v5240
  %v5390 = vpop.f32.mrb[0].mxu0
  %v5391 = vadd.f32 %v2483, %v5390
  %v5392 = vpop.f32.mrb[0].mxu0
  %v5393 = vadd.f32 %v2484, %v5392
  %v5394 = vpop.f32.mrb[0].mxu0
  %v5395 = vadd.f32 %v2485, %v5394
  %v5396 = vpop.f32.mrb[0].mxu0
  %v5397 = vadd.f32 %v2486, %v5396
  %5398 = vmatprep.mubr.bf16.mxu0 0
  %5399 = vmatmul.mubr.bf16.gmra.mrb[0].mxu0 %v5243
  %v5400 = vpop.f32.mrb[0].mxu0
  %v5401 = vadd.f32 %v2487, %v5400
  %v5402 = vpop.f32.mrb[0].mxu0
  %v5403 = vadd.f32 %v2488, %v5402
  %v5404 = vpop.f32.mrb[0].mxu0
  %v5405 = vadd.f32 %v2489, %v5404
  %v5406 = vpop.f32.mrb[0].mxu0
  %v5407 = vadd.f32 %v2490, %v5406
  %5408 = vmatprep.mubr.bf16.mxu0 0
  %5409 = vmatmul.mubr.bf16.gmra.mrb[0].mxu0 %v5246
  %v5410 = vpop.f32.mrb[0].mxu0
  %v5411 = vadd.f32 %v2491, %v5410
  %v5412 = vpop.f32.mrb[0].mxu0
  %v5413 = vadd.f32 %v2492, %v5412
  %v5414 = vpop.f32.mrb[0].mxu0
  %v5415 = vadd.f32 %v2493, %v5414
  %v5416 = vpop.f32.mrb[0].mxu0
  %v5417 = vadd.f32 %v2494, %v5416
  %5418 = vmatprep.mubr.bf16.mxu0 0
  %5419 = vmatmul.mubr.bf16.gmra.mrb[0].mxu0 %v5249
  %v5420 = vpop.f32.mrb[0].mxu0
  %v5421 = vadd.f32 %v2495, %v5420
  %v5422 = vpop.f32.mrb[0].mxu0
  %v5423 = vadd.f32 %v2496, %v5422
  %v5424 = vpop.f32.mrb[0].mxu0
  %v5425 = vadd.f32 %v2497, %v5424
  %v5426 = vpop.f32.mrb[0].mxu0
  %v5427 = vadd.f32 %v2498, %v5426
  %5428 = vmatprep.mubr.bf16.mxu0 0
  %5429 = vmatmul.mubr.bf16.gmra.mrb[0].mxu0 %v5252
  %v5430 = vpop.f32.mrb[0].mxu0
  %v5431 = vadd.f32 %v2499, %v5430
  %v5432 = vpop.f32.mrb[0].mxu0
  %v5433 = vadd.f32 %v2500, %v5432
  %v5434 = vpop.f32.mrb[0].mxu0
  %v5435 = vadd.f32 %v2501, %v5434
  %v5436 = vpop.f32.mrb[0].mxu0
  %v5437 = vadd.f32 %v2502, %v5436
  %5438 = vmatprep.mubr.bf16.mxu0 0
  %5439 = vmatmul.mubr.bf16.gmra.mrb[0].mxu0 %v5255
  %v5440 = vpop.f32.mrb[0].mxu0
  %v5441 = vadd.f32 %v2503, %v5440
  %v5442 = vpop.f32.mrb[0].mxu0
  %v5443 = vadd.f32 %v2504, %v5442
  %v5444 = vpop.f32.mrb[0].mxu0
  %v5445 = vadd.f32 %v2505, %v5444
  %v5446 = vpop.f32.mrb[0].mxu0
  %v5447 = vadd.f32 %v2506, %v5446
  %5448 = vmatprep.mubr.bf16.mxu0 0
  %5449 = vmatmul.mubr.bf16.gmra.mrb[0].mxu0 %v5258
  %v5450 = vpop.f32.mrb[0].mxu0
  %v5451 = vadd.f32 %v2507, %v5450
  %v5452 = vpop.f32.mrb[0].mxu0
  %v5453 = vadd.f32 %v2508, %v5452
  %v5454 = vpop.f32.mrb[0].mxu0
  %v5455 = vadd.f32 %v2509, %v5454
  %v5456 = vpop.f32.mrb[0].mxu0
  %v5457 = vadd.f32 %v2510, %v5456
  %5458 = vmatprep.mubr.bf16.mxu0 0
  %5459 = vmatmul.mubr.bf16.gmra.mrb[0].mxu0 %v5261
  %v5460 = vpop.f32.mrb[0].mxu0
  %v5461 = vadd.f32 %v2511, %v5460
  %v5462 = vpop.f32.mrb[0].mxu0
  %v5463 = vadd.f32 %v2512, %v5462
  %v5464 = vpop.f32.mrb[0].mxu0
  %v5465 = vadd.f32 %v2513, %v5464
  %v5466 = vpop.f32.mrb[0].mxu0
  %v5467 = vadd.f32 %v2514, %v5466
  %5468 = vmatprep.mubr.bf16.mxu0 0
  %5469 = vmatmul.mubr.bf16.gmra.mrb[0].mxu0 %v5264
  %v5470 = vpop.f32.mrb[0].mxu0
  %v5471 = vadd.f32 %v2515, %v5470
  %v5472 = vpop.f32.mrb[0].mxu0
  %v5473 = vadd.f32 %v2516, %v5472
  %v5474 = vpop.f32.mrb[0].mxu0
  %v5475 = vadd.f32 %v2517, %v5474
  %v5476 = vpop.f32.mrb[0].mxu0
  %v5477 = vadd.f32 %v2518, %v5476
  %5478 = vmatprep.mubr.bf16.mxu0 0
  %5479 = vmatmul.mubr.bf16.gmra.mrb[0].mxu0 %v5267
  %v5480 = vpop.f32.mrb[0].mxu0
  %v5481 = vadd.f32 %v2519, %v5480
  %v5482 = vpop.f32.mrb[0].mxu0
  %v5483 = vadd.f32 %v2520, %v5482
  %v5484 = vpop.f32.mrb[0].mxu0
  %v5485 = vadd.f32 %v2521, %v5484
  %v5486 = vpop.f32.mrb[0].mxu0
  %v5487 = vadd.f32 %v2522, %v5486
  %5488 = vmatprep.mubr.bf16.mxu0 0
  %5489 = vmatmul.mubr.bf16.gmra.mrb[0].mxu0 %v5270
  %v5490 = vpop.f32.mrb[0].mxu0
  %v5491 = vadd.f32 %v2523, %v5490
  %v5492 = vpop.f32.mrb[0].mxu0
  %v5493 = vadd.f32 %v2524, %v5492
  %v5494 = vpop.f32.mrb[0].mxu0
  %v5495 = vadd.f32 %v2525, %v5494
  %v5496 = vpop.f32.mrb[0].mxu0
  %v5497 = vadd.f32 %v2526, %v5496
  %5498 = vmatprep.mubr.bf16.mxu0 0
  %5499 = vmatmul.mubr.bf16.gmra.mrb[0].mxu0 %v5273
  %v5500 = vpop.f32.mrb[0].mxu0
  %v5501 = vadd.f32 %v2527, %v5500
  %v5502 = vpop.f32.mrb[0].mxu0
  %v5503 = vadd.f32 %v2528, %v5502
  %v5504 = vpop.f32.mrb[0].mxu0
  %v5505 = vadd.f32 %v2529, %v5504
  %v5506 = vpop.f32.mrb[0].mxu0
  %v5507 = vadd.f32 %v2530, %v5506
  %5508 = vmatprep.mubr.bf16.mxu0 0
  %5509 = vmatmul.mubr.bf16.gmra.mrb[0].mxu0 %v5276
  %v5510 = vpop.f32.mrb[0].mxu0
  %v5511 = vadd.f32 %v2531, %v5510
  %v5512 = vpop.f32.mrb[0].mxu0
  %v5513 = vadd.f32 %v2532, %v5512
  %v5514 = vpop.f32.mrb[0].mxu0
  %v5515 = vadd.f32 %v2533, %v5514
  %v5516 = vpop.f32.mrb[0].mxu0
  %v5517 = vadd.f32 %v2534, %v5516
  %5518 = vdwg.mxu0
  %v5519 = vmax.f32 %v5361, %v5363
  %5520 = vmax.xlane.f32.xlu0 %v5519
  %v5521 = vpop.xlane.xlu0 %5520
  %v5522 = vmax.f32 %v5365, %v5367
  %5523 = vmax.xlane.f32.xlu0 %v5522
  %v5524 = vpop.xlane.xlu0 %5523
  %v5525 = vmax.f32 %v5371, %v5373
  %5526 = vmax.xlane.f32.xlu0 %v5525
  %v5527 = vpop.xlane.xlu0 %5526
  %v5528 = vmax.f32 %v5375, %v5377
  %5529 = vmax.xlane.f32.xlu0 %v5528
  %v5530 = vpop.xlane.xlu0 %5529
  %v5531 = vmax.f32 %v5381, %v5383
  %5532 = vmax.xlane.f32.xlu0 %v5531
  %v5533 = vpop.xlane.xlu0 %5532
  %v5534 = vmax.f32 %v5385, %v5387
  %5535 = vmax.xlane.f32.xlu0 %v5534
  %v5536 = vpop.xlane.xlu0 %5535
  %v5537 = vmax.f32 %v5391, %v5393
  %5538 = vmax.xlane.f32.xlu0 %v5537
  %v5539 = vpop.xlane.xlu0 %5538
  %v5540 = vmax.f32 %v5395, %v5397
  %5541 = vmax.xlane.f32.xlu0 %v5540
  %v5542 = vpop.xlane.xlu0 %5541
  %v5543 = vmax.f32 %v5401, %v5403
  %5544 = vmax.xlane.f32.xlu0 %v5543
  %v5545 = vpop.xlane.xlu0 %5544
  %v5546 = vmax.f32 %v5405, %v5407
  %5547 = vmax.xlane.f32.xlu0 %v5546
  %v5548 = vpop.xlane.xlu0 %5547
  %v5549 = vmax.f32 %v5411, %v5413
  %5550 = vmax.xlane.f32.xlu0 %v5549
  %v5551 = vpop.xlane.xlu0 %5550
  %v5552 = vmax.f32 %v5415, %v5417
  %5553 = vmax.xlane.f32.xlu0 %v5552
  %v5554 = vpop.xlane.xlu0 %5553
  %v5555 = vmax.f32 %v5421, %v5423
  %5556 = vmax.xlane.f32.xlu0 %v5555
  %v5557 = vpop.xlane.xlu0 %5556
  %v5558 = vmax.f32 %v5425, %v5427
  %5559 = vmax.xlane.f32.xlu0 %v5558
  %v5560 = vpop.xlane.xlu0 %5559
  %v5561 = vmax.f32 %v5431, %v5433
  %5562 = vmax.xlane.f32.xlu0 %v5561
  %v5563 = vpop.xlane.xlu0 %5562
  %v5564 = vmax.f32 %v5435, %v5437
  %5565 = vmax.xlane.f32.xlu0 %v5564
  %v5566 = vpop.xlane.xlu0 %5565
  %v5567 = vmax.f32 %v5441, %v5443
  %5568 = vmax.xlane.f32.xlu0 %v5567
  %v5569 = vpop.xlane.xlu0 %5568
  %v5570 = vmax.f32 %v5445, %v5447
  %5571 = vmax.xlane.f32.xlu0 %v5570
  %v5572 = vpop.xlane.xlu0 %5571
  %v5573 = vmax.f32 %v5451, %v5453
  %5574 = vmax.xlane.f32.xlu0 %v5573
  %v5575 = vpop.xlane.xlu0 %5574
  %v5576 = vmax.f32 %v5455, %v5457
  %5577 = vmax.xlane.f32.xlu0 %v5576
  %v5578 = vpop.xlane.xlu0 %5577
  %v5579 = vmax.f32 %v5461, %v5463
  %5580 = vmax.xlane.f32.xlu0 %v5579
  %v5581 = vpop.xlane.xlu0 %5580
  %v5582 = vmax.f32 %v5465, %v5467
  %5583 = vmax.xlane.f32.xlu0 %v5582
  %v5584 = vpop.xlane.xlu0 %5583
  %v5585 = vmax.f32 %v5471, %v5473
  %5586 = vmax.xlane.f32.xlu0 %v5585
  %v5587 = vpop.xlane.xlu0 %5586
  %v5588 = vmax.f32 %v5475, %v5477
  %5589 = vmax.xlane.f32.xlu0 %v5588
  %v5590 = vpop.xlane.xlu0 %5589
  %v5591 = vmax.f32 %v5481, %v5483
  %5592 = vmax.xlane.f32.xlu0 %v5591
  %v5593 = vpop.xlane.xlu0 %5592
  %v5594 = vmax.f32 %v5485, %v5487
  %5595 = vmax.xlane.f32.xlu0 %v5594
  %v5596 = vpop.xlane.xlu0 %5595
  %v5597 = vmax.f32 %v5491, %v5493
  %5598 = vmax.xlane.f32.xlu0 %v5597
  %v5599 = vpop.xlane.xlu0 %5598
  %v5600 = vmax.f32 %v5495, %v5497
  %5601 = vmax.xlane.f32.xlu0 %v5600
  %v5602 = vpop.xlane.xlu0 %5601
  %v5603 = vmax.f32 %v5501, %v5503
  %5604 = vmax.xlane.f32.xlu0 %v5603
  %v5605 = vpop.xlane.xlu0 %5604
  %v5606 = vmax.f32 %v5505, %v5507
  %5607 = vmax.xlane.f32.xlu0 %v5606
  %v5608 = vpop.xlane.xlu0 %5607
  %v5609 = vmax.f32 %v5511, %v5513
  %5610 = vmax.xlane.f32.xlu0 %v5609
  %v5611 = vpop.xlane.xlu0 %5610
  %v5612 = vmax.f32 %v5515, %v5517
  %5613 = vmax.xlane.f32.xlu0 %v5612
  %v5614 = vpop.xlane.xlu0 %5613
  %v5615 = vsub.f32 %v5361, %v5521
  %v5616 = vsub.f32 %v5363, %v5521
  %v5617 = vsub.f32 %v5365, %v5524
  %v5618 = vsub.f32 %v5367, %v5524
  %v5619 = vsub.f32 %v5371, %v5527
  %v5620 = vsub.f32 %v5373, %v5527
  %v5621 = vsub.f32 %v5375, %v5530
  %v5622 = vsub.f32 %v5377, %v5530
  %v5623 = vsub.f32 %v5381, %v5533
  %v5624 = vsub.f32 %v5383, %v5533
  %v5625 = vsub.f32 %v5385, %v5536
  %v5626 = vsub.f32 %v5387, %v5536
  %v5627 = vsub.f32 %v5391, %v5539
  %v5628 = vsub.f32 %v5393, %v5539
  %v5629 = vsub.f32 %v5395, %v5542
  %v5630 = vsub.f32 %v5397, %v5542
  %v5631 = vsub.f32 %v5401, %v5545
  %v5632 = vsub.f32 %v5403, %v5545
  %v5633 = vsub.f32 %v5405, %v5548
  %v5634 = vsub.f32 %v5407, %v5548
  %v5635 = vsub.f32 %v5411, %v5551
  %v5636 = vsub.f32 %v5413, %v5551
  %v5637 = vsub.f32 %v5415, %v5554
  %v5638 = vsub.f32 %v5417, %v5554
  %v5639 = vsub.f32 %v5421, %v5557
  %v5640 = vsub.f32 %v5423, %v5557
  %v5641 = vsub.f32 %v5425, %v5560
  %v5642 = vsub.f32 %v5427, %v5560
  %v5643 = vsub.f32 %v5431, %v5563
  %v5644 = vsub.f32 %v5433, %v5563
  %v5645 = vsub.f32 %v5435, %v5566
  %v5646 = vsub.f32 %v5437, %v5566
  %v5647 = vsub.f32 %v5441, %v5569
  %v5648 = vsub.f32 %v5443, %v5569
  %v5649 = vsub.f32 %v5445, %v5572
  %v5650 = vsub.f32 %v5447, %v5572
  %v5651 = vsub.f32 %v5451, %v5575
  %v5652 = vsub.f32 %v5453, %v5575
  %v5653 = vsub.f32 %v5455, %v5578
  %v5654 = vsub.f32 %v5457, %v5578
  %v5655 = vsub.f32 %v5461, %v5581
  %v5656 = vsub.f32 %v5463, %v5581
  %v5657 = vsub.f32 %v5465, %v5584
  %v5658 = vsub.f32 %v5467, %v5584
  %v5659 = vsub.f32 %v5471, %v5587
  %v5660 = vsub.f32 %v5473, %v5587
  %v5661 = vsub.f32 %v5475, %v5590
  %v5662 = vsub.f32 %v5477, %v5590
  %v5663 = vsub.f32 %v5481, %v5593
  %v5664 = vsub.f32 %v5483, %v5593
  %v5665 = vsub.f32 %v5485, %v5596
  %v5666 = vsub.f32 %v5487, %v5596
  %v5667 = vsub.f32 %v5491, %v5599
  %v5668 = vsub.f32 %v5493, %v5599
  %v5669 = vsub.f32 %v5495, %v5602
  %v5670 = vsub.f32 %v5497, %v5602
  %v5671 = vsub.f32 %v5501, %v5605
  %v5672 = vsub.f32 %v5503, %v5605
  %v5673 = vsub.f32 %v5505, %v5608
  %v5674 = vsub.f32 %v5507, %v5608
  %v5675 = vsub.f32 %v5511, %v5611
  %v5676 = vsub.f32 %v5513, %v5611
  %v5677 = vsub.f32 %v5515, %v5614
  %v5678 = vsub.f32 %v5517, %v5614
  %v5679 = vmul.f32 %v5615, 1.442695
  %v5680 = vpow.pop %v5679
  %v5681 = vmul.f32 %v5616, 1.442695
  %v5682 = vpow.pop %v5681
  %v5683 = vmul.f32 %v5617, 1.442695
  %v5684 = vpow.pop %v5683
  %v5685 = vmul.f32 %v5618, 1.442695
  %v5686 = vpow.pop %v5685
  %v5687 = vmul.f32 %v5619, 1.442695
  %v5688 = vpow.pop %v5687
  %v5689 = vmul.f32 %v5620, 1.442695
  %v5690 = vpow.pop %v5689
  %v5691 = vmul.f32 %v5621, 1.442695
  %v5692 = vpow.pop %v5691
  %v5693 = vmul.f32 %v5622, 1.442695
  %v5694 = vpow.pop %v5693
  %v5695 = vmul.f32 %v5623, 1.442695
  %v5696 = vpow.pop %v5695
  %v5697 = vmul.f32 %v5624, 1.442695
  %v5698 = vpow.pop %v5697
  %v5699 = vmul.f32 %v5625, 1.442695
  %v5700 = vpow.pop %v5699
  %v5701 = vmul.f32 %v5626, 1.442695
  %v5702 = vpow.pop %v5701
  %v5703 = vmul.f32 %v5627, 1.442695
  %v5704 = vpow.pop %v5703
  %v5705 = vmul.f32 %v5628, 1.442695
  %v5706 = vpow.pop %v5705
  %v5707 = vmul.f32 %v5629, 1.442695
  %v5708 = vpow.pop %v5707
  %v5709 = vmul.f32 %v5630, 1.442695
  %v5710 = vpow.pop %v5709
  %v5711 = vmul.f32 %v5631, 1.442695
  %v5712 = vpow.pop %v5711
  %v5713 = vmul.f32 %v5632, 1.442695
  %v5714 = vpow.pop %v5713
  %v5715 = vmul.f32 %v5633, 1.442695
  %v5716 = vpow.pop %v5715
  %v5717 = vmul.f32 %v5634, 1.442695
  %v5718 = vpow.pop %v5717
  %v5719 = vmul.f32 %v5635, 1.442695
  %v5720 = vpow.pop %v5719
  %v5721 = vmul.f32 %v5636, 1.442695
  %v5722 = vpow.pop %v5721
  %v5723 = vmul.f32 %v5637, 1.442695
  %v5724 = vpow.pop %v5723
  %v5725 = vmul.f32 %v5638, 1.442695
  %v5726 = vpow.pop %v5725
  %v5727 = vmul.f32 %v5639, 1.442695
  %v5728 = vpow.pop %v5727
  %v5729 = vmul.f32 %v5640, 1.442695
  %v5730 = vpow.pop %v5729
  %v5731 = vmul.f32 %v5641, 1.442695
  %v5732 = vpow.pop %v5731
  %v5733 = vmul.f32 %v5642, 1.442695
  %v5734 = vpow.pop %v5733
  %v5735 = vmul.f32 %v5643, 1.442695
  %v5736 = vpow.pop %v5735
  %v5737 = vmul.f32 %v5644, 1.442695
  %v5738 = vpow.pop %v5737
  %v5739 = vmul.f32 %v5645, 1.442695
  %v5740 = vpow.pop %v5739
  %v5741 = vmul.f32 %v5646, 1.442695
  %v5742 = vpow.pop %v5741
  %v5743 = vmul.f32 %v5647, 1.442695
  %v5744 = vpow.pop %v5743
  %v5745 = vmul.f32 %v5648, 1.442695
  %v5746 = vpow.pop %v5745
  %v5747 = vmul.f32 %v5649, 1.442695
  %v5748 = vpow.pop %v5747
  %v5749 = vmul.f32 %v5650, 1.442695
  %v5750 = vpow.pop %v5749
  %v5751 = vmul.f32 %v5651, 1.442695
  %v5752 = vpow.pop %v5751
  %v5753 = vmul.f32 %v5652, 1.442695
  %v5754 = vpow.pop %v5753
  %v5755 = vmul.f32 %v5653, 1.442695
  %v5756 = vpow.pop %v5755
  %v5757 = vmul.f32 %v5654, 1.442695
  %v5758 = vpow.pop %v5757
  %v5759 = vmul.f32 %v5655, 1.442695
  %v5760 = vpow.pop %v5759
  %v5761 = vmul.f32 %v5656, 1.442695
  %v5762 = vpow.pop %v5761
  %v5763 = vmul.f32 %v5657, 1.442695
  %v5764 = vpow.pop %v5763
  %v5765 = vmul.f32 %v5658, 1.442695
  %v5766 = vpow.pop %v5765
  %v5767 = vmul.f32 %v5659, 1.442695
  %v5768 = vpow.pop %v5767
  %v5769 = vmul.f32 %v5660, 1.442695
  %v5770 = vpow.pop %v5769
  %v5771 = vmul.f32 %v5661, 1.442695
  %v5772 = vpow.pop %v5771
  %v5773 = vmul.f32 %v5662, 1.442695
  %v5774 = vpow.pop %v5773
  %v5775 = vmul.f32 %v5663, 1.442695
  %v5776 = vpow.pop %v5775
  %v5777 = vmul.f32 %v5664, 1.442695
  %v5778 = vpow.pop %v5777
  %v5779 = vmul.f32 %v5665, 1.442695
  %v5780 = vpow.pop %v5779
  %v5781 = vmul.f32 %v5666, 1.442695
  %v5782 = vpow.pop %v5781
  %v5783 = vmul.f32 %v5667, 1.442695
  %v5784 = vpow.pop %v5783
  %v5785 = vmul.f32 %v5668, 1.442695
  %v5786 = vpow.pop %v5785
  %v5787 = vmul.f32 %v5669, 1.442695
  %v5788 = vpow.pop %v5787
  %v5789 = vmul.f32 %v5670, 1.442695
  %v5790 = vpow.pop %v5789
  %v5791 = vmul.f32 %v5671, 1.442695
  %v5792 = vpow.pop %v5791
  %v5793 = vmul.f32 %v5672, 1.442695
  %v5794 = vpow.pop %v5793
  %v5795 = vmul.f32 %v5673, 1.442695
  %v5796 = vpow.pop %v5795
  %v5797 = vmul.f32 %v5674, 1.442695
  %v5798 = vpow.pop %v5797
  %v5799 = vmul.f32 %v5675, 1.442695
  %v5800 = vpow.pop %v5799
  %v5801 = vmul.f32 %v5676, 1.442695
  %v5802 = vpow.pop %v5801
  %v5803 = vmul.f32 %v5677, 1.442695
  %v5804 = vpow.pop %v5803
  %v5805 = vmul.f32 %v5678, 1.442695
  %v5806 = vpow.pop %v5805
  %v5807 = vadd.f32 %v5680, %v5682
  %5808 = vadd.xlane.f32.xlu0 %v5807
  %v5809 = vpop.xlane.xlu0 %5808
  %v5810 = vadd.f32 %v5684, %v5686
  %5811 = vadd.xlane.f32.xlu0 %v5810
  %v5812 = vpop.xlane.xlu0 %5811
  %v5813 = vadd.f32 %v5688, %v5690
  %5814 = vadd.xlane.f32.xlu0 %v5813
  %v5815 = vpop.xlane.xlu0 %5814
  %v5816 = vadd.f32 %v5692, %v5694
  %5817 = vadd.xlane.f32.xlu0 %v5816
  %v5818 = vpop.xlane.xlu0 %5817
  %v5819 = vadd.f32 %v5696, %v5698
  %5820 = vadd.xlane.f32.xlu0 %v5819
  %v5821 = vpop.xlane.xlu0 %5820
  %v5822 = vadd.f32 %v5700, %v5702
  %5823 = vadd.xlane.f32.xlu0 %v5822
  %v5824 = vpop.xlane.xlu0 %5823
  %v5825 = vadd.f32 %v5704, %v5706
  %5826 = vadd.xlane.f32.xlu0 %v5825
  %v5827 = vpop.xlane.xlu0 %5826
  %v5828 = vadd.f32 %v5708, %v5710
  %5829 = vadd.xlane.f32.xlu0 %v5828
  %v5830 = vpop.xlane.xlu0 %5829
  %v5831 = vadd.f32 %v5712, %v5714
  %5832 = vadd.xlane.f32.xlu0 %v5831
  %v5833 = vpop.xlane.xlu0 %5832
  %v5834 = vadd.f32 %v5716, %v5718
  %5835 = vadd.xlane.f32.xlu0 %v5834
  %v5836 = vpop.xlane.xlu0 %5835
  %v5837 = vadd.f32 %v5720, %v5722
  %5838 = vadd.xlane.f32.xlu0 %v5837
  %v5839 = vpop.xlane.xlu0 %5838
  %v5840 = vadd.f32 %v5724, %v5726
  %5841 = vadd.xlane.f32.xlu0 %v5840
  %v5842 = vpop.xlane.xlu0 %5841
  %v5843 = vadd.f32 %v5728, %v5730
  %5844 = vadd.xlane.f32.xlu0 %v5843
  %v5845 = vpop.xlane.xlu0 %5844
  %v5846 = vadd.f32 %v5732, %v5734
  %5847 = vadd.xlane.f32.xlu0 %v5846
  %v5848 = vpop.xlane.xlu0 %5847
  %v5849 = vadd.f32 %v5736, %v5738
  %5850 = vadd.xlane.f32.xlu0 %v5849
  %v5851 = vpop.xlane.xlu0 %5850
  %v5852 = vadd.f32 %v5740, %v5742
  %5853 = vadd.xlane.f32.xlu0 %v5852
  %v5854 = vpop.xlane.xlu0 %5853
  %v5855 = vadd.f32 %v5744, %v5746
  %5856 = vadd.xlane.f32.xlu0 %v5855
  %v5857 = vpop.xlane.xlu0 %5856
  %v5858 = vadd.f32 %v5748, %v5750
  %5859 = vadd.xlane.f32.xlu0 %v5858
  %v5860 = vpop.xlane.xlu0 %5859
  %v5861 = vadd.f32 %v5752, %v5754
  %5862 = vadd.xlane.f32.xlu0 %v5861
  %v5863 = vpop.xlane.xlu0 %5862
  %v5864 = vadd.f32 %v5756, %v5758
  %5865 = vadd.xlane.f32.xlu0 %v5864
  %v5866 = vpop.xlane.xlu0 %5865
  %v5867 = vadd.f32 %v5760, %v5762
  %5868 = vadd.xlane.f32.xlu0 %v5867
  %v5869 = vpop.xlane.xlu0 %5868
  %v5870 = vadd.f32 %v5764, %v5766
  %5871 = vadd.xlane.f32.xlu0 %v5870
  %v5872 = vpop.xlane.xlu0 %5871
  %v5873 = vadd.f32 %v5768, %v5770
  %5874 = vadd.xlane.f32.xlu0 %v5873
  %v5875 = vpop.xlane.xlu0 %5874
  %v5876 = vadd.f32 %v5772, %v5774
  %5877 = vadd.xlane.f32.xlu0 %v5876
  %v5878 = vpop.xlane.xlu0 %5877
  %v5879 = vadd.f32 %v5776, %v5778
  %5880 = vadd.xlane.f32.xlu0 %v5879
  %v5881 = vpop.xlane.xlu0 %5880
  %v5882 = vadd.f32 %v5780, %v5782
  %5883 = vadd.xlane.f32.xlu0 %v5882
  %v5884 = vpop.xlane.xlu0 %5883
  %v5885 = vadd.f32 %v5784, %v5786
  %5886 = vadd.xlane.f32.xlu0 %v5885
  %v5887 = vpop.xlane.xlu0 %5886
  %v5888 = vadd.f32 %v5788, %v5790
  %5889 = vadd.xlane.f32.xlu0 %v5888
  %v5890 = vpop.xlane.xlu0 %5889
  %v5891 = vadd.f32 %v5792, %v5794
  %5892 = vadd.xlane.f32.xlu0 %v5891
  %v5893 = vpop.xlane.xlu0 %5892
  %v5894 = vadd.f32 %v5796, %v5798
  %5895 = vadd.xlane.f32.xlu0 %v5894
  %v5896 = vpop.xlane.xlu0 %5895
  %v5897 = vadd.f32 %v5800, %v5802
  %5898 = vadd.xlane.f32.xlu0 %v5897
  %v5899 = vpop.xlane.xlu0 %5898
  %v5900 = vadd.f32 %v5804, %v5806
  %5901 = vadd.xlane.f32.xlu0 %v5900
  %v5902 = vpop.xlane.xlu0 %5901
  %v5903 = vrcp.pop %v5809
  %v5904 = vrcp.pop %v5812
  %v5905 = vrcp.pop %v5815
  %v5906 = vrcp.pop %v5818
  %v5907 = vrcp.pop %v5821
  %v5908 = vrcp.pop %v5824
  %v5909 = vrcp.pop %v5827
  %v5910 = vrcp.pop %v5830
  %v5911 = vrcp.pop %v5833
  %v5912 = vrcp.pop %v5836
  %v5913 = vrcp.pop %v5839
  %v5914 = vrcp.pop %v5842
  %v5915 = vrcp.pop %v5845
  %v5916 = vrcp.pop %v5848
  %v5917 = vrcp.pop %v5851
  %v5918 = vrcp.pop %v5854
  %v5919 = vrcp.pop %v5857
  %v5920 = vrcp.pop %v5860
  %v5921 = vrcp.pop %v5863
  %v5922 = vrcp.pop %v5866
  %v5923 = vrcp.pop %v5869
  %v5924 = vrcp.pop %v5872
  %v5925 = vrcp.pop %v5875
  %v5926 = vrcp.pop %v5878
  %v5927 = vrcp.pop %v5881
  %v5928 = vrcp.pop %v5884
  %v5929 = vrcp.pop %v5887
  %v5930 = vrcp.pop %v5890
  %v5931 = vrcp.pop %v5893
  %v5932 = vrcp.pop %v5896
  %v5933 = vrcp.pop %v5899
  %v5934 = vrcp.pop %v5902
  %v5935 = vmul.f32 %v5680, %v5903
  %v5936 = vmul.f32 %v5682, %v5903
  %v5937 = vmul.f32 %v5684, %v5904
  %v5938 = vmul.f32 %v5686, %v5904
  %v5939 = vmul.f32 %v5688, %v5905
  %v5940 = vmul.f32 %v5690, %v5905
  %v5941 = vmul.f32 %v5692, %v5906
  %v5942 = vmul.f32 %v5694, %v5906
  %v5943 = vmul.f32 %v5696, %v5907
  %v5944 = vmul.f32 %v5698, %v5907
  %v5945 = vmul.f32 %v5700, %v5908
  %v5946 = vmul.f32 %v5702, %v5908
  %v5947 = vmul.f32 %v5704, %v5909
  %v5948 = vmul.f32 %v5706, %v5909
  %v5949 = vmul.f32 %v5708, %v5910
  %v5950 = vmul.f32 %v5710, %v5910
  %v5951 = vmul.f32 %v5712, %v5911
  %v5952 = vmul.f32 %v5714, %v5911
  %v5953 = vmul.f32 %v5716, %v5912
  %v5954 = vmul.f32 %v5718, %v5912
  %v5955 = vmul.f32 %v5720, %v5913
  %v5956 = vmul.f32 %v5722, %v5913
  %v5957 = vmul.f32 %v5724, %v5914
  %v5958 = vmul.f32 %v5726, %v5914
  %v5959 = vmul.f32 %v5728, %v5915
  %v5960 = vmul.f32 %v5730, %v5915
  %v5961 = vmul.f32 %v5732, %v5916
  %v5962 = vmul.f32 %v5734, %v5916
  %v5963 = vmul.f32 %v5736, %v5917
  %v5964 = vmul.f32 %v5738, %v5917
  %v5965 = vmul.f32 %v5740, %v5918
  %v5966 = vmul.f32 %v5742, %v5918
  %v5967 = vmul.f32 %v5744, %v5919
  %v5968 = vmul.f32 %v5746, %v5919
  %v5969 = vmul.f32 %v5748, %v5920
  %v5970 = vmul.f32 %v5750, %v5920
  %v5971 = vmul.f32 %v5752, %v5921
  %v5972 = vmul.f32 %v5754, %v5921
  %v5973 = vmul.f32 %v5756, %v5922
  %v5974 = vmul.f32 %v5758, %v5922
  %v5975 = vmul.f32 %v5760, %v5923
  %v5976 = vmul.f32 %v5762, %v5923
  %v5977 = vmul.f32 %v5764, %v5924
  %v5978 = vmul.f32 %v5766, %v5924
  %v5979 = vmul.f32 %v5768, %v5925
  %v5980 = vmul.f32 %v5770, %v5925
  %v5981 = vmul.f32 %v5772, %v5926
  %v5982 = vmul.f32 %v5774, %v5926
  %v5983 = vmul.f32 %v5776, %v5927
  %v5984 = vmul.f32 %v5778, %v5927
  %v5985 = vmul.f32 %v5780, %v5928
  %v5986 = vmul.f32 %v5782, %v5928
  %v5987 = vmul.f32 %v5784, %v5929
  %v5988 = vmul.f32 %v5786, %v5929
  %v5989 = vmul.f32 %v5788, %v5930
  %v5990 = vmul.f32 %v5790, %v5930
  %v5991 = vmul.f32 %v5792, %v5931
  %v5992 = vmul.f32 %v5794, %v5931
  %v5993 = vmul.f32 %v5796, %v5932
  %v5994 = vmul.f32 %v5798, %v5932
  %v5995 = vmul.f32 %v5800, %v5933
  %v5996 = vmul.f32 %v5802, %v5933
  %v5997 = vmul.f32 %v5804, %v5934
  %v5998 = vmul.f32 %v5806, %v5934
  %v5999 = vpack.c.bf16 %v5937, %v5935
  %v6000 = vpack.c.bf16 %v5938, %v5936
  %v6001 = vpack.c.bf16 %v5941, %v5939
  %v6002 = vpack.c.bf16 %v5942, %v5940
  %v6003 = vpack.c.bf16 %v5945, %v5943
  %v6004 = vpack.c.bf16 %v5946, %v5944
  %v6005 = vpack.c.bf16 %v5949, %v5947
  %v6006 = vpack.c.bf16 %v5950, %v5948
  %v6007 = vpack.c.bf16 %v5953, %v5951
  %v6008 = vpack.c.bf16 %v5954, %v5952
  %v6009 = vpack.c.bf16 %v5957, %v5955
  %v6010 = vpack.c.bf16 %v5958, %v5956
  %v6011 = vpack.c.bf16 %v5961, %v5959
  %v6012 = vpack.c.bf16 %v5962, %v5960
  %v6013 = vpack.c.bf16 %v5965, %v5963
  %v6014 = vpack.c.bf16 %v5966, %v5964
  %v6015 = vpack.c.bf16 %v5969, %v5967
  %v6016 = vpack.c.bf16 %v5970, %v5968
  %v6017 = vpack.c.bf16 %v5973, %v5971
  %v6018 = vpack.c.bf16 %v5974, %v5972
  %v6019 = vpack.c.bf16 %v5977, %v5975
  %v6020 = vpack.c.bf16 %v5978, %v5976
  %v6021 = vpack.c.bf16 %v5981, %v5979
  %v6022 = vpack.c.bf16 %v5982, %v5980
  %v6023 = vpack.c.bf16 %v5985, %v5983
  %v6024 = vpack.c.bf16 %v5986, %v5984
  %v6025 = vpack.c.bf16 %v5989, %v5987
  %v6026 = vpack.c.bf16 %v5990, %v5988
  %v6027 = vpack.c.bf16 %v5993, %v5991
  %v6028 = vpack.c.bf16 %v5994, %v5992
  %v6029 = vpack.c.bf16 %v5997, %v5995
  %v6030 = vpack.c.bf16 %v5998, %v5996
  %6031 = vmatprep.subr.bf16.mxu0 0
  %6032 = vmatpush1.bf16.msra.mxu0 %v2408
  %6033 = vmatprep.subr.bf16.mxu0 0
  %6034 = vmatpush1.bf16.msra.mxu0 %v2410
  %6035 = vmatprep.subr.bf16.mxu0 0
  %6036 = vmatpush1.bf16.msra.mxu0 %v2412
  %6037 = vmatprep.subr.bf16.mxu0 0
  %6038 = vmatpush1.bf16.msra.mxu0 %v2414
  %6039 = vmatprep.subr.bf16.mxu0 0
  %6040 = vmatpush1.bf16.msra.mxu0 %v2416
  %6041 = vmatprep.subr.bf16.mxu0 0
  %6042 = vmatpush1.bf16.msra.mxu0 %v2418
  %6043 = vmatprep.subr.bf16.mxu0 0
  %6044 = vmatpush1.bf16.msra.mxu0 %v2420
  %6045 = vmatprep.subr.bf16.mxu0 0
  %6046 = vmatpush1.bf16.msra.mxu0 %v2422
  %6047 = vmatprep.subr.bf16.mxu0 0
  %6048 = vmatpush1.bf16.msra.mxu0 %v2424
  %6049 = vmatprep.subr.bf16.mxu0 0
  %6050 = vmatpush1.bf16.msra.mxu0 %v2426
  %6051 = vmatprep.subr.bf16.mxu0 0
  %6052 = vmatpush1.bf16.msra.mxu0 %v2428
  %6053 = vmatprep.subr.bf16.mxu0 0
  %6054 = vmatpush1.bf16.msra.mxu0 %v2430
  %6055 = vmatprep.subr.bf16.mxu0 0
  %6056 = vmatpush1.bf16.msra.mxu0 %v2432
  %6057 = vmatprep.subr.bf16.mxu0 0
  %6058 = vmatpush1.bf16.msra.mxu0 %v2434
  %6059 = vmatprep.subr.bf16.mxu0 0
  %6060 = vmatpush1.bf16.msra.mxu0 %v2436
  %6061 = vmatprep.subr.bf16.mxu0 0
  %6062 = vmatpush1.bf16.msra.mxu0 %v2438
  %6063 = vmatprep.mubr.bf16.mxu0 %v6000
  %6064 = vmatmul.mubr.bf16.gmra.mrb[0].mxu0 %v5999
  %v6065 = vpop.f32.mrb[0].mxu0
  %v6066 = vadd.f32 0.0, %v6065
  %v6067 = vpop.f32.mrb[0].mxu0
  %v6068 = vpop.f32.mrb[0].mxu0
  %v6069 = vadd.f32 0.0, %v6068
  %v6070 = vpop.f32.mrb[0].mxu0
  %6071 = vmatprep.mubr.bf16.mxu0 %v6002
  %6072 = vmatmul.mubr.bf16.gmra.mrb[0].mxu0 %v6001
  %v6073 = vpop.f32.mrb[0].mxu0
  %v6074 = vadd.f32 0.0, %v6073
  %v6075 = vpop.f32.mrb[0].mxu0
  %v6076 = vpop.f32.mrb[0].mxu0
  %v6077 = vadd.f32 0.0, %v6076
  %v6078 = vpop.f32.mrb[0].mxu0
  %6079 = vmatprep.mubr.bf16.mxu0 %v6004
  %6080 = vmatmul.mubr.bf16.gmra.mrb[0].mxu0 %v6003
  %v6081 = vpop.f32.mrb[0].mxu0
  %v6082 = vadd.f32 0.0, %v6081
  %v6083 = vpop.f32.mrb[0].mxu0
  %v6084 = vpop.f32.mrb[0].mxu0
  %v6085 = vadd.f32 0.0, %v6084
  %v6086 = vpop.f32.mrb[0].mxu0
  %6087 = vmatprep.mubr.bf16.mxu0 %v6006
  %6088 = vmatmul.mubr.bf16.gmra.mrb[0].mxu0 %v6005
  %v6089 = vpop.f32.mrb[0].mxu0
  %v6090 = vadd.f32 0.0, %v6089
  %v6091 = vpop.f32.mrb[0].mxu0
  %v6092 = vpop.f32.mrb[0].mxu0
  %v6093 = vadd.f32 0.0, %v6092
  %v6094 = vpop.f32.mrb[0].mxu0
  %6095 = vmatprep.mubr.bf16.mxu0 %v6008
  %6096 = vmatmul.mubr.bf16.gmra.mrb[0].mxu0 %v6007
  %v6097 = vpop.f32.mrb[0].mxu0
  %v6098 = vadd.f32 0.0, %v6097
  %v6099 = vpop.f32.mrb[0].mxu0
  %v6100 = vpop.f32.mrb[0].mxu0
  %v6101 = vadd.f32 0.0, %v6100
  %v6102 = vpop.f32.mrb[0].mxu0
  %6103 = vmatprep.mubr.bf16.mxu0 %v6010
  %6104 = vmatmul.mubr.bf16.gmra.mrb[0].mxu0 %v6009
  %v6105 = vpop.f32.mrb[0].mxu0
  %v6106 = vadd.f32 0.0, %v6105
  %v6107 = vpop.f32.mrb[0].mxu0
  %v6108 = vpop.f32.mrb[0].mxu0
  %v6109 = vadd.f32 0.0, %v6108
  %v6110 = vpop.f32.mrb[0].mxu0
  %6111 = vmatprep.mubr.bf16.mxu0 %v6012
  %6112 = vmatmul.mubr.bf16.gmra.mrb[0].mxu0 %v6011
  %v6113 = vpop.f32.mrb[0].mxu0
  %v6114 = vadd.f32 0.0, %v6113
  %v6115 = vpop.f32.mrb[0].mxu0
  %v6116 = vpop.f32.mrb[0].mxu0
  %v6117 = vadd.f32 0.0, %v6116
  %v6118 = vpop.f32.mrb[0].mxu0
  %6119 = vmatprep.mubr.bf16.mxu0 %v6014
  %6120 = vmatmul.mubr.bf16.gmra.mrb[0].mxu0 %v6013
  %v6121 = vpop.f32.mrb[0].mxu0
  %v6122 = vadd.f32 0.0, %v6121
  %v6123 = vpop.f32.mrb[0].mxu0
  %v6124 = vpop.f32.mrb[0].mxu0
  %v6125 = vadd.f32 0.0, %v6124
  %v6126 = vpop.f32.mrb[0].mxu0
  %6127 = vmatprep.mubr.bf16.mxu0 %v6016
  %6128 = vmatmul.mubr.bf16.gmra.mrb[0].mxu0 %v6015
  %v6129 = vpop.f32.mrb[0].mxu0
  %v6130 = vadd.f32 0.0, %v6129
  %v6131 = vpop.f32.mrb[0].mxu0
  %v6132 = vpop.f32.mrb[0].mxu0
  %v6133 = vadd.f32 0.0, %v6132
  %v6134 = vpop.f32.mrb[0].mxu0
  %6135 = vmatprep.mubr.bf16.mxu0 %v6018
  %6136 = vmatmul.mubr.bf16.gmra.mrb[0].mxu0 %v6017
  %v6137 = vpop.f32.mrb[0].mxu0
  %v6138 = vadd.f32 0.0, %v6137
  %v6139 = vpop.f32.mrb[0].mxu0
  %v6140 = vpop.f32.mrb[0].mxu0
  %v6141 = vadd.f32 0.0, %v6140
  %v6142 = vpop.f32.mrb[0].mxu0
  %6143 = vmatprep.mubr.bf16.mxu0 %v6020
  %6144 = vmatmul.mubr.bf16.gmra.mrb[0].mxu0 %v6019
  %v6145 = vpop.f32.mrb[0].mxu0
  %v6146 = vadd.f32 0.0, %v6145
  %v6147 = vpop.f32.mrb[0].mxu0
  %v6148 = vpop.f32.mrb[0].mxu0
  %v6149 = vadd.f32 0.0, %v6148
  %v6150 = vpop.f32.mrb[0].mxu0
  %6151 = vmatprep.mubr.bf16.mxu0 %v6022
  %6152 = vmatmul.mubr.bf16.gmra.mrb[0].mxu0 %v6021
  %v6153 = vpop.f32.mrb[0].mxu0
  %v6154 = vadd.f32 0.0, %v6153
  %v6155 = vpop.f32.mrb[0].mxu0
  %v6156 = vpop.f32.mrb[0].mxu0
  %v6157 = vadd.f32 0.0, %v6156
  %v6158 = vpop.f32.mrb[0].mxu0
  %6159 = vmatprep.mubr.bf16.mxu0 %v6024
  %6160 = vmatmul.mubr.bf16.gmra.mrb[0].mxu0 %v6023
  %v6161 = vpop.f32.mrb[0].mxu0
  %v6162 = vadd.f32 0.0, %v6161
  %v6163 = vpop.f32.mrb[0].mxu0
  %v6164 = vpop.f32.mrb[0].mxu0
  %v6165 = vadd.f32 0.0, %v6164
  %v6166 = vpop.f32.mrb[0].mxu0
  %6167 = vmatprep.mubr.bf16.mxu0 %v6026
  %6168 = vmatmul.mubr.bf16.gmra.mrb[0].mxu0 %v6025
  %v6169 = vpop.f32.mrb[0].mxu0
  %v6170 = vadd.f32 0.0, %v6169
  %v6171 = vpop.f32.mrb[0].mxu0
  %v6172 = vpop.f32.mrb[0].mxu0
  %v6173 = vadd.f32 0.0, %v6172
  %v6174 = vpop.f32.mrb[0].mxu0
  %6175 = vmatprep.mubr.bf16.mxu0 %v6028
  %6176 = vmatmul.mubr.bf16.gmra.mrb[0].mxu0 %v6027
  %v6177 = vpop.f32.mrb[0].mxu0
  %v6178 = vadd.f32 0.0, %v6177
  %v6179 = vpop.f32.mrb[0].mxu0
  %v6180 = vpop.f32.mrb[0].mxu0
  %v6181 = vadd.f32 0.0, %v6180
  %v6182 = vpop.f32.mrb[0].mxu0
  %6183 = vmatprep.mubr.bf16.mxu0 %v6030
  %6184 = vmatmul.mubr.bf16.gmra.mrb[0].mxu0 %v6029
  %v6185 = vpop.f32.mrb[0].mxu0
  %v6186 = vadd.f32 0.0, %v6185
  %v6187 = vpop.f32.mrb[0].mxu0
  %v6188 = vpop.f32.mrb[0].mxu0
  %v6189 = vadd.f32 0.0, %v6188
  %v6190 = vpop.f32.mrb[0].mxu0
  %6191 = vdwg.mxu0
  %v6192 = vpack.c.bf16 %v6069, %v6066
  %v6193 = vpack.c.bf16 %v6077, %v6074
  %v6194 = vpack.c.bf16 %v6085, %v6082
  %v6195 = vpack.c.bf16 %v6093, %v6090
  %v6196 = vpack.c.bf16 %v6101, %v6098
  %v6197 = vpack.c.bf16 %v6109, %v6106
  %v6198 = vpack.c.bf16 %v6117, %v6114
  %v6199 = vpack.c.bf16 %v6125, %v6122
  %v6200 = vpack.c.bf16 %v6133, %v6130
  %v6201 = vpack.c.bf16 %v6141, %v6138
  %v6202 = vpack.c.bf16 %v6149, %v6146
  %v6203 = vpack.c.bf16 %v6157, %v6154
  %v6204 = vpack.c.bf16 %v6165, %v6162
  %v6205 = vpack.c.bf16 %v6173, %v6170
  %v6206 = vpack.c.bf16 %v6181, %v6178
  %v6207 = vpack.c.bf16 %v6189, %v6186
  %s6208 = scalar_lea.vmem %s13, 128
  %v6209 = vld [vmem:[%s6208] sm:$0xff]
  %v6210 = vld [vmem:[%s6208 + $0x8] sm:$0xff]
  %v6211 = vld [vmem:[%s6208 + $0x10] sm:$0xff]
  %v6212 = vld [vmem:[%s6208 + $0x18] sm:$0xff]
  %v6213 = vld [vmem:[%s6208 + $0x20] sm:$0xff]
  %v6214 = vld [vmem:[%s6208 + $0x28] sm:$0xff]
  %v6215 = vld [vmem:[%s6208 + $0x30] sm:$0xff]
  %v6216 = vld [vmem:[%s6208 + $0x38] sm:$0xff]
  %v6225 = vunpack.c.l.b16 %v6209
  %v6226 = vunpack.c.h.b16 %v6209
  %v6227 = vunpack.c.l.b16 %v6210
  %v6228 = vunpack.c.h.b16 %v6210
  %v6229 = vunpack.c.l.b16 %v6211
  %v6230 = vunpack.c.h.b16 %v6211
  %v6231 = vunpack.c.l.b16 %v6212
  %v6232 = vunpack.c.h.b16 %v6212
  %v6233 = vunpack.c.l.b16 %v6213
  %v6234 = vunpack.c.h.b16 %v6213
  %v6235 = vunpack.c.l.b16 %v6214
  %v6236 = vunpack.c.h.b16 %v6214
  %v6237 = vunpack.c.l.b16 %v6215
  %v6238 = vunpack.c.h.b16 %v6215
  %v6239 = vunpack.c.l.b16 %v6216
  %v6240 = vunpack.c.h.b16 %v6216
  %v6241 = vpack.c.b16 %v6227, %v6225
  %v6242 = vpack.c.b16 %v6228, %v6226
  %v6243 = vpack.c.b16 %v6231, %v6229
  %v6244 = vpack.c.b16 %v6232, %v6230
  %v6245 = vpack.c.b16 %v6235, %v6233
  %v6246 = vpack.c.b16 %v6236, %v6234
  %v6247 = vpack.c.b16 %v6239, %v6237
  %v6248 = vpack.c.b16 %v6240, %v6238
  %v6258 = vsel %vm245, %v6192, 0
  %v6261 = vsel %vm245, %v6193, 0
  %v6264 = vsel %vm245, %v6194, 0
  %v6267 = vsel %vm245, %v6195, 0
  %v6270 = vsel %vm245, %v6196, 0
  %v6273 = vsel %vm245, %v6197, 0
  %v6276 = vsel %vm245, %v6198, 0
  %v6279 = vsel %vm245, %v6199, 0
  %v6282 = vsel %vm245, %v6200, 0
  %v6285 = vsel %vm245, %v6201, 0
  %v6288 = vsel %vm245, %v6202, 0
  %v6291 = vsel %vm245, %v6203, 0
  %v6294 = vsel %vm245, %v6204, 0
  %v6297 = vsel %vm245, %v6205, 0
  %v6300 = vsel %vm245, %v6206, 0
  %v6303 = vsel %vm245, %v6207, 0
  %6305 = vmatprep.subr.bf16.mxu0 %v6242
  %6306 = vmatpush1.bf16.msra.mxu0 %v6241
  %6307 = vmatprep.subr.bf16.mxu0 %v6244
  %6308 = vmatpush1.bf16.msra.mxu0 %v6243
  %6309 = vmatprep.subr.bf16.mxu0 %v6246
  %6310 = vmatpush1.bf16.msra.mxu0 %v6245
  %6311 = vmatprep.subr.bf16.mxu0 %v6248
  %6312 = vmatpush1.bf16.msra.mxu0 %v6247
  %6313 = vmatprep.subr.bf16.mxu0 0
  %6314 = vmatpush1.bf16.msra.mxu0 0
  %6315 = vmatprep.subr.bf16.mxu0 0
  %6316 = vmatpush1.bf16.msra.mxu0 0
  %6317 = vmatprep.subr.bf16.mxu0 0
  %6318 = vmatpush1.bf16.msra.mxu0 0
  %6319 = vmatprep.subr.bf16.mxu0 0
  %6320 = vmatpush1.bf16.msra.mxu0 0
  %6321 = vmatprep.subr.bf16.mxu0 0
  %6322 = vmatpush1.bf16.msra.mxu0 0
  %6323 = vmatprep.subr.bf16.mxu0 0
  %6324 = vmatpush1.bf16.msra.mxu0 0
  %6325 = vmatprep.subr.bf16.mxu0 0
  %6326 = vmatpush1.bf16.msra.mxu0 0
  %6327 = vmatprep.subr.bf16.mxu0 0
  %6328 = vmatpush1.bf16.msra.mxu0 0
  %6329 = vmatprep.subr.bf16.mxu0 0
  %6330 = vmatpush1.bf16.msra.mxu0 0
  %6331 = vmatprep.subr.bf16.mxu0 0
  %6332 = vmatpush1.bf16.msra.mxu0 0
  %6333 = vmatprep.subr.bf16.mxu0 0
  %6334 = vmatpush1.bf16.msra.mxu0 0
  %6335 = vmatprep.subr.bf16.mxu0 0
  %6336 = vmatpush1.bf16.msra.mxu0 0
  %6337 = vmatprep.mubr.bf16.mxu0 0
  %6338 = vmatmul.mubr.bf16.gmra.mrb[0].mxu0 %v6258
  %v6339 = vpop.f32.mrb[0].mxu0
  %v6340 = vadd.f32 0.0, %v6339
  %v6341 = vpop.f32.mrb[0].mxu0
  %v6342 = vadd.f32 0.0, %v6341
  %v6343 = vpop.f32.mrb[0].mxu0
  %v6344 = vadd.f32 0.0, %v6343
  %v6345 = vpop.f32.mrb[0].mxu0
  %v6346 = vadd.f32 0.0, %v6345
  %6347 = vmatprep.mubr.bf16.mxu0 0
  %6348 = vmatmul.mubr.bf16.gmra.mrb[0].mxu0 %v6261
  %v6349 = vpop.f32.mrb[0].mxu0
  %v6350 = vadd.f32 0.0, %v6349
  %v6351 = vpop.f32.mrb[0].mxu0
  %v6352 = vadd.f32 0.0, %v6351
  %v6353 = vpop.f32.mrb[0].mxu0
  %v6354 = vadd.f32 0.0, %v6353
  %v6355 = vpop.f32.mrb[0].mxu0
  %v6356 = vadd.f32 0.0, %v6355
  %6357 = vmatprep.mubr.bf16.mxu0 0
  %6358 = vmatmul.mubr.bf16.gmra.mrb[0].mxu0 %v6264
  %v6359 = vpop.f32.mrb[0].mxu0
  %v6360 = vadd.f32 0.0, %v6359
  %v6361 = vpop.f32.mrb[0].mxu0
  %v6362 = vadd.f32 0.0, %v6361
  %v6363 = vpop.f32.mrb[0].mxu0
  %v6364 = vadd.f32 0.0, %v6363
  %v6365 = vpop.f32.mrb[0].mxu0
  %v6366 = vadd.f32 0.0, %v6365
  %6367 = vmatprep.mubr.bf16.mxu0 0
  %6368 = vmatmul.mubr.bf16.gmra.mrb[0].mxu0 %v6267
  %v6369 = vpop.f32.mrb[0].mxu0
  %v6370 = vadd.f32 0.0, %v6369
  %v6371 = vpop.f32.mrb[0].mxu0
  %v6372 = vadd.f32 0.0, %v6371
  %v6373 = vpop.f32.mrb[0].mxu0
  %v6374 = vadd.f32 0.0, %v6373
  %v6375 = vpop.f32.mrb[0].mxu0
  %v6376 = vadd.f32 0.0, %v6375
  %6377 = vmatprep.mubr.bf16.mxu0 0
  %6378 = vmatmul.mubr.bf16.gmra.mrb[0].mxu0 %v6270
  %v6379 = vpop.f32.mrb[0].mxu0
  %v6380 = vadd.f32 0.0, %v6379
  %v6381 = vpop.f32.mrb[0].mxu0
  %v6382 = vadd.f32 0.0, %v6381
  %v6383 = vpop.f32.mrb[0].mxu0
  %v6384 = vadd.f32 0.0, %v6383
  %v6385 = vpop.f32.mrb[0].mxu0
  %v6386 = vadd.f32 0.0, %v6385
  %6387 = vmatprep.mubr.bf16.mxu0 0
  %6388 = vmatmul.mubr.bf16.gmra.mrb[0].mxu0 %v6273
  %v6389 = vpop.f32.mrb[0].mxu0
  %v6390 = vadd.f32 0.0, %v6389
  %v6391 = vpop.f32.mrb[0].mxu0
  %v6392 = vadd.f32 0.0, %v6391
  %v6393 = vpop.f32.mrb[0].mxu0
  %v6394 = vadd.f32 0.0, %v6393
  %v6395 = vpop.f32.mrb[0].mxu0
  %v6396 = vadd.f32 0.0, %v6395
  %6397 = vmatprep.mubr.bf16.mxu0 0
  %6398 = vmatmul.mubr.bf16.gmra.mrb[0].mxu0 %v6276
  %v6399 = vpop.f32.mrb[0].mxu0
  %v6400 = vadd.f32 0.0, %v6399
  %v6401 = vpop.f32.mrb[0].mxu0
  %v6402 = vadd.f32 0.0, %v6401
  %v6403 = vpop.f32.mrb[0].mxu0
  %v6404 = vadd.f32 0.0, %v6403
  %v6405 = vpop.f32.mrb[0].mxu0
  %v6406 = vadd.f32 0.0, %v6405
  %6407 = vmatprep.mubr.bf16.mxu0 0
  %6408 = vmatmul.mubr.bf16.gmra.mrb[0].mxu0 %v6279
  %v6409 = vpop.f32.mrb[0].mxu0
  %v6410 = vadd.f32 0.0, %v6409
  %v6411 = vpop.f32.mrb[0].mxu0
  %v6412 = vadd.f32 0.0, %v6411
  %v6413 = vpop.f32.mrb[0].mxu0
  %v6414 = vadd.f32 0.0, %v6413
  %v6415 = vpop.f32.mrb[0].mxu0
  %v6416 = vadd.f32 0.0, %v6415
  %6417 = vmatprep.mubr.bf16.mxu0 0
  %6418 = vmatmul.mubr.bf16.gmra.mrb[0].mxu0 %v6282
  %v6419 = vpop.f32.mrb[0].mxu0
  %v6420 = vadd.f32 0.0, %v6419
  %v6421 = vpop.f32.mrb[0].mxu0
  %v6422 = vadd.f32 0.0, %v6421
  %v6423 = vpop.f32.mrb[0].mxu0
  %v6424 = vadd.f32 0.0, %v6423
  %v6425 = vpop.f32.mrb[0].mxu0
  %v6426 = vadd.f32 0.0, %v6425
  %6427 = vmatprep.mubr.bf16.mxu0 0
  %6428 = vmatmul.mubr.bf16.gmra.mrb[0].mxu0 %v6285
  %v6429 = vpop.f32.mrb[0].mxu0
  %v6430 = vadd.f32 0.0, %v6429
  %v6431 = vpop.f32.mrb[0].mxu0
  %v6432 = vadd.f32 0.0, %v6431
  %v6433 = vpop.f32.mrb[0].mxu0
  %v6434 = vadd.f32 0.0, %v6433
  %v6435 = vpop.f32.mrb[0].mxu0
  %v6436 = vadd.f32 0.0, %v6435
  %6437 = vmatprep.mubr.bf16.mxu0 0
  %6438 = vmatmul.mubr.bf16.gmra.mrb[0].mxu0 %v6288
  %v6439 = vpop.f32.mrb[0].mxu0
  %v6440 = vadd.f32 0.0, %v6439
  %v6441 = vpop.f32.mrb[0].mxu0
  %v6442 = vadd.f32 0.0, %v6441
  %v6443 = vpop.f32.mrb[0].mxu0
  %v6444 = vadd.f32 0.0, %v6443
  %v6445 = vpop.f32.mrb[0].mxu0
  %v6446 = vadd.f32 0.0, %v6445
  %6447 = vmatprep.mubr.bf16.mxu0 0
  %6448 = vmatmul.mubr.bf16.gmra.mrb[0].mxu0 %v6291
  %v6449 = vpop.f32.mrb[0].mxu0
  %v6450 = vadd.f32 0.0, %v6449
  %v6451 = vpop.f32.mrb[0].mxu0
  %v6452 = vadd.f32 0.0, %v6451
  %v6453 = vpop.f32.mrb[0].mxu0
  %v6454 = vadd.f32 0.0, %v6453
  %v6455 = vpop.f32.mrb[0].mxu0
  %v6456 = vadd.f32 0.0, %v6455
  %6457 = vmatprep.mubr.bf16.mxu0 0
  %6458 = vmatmul.mubr.bf16.gmra.mrb[0].mxu0 %v6294
  %v6459 = vpop.f32.mrb[0].mxu0
  %v6460 = vadd.f32 0.0, %v6459
  %v6461 = vpop.f32.mrb[0].mxu0
  %v6462 = vadd.f32 0.0, %v6461
  %v6463 = vpop.f32.mrb[0].mxu0
  %v6464 = vadd.f32 0.0, %v6463
  %v6465 = vpop.f32.mrb[0].mxu0
  %v6466 = vadd.f32 0.0, %v6465
  %6467 = vmatprep.mubr.bf16.mxu0 0
  %6468 = vmatmul.mubr.bf16.gmra.mrb[0].mxu0 %v6297
  %v6469 = vpop.f32.mrb[0].mxu0
  %v6470 = vadd.f32 0.0, %v6469
  %v6471 = vpop.f32.mrb[0].mxu0
  %v6472 = vadd.f32 0.0, %v6471
  %v6473 = vpop.f32.mrb[0].mxu0
  %v6474 = vadd.f32 0.0, %v6473
  %v6475 = vpop.f32.mrb[0].mxu0
  %v6476 = vadd.f32 0.0, %v6475
  %6477 = vmatprep.mubr.bf16.mxu0 0
  %6478 = vmatmul.mubr.bf16.gmra.mrb[0].mxu0 %v6300
  %v6479 = vpop.f32.mrb[0].mxu0
  %v6480 = vadd.f32 0.0, %v6479
  %v6481 = vpop.f32.mrb[0].mxu0
  %v6482 = vadd.f32 0.0, %v6481
  %v6483 = vpop.f32.mrb[0].mxu0
  %v6484 = vadd.f32 0.0, %v6483
  %v6485 = vpop.f32.mrb[0].mxu0
  %v6486 = vadd.f32 0.0, %v6485
  %6487 = vmatprep.mubr.bf16.mxu0 0
  %6488 = vmatmul.mubr.bf16.gmra.mrb[0].mxu0 %v6303
  %v6489 = vpop.f32.mrb[0].mxu0
  %v6490 = vadd.f32 0.0, %v6489
  %v6491 = vpop.f32.mrb[0].mxu0
  %v6492 = vadd.f32 0.0, %v6491
  %v6493 = vpop.f32.mrb[0].mxu0
  %v6494 = vadd.f32 0.0, %v6493
  %v6495 = vpop.f32.mrb[0].mxu0
  %v6496 = vadd.f32 0.0, %v6495
  %6497 = vdwg.mxu0
  %v6498 = vadd.f32 %v5072, %v6340
  %v6499 = vadd.f32 %v5074, %v6342
  %v6500 = vadd.f32 %v5076, %v6344
  %v6501 = vadd.f32 %v5078, %v6346
  %v6502 = vadd.f32 %v5082, %v6350
  %v6503 = vadd.f32 %v5084, %v6352
  %v6504 = vadd.f32 %v5086, %v6354
  %v6505 = vadd.f32 %v5088, %v6356
  %v6506 = vadd.f32 %v5092, %v6360
  %v6507 = vadd.f32 %v5094, %v6362
  %v6508 = vadd.f32 %v5096, %v6364
  %v6509 = vadd.f32 %v5098, %v6366
  %v6510 = vadd.f32 %v5102, %v6370
  %v6511 = vadd.f32 %v5104, %v6372
  %v6512 = vadd.f32 %v5106, %v6374
  %v6513 = vadd.f32 %v5108, %v6376
  %v6514 = vadd.f32 %v5112, %v6380
  %v6515 = vadd.f32 %v5114, %v6382
  %v6516 = vadd.f32 %v5116, %v6384
  %v6517 = vadd.f32 %v5118, %v6386
  %v6518 = vadd.f32 %v5122, %v6390
  %v6519 = vadd.f32 %v5124, %v6392
  %v6520 = vadd.f32 %v5126, %v6394
  %v6521 = vadd.f32 %v5128, %v6396
  %v6522 = vadd.f32 %v5132, %v6400
  %v6523 = vadd.f32 %v5134, %v6402
  %v6524 = vadd.f32 %v5136, %v6404
  %v6525 = vadd.f32 %v5138, %v6406
  %v6526 = vadd.f32 %v5142, %v6410
  %v6527 = vadd.f32 %v5144, %v6412
  %v6528 = vadd.f32 %v5146, %v6414
  %v6529 = vadd.f32 %v5148, %v6416
  %v6530 = vadd.f32 %v5152, %v6420
  %v6531 = vadd.f32 %v5154, %v6422
  %v6532 = vadd.f32 %v5156, %v6424
  %v6533 = vadd.f32 %v5158, %v6426
  %v6534 = vadd.f32 %v5162, %v6430
  %v6535 = vadd.f32 %v5164, %v6432
  %v6536 = vadd.f32 %v5166, %v6434
  %v6537 = vadd.f32 %v5168, %v6436
  %v6538 = vadd.f32 %v5172, %v6440
  %v6539 = vadd.f32 %v5174, %v6442
  %v6540 = vadd.f32 %v5176, %v6444
  %v6541 = vadd.f32 %v5178, %v6446
  %v6542 = vadd.f32 %v5182, %v6450
  %v6543 = vadd.f32 %v5184, %v6452
  %v6544 = vadd.f32 %v5186, %v6454
  %v6545 = vadd.f32 %v5188, %v6456
  %v6546 = vadd.f32 %v5192, %v6460
  %v6547 = vadd.f32 %v5194, %v6462
  %v6548 = vadd.f32 %v5196, %v6464
  %v6549 = vadd.f32 %v5198, %v6466
  %v6550 = vadd.f32 %v5202, %v6470
  %v6551 = vadd.f32 %v5204, %v6472
  %v6552 = vadd.f32 %v5206, %v6474
  %v6553 = vadd.f32 %v5208, %v6476
  %v6554 = vadd.f32 %v5212, %v6480
  %v6555 = vadd.f32 %v5214, %v6482
  %v6556 = vadd.f32 %v5216, %v6484
  %v6557 = vadd.f32 %v5218, %v6486
  %v6558 = vadd.f32 %v5222, %v6490
  %v6559 = vadd.f32 %v5224, %v6492
  %v6560 = vadd.f32 %v5226, %v6494
  %v6561 = vadd.f32 %v5228, %v6496
  %6578 = vrot.lane.b32.xlu0 %v2376, 64
  %v6579 = vpop.permute.xlu0 %6578
  %6580 = vrot.lane.b32.xlu0 %v2378, 64
  %v6581 = vpop.permute.xlu0 %6580
  %6582 = vrot.lane.b32.xlu0 %v2380, 64
  %v6583 = vpop.permute.xlu0 %6582
  %6584 = vrot.lane.b32.xlu0 %v2382, 64
  %v6585 = vpop.permute.xlu0 %6584
  %6586 = vrot.lane.b32.xlu0 %v2384, 64
  %v6587 = vpop.permute.xlu0 %6586
  %6588 = vrot.lane.b32.xlu0 %v2386, 64
  %v6589 = vpop.permute.xlu0 %6588
  %6590 = vrot.lane.b32.xlu0 %v2388, 64
  %v6591 = vpop.permute.xlu0 %6590
  %6592 = vrot.lane.b32.xlu0 %v2390, 64
  %v6593 = vpop.permute.xlu0 %6592
  %6594 = vrot.lane.b32.xlu0 %v2392, 64
  %v6595 = vpop.permute.xlu0 %6594
  %6596 = vrot.lane.b32.xlu0 %v2394, 64
  %v6597 = vpop.permute.xlu0 %6596
  %6598 = vrot.lane.b32.xlu0 %v2396, 64
  %v6599 = vpop.permute.xlu0 %6598
  %6600 = vrot.lane.b32.xlu0 %v2398, 64
  %v6601 = vpop.permute.xlu0 %6600
  %6602 = vrot.lane.b32.xlu0 %v2400, 64
  %v6603 = vpop.permute.xlu0 %6602
  %6604 = vrot.lane.b32.xlu0 %v2402, 64
  %v6605 = vpop.permute.xlu0 %6604
  %6606 = vrot.lane.b32.xlu0 %v2404, 64
  %v6607 = vpop.permute.xlu0 %6606
  %6608 = vrot.lane.b32.xlu0 %v2406, 64
  %v6609 = vpop.permute.xlu0 %6608
  %6626 = vrot.lane.b32.xlu0 %v2440, 64
  %v6627 = vpop.permute.xlu0 %6626
  %6628 = vrot.lane.b32.xlu0 %v2442, 64
  %v6629 = vpop.permute.xlu0 %6628
  %6630 = vrot.lane.b32.xlu0 %v2444, 64
  %v6631 = vpop.permute.xlu0 %6630
  %6632 = vrot.lane.b32.xlu0 %v2446, 64
  %v6633 = vpop.permute.xlu0 %6632
  %6634 = vrot.lane.b32.xlu0 %v2448, 64
  %v6635 = vpop.permute.xlu0 %6634
  %6636 = vrot.lane.b32.xlu0 %v2450, 64
  %v6637 = vpop.permute.xlu0 %6636
  %6638 = vrot.lane.b32.xlu0 %v2452, 64
  %v6639 = vpop.permute.xlu0 %6638
  %6640 = vrot.lane.b32.xlu0 %v2454, 64
  %v6641 = vpop.permute.xlu0 %6640
  %6642 = vrot.lane.b32.xlu0 %v2456, 64
  %v6643 = vpop.permute.xlu0 %6642
  %6644 = vrot.lane.b32.xlu0 %v2458, 64
  %v6645 = vpop.permute.xlu0 %6644
  %6646 = vrot.lane.b32.xlu0 %v2460, 64
  %v6647 = vpop.permute.xlu0 %6646
  %6648 = vrot.lane.b32.xlu0 %v2462, 64
  %v6649 = vpop.permute.xlu0 %6648
  %6650 = vrot.lane.b32.xlu0 %v2464, 64
  %v6651 = vpop.permute.xlu0 %6650
  %6652 = vrot.lane.b32.xlu0 %v2466, 64
  %v6653 = vpop.permute.xlu0 %6652
  %6654 = vrot.lane.b32.xlu0 %v2468, 64
  %v6655 = vpop.permute.xlu0 %6654
  %6656 = vrot.lane.b32.xlu0 %v2470, 64
  %v6657 = vpop.permute.xlu0 %6656
  %v6659 = vsel %vm245, %v6579, 0
  %v6662 = vsel %vm245, %v6581, 0
  %v6665 = vsel %vm245, %v6583, 0
  %v6668 = vsel %vm245, %v6585, 0
  %v6671 = vsel %vm245, %v6587, 0
  %v6674 = vsel %vm245, %v6589, 0
  %v6677 = vsel %vm245, %v6591, 0
  %v6680 = vsel %vm245, %v6593, 0
  %v6683 = vsel %vm245, %v6595, 0
  %v6686 = vsel %vm245, %v6597, 0
  %v6689 = vsel %vm245, %v6599, 0
  %v6692 = vsel %vm245, %v6601, 0
  %v6695 = vsel %vm245, %v6603, 0
  %v6698 = vsel %vm245, %v6605, 0
  %v6701 = vsel %vm245, %v6607, 0
  %v6704 = vsel %vm245, %v6609, 0
  %v6707 = vsel %vm245, %v6627, 0
  %v6710 = vsel %vm245, %v6629, 0
  %v6713 = vsel %vm245, %v6631, 0
  %v6716 = vsel %vm245, %v6633, 0
  %v6719 = vsel %vm245, %v6635, 0
  %v6722 = vsel %vm245, %v6637, 0
  %v6725 = vsel %vm245, %v6639, 0
  %v6728 = vsel %vm245, %v6641, 0
  %v6731 = vsel %vm245, %v6643, 0
  %v6734 = vsel %vm245, %v6645, 0
  %v6737 = vsel %vm245, %v6647, 0
  %v6740 = vsel %vm245, %v6649, 0
  %v6743 = vsel %vm245, %v6651, 0
  %v6746 = vsel %vm245, %v6653, 0
  %v6749 = vsel %vm245, %v6655, 0
  %v6752 = vsel %vm245, %v6657, 0
  %6754 = vmatprep.subr.bf16.mxu0 0
  %6755 = vmatpush1.bf16.xpose.msra.mxu0 %v6707
  %6756 = vmatprep.subr.bf16.mxu0 0
  %6757 = vmatpush1.bf16.xpose.msra.mxu0 %v6710
  %6758 = vmatprep.subr.bf16.mxu0 0
  %6759 = vmatpush1.bf16.xpose.msra.mxu0 %v6713
  %6760 = vmatprep.subr.bf16.mxu0 0
  %6761 = vmatpush1.bf16.xpose.msra.mxu0 %v6716
  %6762 = vmatprep.subr.bf16.mxu0 0
  %6763 = vmatpush1.bf16.xpose.msra.mxu0 %v6719
  %6764 = vmatprep.subr.bf16.mxu0 0
  %6765 = vmatpush1.bf16.xpose.msra.mxu0 %v6722
  %6766 = vmatprep.subr.bf16.mxu0 0
  %6767 = vmatpush1.bf16.xpose.msra.mxu0 %v6725
  %6768 = vmatprep.subr.bf16.mxu0 0
  %6769 = vmatpush1.bf16.xpose.msra.mxu0 %v6728
  %6770 = vmatprep.subr.bf16.mxu0 0
  %6771 = vmatpush1.bf16.xpose.msra.mxu0 %v6731
  %6772 = vmatprep.subr.bf16.mxu0 0
  %6773 = vmatpush1.bf16.xpose.msra.mxu0 %v6734
  %6774 = vmatprep.subr.bf16.mxu0 0
  %6775 = vmatpush1.bf16.xpose.msra.mxu0 %v6737
  %6776 = vmatprep.subr.bf16.mxu0 0
  %6777 = vmatpush1.bf16.xpose.msra.mxu0 %v6740
  %6778 = vmatprep.subr.bf16.mxu0 0
  %6779 = vmatpush1.bf16.xpose.msra.mxu0 %v6743
  %6780 = vmatprep.subr.bf16.mxu0 0
  %6781 = vmatpush1.bf16.xpose.msra.mxu0 %v6746
  %6782 = vmatprep.subr.bf16.mxu0 0
  %6783 = vmatpush1.bf16.xpose.msra.mxu0 %v6749
  %6784 = vmatprep.subr.bf16.mxu0 0
  %6785 = vmatpush1.bf16.xpose.msra.mxu0 %v6752
  %6786 = vmatprep.mubr.bf16.mxu0 0
  %6787 = vmatmul.mubr.bf16.gmra.mrb[0].mxu0 %v6659
  %v6788 = vpop.f32.mrb[0].mxu0
  %v6789 = vadd.f32 %v2471, %v6788
  %v6790 = vpop.f32.mrb[0].mxu0
  %v6791 = vadd.f32 %v2472, %v6790
  %v6792 = vpop.f32.mrb[0].mxu0
  %v6793 = vadd.f32 %v2473, %v6792
  %v6794 = vpop.f32.mrb[0].mxu0
  %v6795 = vadd.f32 %v2474, %v6794
  %6796 = vmatprep.mubr.bf16.mxu0 0
  %6797 = vmatmul.mubr.bf16.gmra.mrb[0].mxu0 %v6662
  %v6798 = vpop.f32.mrb[0].mxu0
  %v6799 = vadd.f32 %v2475, %v6798
  %v6800 = vpop.f32.mrb[0].mxu0
  %v6801 = vadd.f32 %v2476, %v6800
  %v6802 = vpop.f32.mrb[0].mxu0
  %v6803 = vadd.f32 %v2477, %v6802
  %v6804 = vpop.f32.mrb[0].mxu0
  %v6805 = vadd.f32 %v2478, %v6804
  %6806 = vmatprep.mubr.bf16.mxu0 0
  %6807 = vmatmul.mubr.bf16.gmra.mrb[0].mxu0 %v6665
  %v6808 = vpop.f32.mrb[0].mxu0
  %v6809 = vadd.f32 %v2479, %v6808
  %v6810 = vpop.f32.mrb[0].mxu0
  %v6811 = vadd.f32 %v2480, %v6810
  %v6812 = vpop.f32.mrb[0].mxu0
  %v6813 = vadd.f32 %v2481, %v6812
  %v6814 = vpop.f32.mrb[0].mxu0
  %v6815 = vadd.f32 %v2482, %v6814
  %6816 = vmatprep.mubr.bf16.mxu0 0
  %6817 = vmatmul.mubr.bf16.gmra.mrb[0].mxu0 %v6668
  %v6818 = vpop.f32.mrb[0].mxu0
  %v6819 = vadd.f32 %v2483, %v6818
  %v6820 = vpop.f32.mrb[0].mxu0
  %v6821 = vadd.f32 %v2484, %v6820
  %v6822 = vpop.f32.mrb[0].mxu0
  %v6823 = vadd.f32 %v2485, %v6822
  %v6824 = vpop.f32.mrb[0].mxu0
  %v6825 = vadd.f32 %v2486, %v6824
  %6826 = vmatprep.mubr.bf16.mxu0 0
  %6827 = vmatmul.mubr.bf16.gmra.mrb[0].mxu0 %v6671
  %v6828 = vpop.f32.mrb[0].mxu0
  %v6829 = vadd.f32 %v2487, %v6828
  %v6830 = vpop.f32.mrb[0].mxu0
  %v6831 = vadd.f32 %v2488, %v6830
  %v6832 = vpop.f32.mrb[0].mxu0
  %v6833 = vadd.f32 %v2489, %v6832
  %v6834 = vpop.f32.mrb[0].mxu0
  %v6835 = vadd.f32 %v2490, %v6834
  %6836 = vmatprep.mubr.bf16.mxu0 0
  %6837 = vmatmul.mubr.bf16.gmra.mrb[0].mxu0 %v6674
  %v6838 = vpop.f32.mrb[0].mxu0
  %v6839 = vadd.f32 %v2491, %v6838
  %v6840 = vpop.f32.mrb[0].mxu0
  %v6841 = vadd.f32 %v2492, %v6840
  %v6842 = vpop.f32.mrb[0].mxu0
  %v6843 = vadd.f32 %v2493, %v6842
  %v6844 = vpop.f32.mrb[0].mxu0
  %v6845 = vadd.f32 %v2494, %v6844
  %6846 = vmatprep.mubr.bf16.mxu0 0
  %6847 = vmatmul.mubr.bf16.gmra.mrb[0].mxu0 %v6677
  %v6848 = vpop.f32.mrb[0].mxu0
  %v6849 = vadd.f32 %v2495, %v6848
  %v6850 = vpop.f32.mrb[0].mxu0
  %v6851 = vadd.f32 %v2496, %v6850
  %v6852 = vpop.f32.mrb[0].mxu0
  %v6853 = vadd.f32 %v2497, %v6852
  %v6854 = vpop.f32.mrb[0].mxu0
  %v6855 = vadd.f32 %v2498, %v6854
  %6856 = vmatprep.mubr.bf16.mxu0 0
  %6857 = vmatmul.mubr.bf16.gmra.mrb[0].mxu0 %v6680
  %v6858 = vpop.f32.mrb[0].mxu0
  %v6859 = vadd.f32 %v2499, %v6858
  %v6860 = vpop.f32.mrb[0].mxu0
  %v6861 = vadd.f32 %v2500, %v6860
  %v6862 = vpop.f32.mrb[0].mxu0
  %v6863 = vadd.f32 %v2501, %v6862
  %v6864 = vpop.f32.mrb[0].mxu0
  %v6865 = vadd.f32 %v2502, %v6864
  %6866 = vmatprep.mubr.bf16.mxu0 0
  %6867 = vmatmul.mubr.bf16.gmra.mrb[0].mxu0 %v6683
  %v6868 = vpop.f32.mrb[0].mxu0
  %v6869 = vadd.f32 %v2503, %v6868
  %v6870 = vpop.f32.mrb[0].mxu0
  %v6871 = vadd.f32 %v2504, %v6870
  %v6872 = vpop.f32.mrb[0].mxu0
  %v6873 = vadd.f32 %v2505, %v6872
  %v6874 = vpop.f32.mrb[0].mxu0
  %v6875 = vadd.f32 %v2506, %v6874
  %6876 = vmatprep.mubr.bf16.mxu0 0
  %6877 = vmatmul.mubr.bf16.gmra.mrb[0].mxu0 %v6686
  %v6878 = vpop.f32.mrb[0].mxu0
  %v6879 = vadd.f32 %v2507, %v6878
  %v6880 = vpop.f32.mrb[0].mxu0
  %v6881 = vadd.f32 %v2508, %v6880
  %v6882 = vpop.f32.mrb[0].mxu0
  %v6883 = vadd.f32 %v2509, %v6882
  %v6884 = vpop.f32.mrb[0].mxu0
  %v6885 = vadd.f32 %v2510, %v6884
  %6886 = vmatprep.mubr.bf16.mxu0 0
  %6887 = vmatmul.mubr.bf16.gmra.mrb[0].mxu0 %v6689
  %v6888 = vpop.f32.mrb[0].mxu0
  %v6889 = vadd.f32 %v2511, %v6888
  %v6890 = vpop.f32.mrb[0].mxu0
  %v6891 = vadd.f32 %v2512, %v6890
  %v6892 = vpop.f32.mrb[0].mxu0
  %v6893 = vadd.f32 %v2513, %v6892
  %v6894 = vpop.f32.mrb[0].mxu0
  %v6895 = vadd.f32 %v2514, %v6894
  %6896 = vmatprep.mubr.bf16.mxu0 0
  %6897 = vmatmul.mubr.bf16.gmra.mrb[0].mxu0 %v6692
  %v6898 = vpop.f32.mrb[0].mxu0
  %v6899 = vadd.f32 %v2515, %v6898
  %v6900 = vpop.f32.mrb[0].mxu0
  %v6901 = vadd.f32 %v2516, %v6900
  %v6902 = vpop.f32.mrb[0].mxu0
  %v6903 = vadd.f32 %v2517, %v6902
  %v6904 = vpop.f32.mrb[0].mxu0
  %v6905 = vadd.f32 %v2518, %v6904
  %6906 = vmatprep.mubr.bf16.mxu0 0
  %6907 = vmatmul.mubr.bf16.gmra.mrb[0].mxu0 %v6695
  %v6908 = vpop.f32.mrb[0].mxu0
  %v6909 = vadd.f32 %v2519, %v6908
  %v6910 = vpop.f32.mrb[0].mxu0
  %v6911 = vadd.f32 %v2520, %v6910
  %v6912 = vpop.f32.mrb[0].mxu0
  %v6913 = vadd.f32 %v2521, %v6912
  %v6914 = vpop.f32.mrb[0].mxu0
  %v6915 = vadd.f32 %v2522, %v6914
  %6916 = vmatprep.mubr.bf16.mxu0 0
  %6917 = vmatmul.mubr.bf16.gmra.mrb[0].mxu0 %v6698
  %v6918 = vpop.f32.mrb[0].mxu0
  %v6919 = vadd.f32 %v2523, %v6918
  %v6920 = vpop.f32.mrb[0].mxu0
  %v6921 = vadd.f32 %v2524, %v6920
  %v6922 = vpop.f32.mrb[0].mxu0
  %v6923 = vadd.f32 %v2525, %v6922
  %v6924 = vpop.f32.mrb[0].mxu0
  %v6925 = vadd.f32 %v2526, %v6924
  %6926 = vmatprep.mubr.bf16.mxu0 0
  %6927 = vmatmul.mubr.bf16.gmra.mrb[0].mxu0 %v6701
  %v6928 = vpop.f32.mrb[0].mxu0
  %v6929 = vadd.f32 %v2527, %v6928
  %v6930 = vpop.f32.mrb[0].mxu0
  %v6931 = vadd.f32 %v2528, %v6930
  %v6932 = vpop.f32.mrb[0].mxu0
  %v6933 = vadd.f32 %v2529, %v6932
  %v6934 = vpop.f32.mrb[0].mxu0
  %v6935 = vadd.f32 %v2530, %v6934
  %6936 = vmatprep.mubr.bf16.mxu0 0
  %6937 = vmatmul.mubr.bf16.gmra.mrb[0].mxu0 %v6704
  %v6938 = vpop.f32.mrb[0].mxu0
  %v6939 = vadd.f32 %v2531, %v6938
  %v6940 = vpop.f32.mrb[0].mxu0
  %v6941 = vadd.f32 %v2532, %v6940
  %v6942 = vpop.f32.mrb[0].mxu0
  %v6943 = vadd.f32 %v2533, %v6942
  %v6944 = vpop.f32.mrb[0].mxu0
  %v6945 = vadd.f32 %v2534, %v6944
  %6946 = vdwg.mxu0
  %v6947 = vmax.f32 %v6789, %v6791
  %6948 = vmax.xlane.f32.xlu0 %v6947
  %v6949 = vpop.xlane.xlu0 %6948
  %v6950 = vmax.f32 %v6793, %v6795
  %6951 = vmax.xlane.f32.xlu0 %v6950
  %v6952 = vpop.xlane.xlu0 %6951
  %v6953 = vmax.f32 %v6799, %v6801
  %6954 = vmax.xlane.f32.xlu0 %v6953
  %v6955 = vpop.xlane.xlu0 %6954
  %v6956 = vmax.f32 %v6803, %v6805
  %6957 = vmax.xlane.f32.xlu0 %v6956
  %v6958 = vpop.xlane.xlu0 %6957
  %v6959 = vmax.f32 %v6809, %v6811
  %6960 = vmax.xlane.f32.xlu0 %v6959
  %v6961 = vpop.xlane.xlu0 %6960
  %v6962 = vmax.f32 %v6813, %v6815
  %6963 = vmax.xlane.f32.xlu0 %v6962
  %v6964 = vpop.xlane.xlu0 %6963
  %v6965 = vmax.f32 %v6819, %v6821
  %6966 = vmax.xlane.f32.xlu0 %v6965
  %v6967 = vpop.xlane.xlu0 %6966
  %v6968 = vmax.f32 %v6823, %v6825
  %6969 = vmax.xlane.f32.xlu0 %v6968
  %v6970 = vpop.xlane.xlu0 %6969
  %v6971 = vmax.f32 %v6829, %v6831
  %6972 = vmax.xlane.f32.xlu0 %v6971
  %v6973 = vpop.xlane.xlu0 %6972
  %v6974 = vmax.f32 %v6833, %v6835
  %6975 = vmax.xlane.f32.xlu0 %v6974
  %v6976 = vpop.xlane.xlu0 %6975
  %v6977 = vmax.f32 %v6839, %v6841
  %6978 = vmax.xlane.f32.xlu0 %v6977
  %v6979 = vpop.xlane.xlu0 %6978
  %v6980 = vmax.f32 %v6843, %v6845
  %6981 = vmax.xlane.f32.xlu0 %v6980
  %v6982 = vpop.xlane.xlu0 %6981
  %v6983 = vmax.f32 %v6849, %v6851
  %6984 = vmax.xlane.f32.xlu0 %v6983
  %v6985 = vpop.xlane.xlu0 %6984
  %v6986 = vmax.f32 %v6853, %v6855
  %6987 = vmax.xlane.f32.xlu0 %v6986
  %v6988 = vpop.xlane.xlu0 %6987
  %v6989 = vmax.f32 %v6859, %v6861
  %6990 = vmax.xlane.f32.xlu0 %v6989
  %v6991 = vpop.xlane.xlu0 %6990
  %v6992 = vmax.f32 %v6863, %v6865
  %6993 = vmax.xlane.f32.xlu0 %v6992
  %v6994 = vpop.xlane.xlu0 %6993
  %v6995 = vmax.f32 %v6869, %v6871
  %6996 = vmax.xlane.f32.xlu0 %v6995
  %v6997 = vpop.xlane.xlu0 %6996
  %v6998 = vmax.f32 %v6873, %v6875
  %6999 = vmax.xlane.f32.xlu0 %v6998
  %v7000 = vpop.xlane.xlu0 %6999
  %v7001 = vmax.f32 %v6879, %v6881
  %7002 = vmax.xlane.f32.xlu0 %v7001
  %v7003 = vpop.xlane.xlu0 %7002
  %v7004 = vmax.f32 %v6883, %v6885
  %7005 = vmax.xlane.f32.xlu0 %v7004
  %v7006 = vpop.xlane.xlu0 %7005
  %v7007 = vmax.f32 %v6889, %v6891
  %7008 = vmax.xlane.f32.xlu0 %v7007
  %v7009 = vpop.xlane.xlu0 %7008
  %v7010 = vmax.f32 %v6893, %v6895
  %7011 = vmax.xlane.f32.xlu0 %v7010
  %v7012 = vpop.xlane.xlu0 %7011
  %v7013 = vmax.f32 %v6899, %v6901
  %7014 = vmax.xlane.f32.xlu0 %v7013
  %v7015 = vpop.xlane.xlu0 %7014
  %v7016 = vmax.f32 %v6903, %v6905
  %7017 = vmax.xlane.f32.xlu0 %v7016
  %v7018 = vpop.xlane.xlu0 %7017
  %v7019 = vmax.f32 %v6909, %v6911
  %7020 = vmax.xlane.f32.xlu0 %v7019
  %v7021 = vpop.xlane.xlu0 %7020
  %v7022 = vmax.f32 %v6913, %v6915
  %7023 = vmax.xlane.f32.xlu0 %v7022
  %v7024 = vpop.xlane.xlu0 %7023
  %v7025 = vmax.f32 %v6919, %v6921
  %7026 = vmax.xlane.f32.xlu0 %v7025
  %v7027 = vpop.xlane.xlu0 %7026
  %v7028 = vmax.f32 %v6923, %v6925
  %7029 = vmax.xlane.f32.xlu0 %v7028
  %v7030 = vpop.xlane.xlu0 %7029
  %v7031 = vmax.f32 %v6929, %v6931
  %7032 = vmax.xlane.f32.xlu0 %v7031
  %v7033 = vpop.xlane.xlu0 %7032
  %v7034 = vmax.f32 %v6933, %v6935
  %7035 = vmax.xlane.f32.xlu0 %v7034
  %v7036 = vpop.xlane.xlu0 %7035
  %v7037 = vmax.f32 %v6939, %v6941
  %7038 = vmax.xlane.f32.xlu0 %v7037
  %v7039 = vpop.xlane.xlu0 %7038
  %v7040 = vmax.f32 %v6943, %v6945
  %7041 = vmax.xlane.f32.xlu0 %v7040
  %v7042 = vpop.xlane.xlu0 %7041
  %v7043 = vsub.f32 %v6789, %v6949
  %v7044 = vsub.f32 %v6791, %v6949
  %v7045 = vsub.f32 %v6793, %v6952
  %v7046 = vsub.f32 %v6795, %v6952
  %v7047 = vsub.f32 %v6799, %v6955
  %v7048 = vsub.f32 %v6801, %v6955
  %v7049 = vsub.f32 %v6803, %v6958
  %v7050 = vsub.f32 %v6805, %v6958
  %v7051 = vsub.f32 %v6809, %v6961
  %v7052 = vsub.f32 %v6811, %v6961
  %v7053 = vsub.f32 %v6813, %v6964
  %v7054 = vsub.f32 %v6815, %v6964
  %v7055 = vsub.f32 %v6819, %v6967
  %v7056 = vsub.f32 %v6821, %v6967
  %v7057 = vsub.f32 %v6823, %v6970
  %v7058 = vsub.f32 %v6825, %v6970
  %v7059 = vsub.f32 %v6829, %v6973
  %v7060 = vsub.f32 %v6831, %v6973
  %v7061 = vsub.f32 %v6833, %v6976
  %v7062 = vsub.f32 %v6835, %v6976
  %v7063 = vsub.f32 %v6839, %v6979
  %v7064 = vsub.f32 %v6841, %v6979
  %v7065 = vsub.f32 %v6843, %v6982
  %v7066 = vsub.f32 %v6845, %v6982
  %v7067 = vsub.f32 %v6849, %v6985
  %v7068 = vsub.f32 %v6851, %v6985
  %v7069 = vsub.f32 %v6853, %v6988
  %v7070 = vsub.f32 %v6855, %v6988
  %v7071 = vsub.f32 %v6859, %v6991
  %v7072 = vsub.f32 %v6861, %v6991
  %v7073 = vsub.f32 %v6863, %v6994
  %v7074 = vsub.f32 %v6865, %v6994
  %v7075 = vsub.f32 %v6869, %v6997
  %v7076 = vsub.f32 %v6871, %v6997
  %v7077 = vsub.f32 %v6873, %v7000
  %v7078 = vsub.f32 %v6875, %v7000
  %v7079 = vsub.f32 %v6879, %v7003
  %v7080 = vsub.f32 %v6881, %v7003
  %v7081 = vsub.f32 %v6883, %v7006
  %v7082 = vsub.f32 %v6885, %v7006
  %v7083 = vsub.f32 %v6889, %v7009
  %v7084 = vsub.f32 %v6891, %v7009
  %v7085 = vsub.f32 %v6893, %v7012
  %v7086 = vsub.f32 %v6895, %v7012
  %v7087 = vsub.f32 %v6899, %v7015
  %v7088 = vsub.f32 %v6901, %v7015
  %v7089 = vsub.f32 %v6903, %v7018
  %v7090 = vsub.f32 %v6905, %v7018
  %v7091 = vsub.f32 %v6909, %v7021
  %v7092 = vsub.f32 %v6911, %v7021
  %v7093 = vsub.f32 %v6913, %v7024
  %v7094 = vsub.f32 %v6915, %v7024
  %v7095 = vsub.f32 %v6919, %v7027
  %v7096 = vsub.f32 %v6921, %v7027
  %v7097 = vsub.f32 %v6923, %v7030
  %v7098 = vsub.f32 %v6925, %v7030
  %v7099 = vsub.f32 %v6929, %v7033
  %v7100 = vsub.f32 %v6931, %v7033
  %v7101 = vsub.f32 %v6933, %v7036
  %v7102 = vsub.f32 %v6935, %v7036
  %v7103 = vsub.f32 %v6939, %v7039
  %v7104 = vsub.f32 %v6941, %v7039
  %v7105 = vsub.f32 %v6943, %v7042
  %v7106 = vsub.f32 %v6945, %v7042
  %v7107 = vmul.f32 %v7043, 1.442695
  %v7108 = vpow.pop %v7107
  %v7109 = vmul.f32 %v7044, 1.442695
  %v7110 = vpow.pop %v7109
  %v7111 = vmul.f32 %v7045, 1.442695
  %v7112 = vpow.pop %v7111
  %v7113 = vmul.f32 %v7046, 1.442695
  %v7114 = vpow.pop %v7113
  %v7115 = vmul.f32 %v7047, 1.442695
  %v7116 = vpow.pop %v7115
  %v7117 = vmul.f32 %v7048, 1.442695
  %v7118 = vpow.pop %v7117
  %v7119 = vmul.f32 %v7049, 1.442695
  %v7120 = vpow.pop %v7119
  %v7121 = vmul.f32 %v7050, 1.442695
  %v7122 = vpow.pop %v7121
  %v7123 = vmul.f32 %v7051, 1.442695
  %v7124 = vpow.pop %v7123
  %v7125 = vmul.f32 %v7052, 1.442695
  %v7126 = vpow.pop %v7125
  %v7127 = vmul.f32 %v7053, 1.442695
  %v7128 = vpow.pop %v7127
  %v7129 = vmul.f32 %v7054, 1.442695
  %v7130 = vpow.pop %v7129
  %v7131 = vmul.f32 %v7055, 1.442695
  %v7132 = vpow.pop %v7131
  %v7133 = vmul.f32 %v7056, 1.442695
  %v7134 = vpow.pop %v7133
  %v7135 = vmul.f32 %v7057, 1.442695
  %v7136 = vpow.pop %v7135
  %v7137 = vmul.f32 %v7058, 1.442695
  %v7138 = vpow.pop %v7137
  %v7139 = vmul.f32 %v7059, 1.442695
  %v7140 = vpow.pop %v7139
  %v7141 = vmul.f32 %v7060, 1.442695
  %v7142 = vpow.pop %v7141
  %v7143 = vmul.f32 %v7061, 1.442695
  %v7144 = vpow.pop %v7143
  %v7145 = vmul.f32 %v7062, 1.442695
  %v7146 = vpow.pop %v7145
  %v7147 = vmul.f32 %v7063, 1.442695
  %v7148 = vpow.pop %v7147
  %v7149 = vmul.f32 %v7064, 1.442695
  %v7150 = vpow.pop %v7149
  %v7151 = vmul.f32 %v7065, 1.442695
  %v7152 = vpow.pop %v7151
  %v7153 = vmul.f32 %v7066, 1.442695
  %v7154 = vpow.pop %v7153
  %v7155 = vmul.f32 %v7067, 1.442695
  %v7156 = vpow.pop %v7155
  %v7157 = vmul.f32 %v7068, 1.442695
  %v7158 = vpow.pop %v7157
  %v7159 = vmul.f32 %v7069, 1.442695
  %v7160 = vpow.pop %v7159
  %v7161 = vmul.f32 %v7070, 1.442695
  %v7162 = vpow.pop %v7161
  %v7163 = vmul.f32 %v7071, 1.442695
  %v7164 = vpow.pop %v7163
  %v7165 = vmul.f32 %v7072, 1.442695
  %v7166 = vpow.pop %v7165
  %v7167 = vmul.f32 %v7073, 1.442695
  %v7168 = vpow.pop %v7167
  %v7169 = vmul.f32 %v7074, 1.442695
  %v7170 = vpow.pop %v7169
  %v7171 = vmul.f32 %v7075, 1.442695
  %v7172 = vpow.pop %v7171
  %v7173 = vmul.f32 %v7076, 1.442695
  %v7174 = vpow.pop %v7173
  %v7175 = vmul.f32 %v7077, 1.442695
  %v7176 = vpow.pop %v7175
  %v7177 = vmul.f32 %v7078, 1.442695
  %v7178 = vpow.pop %v7177
  %v7179 = vmul.f32 %v7079, 1.442695
  %v7180 = vpow.pop %v7179
  %v7181 = vmul.f32 %v7080, 1.442695
  %v7182 = vpow.pop %v7181
  %v7183 = vmul.f32 %v7081, 1.442695
  %v7184 = vpow.pop %v7183
  %v7185 = vmul.f32 %v7082, 1.442695
  %v7186 = vpow.pop %v7185
  %v7187 = vmul.f32 %v7083, 1.442695
  %v7188 = vpow.pop %v7187
  %v7189 = vmul.f32 %v7084, 1.442695
  %v7190 = vpow.pop %v7189
  %v7191 = vmul.f32 %v7085, 1.442695
  %v7192 = vpow.pop %v7191
  %v7193 = vmul.f32 %v7086, 1.442695
  %v7194 = vpow.pop %v7193
  %v7195 = vmul.f32 %v7087, 1.442695
  %v7196 = vpow.pop %v7195
  %v7197 = vmul.f32 %v7088, 1.442695
  %v7198 = vpow.pop %v7197
  %v7199 = vmul.f32 %v7089, 1.442695
  %v7200 = vpow.pop %v7199
  %v7201 = vmul.f32 %v7090, 1.442695
  %v7202 = vpow.pop %v7201
  %v7203 = vmul.f32 %v7091, 1.442695
  %v7204 = vpow.pop %v7203
  %v7205 = vmul.f32 %v7092, 1.442695
  %v7206 = vpow.pop %v7205
  %v7207 = vmul.f32 %v7093, 1.442695
  %v7208 = vpow.pop %v7207
  %v7209 = vmul.f32 %v7094, 1.442695
  %v7210 = vpow.pop %v7209
  %v7211 = vmul.f32 %v7095, 1.442695
  %v7212 = vpow.pop %v7211
  %v7213 = vmul.f32 %v7096, 1.442695
  %v7214 = vpow.pop %v7213
  %v7215 = vmul.f32 %v7097, 1.442695
  %v7216 = vpow.pop %v7215
  %v7217 = vmul.f32 %v7098, 1.442695
  %v7218 = vpow.pop %v7217
  %v7219 = vmul.f32 %v7099, 1.442695
  %v7220 = vpow.pop %v7219
  %v7221 = vmul.f32 %v7100, 1.442695
  %v7222 = vpow.pop %v7221
  %v7223 = vmul.f32 %v7101, 1.442695
  %v7224 = vpow.pop %v7223
  %v7225 = vmul.f32 %v7102, 1.442695
  %v7226 = vpow.pop %v7225
  %v7227 = vmul.f32 %v7103, 1.442695
  %v7228 = vpow.pop %v7227
  %v7229 = vmul.f32 %v7104, 1.442695
  %v7230 = vpow.pop %v7229
  %v7231 = vmul.f32 %v7105, 1.442695
  %v7232 = vpow.pop %v7231
  %v7233 = vmul.f32 %v7106, 1.442695
  %v7234 = vpow.pop %v7233
  %v7235 = vadd.f32 %v7108, %v7110
  %7236 = vadd.xlane.f32.xlu0 %v7235
  %v7237 = vpop.xlane.xlu0 %7236
  %v7238 = vadd.f32 %v7112, %v7114
  %7239 = vadd.xlane.f32.xlu0 %v7238
  %v7240 = vpop.xlane.xlu0 %7239
  %v7241 = vadd.f32 %v7116, %v7118
  %7242 = vadd.xlane.f32.xlu0 %v7241
  %v7243 = vpop.xlane.xlu0 %7242
  %v7244 = vadd.f32 %v7120, %v7122
  %7245 = vadd.xlane.f32.xlu0 %v7244
  %v7246 = vpop.xlane.xlu0 %7245
  %v7247 = vadd.f32 %v7124, %v7126
  %7248 = vadd.xlane.f32.xlu0 %v7247
  %v7249 = vpop.xlane.xlu0 %7248
  %v7250 = vadd.f32 %v7128, %v7130
  %7251 = vadd.xlane.f32.xlu0 %v7250
  %v7252 = vpop.xlane.xlu0 %7251
  %v7253 = vadd.f32 %v7132, %v7134
  %7254 = vadd.xlane.f32.xlu0 %v7253
  %v7255 = vpop.xlane.xlu0 %7254
  %v7256 = vadd.f32 %v7136, %v7138
  %7257 = vadd.xlane.f32.xlu0 %v7256
  %v7258 = vpop.xlane.xlu0 %7257
  %v7259 = vadd.f32 %v7140, %v7142
  %7260 = vadd.xlane.f32.xlu0 %v7259
  %v7261 = vpop.xlane.xlu0 %7260
  %v7262 = vadd.f32 %v7144, %v7146
  %7263 = vadd.xlane.f32.xlu0 %v7262
  %v7264 = vpop.xlane.xlu0 %7263
  %v7265 = vadd.f32 %v7148, %v7150
  %7266 = vadd.xlane.f32.xlu0 %v7265
  %v7267 = vpop.xlane.xlu0 %7266
  %v7268 = vadd.f32 %v7152, %v7154
  %7269 = vadd.xlane.f32.xlu0 %v7268
  %v7270 = vpop.xlane.xlu0 %7269
  %v7271 = vadd.f32 %v7156, %v7158
  %7272 = vadd.xlane.f32.xlu0 %v7271
  %v7273 = vpop.xlane.xlu0 %7272
  %v7274 = vadd.f32 %v7160, %v7162
  %7275 = vadd.xlane.f32.xlu0 %v7274
  %v7276 = vpop.xlane.xlu0 %7275
  %v7277 = vadd.f32 %v7164, %v7166
  %7278 = vadd.xlane.f32.xlu0 %v7277
  %v7279 = vpop.xlane.xlu0 %7278
  %v7280 = vadd.f32 %v7168, %v7170
  %7281 = vadd.xlane.f32.xlu0 %v7280
  %v7282 = vpop.xlane.xlu0 %7281
  %v7283 = vadd.f32 %v7172, %v7174
  %7284 = vadd.xlane.f32.xlu0 %v7283
  %v7285 = vpop.xlane.xlu0 %7284
  %v7286 = vadd.f32 %v7176, %v7178
  %7287 = vadd.xlane.f32.xlu0 %v7286
  %v7288 = vpop.xlane.xlu0 %7287
  %v7289 = vadd.f32 %v7180, %v7182
  %7290 = vadd.xlane.f32.xlu0 %v7289
  %v7291 = vpop.xlane.xlu0 %7290
  %v7292 = vadd.f32 %v7184, %v7186
  %7293 = vadd.xlane.f32.xlu0 %v7292
  %v7294 = vpop.xlane.xlu0 %7293
  %v7295 = vadd.f32 %v7188, %v7190
  %7296 = vadd.xlane.f32.xlu0 %v7295
  %v7297 = vpop.xlane.xlu0 %7296
  %v7298 = vadd.f32 %v7192, %v7194
  %7299 = vadd.xlane.f32.xlu0 %v7298
  %v7300 = vpop.xlane.xlu0 %7299
  %v7301 = vadd.f32 %v7196, %v7198
  %7302 = vadd.xlane.f32.xlu0 %v7301
  %v7303 = vpop.xlane.xlu0 %7302
  %v7304 = vadd.f32 %v7200, %v7202
  %7305 = vadd.xlane.f32.xlu0 %v7304
  %v7306 = vpop.xlane.xlu0 %7305
  %v7307 = vadd.f32 %v7204, %v7206
  %7308 = vadd.xlane.f32.xlu0 %v7307
  %v7309 = vpop.xlane.xlu0 %7308
  %v7310 = vadd.f32 %v7208, %v7210
  %7311 = vadd.xlane.f32.xlu0 %v7310
  %v7312 = vpop.xlane.xlu0 %7311
  %v7313 = vadd.f32 %v7212, %v7214
  %7314 = vadd.xlane.f32.xlu0 %v7313
  %v7315 = vpop.xlane.xlu0 %7314
  %v7316 = vadd.f32 %v7216, %v7218
  %7317 = vadd.xlane.f32.xlu0 %v7316
  %v7318 = vpop.xlane.xlu0 %7317
  %v7319 = vadd.f32 %v7220, %v7222
  %7320 = vadd.xlane.f32.xlu0 %v7319
  %v7321 = vpop.xlane.xlu0 %7320
  %v7322 = vadd.f32 %v7224, %v7226
  %7323 = vadd.xlane.f32.xlu0 %v7322
  %v7324 = vpop.xlane.xlu0 %7323
  %v7325 = vadd.f32 %v7228, %v7230
  %7326 = vadd.xlane.f32.xlu0 %v7325
  %v7327 = vpop.xlane.xlu0 %7326
  %v7328 = vadd.f32 %v7232, %v7234
  %7329 = vadd.xlane.f32.xlu0 %v7328
  %v7330 = vpop.xlane.xlu0 %7329
  %v7331 = vrcp.pop %v7237
  %v7332 = vrcp.pop %v7240
  %v7333 = vrcp.pop %v7243
  %v7334 = vrcp.pop %v7246
  %v7335 = vrcp.pop %v7249
  %v7336 = vrcp.pop %v7252
  %v7337 = vrcp.pop %v7255
  %v7338 = vrcp.pop %v7258
  %v7339 = vrcp.pop %v7261
  %v7340 = vrcp.pop %v7264
  %v7341 = vrcp.pop %v7267
  %v7342 = vrcp.pop %v7270
  %v7343 = vrcp.pop %v7273
  %v7344 = vrcp.pop %v7276
  %v7345 = vrcp.pop %v7279
  %v7346 = vrcp.pop %v7282
  %v7347 = vrcp.pop %v7285
  %v7348 = vrcp.pop %v7288
  %v7349 = vrcp.pop %v7291
  %v7350 = vrcp.pop %v7294
  %v7351 = vrcp.pop %v7297
  %v7352 = vrcp.pop %v7300
  %v7353 = vrcp.pop %v7303
  %v7354 = vrcp.pop %v7306
  %v7355 = vrcp.pop %v7309
  %v7356 = vrcp.pop %v7312
  %v7357 = vrcp.pop %v7315
  %v7358 = vrcp.pop %v7318
  %v7359 = vrcp.pop %v7321
  %v7360 = vrcp.pop %v7324
  %v7361 = vrcp.pop %v7327
  %v7362 = vrcp.pop %v7330
  %v7363 = vmul.f32 %v7108, %v7331
  %v7364 = vmul.f32 %v7110, %v7331
  %v7365 = vmul.f32 %v7112, %v7332
  %v7366 = vmul.f32 %v7114, %v7332
  %v7367 = vmul.f32 %v7116, %v7333
  %v7368 = vmul.f32 %v7118, %v7333
  %v7369 = vmul.f32 %v7120, %v7334
  %v7370 = vmul.f32 %v7122, %v7334
  %v7371 = vmul.f32 %v7124, %v7335
  %v7372 = vmul.f32 %v7126, %v7335
  %v7373 = vmul.f32 %v7128, %v7336
  %v7374 = vmul.f32 %v7130, %v7336
  %v7375 = vmul.f32 %v7132, %v7337
  %v7376 = vmul.f32 %v7134, %v7337
  %v7377 = vmul.f32 %v7136, %v7338
  %v7378 = vmul.f32 %v7138, %v7338
  %v7379 = vmul.f32 %v7140, %v7339
  %v7380 = vmul.f32 %v7142, %v7339
  %v7381 = vmul.f32 %v7144, %v7340
  %v7382 = vmul.f32 %v7146, %v7340
  %v7383 = vmul.f32 %v7148, %v7341
  %v7384 = vmul.f32 %v7150, %v7341
  %v7385 = vmul.f32 %v7152, %v7342
  %v7386 = vmul.f32 %v7154, %v7342
  %v7387 = vmul.f32 %v7156, %v7343
  %v7388 = vmul.f32 %v7158, %v7343
  %v7389 = vmul.f32 %v7160, %v7344
  %v7390 = vmul.f32 %v7162, %v7344
  %v7391 = vmul.f32 %v7164, %v7345
  %v7392 = vmul.f32 %v7166, %v7345
  %v7393 = vmul.f32 %v7168, %v7346
  %v7394 = vmul.f32 %v7170, %v7346
  %v7395 = vmul.f32 %v7172, %v7347
  %v7396 = vmul.f32 %v7174, %v7347
  %v7397 = vmul.f32 %v7176, %v7348
  %v7398 = vmul.f32 %v7178, %v7348
  %v7399 = vmul.f32 %v7180, %v7349
  %v7400 = vmul.f32 %v7182, %v7349
  %v7401 = vmul.f32 %v7184, %v7350
  %v7402 = vmul.f32 %v7186, %v7350
  %v7403 = vmul.f32 %v7188, %v7351
  %v7404 = vmul.f32 %v7190, %v7351
  %v7405 = vmul.f32 %v7192, %v7352
  %v7406 = vmul.f32 %v7194, %v7352
  %v7407 = vmul.f32 %v7196, %v7353
  %v7408 = vmul.f32 %v7198, %v7353
  %v7409 = vmul.f32 %v7200, %v7354
  %v7410 = vmul.f32 %v7202, %v7354
  %v7411 = vmul.f32 %v7204, %v7355
  %v7412 = vmul.f32 %v7206, %v7355
  %v7413 = vmul.f32 %v7208, %v7356
  %v7414 = vmul.f32 %v7210, %v7356
  %v7415 = vmul.f32 %v7212, %v7357
  %v7416 = vmul.f32 %v7214, %v7357
  %v7417 = vmul.f32 %v7216, %v7358
  %v7418 = vmul.f32 %v7218, %v7358
  %v7419 = vmul.f32 %v7220, %v7359
  %v7420 = vmul.f32 %v7222, %v7359
  %v7421 = vmul.f32 %v7224, %v7360
  %v7422 = vmul.f32 %v7226, %v7360
  %v7423 = vmul.f32 %v7228, %v7361
  %v7424 = vmul.f32 %v7230, %v7361
  %v7425 = vmul.f32 %v7232, %v7362
  %v7426 = vmul.f32 %v7234, %v7362
  %v7427 = vpack.c.bf16 %v7365, %v7363
  %v7428 = vpack.c.bf16 %v7366, %v7364
  %v7429 = vpack.c.bf16 %v7369, %v7367
  %v7430 = vpack.c.bf16 %v7370, %v7368
  %v7431 = vpack.c.bf16 %v7373, %v7371
  %v7432 = vpack.c.bf16 %v7374, %v7372
  %v7433 = vpack.c.bf16 %v7377, %v7375
  %v7434 = vpack.c.bf16 %v7378, %v7376
  %v7435 = vpack.c.bf16 %v7381, %v7379
  %v7436 = vpack.c.bf16 %v7382, %v7380
  %v7437 = vpack.c.bf16 %v7385, %v7383
  %v7438 = vpack.c.bf16 %v7386, %v7384
  %v7439 = vpack.c.bf16 %v7389, %v7387
  %v7440 = vpack.c.bf16 %v7390, %v7388
  %v7441 = vpack.c.bf16 %v7393, %v7391
  %v7442 = vpack.c.bf16 %v7394, %v7392
  %v7443 = vpack.c.bf16 %v7397, %v7395
  %v7444 = vpack.c.bf16 %v7398, %v7396
  %v7445 = vpack.c.bf16 %v7401, %v7399
  %v7446 = vpack.c.bf16 %v7402, %v7400
  %v7447 = vpack.c.bf16 %v7405, %v7403
  %v7448 = vpack.c.bf16 %v7406, %v7404
  %v7449 = vpack.c.bf16 %v7409, %v7407
  %v7450 = vpack.c.bf16 %v7410, %v7408
  %v7451 = vpack.c.bf16 %v7413, %v7411
  %v7452 = vpack.c.bf16 %v7414, %v7412
  %v7453 = vpack.c.bf16 %v7417, %v7415
  %v7454 = vpack.c.bf16 %v7418, %v7416
  %v7455 = vpack.c.bf16 %v7421, %v7419
  %v7456 = vpack.c.bf16 %v7422, %v7420
  %v7457 = vpack.c.bf16 %v7425, %v7423
  %v7458 = vpack.c.bf16 %v7426, %v7424
  %7475 = vrot.lane.b32.xlu0 %v2408, 64
  %v7476 = vpop.permute.xlu0 %7475
  %7477 = vrot.lane.b32.xlu0 %v2410, 64
  %v7478 = vpop.permute.xlu0 %7477
  %7479 = vrot.lane.b32.xlu0 %v2412, 64
  %v7480 = vpop.permute.xlu0 %7479
  %7481 = vrot.lane.b32.xlu0 %v2414, 64
  %v7482 = vpop.permute.xlu0 %7481
  %7483 = vrot.lane.b32.xlu0 %v2416, 64
  %v7484 = vpop.permute.xlu0 %7483
  %7485 = vrot.lane.b32.xlu0 %v2418, 64
  %v7486 = vpop.permute.xlu0 %7485
  %7487 = vrot.lane.b32.xlu0 %v2420, 64
  %v7488 = vpop.permute.xlu0 %7487
  %7489 = vrot.lane.b32.xlu0 %v2422, 64
  %v7490 = vpop.permute.xlu0 %7489
  %7491 = vrot.lane.b32.xlu0 %v2424, 64
  %v7492 = vpop.permute.xlu0 %7491
  %7493 = vrot.lane.b32.xlu0 %v2426, 64
  %v7494 = vpop.permute.xlu0 %7493
  %7495 = vrot.lane.b32.xlu0 %v2428, 64
  %v7496 = vpop.permute.xlu0 %7495
  %7497 = vrot.lane.b32.xlu0 %v2430, 64
  %v7498 = vpop.permute.xlu0 %7497
  %7499 = vrot.lane.b32.xlu0 %v2432, 64
  %v7500 = vpop.permute.xlu0 %7499
  %7501 = vrot.lane.b32.xlu0 %v2434, 64
  %v7502 = vpop.permute.xlu0 %7501
  %7503 = vrot.lane.b32.xlu0 %v2436, 64
  %v7504 = vpop.permute.xlu0 %7503
  %7505 = vrot.lane.b32.xlu0 %v2438, 64
  %v7506 = vpop.permute.xlu0 %7505
  %7523 = vmatprep.subr.bf16.mxu0 0
  %7524 = vmatpush1.bf16.msra.mxu0 %v7476
  %7525 = vmatprep.subr.bf16.mxu0 0
  %7526 = vmatpush1.bf16.msra.mxu0 %v7478
  %7527 = vmatprep.subr.bf16.mxu0 0
  %7528 = vmatpush1.bf16.msra.mxu0 %v7480
  %7529 = vmatprep.subr.bf16.mxu0 0
  %7530 = vmatpush1.bf16.msra.mxu0 %v7482
  %7531 = vmatprep.subr.bf16.mxu0 0
  %7532 = vmatpush1.bf16.msra.mxu0 %v7484
  %7533 = vmatprep.subr.bf16.mxu0 0
  %7534 = vmatpush1.bf16.msra.mxu0 %v7486
  %7535 = vmatprep.subr.bf16.mxu0 0
  %7536 = vmatpush1.bf16.msra.mxu0 %v7488
  %7537 = vmatprep.subr.bf16.mxu0 0
  %7538 = vmatpush1.bf16.msra.mxu0 %v7490
  %7539 = vmatprep.subr.bf16.mxu0 0
  %7540 = vmatpush1.bf16.msra.mxu0 %v7492
  %7541 = vmatprep.subr.bf16.mxu0 0
  %7542 = vmatpush1.bf16.msra.mxu0 %v7494
  %7543 = vmatprep.subr.bf16.mxu0 0
  %7544 = vmatpush1.bf16.msra.mxu0 %v7496
  %7545 = vmatprep.subr.bf16.mxu0 0
  %7546 = vmatpush1.bf16.msra.mxu0 %v7498
  %7547 = vmatprep.subr.bf16.mxu0 0
  %7548 = vmatpush1.bf16.msra.mxu0 %v7500
  %7549 = vmatprep.subr.bf16.mxu0 0
  %7550 = vmatpush1.bf16.msra.mxu0 %v7502
  %7551 = vmatprep.subr.bf16.mxu0 0
  %7552 = vmatpush1.bf16.msra.mxu0 %v7504
  %7553 = vmatprep.subr.bf16.mxu0 0
  %7554 = vmatpush1.bf16.msra.mxu0 %v7506
  %7555 = vmatprep.mubr.bf16.mxu0 %v7428
  %7556 = vmatmul.mubr.bf16.gmra.mrb[0].mxu0 %v7427
  %v7557 = vpop.f32.mrb[0].mxu0
  %v7558 = vadd.f32 0.0, %v7557
  %v7559 = vpop.f32.mrb[0].mxu0
  %v7560 = vpop.f32.mrb[0].mxu0
  %v7561 = vadd.f32 0.0, %v7560
  %v7562 = vpop.f32.mrb[0].mxu0
  %7563 = vmatprep.mubr.bf16.mxu0 %v7430
  %7564 = vmatmul.mubr.bf16.gmra.mrb[0].mxu0 %v7429
  %v7565 = vpop.f32.mrb[0].mxu0
  %v7566 = vadd.f32 0.0, %v7565
  %v7567 = vpop.f32.mrb[0].mxu0
  %v7568 = vpop.f32.mrb[0].mxu0
  %v7569 = vadd.f32 0.0, %v7568
  %v7570 = vpop.f32.mrb[0].mxu0
  %7571 = vmatprep.mubr.bf16.mxu0 %v7432
  %7572 = vmatmul.mubr.bf16.gmra.mrb[0].mxu0 %v7431
  %v7573 = vpop.f32.mrb[0].mxu0
  %v7574 = vadd.f32 0.0, %v7573
  %v7575 = vpop.f32.mrb[0].mxu0
  %v7576 = vpop.f32.mrb[0].mxu0
  %v7577 = vadd.f32 0.0, %v7576
  %v7578 = vpop.f32.mrb[0].mxu0
  %7579 = vmatprep.mubr.bf16.mxu0 %v7434
  %7580 = vmatmul.mubr.bf16.gmra.mrb[0].mxu0 %v7433
  %v7581 = vpop.f32.mrb[0].mxu0
  %v7582 = vadd.f32 0.0, %v7581
  %v7583 = vpop.f32.mrb[0].mxu0
  %v7584 = vpop.f32.mrb[0].mxu0
  %v7585 = vadd.f32 0.0, %v7584
  %v7586 = vpop.f32.mrb[0].mxu0
  %7587 = vmatprep.mubr.bf16.mxu0 %v7436
  %7588 = vmatmul.mubr.bf16.gmra.mrb[0].mxu0 %v7435
  %v7589 = vpop.f32.mrb[0].mxu0
  %v7590 = vadd.f32 0.0, %v7589
  %v7591 = vpop.f32.mrb[0].mxu0
  %v7592 = vpop.f32.mrb[0].mxu0
  %v7593 = vadd.f32 0.0, %v7592
  %v7594 = vpop.f32.mrb[0].mxu0
  %7595 = vmatprep.mubr.bf16.mxu0 %v7438
  %7596 = vmatmul.mubr.bf16.gmra.mrb[0].mxu0 %v7437
  %v7597 = vpop.f32.mrb[0].mxu0
  %v7598 = vadd.f32 0.0, %v7597
  %v7599 = vpop.f32.mrb[0].mxu0
  %v7600 = vpop.f32.mrb[0].mxu0
  %v7601 = vadd.f32 0.0, %v7600
  %v7602 = vpop.f32.mrb[0].mxu0
  %7603 = vmatprep.mubr.bf16.mxu0 %v7440
  %7604 = vmatmul.mubr.bf16.gmra.mrb[0].mxu0 %v7439
  %v7605 = vpop.f32.mrb[0].mxu0
  %v7606 = vadd.f32 0.0, %v7605
  %v7607 = vpop.f32.mrb[0].mxu0
  %v7608 = vpop.f32.mrb[0].mxu0
  %v7609 = vadd.f32 0.0, %v7608
  %v7610 = vpop.f32.mrb[0].mxu0
  %7611 = vmatprep.mubr.bf16.mxu0 %v7442
  %7612 = vmatmul.mubr.bf16.gmra.mrb[0].mxu0 %v7441
  %v7613 = vpop.f32.mrb[0].mxu0
  %v7614 = vadd.f32 0.0, %v7613
  %v7615 = vpop.f32.mrb[0].mxu0
  %v7616 = vpop.f32.mrb[0].mxu0
  %v7617 = vadd.f32 0.0, %v7616
  %v7618 = vpop.f32.mrb[0].mxu0
  %7619 = vmatprep.mubr.bf16.mxu0 %v7444
  %7620 = vmatmul.mubr.bf16.gmra.mrb[0].mxu0 %v7443
  %v7621 = vpop.f32.mrb[0].mxu0
  %v7622 = vadd.f32 0.0, %v7621
  %v7623 = vpop.f32.mrb[0].mxu0
  %v7624 = vpop.f32.mrb[0].mxu0
  %v7625 = vadd.f32 0.0, %v7624
  %v7626 = vpop.f32.mrb[0].mxu0
  %7627 = vmatprep.mubr.bf16.mxu0 %v7446
  %7628 = vmatmul.mubr.bf16.gmra.mrb[0].mxu0 %v7445
  %v7629 = vpop.f32.mrb[0].mxu0
  %v7630 = vadd.f32 0.0, %v7629
  %v7631 = vpop.f32.mrb[0].mxu0
  %v7632 = vpop.f32.mrb[0].mxu0
  %v7633 = vadd.f32 0.0, %v7632
  %v7634 = vpop.f32.mrb[0].mxu0
  %7635 = vmatprep.mubr.bf16.mxu0 %v7448
  %7636 = vmatmul.mubr.bf16.gmra.mrb[0].mxu0 %v7447
  %v7637 = vpop.f32.mrb[0].mxu0
  %v7638 = vadd.f32 0.0, %v7637
  %v7639 = vpop.f32.mrb[0].mxu0
  %v7640 = vpop.f32.mrb[0].mxu0
  %v7641 = vadd.f32 0.0, %v7640
  %v7642 = vpop.f32.mrb[0].mxu0
  %7643 = vmatprep.mubr.bf16.mxu0 %v7450
  %7644 = vmatmul.mubr.bf16.gmra.mrb[0].mxu0 %v7449
  %v7645 = vpop.f32.mrb[0].mxu0
  %v7646 = vadd.f32 0.0, %v7645
  %v7647 = vpop.f32.mrb[0].mxu0
  %v7648 = vpop.f32.mrb[0].mxu0
  %v7649 = vadd.f32 0.0, %v7648
  %v7650 = vpop.f32.mrb[0].mxu0
  %7651 = vmatprep.mubr.bf16.mxu0 %v7452
  %7652 = vmatmul.mubr.bf16.gmra.mrb[0].mxu0 %v7451
  %v7653 = vpop.f32.mrb[0].mxu0
  %v7654 = vadd.f32 0.0, %v7653
  %v7655 = vpop.f32.mrb[0].mxu0
  %v7656 = vpop.f32.mrb[0].mxu0
  %v7657 = vadd.f32 0.0, %v7656
  %v7658 = vpop.f32.mrb[0].mxu0
  %7659 = vmatprep.mubr.bf16.mxu0 %v7454
  %7660 = vmatmul.mubr.bf16.gmra.mrb[0].mxu0 %v7453
  %v7661 = vpop.f32.mrb[0].mxu0
  %v7662 = vadd.f32 0.0, %v7661
  %v7663 = vpop.f32.mrb[0].mxu0
  %v7664 = vpop.f32.mrb[0].mxu0
  %v7665 = vadd.f32 0.0, %v7664
  %v7666 = vpop.f32.mrb[0].mxu0
  %7667 = vmatprep.mubr.bf16.mxu0 %v7456
  %7668 = vmatmul.mubr.bf16.gmra.mrb[0].mxu0 %v7455
  %v7669 = vpop.f32.mrb[0].mxu0
  %v7670 = vadd.f32 0.0, %v7669
  %v7671 = vpop.f32.mrb[0].mxu0
  %v7672 = vpop.f32.mrb[0].mxu0
  %v7673 = vadd.f32 0.0, %v7672
  %v7674 = vpop.f32.mrb[0].mxu0
  %7675 = vmatprep.mubr.bf16.mxu0 %v7458
  %7676 = vmatmul.mubr.bf16.gmra.mrb[0].mxu0 %v7457
  %v7677 = vpop.f32.mrb[0].mxu0
  %v7678 = vadd.f32 0.0, %v7677
  %v7679 = vpop.f32.mrb[0].mxu0
  %v7680 = vpop.f32.mrb[0].mxu0
  %v7681 = vadd.f32 0.0, %v7680
  %v7682 = vpop.f32.mrb[0].mxu0
  %7683 = vdwg.mxu0
  %v7684 = vpack.c.bf16 %v7561, %v7558
  %v7685 = vpack.c.bf16 %v7569, %v7566
  %v7686 = vpack.c.bf16 %v7577, %v7574
  %v7687 = vpack.c.bf16 %v7585, %v7582
  %v7688 = vpack.c.bf16 %v7593, %v7590
  %v7689 = vpack.c.bf16 %v7601, %v7598
  %v7690 = vpack.c.bf16 %v7609, %v7606
  %v7691 = vpack.c.bf16 %v7617, %v7614
  %v7692 = vpack.c.bf16 %v7625, %v7622
  %v7693 = vpack.c.bf16 %v7633, %v7630
  %v7694 = vpack.c.bf16 %v7641, %v7638
  %v7695 = vpack.c.bf16 %v7649, %v7646
  %v7696 = vpack.c.bf16 %v7657, %v7654
  %v7697 = vpack.c.bf16 %v7665, %v7662
  %v7698 = vpack.c.bf16 %v7673, %v7670
  %v7699 = vpack.c.bf16 %v7681, %v7678
  %s7700 = scalar_lea.vmem %s13, 192
  %v7701 = vld [vmem:[%s7700] sm:$0xff]
  %v7702 = vld [vmem:[%s7700 + $0x8] sm:$0xff]
  %v7703 = vld [vmem:[%s7700 + $0x10] sm:$0xff]
  %v7704 = vld [vmem:[%s7700 + $0x18] sm:$0xff]
  %v7705 = vld [vmem:[%s7700 + $0x20] sm:$0xff]
  %v7706 = vld [vmem:[%s7700 + $0x28] sm:$0xff]
  %v7707 = vld [vmem:[%s7700 + $0x30] sm:$0xff]
  %v7708 = vld [vmem:[%s7700 + $0x38] sm:$0xff]
  %v7717 = vunpack.c.l.b16 %v7701
  %v7718 = vunpack.c.h.b16 %v7701
  %v7719 = vunpack.c.l.b16 %v7702
  %v7720 = vunpack.c.h.b16 %v7702
  %v7721 = vunpack.c.l.b16 %v7703
  %v7722 = vunpack.c.h.b16 %v7703
  %v7723 = vunpack.c.l.b16 %v7704
  %v7724 = vunpack.c.h.b16 %v7704
  %v7725 = vunpack.c.l.b16 %v7705
  %v7726 = vunpack.c.h.b16 %v7705
  %v7727 = vunpack.c.l.b16 %v7706
  %v7728 = vunpack.c.h.b16 %v7706
  %v7729 = vunpack.c.l.b16 %v7707
  %v7730 = vunpack.c.h.b16 %v7707
  %v7731 = vunpack.c.l.b16 %v7708
  %v7732 = vunpack.c.h.b16 %v7708
  %v7733 = vpack.c.b16 %v7719, %v7717
  %v7734 = vpack.c.b16 %v7720, %v7718
  %v7735 = vpack.c.b16 %v7723, %v7721
  %v7736 = vpack.c.b16 %v7724, %v7722
  %v7737 = vpack.c.b16 %v7727, %v7725
  %v7738 = vpack.c.b16 %v7728, %v7726
  %v7739 = vpack.c.b16 %v7731, %v7729
  %v7740 = vpack.c.b16 %v7732, %v7730
  %v7750 = vsel %vm245, %v7684, 0
  %v7753 = vsel %vm245, %v7685, 0
  %v7756 = vsel %vm245, %v7686, 0
  %v7759 = vsel %vm245, %v7687, 0
  %v7762 = vsel %vm245, %v7688, 0
  %v7765 = vsel %vm245, %v7689, 0
  %v7768 = vsel %vm245, %v7690, 0
  %v7771 = vsel %vm245, %v7691, 0
  %v7774 = vsel %vm245, %v7692, 0
  %v7777 = vsel %vm245, %v7693, 0
  %v7780 = vsel %vm245, %v7694, 0
  %v7783 = vsel %vm245, %v7695, 0
  %v7786 = vsel %vm245, %v7696, 0
  %v7789 = vsel %vm245, %v7697, 0
  %v7792 = vsel %vm245, %v7698, 0
  %v7795 = vsel %vm245, %v7699, 0
  %7797 = vmatprep.subr.bf16.mxu0 %v7734
  %7798 = vmatpush1.bf16.msra.mxu0 %v7733
  %7799 = vmatprep.subr.bf16.mxu0 %v7736
  %7800 = vmatpush1.bf16.msra.mxu0 %v7735
  %7801 = vmatprep.subr.bf16.mxu0 %v7738
  %7802 = vmatpush1.bf16.msra.mxu0 %v7737
  %7803 = vmatprep.subr.bf16.mxu0 %v7740
  %7804 = vmatpush1.bf16.msra.mxu0 %v7739
  %7805 = vmatprep.subr.bf16.mxu0 0
  %7806 = vmatpush1.bf16.msra.mxu0 0
  %7807 = vmatprep.subr.bf16.mxu0 0
  %7808 = vmatpush1.bf16.msra.mxu0 0
  %7809 = vmatprep.subr.bf16.mxu0 0
  %7810 = vmatpush1.bf16.msra.mxu0 0
  %7811 = vmatprep.subr.bf16.mxu0 0
  %7812 = vmatpush1.bf16.msra.mxu0 0
  %7813 = vmatprep.subr.bf16.mxu0 0
  %7814 = vmatpush1.bf16.msra.mxu0 0
  %7815 = vmatprep.subr.bf16.mxu0 0
  %7816 = vmatpush1.bf16.msra.mxu0 0
  %7817 = vmatprep.subr.bf16.mxu0 0
  %7818 = vmatpush1.bf16.msra.mxu0 0
  %7819 = vmatprep.subr.bf16.mxu0 0
  %7820 = vmatpush1.bf16.msra.mxu0 0
  %7821 = vmatprep.subr.bf16.mxu0 0
  %7822 = vmatpush1.bf16.msra.mxu0 0
  %7823 = vmatprep.subr.bf16.mxu0 0
  %7824 = vmatpush1.bf16.msra.mxu0 0
  %7825 = vmatprep.subr.bf16.mxu0 0
  %7826 = vmatpush1.bf16.msra.mxu0 0
  %7827 = vmatprep.subr.bf16.mxu0 0
  %7828 = vmatpush1.bf16.msra.mxu0 0
  %7829 = vmatprep.mubr.bf16.mxu0 0
  %7830 = vmatmul.mubr.bf16.gmra.mrb[0].mxu0 %v7750
  %v7831 = vpop.f32.mrb[0].mxu0
  %v7832 = vadd.f32 0.0, %v7831
  %v7833 = vpop.f32.mrb[0].mxu0
  %v7834 = vadd.f32 0.0, %v7833
  %v7835 = vpop.f32.mrb[0].mxu0
  %v7836 = vadd.f32 0.0, %v7835
  %v7837 = vpop.f32.mrb[0].mxu0
  %v7838 = vadd.f32 0.0, %v7837
  %7839 = vmatprep.mubr.bf16.mxu0 0
  %7840 = vmatmul.mubr.bf16.gmra.mrb[0].mxu0 %v7753
  %v7841 = vpop.f32.mrb[0].mxu0
  %v7842 = vadd.f32 0.0, %v7841
  %v7843 = vpop.f32.mrb[0].mxu0
  %v7844 = vadd.f32 0.0, %v7843
  %v7845 = vpop.f32.mrb[0].mxu0
  %v7846 = vadd.f32 0.0, %v7845
  %v7847 = vpop.f32.mrb[0].mxu0
  %v7848 = vadd.f32 0.0, %v7847
  %7849 = vmatprep.mubr.bf16.mxu0 0
  %7850 = vmatmul.mubr.bf16.gmra.mrb[0].mxu0 %v7756
  %v7851 = vpop.f32.mrb[0].mxu0
  %v7852 = vadd.f32 0.0, %v7851
  %v7853 = vpop.f32.mrb[0].mxu0
  %v7854 = vadd.f32 0.0, %v7853
  %v7855 = vpop.f32.mrb[0].mxu0
  %v7856 = vadd.f32 0.0, %v7855
  %v7857 = vpop.f32.mrb[0].mxu0
  %v7858 = vadd.f32 0.0, %v7857
  %7859 = vmatprep.mubr.bf16.mxu0 0
  %7860 = vmatmul.mubr.bf16.gmra.mrb[0].mxu0 %v7759
  %v7861 = vpop.f32.mrb[0].mxu0
  %v7862 = vadd.f32 0.0, %v7861
  %v7863 = vpop.f32.mrb[0].mxu0
  %v7864 = vadd.f32 0.0, %v7863
  %v7865 = vpop.f32.mrb[0].mxu0
  %v7866 = vadd.f32 0.0, %v7865
  %v7867 = vpop.f32.mrb[0].mxu0
  %v7868 = vadd.f32 0.0, %v7867
  %7869 = vmatprep.mubr.bf16.mxu0 0
  %7870 = vmatmul.mubr.bf16.gmra.mrb[0].mxu0 %v7762
  %v7871 = vpop.f32.mrb[0].mxu0
  %v7872 = vadd.f32 0.0, %v7871
  %v7873 = vpop.f32.mrb[0].mxu0
  %v7874 = vadd.f32 0.0, %v7873
  %v7875 = vpop.f32.mrb[0].mxu0
  %v7876 = vadd.f32 0.0, %v7875
  %v7877 = vpop.f32.mrb[0].mxu0
  %v7878 = vadd.f32 0.0, %v7877
  %7879 = vmatprep.mubr.bf16.mxu0 0
  %7880 = vmatmul.mubr.bf16.gmra.mrb[0].mxu0 %v7765
  %v7881 = vpop.f32.mrb[0].mxu0
  %v7882 = vadd.f32 0.0, %v7881
  %v7883 = vpop.f32.mrb[0].mxu0
  %v7884 = vadd.f32 0.0, %v7883
  %v7885 = vpop.f32.mrb[0].mxu0
  %v7886 = vadd.f32 0.0, %v7885
  %v7887 = vpop.f32.mrb[0].mxu0
  %v7888 = vadd.f32 0.0, %v7887
  %7889 = vmatprep.mubr.bf16.mxu0 0
  %7890 = vmatmul.mubr.bf16.gmra.mrb[0].mxu0 %v7768
  %v7891 = vpop.f32.mrb[0].mxu0
  %v7892 = vadd.f32 0.0, %v7891
  %v7893 = vpop.f32.mrb[0].mxu0
  %v7894 = vadd.f32 0.0, %v7893
  %v7895 = vpop.f32.mrb[0].mxu0
  %v7896 = vadd.f32 0.0, %v7895
  %v7897 = vpop.f32.mrb[0].mxu0
  %v7898 = vadd.f32 0.0, %v7897
  %7899 = vmatprep.mubr.bf16.mxu0 0
  %7900 = vmatmul.mubr.bf16.gmra.mrb[0].mxu0 %v7771
  %v7901 = vpop.f32.mrb[0].mxu0
  %v7902 = vadd.f32 0.0, %v7901
  %v7903 = vpop.f32.mrb[0].mxu0
  %v7904 = vadd.f32 0.0, %v7903
  %v7905 = vpop.f32.mrb[0].mxu0
  %v7906 = vadd.f32 0.0, %v7905
  %v7907 = vpop.f32.mrb[0].mxu0
  %v7908 = vadd.f32 0.0, %v7907
  %7909 = vmatprep.mubr.bf16.mxu0 0
  %7910 = vmatmul.mubr.bf16.gmra.mrb[0].mxu0 %v7774
  %v7911 = vpop.f32.mrb[0].mxu0
  %v7912 = vadd.f32 0.0, %v7911
  %v7913 = vpop.f32.mrb[0].mxu0
  %v7914 = vadd.f32 0.0, %v7913
  %v7915 = vpop.f32.mrb[0].mxu0
  %v7916 = vadd.f32 0.0, %v7915
  %v7917 = vpop.f32.mrb[0].mxu0
  %v7918 = vadd.f32 0.0, %v7917
  %7919 = vmatprep.mubr.bf16.mxu0 0
  %7920 = vmatmul.mubr.bf16.gmra.mrb[0].mxu0 %v7777
  %v7921 = vpop.f32.mrb[0].mxu0
  %v7922 = vadd.f32 0.0, %v7921
  %v7923 = vpop.f32.mrb[0].mxu0
  %v7924 = vadd.f32 0.0, %v7923
  %v7925 = vpop.f32.mrb[0].mxu0
  %v7926 = vadd.f32 0.0, %v7925
  %v7927 = vpop.f32.mrb[0].mxu0
  %v7928 = vadd.f32 0.0, %v7927
  %7929 = vmatprep.mubr.bf16.mxu0 0
  %7930 = vmatmul.mubr.bf16.gmra.mrb[0].mxu0 %v7780
  %v7931 = vpop.f32.mrb[0].mxu0
  %v7932 = vadd.f32 0.0, %v7931
  %v7933 = vpop.f32.mrb[0].mxu0
  %v7934 = vadd.f32 0.0, %v7933
  %v7935 = vpop.f32.mrb[0].mxu0
  %v7936 = vadd.f32 0.0, %v7935
  %v7937 = vpop.f32.mrb[0].mxu0
  %v7938 = vadd.f32 0.0, %v7937
  %7939 = vmatprep.mubr.bf16.mxu0 0
  %7940 = vmatmul.mubr.bf16.gmra.mrb[0].mxu0 %v7783
  %v7941 = vpop.f32.mrb[0].mxu0
  %v7942 = vadd.f32 0.0, %v7941
  %v7943 = vpop.f32.mrb[0].mxu0
  %v7944 = vadd.f32 0.0, %v7943
  %v7945 = vpop.f32.mrb[0].mxu0
  %v7946 = vadd.f32 0.0, %v7945
  %v7947 = vpop.f32.mrb[0].mxu0
  %v7948 = vadd.f32 0.0, %v7947
  %7949 = vmatprep.mubr.bf16.mxu0 0
  %7950 = vmatmul.mubr.bf16.gmra.mrb[0].mxu0 %v7786
  %v7951 = vpop.f32.mrb[0].mxu0
  %v7952 = vadd.f32 0.0, %v7951
  %v7953 = vpop.f32.mrb[0].mxu0
  %v7954 = vadd.f32 0.0, %v7953
  %v7955 = vpop.f32.mrb[0].mxu0
  %v7956 = vadd.f32 0.0, %v7955
  %v7957 = vpop.f32.mrb[0].mxu0
  %v7958 = vadd.f32 0.0, %v7957
  %7959 = vmatprep.mubr.bf16.mxu0 0
  %7960 = vmatmul.mubr.bf16.gmra.mrb[0].mxu0 %v7789
  %v7961 = vpop.f32.mrb[0].mxu0
  %v7962 = vadd.f32 0.0, %v7961
  %v7963 = vpop.f32.mrb[0].mxu0
  %v7964 = vadd.f32 0.0, %v7963
  %v7965 = vpop.f32.mrb[0].mxu0
  %v7966 = vadd.f32 0.0, %v7965
  %v7967 = vpop.f32.mrb[0].mxu0
  %v7968 = vadd.f32 0.0, %v7967
  %7969 = vmatprep.mubr.bf16.mxu0 0
  %7970 = vmatmul.mubr.bf16.gmra.mrb[0].mxu0 %v7792
  %v7971 = vpop.f32.mrb[0].mxu0
  %v7972 = vadd.f32 0.0, %v7971
  %v7973 = vpop.f32.mrb[0].mxu0
  %v7974 = vadd.f32 0.0, %v7973
  %v7975 = vpop.f32.mrb[0].mxu0
  %v7976 = vadd.f32 0.0, %v7975
  %v7977 = vpop.f32.mrb[0].mxu0
  %v7978 = vadd.f32 0.0, %v7977
  %7979 = vmatprep.mubr.bf16.mxu0 0
  %7980 = vmatmul.mubr.bf16.gmra.mrb[0].mxu0 %v7795
  %v7981 = vpop.f32.mrb[0].mxu0
  %v7982 = vadd.f32 0.0, %v7981
  %v7983 = vpop.f32.mrb[0].mxu0
  %v7984 = vadd.f32 0.0, %v7983
  %v7985 = vpop.f32.mrb[0].mxu0
  %v7986 = vadd.f32 0.0, %v7985
  %v7987 = vpop.f32.mrb[0].mxu0
  %v7988 = vadd.f32 0.0, %v7987
  %7989 = vdwg.mxu0
  %v7990 = vadd.f32 %v6498, %v7832
  %v7991 = vadd.f32 %v6499, %v7834
  %v7992 = vadd.f32 %v6500, %v7836
  %v7993 = vadd.f32 %v6501, %v7838
  %v7994 = vadd.f32 %v6502, %v7842
  %v7995 = vadd.f32 %v6503, %v7844
  %v7996 = vadd.f32 %v6504, %v7846
  %v7997 = vadd.f32 %v6505, %v7848
  %v7998 = vadd.f32 %v6506, %v7852
  %v7999 = vadd.f32 %v6507, %v7854
  %v8000 = vadd.f32 %v6508, %v7856
  %v8001 = vadd.f32 %v6509, %v7858
  %v8002 = vadd.f32 %v6510, %v7862
  %v8003 = vadd.f32 %v6511, %v7864
  %v8004 = vadd.f32 %v6512, %v7866
  %v8005 = vadd.f32 %v6513, %v7868
  %v8006 = vadd.f32 %v6514, %v7872
  %v8007 = vadd.f32 %v6515, %v7874
  %v8008 = vadd.f32 %v6516, %v7876
  %v8009 = vadd.f32 %v6517, %v7878
  %v8010 = vadd.f32 %v6518, %v7882
  %v8011 = vadd.f32 %v6519, %v7884
  %v8012 = vadd.f32 %v6520, %v7886
  %v8013 = vadd.f32 %v6521, %v7888
  %v8014 = vadd.f32 %v6522, %v7892
  %v8015 = vadd.f32 %v6523, %v7894
  %v8016 = vadd.f32 %v6524, %v7896
  %v8017 = vadd.f32 %v6525, %v7898
  %v8018 = vadd.f32 %v6526, %v7902
  %v8019 = vadd.f32 %v6527, %v7904
  %v8020 = vadd.f32 %v6528, %v7906
  %v8021 = vadd.f32 %v6529, %v7908
  %v8022 = vadd.f32 %v6530, %v7912
  %v8023 = vadd.f32 %v6531, %v7914
  %v8024 = vadd.f32 %v6532, %v7916
  %v8025 = vadd.f32 %v6533, %v7918
  %v8026 = vadd.f32 %v6534, %v7922
  %v8027 = vadd.f32 %v6535, %v7924
  %v8028 = vadd.f32 %v6536, %v7926
  %v8029 = vadd.f32 %v6537, %v7928
  %v8030 = vadd.f32 %v6538, %v7932
  %v8031 = vadd.f32 %v6539, %v7934
  %v8032 = vadd.f32 %v6540, %v7936
  %v8033 = vadd.f32 %v6541, %v7938
  %v8034 = vadd.f32 %v6542, %v7942
  %v8035 = vadd.f32 %v6543, %v7944
  %v8036 = vadd.f32 %v6544, %v7946
  %v8037 = vadd.f32 %v6545, %v7948
  %v8038 = vadd.f32 %v6546, %v7952
  %v8039 = vadd.f32 %v6547, %v7954
  %v8040 = vadd.f32 %v6548, %v7956
  %v8041 = vadd.f32 %v6549, %v7958
  %v8042 = vadd.f32 %v6550, %v7962
  %v8043 = vadd.f32 %v6551, %v7964
  %v8044 = vadd.f32 %v6552, %v7966
  %v8045 = vadd.f32 %v6553, %v7968
  %v8046 = vadd.f32 %v6554, %v7972
  %v8047 = vadd.f32 %v6555, %v7974
  %v8048 = vadd.f32 %v6556, %v7976
  %v8049 = vadd.f32 %v6557, %v7978
  %v8050 = vadd.f32 %v6558, %v7982
  %v8051 = vadd.f32 %v6559, %v7984
  %v8052 = vadd.f32 %v6560, %v7986
  %v8053 = vadd.f32 %v6561, %v7988
  %v8054 = vadd.f32 %v1088, %v7990
  %v8055 = vadd.f32 %v1089, %v7991
  %v8056 = vadd.f32 %v1090, %v7992
  %v8057 = vadd.f32 %v1091, %v7993
  %v8058 = vadd.f32 %v1092, %v7994
  %v8059 = vadd.f32 %v1093, %v7995
  %v8060 = vadd.f32 %v1094, %v7996
  %v8061 = vadd.f32 %v1095, %v7997
  %v8062 = vadd.f32 %v1096, %v7998
  %v8063 = vadd.f32 %v1097, %v7999
  %v8064 = vadd.f32 %v1098, %v8000
  %v8065 = vadd.f32 %v1099, %v8001
  %v8066 = vadd.f32 %v1100, %v8002
  %v8067 = vadd.f32 %v1101, %v8003
  %v8068 = vadd.f32 %v1102, %v8004
  %v8069 = vadd.f32 %v1103, %v8005
  %v8070 = vadd.f32 %v1104, %v8006
  %v8071 = vadd.f32 %v1105, %v8007
  %v8072 = vadd.f32 %v1106, %v8008
  %v8073 = vadd.f32 %v1107, %v8009
  %v8074 = vadd.f32 %v1108, %v8010
  %v8075 = vadd.f32 %v1109, %v8011
  %v8076 = vadd.f32 %v1110, %v8012
  %v8077 = vadd.f32 %v1111, %v8013
  %v8078 = vadd.f32 %v1112, %v8014
  %v8079 = vadd.f32 %v1113, %v8015
  %v8080 = vadd.f32 %v1114, %v8016
  %v8081 = vadd.f32 %v1115, %v8017
  %v8082 = vadd.f32 %v1116, %v8018
  %v8083 = vadd.f32 %v1117, %v8019
  %v8084 = vadd.f32 %v1118, %v8020
  %v8085 = vadd.f32 %v1119, %v8021
  %v8086 = vadd.f32 %v1120, %v8022
  %v8087 = vadd.f32 %v1121, %v8023
  %v8088 = vadd.f32 %v1122, %v8024
  %v8089 = vadd.f32 %v1123, %v8025
  %v8090 = vadd.f32 %v1124, %v8026
  %v8091 = vadd.f32 %v1125, %v8027
  %v8092 = vadd.f32 %v1126, %v8028
  %v8093 = vadd.f32 %v1127, %v8029
  %v8094 = vadd.f32 %v1128, %v8030
  %v8095 = vadd.f32 %v1129, %v8031
  %v8096 = vadd.f32 %v1130, %v8032
  %v8097 = vadd.f32 %v1131, %v8033
  %v8098 = vadd.f32 %v1132, %v8034
  %v8099 = vadd.f32 %v1133, %v8035
  %v8100 = vadd.f32 %v1134, %v8036
  %v8101 = vadd.f32 %v1135, %v8037
  %v8102 = vadd.f32 %v1136, %v8038
  %v8103 = vadd.f32 %v1137, %v8039
  %v8104 = vadd.f32 %v1138, %v8040
  %v8105 = vadd.f32 %v1139, %v8041
  %v8106 = vadd.f32 %v1140, %v8042
  %v8107 = vadd.f32 %v1141, %v8043
  %v8108 = vadd.f32 %v1142, %v8044
  %v8109 = vadd.f32 %v1143, %v8045
  %v8110 = vadd.f32 %v1144, %v8046
  %v8111 = vadd.f32 %v1145, %v8047
  %v8112 = vadd.f32 %v1146, %v8048
  %v8113 = vadd.f32 %v1147, %v8049
  %v8114 = vadd.f32 %v1148, %v8050
  %v8115 = vadd.f32 %v1149, %v8051
  %v8116 = vadd.f32 %v1150, %v8052
  %v8117 = vadd.f32 %v1151, %v8053
  %v8118 = vld [vmem:[%s14] sm:$0x3]
  %v8120 = vlaneseq
  %v8121 = vshrl.u32 %v8120, 7
  %v8122 = vsub.s32 0, %v8121
  %v8123 = vrot.slane %v8118, %v8122
  %v8124 = vlaneseq
  %v8125 = vshrl.u32 %v8124, 7
  %v8126 = vsub.s32 1, %v8125
  %v8127 = vrot.slane %v8118, %v8126
  %v8130 = vadd.f32 %v8054, %v8123
  %v8131 = vadd.f32 %v8055, %v8127
  %v8132 = vadd.f32 %v8056, %v8123
  %v8133 = vadd.f32 %v8057, %v8127
  %v8134 = vadd.f32 %v8058, %v8123
  %v8135 = vadd.f32 %v8059, %v8127
  %v8136 = vadd.f32 %v8060, %v8123
  %v8137 = vadd.f32 %v8061, %v8127
  %v8138 = vadd.f32 %v8062, %v8123
  %v8139 = vadd.f32 %v8063, %v8127
  %v8140 = vadd.f32 %v8064, %v8123
  %v8141 = vadd.f32 %v8065, %v8127
  %v8142 = vadd.f32 %v8066, %v8123
  %v8143 = vadd.f32 %v8067, %v8127
  %v8144 = vadd.f32 %v8068, %v8123
  %v8145 = vadd.f32 %v8069, %v8127
  %v8146 = vadd.f32 %v8070, %v8123
  %v8147 = vadd.f32 %v8071, %v8127
  %v8148 = vadd.f32 %v8072, %v8123
  %v8149 = vadd.f32 %v8073, %v8127
  %v8150 = vadd.f32 %v8074, %v8123
  %v8151 = vadd.f32 %v8075, %v8127
  %v8152 = vadd.f32 %v8076, %v8123
  %v8153 = vadd.f32 %v8077, %v8127
  %v8154 = vadd.f32 %v8078, %v8123
  %v8155 = vadd.f32 %v8079, %v8127
  %v8156 = vadd.f32 %v8080, %v8123
  %v8157 = vadd.f32 %v8081, %v8127
  %v8158 = vadd.f32 %v8082, %v8123
  %v8159 = vadd.f32 %v8083, %v8127
  %v8160 = vadd.f32 %v8084, %v8123
  %v8161 = vadd.f32 %v8085, %v8127
  %v8162 = vadd.f32 %v8086, %v8123
  %v8163 = vadd.f32 %v8087, %v8127
  %v8164 = vadd.f32 %v8088, %v8123
  %v8165 = vadd.f32 %v8089, %v8127
  %v8166 = vadd.f32 %v8090, %v8123
  %v8167 = vadd.f32 %v8091, %v8127
  %v8168 = vadd.f32 %v8092, %v8123
  %v8169 = vadd.f32 %v8093, %v8127
  %v8170 = vadd.f32 %v8094, %v8123
  %v8171 = vadd.f32 %v8095, %v8127
  %v8172 = vadd.f32 %v8096, %v8123
  %v8173 = vadd.f32 %v8097, %v8127
  %v8174 = vadd.f32 %v8098, %v8123
  %v8175 = vadd.f32 %v8099, %v8127
  %v8176 = vadd.f32 %v8100, %v8123
  %v8177 = vadd.f32 %v8101, %v8127
  %v8178 = vadd.f32 %v8102, %v8123
  %v8179 = vadd.f32 %v8103, %v8127
  %v8180 = vadd.f32 %v8104, %v8123
  %v8181 = vadd.f32 %v8105, %v8127
  %v8182 = vadd.f32 %v8106, %v8123
  %v8183 = vadd.f32 %v8107, %v8127
  %v8184 = vadd.f32 %v8108, %v8123
  %v8185 = vadd.f32 %v8109, %v8127
  %v8186 = vadd.f32 %v8110, %v8123
  %v8187 = vadd.f32 %v8111, %v8127
  %v8188 = vadd.f32 %v8112, %v8123
  %v8189 = vadd.f32 %v8113, %v8127
  %v8190 = vadd.f32 %v8114, %v8123
  %v8191 = vadd.f32 %v8115, %v8127
  %v8192 = vadd.f32 %v8116, %v8123
  %v8193 = vadd.f32 %v8117, %v8127
  %v8194 = vld [vmem:[%s15] sm:$0x3]
  %v8195 = vld [vmem:[%s16] sm:$0x3]
  %v8196 = vadd.f32 %v8130, %v8131
  %8197 = vadd.xlane.f32.xlu0 %v8196
  %v8198 = vpop.xlane.xlu0 %8197
  %v8199 = vadd.f32 %v8132, %v8133
  %8200 = vadd.xlane.f32.xlu0 %v8199
  %v8201 = vpop.xlane.xlu0 %8200
  %v8202 = vadd.f32 %v8134, %v8135
  %8203 = vadd.xlane.f32.xlu0 %v8202
  %v8204 = vpop.xlane.xlu0 %8203
  %v8205 = vadd.f32 %v8136, %v8137
  %8206 = vadd.xlane.f32.xlu0 %v8205
  %v8207 = vpop.xlane.xlu0 %8206
  %v8208 = vadd.f32 %v8138, %v8139
  %8209 = vadd.xlane.f32.xlu0 %v8208
  %v8210 = vpop.xlane.xlu0 %8209
  %v8211 = vadd.f32 %v8140, %v8141
  %8212 = vadd.xlane.f32.xlu0 %v8211
  %v8213 = vpop.xlane.xlu0 %8212
  %v8214 = vadd.f32 %v8142, %v8143
  %8215 = vadd.xlane.f32.xlu0 %v8214
  %v8216 = vpop.xlane.xlu0 %8215
  %v8217 = vadd.f32 %v8144, %v8145
  %8218 = vadd.xlane.f32.xlu0 %v8217
  %v8219 = vpop.xlane.xlu0 %8218
  %v8220 = vadd.f32 %v8146, %v8147
  %8221 = vadd.xlane.f32.xlu0 %v8220
  %v8222 = vpop.xlane.xlu0 %8221
  %v8223 = vadd.f32 %v8148, %v8149
  %8224 = vadd.xlane.f32.xlu0 %v8223
  %v8225 = vpop.xlane.xlu0 %8224
  %v8226 = vadd.f32 %v8150, %v8151
  %8227 = vadd.xlane.f32.xlu0 %v8226
  %v8228 = vpop.xlane.xlu0 %8227
  %v8229 = vadd.f32 %v8152, %v8153
  %8230 = vadd.xlane.f32.xlu0 %v8229
  %v8231 = vpop.xlane.xlu0 %8230
  %v8232 = vadd.f32 %v8154, %v8155
  %8233 = vadd.xlane.f32.xlu0 %v8232
  %v8234 = vpop.xlane.xlu0 %8233
  %v8235 = vadd.f32 %v8156, %v8157
  %8236 = vadd.xlane.f32.xlu0 %v8235
  %v8237 = vpop.xlane.xlu0 %8236
  %v8238 = vadd.f32 %v8158, %v8159
  %8239 = vadd.xlane.f32.xlu0 %v8238
  %v8240 = vpop.xlane.xlu0 %8239
  %v8241 = vadd.f32 %v8160, %v8161
  %8242 = vadd.xlane.f32.xlu0 %v8241
  %v8243 = vpop.xlane.xlu0 %8242
  %v8244 = vadd.f32 %v8162, %v8163
  %8245 = vadd.xlane.f32.xlu0 %v8244
  %v8246 = vpop.xlane.xlu0 %8245
  %v8247 = vadd.f32 %v8164, %v8165
  %8248 = vadd.xlane.f32.xlu0 %v8247
  %v8249 = vpop.xlane.xlu0 %8248
  %v8250 = vadd.f32 %v8166, %v8167
  %8251 = vadd.xlane.f32.xlu0 %v8250
  %v8252 = vpop.xlane.xlu0 %8251
  %v8253 = vadd.f32 %v8168, %v8169
  %8254 = vadd.xlane.f32.xlu0 %v8253
  %v8255 = vpop.xlane.xlu0 %8254
  %v8256 = vadd.f32 %v8170, %v8171
  %8257 = vadd.xlane.f32.xlu0 %v8256
  %v8258 = vpop.xlane.xlu0 %8257
  %v8259 = vadd.f32 %v8172, %v8173
  %8260 = vadd.xlane.f32.xlu0 %v8259
  %v8261 = vpop.xlane.xlu0 %8260
  %v8262 = vadd.f32 %v8174, %v8175
  %8263 = vadd.xlane.f32.xlu0 %v8262
  %v8264 = vpop.xlane.xlu0 %8263
  %v8265 = vadd.f32 %v8176, %v8177
  %8266 = vadd.xlane.f32.xlu0 %v8265
  %v8267 = vpop.xlane.xlu0 %8266
  %v8268 = vadd.f32 %v8178, %v8179
  %8269 = vadd.xlane.f32.xlu0 %v8268
  %v8270 = vpop.xlane.xlu0 %8269
  %v8271 = vadd.f32 %v8180, %v8181
  %8272 = vadd.xlane.f32.xlu0 %v8271
  %v8273 = vpop.xlane.xlu0 %8272
  %v8274 = vadd.f32 %v8182, %v8183
  %8275 = vadd.xlane.f32.xlu0 %v8274
  %v8276 = vpop.xlane.xlu0 %8275
  %v8277 = vadd.f32 %v8184, %v8185
  %8278 = vadd.xlane.f32.xlu0 %v8277
  %v8279 = vpop.xlane.xlu0 %8278
  %v8280 = vadd.f32 %v8186, %v8187
  %8281 = vadd.xlane.f32.xlu0 %v8280
  %v8282 = vpop.xlane.xlu0 %8281
  %v8283 = vadd.f32 %v8188, %v8189
  %8284 = vadd.xlane.f32.xlu0 %v8283
  %v8285 = vpop.xlane.xlu0 %8284
  %v8286 = vadd.f32 %v8190, %v8191
  %8287 = vadd.xlane.f32.xlu0 %v8286
  %v8288 = vpop.xlane.xlu0 %8287
  %v8289 = vadd.f32 %v8192, %v8193
  %8290 = vadd.xlane.f32.xlu0 %v8289
  %v8291 = vpop.xlane.xlu0 %8290
  %v8292 = vmul.f32 %v8198, %v585
  %v8293 = vmul.f32 %v8201, %v585
  %v8294 = vmul.f32 %v8204, %v585
  %v8295 = vmul.f32 %v8207, %v585
  %v8296 = vmul.f32 %v8210, %v585
  %v8297 = vmul.f32 %v8213, %v585
  %v8298 = vmul.f32 %v8216, %v585
  %v8299 = vmul.f32 %v8219, %v585
  %v8300 = vmul.f32 %v8222, %v585
  %v8301 = vmul.f32 %v8225, %v585
  %v8302 = vmul.f32 %v8228, %v585
  %v8303 = vmul.f32 %v8231, %v585
  %v8304 = vmul.f32 %v8234, %v585
  %v8305 = vmul.f32 %v8237, %v585
  %v8306 = vmul.f32 %v8240, %v585
  %v8307 = vmul.f32 %v8243, %v585
  %v8308 = vmul.f32 %v8246, %v585
  %v8309 = vmul.f32 %v8249, %v585
  %v8310 = vmul.f32 %v8252, %v585
  %v8311 = vmul.f32 %v8255, %v585
  %v8312 = vmul.f32 %v8258, %v585
  %v8313 = vmul.f32 %v8261, %v585
  %v8314 = vmul.f32 %v8264, %v585
  %v8315 = vmul.f32 %v8267, %v585
  %v8316 = vmul.f32 %v8270, %v585
  %v8317 = vmul.f32 %v8273, %v585
  %v8318 = vmul.f32 %v8276, %v585
  %v8319 = vmul.f32 %v8279, %v585
  %v8320 = vmul.f32 %v8282, %v585
  %v8321 = vmul.f32 %v8285, %v585
  %v8322 = vmul.f32 %v8288, %v585
  %v8323 = vmul.f32 %v8291, %v585
  %v8324 = vsub.f32 %v8130, %v8292
  %v8325 = vsub.f32 %v8131, %v8292
  %v8326 = vsub.f32 %v8132, %v8293
  %v8327 = vsub.f32 %v8133, %v8293
  %v8328 = vsub.f32 %v8134, %v8294
  %v8329 = vsub.f32 %v8135, %v8294
  %v8330 = vsub.f32 %v8136, %v8295
  %v8331 = vsub.f32 %v8137, %v8295
  %v8332 = vsub.f32 %v8138, %v8296
  %v8333 = vsub.f32 %v8139, %v8296
  %v8334 = vsub.f32 %v8140, %v8297
  %v8335 = vsub.f32 %v8141, %v8297
  %v8336 = vsub.f32 %v8142, %v8298
  %v8337 = vsub.f32 %v8143, %v8298
  %v8338 = vsub.f32 %v8144, %v8299
  %v8339 = vsub.f32 %v8145, %v8299
  %v8340 = vsub.f32 %v8146, %v8300
  %v8341 = vsub.f32 %v8147, %v8300
  %v8342 = vsub.f32 %v8148, %v8301
  %v8343 = vsub.f32 %v8149, %v8301
  %v8344 = vsub.f32 %v8150, %v8302
  %v8345 = vsub.f32 %v8151, %v8302
  %v8346 = vsub.f32 %v8152, %v8303
  %v8347 = vsub.f32 %v8153, %v8303
  %v8348 = vsub.f32 %v8154, %v8304
  %v8349 = vsub.f32 %v8155, %v8304
  %v8350 = vsub.f32 %v8156, %v8305
  %v8351 = vsub.f32 %v8157, %v8305
  %v8352 = vsub.f32 %v8158, %v8306
  %v8353 = vsub.f32 %v8159, %v8306
  %v8354 = vsub.f32 %v8160, %v8307
  %v8355 = vsub.f32 %v8161, %v8307
  %v8356 = vsub.f32 %v8162, %v8308
  %v8357 = vsub.f32 %v8163, %v8308
  %v8358 = vsub.f32 %v8164, %v8309
  %v8359 = vsub.f32 %v8165, %v8309
  %v8360 = vsub.f32 %v8166, %v8310
  %v8361 = vsub.f32 %v8167, %v8310
  %v8362 = vsub.f32 %v8168, %v8311
  %v8363 = vsub.f32 %v8169, %v8311
  %v8364 = vsub.f32 %v8170, %v8312
  %v8365 = vsub.f32 %v8171, %v8312
  %v8366 = vsub.f32 %v8172, %v8313
  %v8367 = vsub.f32 %v8173, %v8313
  %v8368 = vsub.f32 %v8174, %v8314
  %v8369 = vsub.f32 %v8175, %v8314
  %v8370 = vsub.f32 %v8176, %v8315
  %v8371 = vsub.f32 %v8177, %v8315
  %v8372 = vsub.f32 %v8178, %v8316
  %v8373 = vsub.f32 %v8179, %v8316
  %v8374 = vsub.f32 %v8180, %v8317
  %v8375 = vsub.f32 %v8181, %v8317
  %v8376 = vsub.f32 %v8182, %v8318
  %v8377 = vsub.f32 %v8183, %v8318
  %v8378 = vsub.f32 %v8184, %v8319
  %v8379 = vsub.f32 %v8185, %v8319
  %v8380 = vsub.f32 %v8186, %v8320
  %v8381 = vsub.f32 %v8187, %v8320
  %v8382 = vsub.f32 %v8188, %v8321
  %v8383 = vsub.f32 %v8189, %v8321
  %v8384 = vsub.f32 %v8190, %v8322
  %v8385 = vsub.f32 %v8191, %v8322
  %v8386 = vsub.f32 %v8192, %v8323
  %v8387 = vsub.f32 %v8193, %v8323
  %v8388 = vmul.f32 %v8324, %v8324
  %v8389 = vmul.f32 %v8325, %v8325
  %v8390 = vmul.f32 %v8326, %v8326
  %v8391 = vmul.f32 %v8327, %v8327
  %v8392 = vmul.f32 %v8328, %v8328
  %v8393 = vmul.f32 %v8329, %v8329
  %v8394 = vmul.f32 %v8330, %v8330
  %v8395 = vmul.f32 %v8331, %v8331
  %v8396 = vmul.f32 %v8332, %v8332
  %v8397 = vmul.f32 %v8333, %v8333
  %v8398 = vmul.f32 %v8334, %v8334
  %v8399 = vmul.f32 %v8335, %v8335
  %v8400 = vmul.f32 %v8336, %v8336
  %v8401 = vmul.f32 %v8337, %v8337
  %v8402 = vmul.f32 %v8338, %v8338
  %v8403 = vmul.f32 %v8339, %v8339
  %v8404 = vmul.f32 %v8340, %v8340
  %v8405 = vmul.f32 %v8341, %v8341
  %v8406 = vmul.f32 %v8342, %v8342
  %v8407 = vmul.f32 %v8343, %v8343
  %v8408 = vmul.f32 %v8344, %v8344
  %v8409 = vmul.f32 %v8345, %v8345
  %v8410 = vmul.f32 %v8346, %v8346
  %v8411 = vmul.f32 %v8347, %v8347
  %v8412 = vmul.f32 %v8348, %v8348
  %v8413 = vmul.f32 %v8349, %v8349
  %v8414 = vmul.f32 %v8350, %v8350
  %v8415 = vmul.f32 %v8351, %v8351
  %v8416 = vmul.f32 %v8352, %v8352
  %v8417 = vmul.f32 %v8353, %v8353
  %v8418 = vmul.f32 %v8354, %v8354
  %v8419 = vmul.f32 %v8355, %v8355
  %v8420 = vmul.f32 %v8356, %v8356
  %v8421 = vmul.f32 %v8357, %v8357
  %v8422 = vmul.f32 %v8358, %v8358
  %v8423 = vmul.f32 %v8359, %v8359
  %v8424 = vmul.f32 %v8360, %v8360
  %v8425 = vmul.f32 %v8361, %v8361
  %v8426 = vmul.f32 %v8362, %v8362
  %v8427 = vmul.f32 %v8363, %v8363
  %v8428 = vmul.f32 %v8364, %v8364
  %v8429 = vmul.f32 %v8365, %v8365
  %v8430 = vmul.f32 %v8366, %v8366
  %v8431 = vmul.f32 %v8367, %v8367
  %v8432 = vmul.f32 %v8368, %v8368
  %v8433 = vmul.f32 %v8369, %v8369
  %v8434 = vmul.f32 %v8370, %v8370
  %v8435 = vmul.f32 %v8371, %v8371
  %v8436 = vmul.f32 %v8372, %v8372
  %v8437 = vmul.f32 %v8373, %v8373
  %v8438 = vmul.f32 %v8374, %v8374
  %v8439 = vmul.f32 %v8375, %v8375
  %v8440 = vmul.f32 %v8376, %v8376
  %v8441 = vmul.f32 %v8377, %v8377
  %v8442 = vmul.f32 %v8378, %v8378
  %v8443 = vmul.f32 %v8379, %v8379
  %v8444 = vmul.f32 %v8380, %v8380
  %v8445 = vmul.f32 %v8381, %v8381
  %v8446 = vmul.f32 %v8382, %v8382
  %v8447 = vmul.f32 %v8383, %v8383
  %v8448 = vmul.f32 %v8384, %v8384
  %v8449 = vmul.f32 %v8385, %v8385
  %v8450 = vmul.f32 %v8386, %v8386
  %v8451 = vmul.f32 %v8387, %v8387
  %v8452 = vadd.f32 %v8388, %v8389
  %8453 = vadd.xlane.f32.xlu0 %v8452
  %v8454 = vpop.xlane.xlu0 %8453
  %v8455 = vadd.f32 %v8390, %v8391
  %8456 = vadd.xlane.f32.xlu0 %v8455
  %v8457 = vpop.xlane.xlu0 %8456
  %v8458 = vadd.f32 %v8392, %v8393
  %8459 = vadd.xlane.f32.xlu0 %v8458
  %v8460 = vpop.xlane.xlu0 %8459
  %v8461 = vadd.f32 %v8394, %v8395
  %8462 = vadd.xlane.f32.xlu0 %v8461
  %v8463 = vpop.xlane.xlu0 %8462
  %v8464 = vadd.f32 %v8396, %v8397
  %8465 = vadd.xlane.f32.xlu0 %v8464
  %v8466 = vpop.xlane.xlu0 %8465
  %v8467 = vadd.f32 %v8398, %v8399
  %8468 = vadd.xlane.f32.xlu0 %v8467
  %v8469 = vpop.xlane.xlu0 %8468
  %v8470 = vadd.f32 %v8400, %v8401
  %8471 = vadd.xlane.f32.xlu0 %v8470
  %v8472 = vpop.xlane.xlu0 %8471
  %v8473 = vadd.f32 %v8402, %v8403
  %8474 = vadd.xlane.f32.xlu0 %v8473
  %v8475 = vpop.xlane.xlu0 %8474
  %v8476 = vadd.f32 %v8404, %v8405
  %8477 = vadd.xlane.f32.xlu0 %v8476
  %v8478 = vpop.xlane.xlu0 %8477
  %v8479 = vadd.f32 %v8406, %v8407
  %8480 = vadd.xlane.f32.xlu0 %v8479
  %v8481 = vpop.xlane.xlu0 %8480
  %v8482 = vadd.f32 %v8408, %v8409
  %8483 = vadd.xlane.f32.xlu0 %v8482
  %v8484 = vpop.xlane.xlu0 %8483
  %v8485 = vadd.f32 %v8410, %v8411
  %8486 = vadd.xlane.f32.xlu0 %v8485
  %v8487 = vpop.xlane.xlu0 %8486
  %v8488 = vadd.f32 %v8412, %v8413
  %8489 = vadd.xlane.f32.xlu0 %v8488
  %v8490 = vpop.xlane.xlu0 %8489
  %v8491 = vadd.f32 %v8414, %v8415
  %8492 = vadd.xlane.f32.xlu0 %v8491
  %v8493 = vpop.xlane.xlu0 %8492
  %v8494 = vadd.f32 %v8416, %v8417
  %8495 = vadd.xlane.f32.xlu0 %v8494
  %v8496 = vpop.xlane.xlu0 %8495
  %v8497 = vadd.f32 %v8418, %v8419
  %8498 = vadd.xlane.f32.xlu0 %v8497
  %v8499 = vpop.xlane.xlu0 %8498
  %v8500 = vadd.f32 %v8420, %v8421
  %8501 = vadd.xlane.f32.xlu0 %v8500
  %v8502 = vpop.xlane.xlu0 %8501
  %v8503 = vadd.f32 %v8422, %v8423
  %8504 = vadd.xlane.f32.xlu0 %v8503
  %v8505 = vpop.xlane.xlu0 %8504
  %v8506 = vadd.f32 %v8424, %v8425
  %8507 = vadd.xlane.f32.xlu0 %v8506
  %v8508 = vpop.xlane.xlu0 %8507
  %v8509 = vadd.f32 %v8426, %v8427
  %8510 = vadd.xlane.f32.xlu0 %v8509
  %v8511 = vpop.xlane.xlu0 %8510
  %v8512 = vadd.f32 %v8428, %v8429
  %8513 = vadd.xlane.f32.xlu0 %v8512
  %v8514 = vpop.xlane.xlu0 %8513
  %v8515 = vadd.f32 %v8430, %v8431
  %8516 = vadd.xlane.f32.xlu0 %v8515
  %v8517 = vpop.xlane.xlu0 %8516
  %v8518 = vadd.f32 %v8432, %v8433
  %8519 = vadd.xlane.f32.xlu0 %v8518
  %v8520 = vpop.xlane.xlu0 %8519
  %v8521 = vadd.f32 %v8434, %v8435
  %8522 = vadd.xlane.f32.xlu0 %v8521
  %v8523 = vpop.xlane.xlu0 %8522
  %v8524 = vadd.f32 %v8436, %v8437
  %8525 = vadd.xlane.f32.xlu0 %v8524
  %v8526 = vpop.xlane.xlu0 %8525
  %v8527 = vadd.f32 %v8438, %v8439
  %8528 = vadd.xlane.f32.xlu0 %v8527
  %v8529 = vpop.xlane.xlu0 %8528
  %v8530 = vadd.f32 %v8440, %v8441
  %8531 = vadd.xlane.f32.xlu0 %v8530
  %v8532 = vpop.xlane.xlu0 %8531
  %v8533 = vadd.f32 %v8442, %v8443
  %8534 = vadd.xlane.f32.xlu0 %v8533
  %v8535 = vpop.xlane.xlu0 %8534
  %v8536 = vadd.f32 %v8444, %v8445
  %8537 = vadd.xlane.f32.xlu0 %v8536
  %v8538 = vpop.xlane.xlu0 %8537
  %v8539 = vadd.f32 %v8446, %v8447
  %8540 = vadd.xlane.f32.xlu0 %v8539
  %v8541 = vpop.xlane.xlu0 %8540
  %v8542 = vadd.f32 %v8448, %v8449
  %8543 = vadd.xlane.f32.xlu0 %v8542
  %v8544 = vpop.xlane.xlu0 %8543
  %v8545 = vadd.f32 %v8450, %v8451
  %8546 = vadd.xlane.f32.xlu0 %v8545
  %v8547 = vpop.xlane.xlu0 %8546
  %v8548 = vmul.f32 %v8454, %v585
  %v8549 = vmul.f32 %v8457, %v585
  %v8550 = vmul.f32 %v8460, %v585
  %v8551 = vmul.f32 %v8463, %v585
  %v8552 = vmul.f32 %v8466, %v585
  %v8553 = vmul.f32 %v8469, %v585
  %v8554 = vmul.f32 %v8472, %v585
  %v8555 = vmul.f32 %v8475, %v585
  %v8556 = vmul.f32 %v8478, %v585
  %v8557 = vmul.f32 %v8481, %v585
  %v8558 = vmul.f32 %v8484, %v585
  %v8559 = vmul.f32 %v8487, %v585
  %v8560 = vmul.f32 %v8490, %v585
  %v8561 = vmul.f32 %v8493, %v585
  %v8562 = vmul.f32 %v8496, %v585
  %v8563 = vmul.f32 %v8499, %v585
  %v8564 = vmul.f32 %v8502, %v585
  %v8565 = vmul.f32 %v8505, %v585
  %v8566 = vmul.f32 %v8508, %v585
  %v8567 = vmul.f32 %v8511, %v585
  %v8568 = vmul.f32 %v8514, %v585
  %v8569 = vmul.f32 %v8517, %v585
  %v8570 = vmul.f32 %v8520, %v585
  %v8571 = vmul.f32 %v8523, %v585
  %v8572 = vmul.f32 %v8526, %v585
  %v8573 = vmul.f32 %v8529, %v585
  %v8574 = vmul.f32 %v8532, %v585
  %v8575 = vmul.f32 %v8535, %v585
  %v8576 = vmul.f32 %v8538, %v585
  %v8577 = vmul.f32 %v8541, %v585
  %v8578 = vmul.f32 %v8544, %v585
  %v8579 = vmul.f32 %v8547, %v585
  %v8580 = vadd.f32 %v8548, 1e-05
  %v8581 = vadd.f32 %v8549, 1e-05
  %v8582 = vadd.f32 %v8550, 1e-05
  %v8583 = vadd.f32 %v8551, 1e-05
  %v8584 = vadd.f32 %v8552, 1e-05
  %v8585 = vadd.f32 %v8553, 1e-05
  %v8586 = vadd.f32 %v8554, 1e-05
  %v8587 = vadd.f32 %v8555, 1e-05
  %v8588 = vadd.f32 %v8556, 1e-05
  %v8589 = vadd.f32 %v8557, 1e-05
  %v8590 = vadd.f32 %v8558, 1e-05
  %v8591 = vadd.f32 %v8559, 1e-05
  %v8592 = vadd.f32 %v8560, 1e-05
  %v8593 = vadd.f32 %v8561, 1e-05
  %v8594 = vadd.f32 %v8562, 1e-05
  %v8595 = vadd.f32 %v8563, 1e-05
  %v8596 = vadd.f32 %v8564, 1e-05
  %v8597 = vadd.f32 %v8565, 1e-05
  %v8598 = vadd.f32 %v8566, 1e-05
  %v8599 = vadd.f32 %v8567, 1e-05
  %v8600 = vadd.f32 %v8568, 1e-05
  %v8601 = vadd.f32 %v8569, 1e-05
  %v8602 = vadd.f32 %v8570, 1e-05
  %v8603 = vadd.f32 %v8571, 1e-05
  %v8604 = vadd.f32 %v8572, 1e-05
  %v8605 = vadd.f32 %v8573, 1e-05
  %v8606 = vadd.f32 %v8574, 1e-05
  %v8607 = vadd.f32 %v8575, 1e-05
  %v8608 = vadd.f32 %v8576, 1e-05
  %v8609 = vadd.f32 %v8577, 1e-05
  %v8610 = vadd.f32 %v8578, 1e-05
  %v8611 = vadd.f32 %v8579, 1e-05
  %v8612 = vrsqrt.pop %v8580
  %v8613 = vrsqrt.pop %v8581
  %v8614 = vrsqrt.pop %v8582
  %v8615 = vrsqrt.pop %v8583
  %v8616 = vrsqrt.pop %v8584
  %v8617 = vrsqrt.pop %v8585
  %v8618 = vrsqrt.pop %v8586
  %v8619 = vrsqrt.pop %v8587
  %v8620 = vrsqrt.pop %v8588
  %v8621 = vrsqrt.pop %v8589
  %v8622 = vrsqrt.pop %v8590
  %v8623 = vrsqrt.pop %v8591
  %v8624 = vrsqrt.pop %v8592
  %v8625 = vrsqrt.pop %v8593
  %v8626 = vrsqrt.pop %v8594
  %v8627 = vrsqrt.pop %v8595
  %v8628 = vrsqrt.pop %v8596
  %v8629 = vrsqrt.pop %v8597
  %v8630 = vrsqrt.pop %v8598
  %v8631 = vrsqrt.pop %v8599
  %v8632 = vrsqrt.pop %v8600
  %v8633 = vrsqrt.pop %v8601
  %v8634 = vrsqrt.pop %v8602
  %v8635 = vrsqrt.pop %v8603
  %v8636 = vrsqrt.pop %v8604
  %v8637 = vrsqrt.pop %v8605
  %v8638 = vrsqrt.pop %v8606
  %v8639 = vrsqrt.pop %v8607
  %v8640 = vrsqrt.pop %v8608
  %v8641 = vrsqrt.pop %v8609
  %v8642 = vrsqrt.pop %v8610
  %v8643 = vrsqrt.pop %v8611
  %v8644 = vmul.f32 %v8324, %v8612
  %v8645 = vmul.f32 %v8325, %v8612
  %v8646 = vmul.f32 %v8326, %v8613
  %v8647 = vmul.f32 %v8327, %v8613
  %v8648 = vmul.f32 %v8328, %v8614
  %v8649 = vmul.f32 %v8329, %v8614
  %v8650 = vmul.f32 %v8330, %v8615
  %v8651 = vmul.f32 %v8331, %v8615
  %v8652 = vmul.f32 %v8332, %v8616
  %v8653 = vmul.f32 %v8333, %v8616
  %v8654 = vmul.f32 %v8334, %v8617
  %v8655 = vmul.f32 %v8335, %v8617
  %v8656 = vmul.f32 %v8336, %v8618
  %v8657 = vmul.f32 %v8337, %v8618
  %v8658 = vmul.f32 %v8338, %v8619
  %v8659 = vmul.f32 %v8339, %v8619
  %v8660 = vmul.f32 %v8340, %v8620
  %v8661 = vmul.f32 %v8341, %v8620
  %v8662 = vmul.f32 %v8342, %v8621
  %v8663 = vmul.f32 %v8343, %v8621
  %v8664 = vmul.f32 %v8344, %v8622
  %v8665 = vmul.f32 %v8345, %v8622
  %v8666 = vmul.f32 %v8346, %v8623
  %v8667 = vmul.f32 %v8347, %v8623
  %v8668 = vmul.f32 %v8348, %v8624
  %v8669 = vmul.f32 %v8349, %v8624
  %v8670 = vmul.f32 %v8350, %v8625
  %v8671 = vmul.f32 %v8351, %v8625
  %v8672 = vmul.f32 %v8352, %v8626
  %v8673 = vmul.f32 %v8353, %v8626
  %v8674 = vmul.f32 %v8354, %v8627
  %v8675 = vmul.f32 %v8355, %v8627
  %v8676 = vmul.f32 %v8356, %v8628
  %v8677 = vmul.f32 %v8357, %v8628
  %v8678 = vmul.f32 %v8358, %v8629
  %v8679 = vmul.f32 %v8359, %v8629
  %v8680 = vmul.f32 %v8360, %v8630
  %v8681 = vmul.f32 %v8361, %v8630
  %v8682 = vmul.f32 %v8362, %v8631
  %v8683 = vmul.f32 %v8363, %v8631
  %v8684 = vmul.f32 %v8364, %v8632
  %v8685 = vmul.f32 %v8365, %v8632
  %v8686 = vmul.f32 %v8366, %v8633
  %v8687 = vmul.f32 %v8367, %v8633
  %v8688 = vmul.f32 %v8368, %v8634
  %v8689 = vmul.f32 %v8369, %v8634
  %v8690 = vmul.f32 %v8370, %v8635
  %v8691 = vmul.f32 %v8371, %v8635
  %v8692 = vmul.f32 %v8372, %v8636
  %v8693 = vmul.f32 %v8373, %v8636
  %v8694 = vmul.f32 %v8374, %v8637
  %v8695 = vmul.f32 %v8375, %v8637
  %v8696 = vmul.f32 %v8376, %v8638
  %v8697 = vmul.f32 %v8377, %v8638
  %v8698 = vmul.f32 %v8378, %v8639
  %v8699 = vmul.f32 %v8379, %v8639
  %v8700 = vmul.f32 %v8380, %v8640
  %v8701 = vmul.f32 %v8381, %v8640
  %v8702 = vmul.f32 %v8382, %v8641
  %v8703 = vmul.f32 %v8383, %v8641
  %v8704 = vmul.f32 %v8384, %v8642
  %v8705 = vmul.f32 %v8385, %v8642
  %v8706 = vmul.f32 %v8386, %v8643
  %v8707 = vmul.f32 %v8387, %v8643
  %v8709 = vlaneseq
  %v8710 = vshrl.u32 %v8709, 7
  %v8711 = vsub.s32 0, %v8710
  %v8712 = vrot.slane %v8194, %v8711
  %v8713 = vlaneseq
  %v8714 = vshrl.u32 %v8713, 7
  %v8715 = vsub.s32 1, %v8714
  %v8716 = vrot.slane %v8194, %v8715
  %v8719 = vmul.f32 %v8644, %v8712
  %v8720 = vmul.f32 %v8645, %v8716
  %v8721 = vmul.f32 %v8646, %v8712
  %v8722 = vmul.f32 %v8647, %v8716
  %v8723 = vmul.f32 %v8648, %v8712
  %v8724 = vmul.f32 %v8649, %v8716
  %v8725 = vmul.f32 %v8650, %v8712
  %v8726 = vmul.f32 %v8651, %v8716
  %v8727 = vmul.f32 %v8652, %v8712
  %v8728 = vmul.f32 %v8653, %v8716
  %v8729 = vmul.f32 %v8654, %v8712
  %v8730 = vmul.f32 %v8655, %v8716
  %v8731 = vmul.f32 %v8656, %v8712
  %v8732 = vmul.f32 %v8657, %v8716
  %v8733 = vmul.f32 %v8658, %v8712
  %v8734 = vmul.f32 %v8659, %v8716
  %v8735 = vmul.f32 %v8660, %v8712
  %v8736 = vmul.f32 %v8661, %v8716
  %v8737 = vmul.f32 %v8662, %v8712
  %v8738 = vmul.f32 %v8663, %v8716
  %v8739 = vmul.f32 %v8664, %v8712
  %v8740 = vmul.f32 %v8665, %v8716
  %v8741 = vmul.f32 %v8666, %v8712
  %v8742 = vmul.f32 %v8667, %v8716
  %v8743 = vmul.f32 %v8668, %v8712
  %v8744 = vmul.f32 %v8669, %v8716
  %v8745 = vmul.f32 %v8670, %v8712
  %v8746 = vmul.f32 %v8671, %v8716
  %v8747 = vmul.f32 %v8672, %v8712
  %v8748 = vmul.f32 %v8673, %v8716
  %v8749 = vmul.f32 %v8674, %v8712
  %v8750 = vmul.f32 %v8675, %v8716
  %v8751 = vmul.f32 %v8676, %v8712
  %v8752 = vmul.f32 %v8677, %v8716
  %v8753 = vmul.f32 %v8678, %v8712
  %v8754 = vmul.f32 %v8679, %v8716
  %v8755 = vmul.f32 %v8680, %v8712
  %v8756 = vmul.f32 %v8681, %v8716
  %v8757 = vmul.f32 %v8682, %v8712
  %v8758 = vmul.f32 %v8683, %v8716
  %v8759 = vmul.f32 %v8684, %v8712
  %v8760 = vmul.f32 %v8685, %v8716
  %v8761 = vmul.f32 %v8686, %v8712
  %v8762 = vmul.f32 %v8687, %v8716
  %v8763 = vmul.f32 %v8688, %v8712
  %v8764 = vmul.f32 %v8689, %v8716
  %v8765 = vmul.f32 %v8690, %v8712
  %v8766 = vmul.f32 %v8691, %v8716
  %v8767 = vmul.f32 %v8692, %v8712
  %v8768 = vmul.f32 %v8693, %v8716
  %v8769 = vmul.f32 %v8694, %v8712
  %v8770 = vmul.f32 %v8695, %v8716
  %v8771 = vmul.f32 %v8696, %v8712
  %v8772 = vmul.f32 %v8697, %v8716
  %v8773 = vmul.f32 %v8698, %v8712
  %v8774 = vmul.f32 %v8699, %v8716
  %v8775 = vmul.f32 %v8700, %v8712
  %v8776 = vmul.f32 %v8701, %v8716
  %v8777 = vmul.f32 %v8702, %v8712
  %v8778 = vmul.f32 %v8703, %v8716
  %v8779 = vmul.f32 %v8704, %v8712
  %v8780 = vmul.f32 %v8705, %v8716
  %v8781 = vmul.f32 %v8706, %v8712
  %v8782 = vmul.f32 %v8707, %v8716
  %v8784 = vlaneseq
  %v8785 = vshrl.u32 %v8784, 7
  %v8786 = vsub.s32 0, %v8785
  %v8787 = vrot.slane %v8195, %v8786
  %v8788 = vlaneseq
  %v8789 = vshrl.u32 %v8788, 7
  %v8790 = vsub.s32 1, %v8789
  %v8791 = vrot.slane %v8195, %v8790
  %v8794 = vadd.f32 %v8719, %v8787
  %v8795 = vadd.f32 %v8720, %v8791
  %v8796 = vadd.f32 %v8721, %v8787
  %v8797 = vadd.f32 %v8722, %v8791
  %v8798 = vadd.f32 %v8723, %v8787
  %v8799 = vadd.f32 %v8724, %v8791
  %v8800 = vadd.f32 %v8725, %v8787
  %v8801 = vadd.f32 %v8726, %v8791
  %v8802 = vadd.f32 %v8727, %v8787
  %v8803 = vadd.f32 %v8728, %v8791
  %v8804 = vadd.f32 %v8729, %v8787
  %v8805 = vadd.f32 %v8730, %v8791
  %v8806 = vadd.f32 %v8731, %v8787
  %v8807 = vadd.f32 %v8732, %v8791
  %v8808 = vadd.f32 %v8733, %v8787
  %v8809 = vadd.f32 %v8734, %v8791
  %v8810 = vadd.f32 %v8735, %v8787
  %v8811 = vadd.f32 %v8736, %v8791
  %v8812 = vadd.f32 %v8737, %v8787
  %v8813 = vadd.f32 %v8738, %v8791
  %v8814 = vadd.f32 %v8739, %v8787
  %v8815 = vadd.f32 %v8740, %v8791
  %v8816 = vadd.f32 %v8741, %v8787
  %v8817 = vadd.f32 %v8742, %v8791
  %v8818 = vadd.f32 %v8743, %v8787
  %v8819 = vadd.f32 %v8744, %v8791
  %v8820 = vadd.f32 %v8745, %v8787
  %v8821 = vadd.f32 %v8746, %v8791
  %v8822 = vadd.f32 %v8747, %v8787
  %v8823 = vadd.f32 %v8748, %v8791
  %v8824 = vadd.f32 %v8749, %v8787
  %v8825 = vadd.f32 %v8750, %v8791
  %v8826 = vadd.f32 %v8751, %v8787
  %v8827 = vadd.f32 %v8752, %v8791
  %v8828 = vadd.f32 %v8753, %v8787
  %v8829 = vadd.f32 %v8754, %v8791
  %v8830 = vadd.f32 %v8755, %v8787
  %v8831 = vadd.f32 %v8756, %v8791
  %v8832 = vadd.f32 %v8757, %v8787
  %v8833 = vadd.f32 %v8758, %v8791
  %v8834 = vadd.f32 %v8759, %v8787
  %v8835 = vadd.f32 %v8760, %v8791
  %v8836 = vadd.f32 %v8761, %v8787
  %v8837 = vadd.f32 %v8762, %v8791
  %v8838 = vadd.f32 %v8763, %v8787
  %v8839 = vadd.f32 %v8764, %v8791
  %v8840 = vadd.f32 %v8765, %v8787
  %v8841 = vadd.f32 %v8766, %v8791
  %v8842 = vadd.f32 %v8767, %v8787
  %v8843 = vadd.f32 %v8768, %v8791
  %v8844 = vadd.f32 %v8769, %v8787
  %v8845 = vadd.f32 %v8770, %v8791
  %v8846 = vadd.f32 %v8771, %v8787
  %v8847 = vadd.f32 %v8772, %v8791
  %v8848 = vadd.f32 %v8773, %v8787
  %v8849 = vadd.f32 %v8774, %v8791
  %v8850 = vadd.f32 %v8775, %v8787
  %v8851 = vadd.f32 %v8776, %v8791
  %v8852 = vadd.f32 %v8777, %v8787
  %v8853 = vadd.f32 %v8778, %v8791
  %v8854 = vadd.f32 %v8779, %v8787
  %v8855 = vadd.f32 %v8780, %v8791
  %v8856 = vadd.f32 %v8781, %v8787
  %v8857 = vadd.f32 %v8782, %v8791
  %v8858 = vpack.c.bf16 %v8796, %v8794
  %v8859 = vpack.c.bf16 %v8797, %v8795
  %v8860 = vpack.c.bf16 %v8800, %v8798
  %v8861 = vpack.c.bf16 %v8801, %v8799
  %v8862 = vpack.c.bf16 %v8804, %v8802
  %v8863 = vpack.c.bf16 %v8805, %v8803
  %v8864 = vpack.c.bf16 %v8808, %v8806
  %v8865 = vpack.c.bf16 %v8809, %v8807
  %v8866 = vpack.c.bf16 %v8812, %v8810
  %v8867 = vpack.c.bf16 %v8813, %v8811
  %v8868 = vpack.c.bf16 %v8816, %v8814
  %v8869 = vpack.c.bf16 %v8817, %v8815
  %v8870 = vpack.c.bf16 %v8820, %v8818
  %v8871 = vpack.c.bf16 %v8821, %v8819
  %v8872 = vpack.c.bf16 %v8824, %v8822
  %v8873 = vpack.c.bf16 %v8825, %v8823
  %v8874 = vpack.c.bf16 %v8828, %v8826
  %v8875 = vpack.c.bf16 %v8829, %v8827
  %v8876 = vpack.c.bf16 %v8832, %v8830
  %v8877 = vpack.c.bf16 %v8833, %v8831
  %v8878 = vpack.c.bf16 %v8836, %v8834
  %v8879 = vpack.c.bf16 %v8837, %v8835
  %v8880 = vpack.c.bf16 %v8840, %v8838
  %v8881 = vpack.c.bf16 %v8841, %v8839
  %v8882 = vpack.c.bf16 %v8844, %v8842
  %v8883 = vpack.c.bf16 %v8845, %v8843
  %v8884 = vpack.c.bf16 %v8848, %v8846
  %v8885 = vpack.c.bf16 %v8849, %v8847
  %v8886 = vpack.c.bf16 %v8852, %v8850
  %v8887 = vpack.c.bf16 %v8853, %v8851
  %v8888 = vpack.c.bf16 %v8856, %v8854
  %v8889 = vpack.c.bf16 %v8857, %v8855
  %v8890 = vld [vmem:[%s17] sm:$0xff]
  %v8891 = vld [vmem:[%s17 + $0x8] sm:$0xff]
  %v8892 = vld [vmem:[%s17 + $0x10] sm:$0xff]
  %v8893 = vld [vmem:[%s17 + $0x18] sm:$0xff]
  %v8894 = vld [vmem:[%s17 + $0x20] sm:$0xff]
  %v8895 = vld [vmem:[%s17 + $0x28] sm:$0xff]
  %v8896 = vld [vmem:[%s17 + $0x30] sm:$0xff]
  %v8897 = vld [vmem:[%s17 + $0x38] sm:$0xff]
  %v8898 = vld [vmem:[%s17 + $0x40] sm:$0xff]
  %v8899 = vld [vmem:[%s17 + $0x48] sm:$0xff]
  %v8900 = vld [vmem:[%s17 + $0x50] sm:$0xff]
  %v8901 = vld [vmem:[%s17 + $0x58] sm:$0xff]
  %v8902 = vld [vmem:[%s17 + $0x60] sm:$0xff]
  %v8903 = vld [vmem:[%s17 + $0x68] sm:$0xff]
  %v8904 = vld [vmem:[%s17 + $0x70] sm:$0xff]
  %v8905 = vld [vmem:[%s17 + $0x78] sm:$0xff]
  %v8906 = vld [vmem:[%s17 + $0x80] sm:$0xff]
  %v8907 = vld [vmem:[%s17 + $0x88] sm:$0xff]
  %v8908 = vld [vmem:[%s17 + $0x90] sm:$0xff]
  %v8909 = vld [vmem:[%s17 + $0x98] sm:$0xff]
  %v8910 = vld [vmem:[%s17 + $0xa0] sm:$0xff]
  %v8911 = vld [vmem:[%s17 + $0xa8] sm:$0xff]
  %v8912 = vld [vmem:[%s17 + $0xb0] sm:$0xff]
  %v8913 = vld [vmem:[%s17 + $0xb8] sm:$0xff]
  %v8914 = vld [vmem:[%s17 + $0xc0] sm:$0xff]
  %v8915 = vld [vmem:[%s17 + $0xc8] sm:$0xff]
  %v8916 = vld [vmem:[%s17 + $0xd0] sm:$0xff]
  %v8917 = vld [vmem:[%s17 + $0xd8] sm:$0xff]
  %v8918 = vld [vmem:[%s17 + $0xe0] sm:$0xff]
  %v8919 = vld [vmem:[%s17 + $0xe8] sm:$0xff]
  %v8920 = vld [vmem:[%s17 + $0xf0] sm:$0xff]
  %v8921 = vld [vmem:[%s17 + $0xf8] sm:$0xff]
  %v8922 = vld [vmem:[%s17 + $0x100] sm:$0xff]
  %v8923 = vld [vmem:[%s17 + $0x108] sm:$0xff]
  %v8924 = vld [vmem:[%s17 + $0x110] sm:$0xff]
  %v8925 = vld [vmem:[%s17 + $0x118] sm:$0xff]
  %v8926 = vld [vmem:[%s17 + $0x120] sm:$0xff]
  %v8927 = vld [vmem:[%s17 + $0x128] sm:$0xff]
  %v8928 = vld [vmem:[%s17 + $0x130] sm:$0xff]
  %v8929 = vld [vmem:[%s17 + $0x138] sm:$0xff]
  %v8930 = vld [vmem:[%s17 + $0x140] sm:$0xff]
  %v8931 = vld [vmem:[%s17 + $0x148] sm:$0xff]
  %v8932 = vld [vmem:[%s17 + $0x150] sm:$0xff]
  %v8933 = vld [vmem:[%s17 + $0x158] sm:$0xff]
  %v8934 = vld [vmem:[%s17 + $0x160] sm:$0xff]
  %v8935 = vld [vmem:[%s17 + $0x168] sm:$0xff]
  %v8936 = vld [vmem:[%s17 + $0x170] sm:$0xff]
  %v8937 = vld [vmem:[%s17 + $0x178] sm:$0xff]
  %v8938 = vld [vmem:[%s17 + $0x180] sm:$0xff]
  %v8939 = vld [vmem:[%s17 + $0x188] sm:$0xff]
  %v8940 = vld [vmem:[%s17 + $0x190] sm:$0xff]
  %v8941 = vld [vmem:[%s17 + $0x198] sm:$0xff]
  %v8942 = vld [vmem:[%s17 + $0x1a0] sm:$0xff]
  %v8943 = vld [vmem:[%s17 + $0x1a8] sm:$0xff]
  %v8944 = vld [vmem:[%s17 + $0x1b0] sm:$0xff]
  %v8945 = vld [vmem:[%s17 + $0x1b8] sm:$0xff]
  %v8946 = vld [vmem:[%s17 + $0x1c0] sm:$0xff]
  %v8947 = vld [vmem:[%s17 + $0x1c8] sm:$0xff]
  %v8948 = vld [vmem:[%s17 + $0x1d0] sm:$0xff]
  %v8949 = vld [vmem:[%s17 + $0x1d8] sm:$0xff]
  %v8950 = vld [vmem:[%s17 + $0x1e0] sm:$0xff]
  %v8951 = vld [vmem:[%s17 + $0x1e8] sm:$0xff]
  %v8952 = vld [vmem:[%s17 + $0x1f0] sm:$0xff]
  %v8953 = vld [vmem:[%s17 + $0x1f8] sm:$0xff]
  %v8954 = vld [vmem:[%s18] sm:$0xf]
  %v8956 = vlaneseq
  %v8957 = vshrl.u32 %v8956, 7
  %v8958 = vsub.s32 0, %v8957
  %v8959 = vrot.slane %v8954, %v8958
  %v8960 = vlaneseq
  %v8961 = vshrl.u32 %v8960, 7
  %v8962 = vsub.s32 1, %v8961
  %v8963 = vrot.slane %v8954, %v8962
  %v8964 = vlaneseq
  %v8965 = vshrl.u32 %v8964, 7
  %v8966 = vsub.s32 2, %v8965
  %v8967 = vrot.slane %v8954, %v8966
  %v8968 = vlaneseq
  %v8969 = vshrl.u32 %v8968, 7
  %v8970 = vsub.s32 3, %v8969
  %v8971 = vrot.slane %v8954, %v8970
  %v9040 = vunpack.c.l.b16 %v8890
  %v9041 = vunpack.c.h.b16 %v8890
  %v9042 = vunpack.c.l.b16 %v8891
  %v9043 = vunpack.c.h.b16 %v8891
  %v9044 = vunpack.c.l.b16 %v8892
  %v9045 = vunpack.c.h.b16 %v8892
  %v9046 = vunpack.c.l.b16 %v8893
  %v9047 = vunpack.c.h.b16 %v8893
  %v9048 = vunpack.c.l.b16 %v8894
  %v9049 = vunpack.c.h.b16 %v8894
  %v9050 = vunpack.c.l.b16 %v8895
  %v9051 = vunpack.c.h.b16 %v8895
  %v9052 = vunpack.c.l.b16 %v8896
  %v9053 = vunpack.c.h.b16 %v8896
  %v9054 = vunpack.c.l.b16 %v8897
  %v9055 = vunpack.c.h.b16 %v8897
  %v9056 = vunpack.c.l.b16 %v8898
  %v9057 = vunpack.c.h.b16 %v8898
  %v9058 = vunpack.c.l.b16 %v8899
  %v9059 = vunpack.c.h.b16 %v8899
  %v9060 = vunpack.c.l.b16 %v8900
  %v9061 = vunpack.c.h.b16 %v8900
  %v9062 = vunpack.c.l.b16 %v8901
  %v9063 = vunpack.c.h.b16 %v8901
  %v9064 = vunpack.c.l.b16 %v8902
  %v9065 = vunpack.c.h.b16 %v8902
  %v9066 = vunpack.c.l.b16 %v8903
  %v9067 = vunpack.c.h.b16 %v8903
  %v9068 = vunpack.c.l.b16 %v8904
  %v9069 = vunpack.c.h.b16 %v8904
  %v9070 = vunpack.c.l.b16 %v8905
  %v9071 = vunpack.c.h.b16 %v8905
  %v9072 = vunpack.c.l.b16 %v8906
  %v9073 = vunpack.c.h.b16 %v8906
  %v9074 = vunpack.c.l.b16 %v8907
  %v9075 = vunpack.c.h.b16 %v8907
  %v9076 = vunpack.c.l.b16 %v8908
  %v9077 = vunpack.c.h.b16 %v8908
  %v9078 = vunpack.c.l.b16 %v8909
  %v9079 = vunpack.c.h.b16 %v8909
  %v9080 = vunpack.c.l.b16 %v8910
  %v9081 = vunpack.c.h.b16 %v8910
  %v9082 = vunpack.c.l.b16 %v8911
  %v9083 = vunpack.c.h.b16 %v8911
  %v9084 = vunpack.c.l.b16 %v8912
  %v9085 = vunpack.c.h.b16 %v8912
  %v9086 = vunpack.c.l.b16 %v8913
  %v9087 = vunpack.c.h.b16 %v8913
  %v9088 = vunpack.c.l.b16 %v8914
  %v9089 = vunpack.c.h.b16 %v8914
  %v9090 = vunpack.c.l.b16 %v8915
  %v9091 = vunpack.c.h.b16 %v8915
  %v9092 = vunpack.c.l.b16 %v8916
  %v9093 = vunpack.c.h.b16 %v8916
  %v9094 = vunpack.c.l.b16 %v8917
  %v9095 = vunpack.c.h.b16 %v8917
  %v9096 = vunpack.c.l.b16 %v8918
  %v9097 = vunpack.c.h.b16 %v8918
  %v9098 = vunpack.c.l.b16 %v8919
  %v9099 = vunpack.c.h.b16 %v8919
  %v9100 = vunpack.c.l.b16 %v8920
  %v9101 = vunpack.c.h.b16 %v8920
  %v9102 = vunpack.c.l.b16 %v8921
  %v9103 = vunpack.c.h.b16 %v8921
  %v9104 = vunpack.c.l.b16 %v8922
  %v9105 = vunpack.c.h.b16 %v8922
  %v9106 = vunpack.c.l.b16 %v8923
  %v9107 = vunpack.c.h.b16 %v8923
  %v9108 = vunpack.c.l.b16 %v8924
  %v9109 = vunpack.c.h.b16 %v8924
  %v9110 = vunpack.c.l.b16 %v8925
  %v9111 = vunpack.c.h.b16 %v8925
  %v9112 = vunpack.c.l.b16 %v8926
  %v9113 = vunpack.c.h.b16 %v8926
  %v9114 = vunpack.c.l.b16 %v8927
  %v9115 = vunpack.c.h.b16 %v8927
  %v9116 = vunpack.c.l.b16 %v8928
  %v9117 = vunpack.c.h.b16 %v8928
  %v9118 = vunpack.c.l.b16 %v8929
  %v9119 = vunpack.c.h.b16 %v8929
  %v9120 = vunpack.c.l.b16 %v8930
  %v9121 = vunpack.c.h.b16 %v8930
  %v9122 = vunpack.c.l.b16 %v8931
  %v9123 = vunpack.c.h.b16 %v8931
  %v9124 = vunpack.c.l.b16 %v8932
  %v9125 = vunpack.c.h.b16 %v8932
  %v9126 = vunpack.c.l.b16 %v8933
  %v9127 = vunpack.c.h.b16 %v8933
  %v9128 = vunpack.c.l.b16 %v8934
  %v9129 = vunpack.c.h.b16 %v8934
  %v9130 = vunpack.c.l.b16 %v8935
  %v9131 = vunpack.c.h.b16 %v8935
  %v9132 = vunpack.c.l.b16 %v8936
  %v9133 = vunpack.c.h.b16 %v8936
  %v9134 = vunpack.c.l.b16 %v8937
  %v9135 = vunpack.c.h.b16 %v8937
  %v9136 = vunpack.c.l.b16 %v8938
  %v9137 = vunpack.c.h.b16 %v8938
  %v9138 = vunpack.c.l.b16 %v8939
  %v9139 = vunpack.c.h.b16 %v8939
  %v9140 = vunpack.c.l.b16 %v8940
  %v9141 = vunpack.c.h.b16 %v8940
  %v9142 = vunpack.c.l.b16 %v8941
  %v9143 = vunpack.c.h.b16 %v8941
  %v9144 = vunpack.c.l.b16 %v8942
  %v9145 = vunpack.c.h.b16 %v8942
  %v9146 = vunpack.c.l.b16 %v8943
  %v9147 = vunpack.c.h.b16 %v8943
  %v9148 = vunpack.c.l.b16 %v8944
  %v9149 = vunpack.c.h.b16 %v8944
  %v9150 = vunpack.c.l.b16 %v8945
  %v9151 = vunpack.c.h.b16 %v8945
  %v9152 = vunpack.c.l.b16 %v8946
  %v9153 = vunpack.c.h.b16 %v8946
  %v9154 = vunpack.c.l.b16 %v8947
  %v9155 = vunpack.c.h.b16 %v8947
  %v9156 = vunpack.c.l.b16 %v8948
  %v9157 = vunpack.c.h.b16 %v8948
  %v9158 = vunpack.c.l.b16 %v8949
  %v9159 = vunpack.c.h.b16 %v8949
  %v9160 = vunpack.c.l.b16 %v8950
  %v9161 = vunpack.c.h.b16 %v8950
  %v9162 = vunpack.c.l.b16 %v8951
  %v9163 = vunpack.c.h.b16 %v8951
  %v9164 = vunpack.c.l.b16 %v8952
  %v9165 = vunpack.c.h.b16 %v8952
  %v9166 = vunpack.c.l.b16 %v8953
  %v9167 = vunpack.c.h.b16 %v8953
  %v9168 = vpack.c.b16 %v9044, %v9040
  %v9169 = vpack.c.b16 %v9045, %v9041
  %v9170 = vpack.c.b16 %v9046, %v9042
  %v9171 = vpack.c.b16 %v9047, %v9043
  %v9172 = vpack.c.b16 %v9052, %v9048
  %v9173 = vpack.c.b16 %v9053, %v9049
  %v9174 = vpack.c.b16 %v9054, %v9050
  %v9175 = vpack.c.b16 %v9055, %v9051
  %v9176 = vpack.c.b16 %v9060, %v9056
  %v9177 = vpack.c.b16 %v9061, %v9057
  %v9178 = vpack.c.b16 %v9062, %v9058
  %v9179 = vpack.c.b16 %v9063, %v9059
  %v9180 = vpack.c.b16 %v9068, %v9064
  %v9181 = vpack.c.b16 %v9069, %v9065
  %v9182 = vpack.c.b16 %v9070, %v9066
  %v9183 = vpack.c.b16 %v9071, %v9067
  %v9184 = vpack.c.b16 %v9076, %v9072
  %v9185 = vpack.c.b16 %v9077, %v9073
  %v9186 = vpack.c.b16 %v9078, %v9074
  %v9187 = vpack.c.b16 %v9079, %v9075
  %v9188 = vpack.c.b16 %v9084, %v9080
  %v9189 = vpack.c.b16 %v9085, %v9081
  %v9190 = vpack.c.b16 %v9086, %v9082
  %v9191 = vpack.c.b16 %v9087, %v9083
  %v9192 = vpack.c.b16 %v9092, %v9088
  %v9193 = vpack.c.b16 %v9093, %v9089
  %v9194 = vpack.c.b16 %v9094, %v9090
  %v9195 = vpack.c.b16 %v9095, %v9091
  %v9196 = vpack.c.b16 %v9100, %v9096
  %v9197 = vpack.c.b16 %v9101, %v9097
  %v9198 = vpack.c.b16 %v9102, %v9098
  %v9199 = vpack.c.b16 %v9103, %v9099
  %v9200 = vpack.c.b16 %v9108, %v9104
  %v9201 = vpack.c.b16 %v9109, %v9105
  %v9202 = vpack.c.b16 %v9110, %v9106
  %v9203 = vpack.c.b16 %v9111, %v9107
  %v9204 = vpack.c.b16 %v9116, %v9112
  %v9205 = vpack.c.b16 %v9117, %v9113
  %v9206 = vpack.c.b16 %v9118, %v9114
  %v9207 = vpack.c.b16 %v9119, %v9115
  %v9208 = vpack.c.b16 %v9124, %v9120
  %v9209 = vpack.c.b16 %v9125, %v9121
  %v9210 = vpack.c.b16 %v9126, %v9122
  %v9211 = vpack.c.b16 %v9127, %v9123
  %v9212 = vpack.c.b16 %v9132, %v9128
  %v9213 = vpack.c.b16 %v9133, %v9129
  %v9214 = vpack.c.b16 %v9134, %v9130
  %v9215 = vpack.c.b16 %v9135, %v9131
  %v9216 = vpack.c.b16 %v9140, %v9136
  %v9217 = vpack.c.b16 %v9141, %v9137
  %v9218 = vpack.c.b16 %v9142, %v9138
  %v9219 = vpack.c.b16 %v9143, %v9139
  %v9220 = vpack.c.b16 %v9148, %v9144
  %v9221 = vpack.c.b16 %v9149, %v9145
  %v9222 = vpack.c.b16 %v9150, %v9146
  %v9223 = vpack.c.b16 %v9151, %v9147
  %v9224 = vpack.c.b16 %v9156, %v9152
  %v9225 = vpack.c.b16 %v9157, %v9153
  %v9226 = vpack.c.b16 %v9158, %v9154
  %v9227 = vpack.c.b16 %v9159, %v9155
  %v9228 = vpack.c.b16 %v9164, %v9160
  %v9229 = vpack.c.b16 %v9165, %v9161
  %v9230 = vpack.c.b16 %v9166, %v9162
  %v9231 = vpack.c.b16 %v9167, %v9163
  %9296 = vmatprep.subr.bf16.mxu0 %v9169
  %9297 = vmatpush1.bf16.msra.mxu0 %v9168
  %9298 = vmatprep.subr.bf16.mxu0 %v9173
  %9299 = vmatpush1.bf16.msra.mxu0 %v9172
  %9300 = vmatprep.subr.bf16.mxu0 %v9177
  %9301 = vmatpush1.bf16.msra.mxu0 %v9176
  %9302 = vmatprep.subr.bf16.mxu0 %v9181
  %9303 = vmatpush1.bf16.msra.mxu0 %v9180
  %9304 = vmatprep.subr.bf16.mxu0 %v9185
  %9305 = vmatpush1.bf16.msra.mxu0 %v9184
  %9306 = vmatprep.subr.bf16.mxu0 %v9189
  %9307 = vmatpush1.bf16.msra.mxu0 %v9188
  %9308 = vmatprep.subr.bf16.mxu0 %v9193
  %9309 = vmatpush1.bf16.msra.mxu0 %v9192
  %9310 = vmatprep.subr.bf16.mxu0 %v9197
  %9311 = vmatpush1.bf16.msra.mxu0 %v9196
  %9312 = vmatprep.subr.bf16.mxu0 %v9201
  %9313 = vmatpush1.bf16.msra.mxu0 %v9200
  %9314 = vmatprep.subr.bf16.mxu0 %v9205
  %9315 = vmatpush1.bf16.msra.mxu0 %v9204
  %9316 = vmatprep.subr.bf16.mxu0 %v9209
  %9317 = vmatpush1.bf16.msra.mxu0 %v9208
  %9318 = vmatprep.subr.bf16.mxu0 %v9213
  %9319 = vmatpush1.bf16.msra.mxu0 %v9212
  %9320 = vmatprep.subr.bf16.mxu0 %v9217
  %9321 = vmatpush1.bf16.msra.mxu0 %v9216
  %9322 = vmatprep.subr.bf16.mxu0 %v9221
  %9323 = vmatpush1.bf16.msra.mxu0 %v9220
  %9324 = vmatprep.subr.bf16.mxu0 %v9225
  %9325 = vmatpush1.bf16.msra.mxu0 %v9224
  %9326 = vmatprep.subr.bf16.mxu0 %v9229
  %9327 = vmatpush1.bf16.msra.mxu0 %v9228
  %9328 = vmatprep.mubr.bf16.mxu0 %v8859
  %9329 = vmatmul.mubr.bf16.gmra.mrb[0].mxu0 %v8858
  %v9330 = vpop.f32.mrb[0].mxu0
  %v9331 = vadd.f32 %v8959, %v9330
  %v9332 = vpop.f32.mrb[0].mxu0
  %v9333 = vadd.f32 %v8963, %v9332
  %v9334 = vpop.f32.mrb[0].mxu0
  %v9335 = vadd.f32 %v8959, %v9334
  %v9336 = vpop.f32.mrb[0].mxu0
  %v9337 = vadd.f32 %v8963, %v9336
  %9338 = vmatprep.mubr.bf16.mxu0 %v8861
  %9339 = vmatmul.mubr.bf16.gmra.mrb[0].mxu0 %v8860
  %v9340 = vpop.f32.mrb[0].mxu0
  %v9341 = vadd.f32 %v8959, %v9340
  %v9342 = vpop.f32.mrb[0].mxu0
  %v9343 = vadd.f32 %v8963, %v9342
  %v9344 = vpop.f32.mrb[0].mxu0
  %v9345 = vadd.f32 %v8959, %v9344
  %v9346 = vpop.f32.mrb[0].mxu0
  %v9347 = vadd.f32 %v8963, %v9346
  %9348 = vmatprep.mubr.bf16.mxu0 %v8863
  %9349 = vmatmul.mubr.bf16.gmra.mrb[0].mxu0 %v8862
  %v9350 = vpop.f32.mrb[0].mxu0
  %v9351 = vadd.f32 %v8959, %v9350
  %v9352 = vpop.f32.mrb[0].mxu0
  %v9353 = vadd.f32 %v8963, %v9352
  %v9354 = vpop.f32.mrb[0].mxu0
  %v9355 = vadd.f32 %v8959, %v9354
  %v9356 = vpop.f32.mrb[0].mxu0
  %v9357 = vadd.f32 %v8963, %v9356
  %9358 = vmatprep.mubr.bf16.mxu0 %v8865
  %9359 = vmatmul.mubr.bf16.gmra.mrb[0].mxu0 %v8864
  %v9360 = vpop.f32.mrb[0].mxu0
  %v9361 = vadd.f32 %v8959, %v9360
  %v9362 = vpop.f32.mrb[0].mxu0
  %v9363 = vadd.f32 %v8963, %v9362
  %v9364 = vpop.f32.mrb[0].mxu0
  %v9365 = vadd.f32 %v8959, %v9364
  %v9366 = vpop.f32.mrb[0].mxu0
  %v9367 = vadd.f32 %v8963, %v9366
  %9368 = vmatprep.mubr.bf16.mxu0 %v8867
  %9369 = vmatmul.mubr.bf16.gmra.mrb[0].mxu0 %v8866
  %v9370 = vpop.f32.mrb[0].mxu0
  %v9371 = vadd.f32 %v8959, %v9370
  %v9372 = vpop.f32.mrb[0].mxu0
  %v9373 = vadd.f32 %v8963, %v9372
  %v9374 = vpop.f32.mrb[0].mxu0
  %v9375 = vadd.f32 %v8959, %v9374
  %v9376 = vpop.f32.mrb[0].mxu0
  %v9377 = vadd.f32 %v8963, %v9376
  %9378 = vmatprep.mubr.bf16.mxu0 %v8869
  %9379 = vmatmul.mubr.bf16.gmra.mrb[0].mxu0 %v8868
  %v9380 = vpop.f32.mrb[0].mxu0
  %v9381 = vadd.f32 %v8959, %v9380
  %v9382 = vpop.f32.mrb[0].mxu0
  %v9383 = vadd.f32 %v8963, %v9382
  %v9384 = vpop.f32.mrb[0].mxu0
  %v9385 = vadd.f32 %v8959, %v9384
  %v9386 = vpop.f32.mrb[0].mxu0
  %v9387 = vadd.f32 %v8963, %v9386
  %9388 = vmatprep.mubr.bf16.mxu0 %v8871
  %9389 = vmatmul.mubr.bf16.gmra.mrb[0].mxu0 %v8870
  %v9390 = vpop.f32.mrb[0].mxu0
  %v9391 = vadd.f32 %v8959, %v9390
  %v9392 = vpop.f32.mrb[0].mxu0
  %v9393 = vadd.f32 %v8963, %v9392
  %v9394 = vpop.f32.mrb[0].mxu0
  %v9395 = vadd.f32 %v8959, %v9394
  %v9396 = vpop.f32.mrb[0].mxu0
  %v9397 = vadd.f32 %v8963, %v9396
  %9398 = vmatprep.mubr.bf16.mxu0 %v8873
  %9399 = vmatmul.mubr.bf16.gmra.mrb[0].mxu0 %v8872
  %v9400 = vpop.f32.mrb[0].mxu0
  %v9401 = vadd.f32 %v8959, %v9400
  %v9402 = vpop.f32.mrb[0].mxu0
  %v9403 = vadd.f32 %v8963, %v9402
  %v9404 = vpop.f32.mrb[0].mxu0
  %v9405 = vadd.f32 %v8959, %v9404
  %v9406 = vpop.f32.mrb[0].mxu0
  %v9407 = vadd.f32 %v8963, %v9406
  %9408 = vmatprep.mubr.bf16.mxu0 %v8875
  %9409 = vmatmul.mubr.bf16.gmra.mrb[0].mxu0 %v8874
  %v9410 = vpop.f32.mrb[0].mxu0
  %v9411 = vadd.f32 %v8959, %v9410
  %v9412 = vpop.f32.mrb[0].mxu0
  %v9413 = vadd.f32 %v8963, %v9412
  %v9414 = vpop.f32.mrb[0].mxu0
  %v9415 = vadd.f32 %v8959, %v9414
  %v9416 = vpop.f32.mrb[0].mxu0
  %v9417 = vadd.f32 %v8963, %v9416
  %9418 = vmatprep.mubr.bf16.mxu0 %v8877
  %9419 = vmatmul.mubr.bf16.gmra.mrb[0].mxu0 %v8876
  %v9420 = vpop.f32.mrb[0].mxu0
  %v9421 = vadd.f32 %v8959, %v9420
  %v9422 = vpop.f32.mrb[0].mxu0
  %v9423 = vadd.f32 %v8963, %v9422
  %v9424 = vpop.f32.mrb[0].mxu0
  %v9425 = vadd.f32 %v8959, %v9424
  %v9426 = vpop.f32.mrb[0].mxu0
  %v9427 = vadd.f32 %v8963, %v9426
  %9428 = vmatprep.mubr.bf16.mxu0 %v8879
  %9429 = vmatmul.mubr.bf16.gmra.mrb[0].mxu0 %v8878
  %v9430 = vpop.f32.mrb[0].mxu0
  %v9431 = vadd.f32 %v8959, %v9430
  %v9432 = vpop.f32.mrb[0].mxu0
  %v9433 = vadd.f32 %v8963, %v9432
  %v9434 = vpop.f32.mrb[0].mxu0
  %v9435 = vadd.f32 %v8959, %v9434
  %v9436 = vpop.f32.mrb[0].mxu0
  %v9437 = vadd.f32 %v8963, %v9436
  %9438 = vmatprep.mubr.bf16.mxu0 %v8881
  %9439 = vmatmul.mubr.bf16.gmra.mrb[0].mxu0 %v8880
  %v9440 = vpop.f32.mrb[0].mxu0
  %v9441 = vadd.f32 %v8959, %v9440
  %v9442 = vpop.f32.mrb[0].mxu0
  %v9443 = vadd.f32 %v8963, %v9442
  %v9444 = vpop.f32.mrb[0].mxu0
  %v9445 = vadd.f32 %v8959, %v9444
  %v9446 = vpop.f32.mrb[0].mxu0
  %v9447 = vadd.f32 %v8963, %v9446
  %9448 = vmatprep.mubr.bf16.mxu0 %v8883
  %9449 = vmatmul.mubr.bf16.gmra.mrb[0].mxu0 %v8882
  %v9450 = vpop.f32.mrb[0].mxu0
  %v9451 = vadd.f32 %v8959, %v9450
  %v9452 = vpop.f32.mrb[0].mxu0
  %v9453 = vadd.f32 %v8963, %v9452
  %v9454 = vpop.f32.mrb[0].mxu0
  %v9455 = vadd.f32 %v8959, %v9454
  %v9456 = vpop.f32.mrb[0].mxu0
  %v9457 = vadd.f32 %v8963, %v9456
  %9458 = vmatprep.mubr.bf16.mxu0 %v8885
  %9459 = vmatmul.mubr.bf16.gmra.mrb[0].mxu0 %v8884
  %v9460 = vpop.f32.mrb[0].mxu0
  %v9461 = vadd.f32 %v8959, %v9460
  %v9462 = vpop.f32.mrb[0].mxu0
  %v9463 = vadd.f32 %v8963, %v9462
  %v9464 = vpop.f32.mrb[0].mxu0
  %v9465 = vadd.f32 %v8959, %v9464
  %v9466 = vpop.f32.mrb[0].mxu0
  %v9467 = vadd.f32 %v8963, %v9466
  %9468 = vmatprep.mubr.bf16.mxu0 %v8887
  %9469 = vmatmul.mubr.bf16.gmra.mrb[0].mxu0 %v8886
  %v9470 = vpop.f32.mrb[0].mxu0
  %v9471 = vadd.f32 %v8959, %v9470
  %v9472 = vpop.f32.mrb[0].mxu0
  %v9473 = vadd.f32 %v8963, %v9472
  %v9474 = vpop.f32.mrb[0].mxu0
  %v9475 = vadd.f32 %v8959, %v9474
  %v9476 = vpop.f32.mrb[0].mxu0
  %v9477 = vadd.f32 %v8963, %v9476
  %9478 = vmatprep.mubr.bf16.mxu0 %v8889
  %9479 = vmatmul.mubr.bf16.gmra.mrb[0].mxu0 %v8888
  %v9480 = vpop.f32.mrb[0].mxu0
  %v9481 = vadd.f32 %v8959, %v9480
  %v9482 = vpop.f32.mrb[0].mxu0
  %v9483 = vadd.f32 %v8963, %v9482
  %v9484 = vpop.f32.mrb[0].mxu0
  %v9485 = vadd.f32 %v8959, %v9484
  %v9486 = vpop.f32.mrb[0].mxu0
  %v9487 = vadd.f32 %v8963, %v9486
  %9488 = vdwg.mxu0
  %9489 = vmatprep.subr.bf16.mxu0 %v9171
  %9490 = vmatpush1.bf16.msra.mxu0 %v9170
  %9491 = vmatprep.subr.bf16.mxu0 %v9175
  %9492 = vmatpush1.bf16.msra.mxu0 %v9174
  %9493 = vmatprep.subr.bf16.mxu0 %v9179
  %9494 = vmatpush1.bf16.msra.mxu0 %v9178
  %9495 = vmatprep.subr.bf16.mxu0 %v9183
  %9496 = vmatpush1.bf16.msra.mxu0 %v9182
  %9497 = vmatprep.subr.bf16.mxu0 %v9187
  %9498 = vmatpush1.bf16.msra.mxu0 %v9186
  %9499 = vmatprep.subr.bf16.mxu0 %v9191
  %9500 = vmatpush1.bf16.msra.mxu0 %v9190
  %9501 = vmatprep.subr.bf16.mxu0 %v9195
  %9502 = vmatpush1.bf16.msra.mxu0 %v9194
  %9503 = vmatprep.subr.bf16.mxu0 %v9199
  %9504 = vmatpush1.bf16.msra.mxu0 %v9198
  %9505 = vmatprep.subr.bf16.mxu0 %v9203
  %9506 = vmatpush1.bf16.msra.mxu0 %v9202
  %9507 = vmatprep.subr.bf16.mxu0 %v9207
  %9508 = vmatpush1.bf16.msra.mxu0 %v9206
  %9509 = vmatprep.subr.bf16.mxu0 %v9211
  %9510 = vmatpush1.bf16.msra.mxu0 %v9210
  %9511 = vmatprep.subr.bf16.mxu0 %v9215
  %9512 = vmatpush1.bf16.msra.mxu0 %v9214
  %9513 = vmatprep.subr.bf16.mxu0 %v9219
  %9514 = vmatpush1.bf16.msra.mxu0 %v9218
  %9515 = vmatprep.subr.bf16.mxu0 %v9223
  %9516 = vmatpush1.bf16.msra.mxu0 %v9222
  %9517 = vmatprep.subr.bf16.mxu0 %v9227
  %9518 = vmatpush1.bf16.msra.mxu0 %v9226
  %9519 = vmatprep.subr.bf16.mxu0 %v9231
  %9520 = vmatpush1.bf16.msra.mxu0 %v9230
  %9521 = vmatprep.mubr.bf16.mxu0 %v8859
  %9522 = vmatmul.mubr.bf16.gmra.mrb[0].mxu0 %v8858
  %v9523 = vpop.f32.mrb[0].mxu0
  %v9524 = vadd.f32 %v8967, %v9523
  %v9525 = vpop.f32.mrb[0].mxu0
  %v9526 = vadd.f32 %v8971, %v9525
  %v9527 = vpop.f32.mrb[0].mxu0
  %v9528 = vadd.f32 %v8967, %v9527
  %v9529 = vpop.f32.mrb[0].mxu0
  %v9530 = vadd.f32 %v8971, %v9529
  %9531 = vmatprep.mubr.bf16.mxu0 %v8861
  %9532 = vmatmul.mubr.bf16.gmra.mrb[0].mxu0 %v8860
  %v9533 = vpop.f32.mrb[0].mxu0
  %v9534 = vadd.f32 %v8967, %v9533
  %v9535 = vpop.f32.mrb[0].mxu0
  %v9536 = vadd.f32 %v8971, %v9535
  %v9537 = vpop.f32.mrb[0].mxu0
  %v9538 = vadd.f32 %v8967, %v9537
  %v9539 = vpop.f32.mrb[0].mxu0
  %v9540 = vadd.f32 %v8971, %v9539
  %9541 = vmatprep.mubr.bf16.mxu0 %v8863
  %9542 = vmatmul.mubr.bf16.gmra.mrb[0].mxu0 %v8862
  %v9543 = vpop.f32.mrb[0].mxu0
  %v9544 = vadd.f32 %v8967, %v9543
  %v9545 = vpop.f32.mrb[0].mxu0
  %v9546 = vadd.f32 %v8971, %v9545
  %v9547 = vpop.f32.mrb[0].mxu0
  %v9548 = vadd.f32 %v8967, %v9547
  %v9549 = vpop.f32.mrb[0].mxu0
  %v9550 = vadd.f32 %v8971, %v9549
  %9551 = vmatprep.mubr.bf16.mxu0 %v8865
  %9552 = vmatmul.mubr.bf16.gmra.mrb[0].mxu0 %v8864
  %v9553 = vpop.f32.mrb[0].mxu0
  %v9554 = vadd.f32 %v8967, %v9553
  %v9555 = vpop.f32.mrb[0].mxu0
  %v9556 = vadd.f32 %v8971, %v9555
  %v9557 = vpop.f32.mrb[0].mxu0
  %v9558 = vadd.f32 %v8967, %v9557
  %v9559 = vpop.f32.mrb[0].mxu0
  %v9560 = vadd.f32 %v8971, %v9559
  %9561 = vmatprep.mubr.bf16.mxu0 %v8867
  %9562 = vmatmul.mubr.bf16.gmra.mrb[0].mxu0 %v8866
  %v9563 = vpop.f32.mrb[0].mxu0
  %v9564 = vadd.f32 %v8967, %v9563
  %v9565 = vpop.f32.mrb[0].mxu0
  %v9566 = vadd.f32 %v8971, %v9565
  %v9567 = vpop.f32.mrb[0].mxu0
  %v9568 = vadd.f32 %v8967, %v9567
  %v9569 = vpop.f32.mrb[0].mxu0
  %v9570 = vadd.f32 %v8971, %v9569
  %9571 = vmatprep.mubr.bf16.mxu0 %v8869
  %9572 = vmatmul.mubr.bf16.gmra.mrb[0].mxu0 %v8868
  %v9573 = vpop.f32.mrb[0].mxu0
  %v9574 = vadd.f32 %v8967, %v9573
  %v9575 = vpop.f32.mrb[0].mxu0
  %v9576 = vadd.f32 %v8971, %v9575
  %v9577 = vpop.f32.mrb[0].mxu0
  %v9578 = vadd.f32 %v8967, %v9577
  %v9579 = vpop.f32.mrb[0].mxu0
  %v9580 = vadd.f32 %v8971, %v9579
  %9581 = vmatprep.mubr.bf16.mxu0 %v8871
  %9582 = vmatmul.mubr.bf16.gmra.mrb[0].mxu0 %v8870
  %v9583 = vpop.f32.mrb[0].mxu0
  %v9584 = vadd.f32 %v8967, %v9583
  %v9585 = vpop.f32.mrb[0].mxu0
  %v9586 = vadd.f32 %v8971, %v9585
  %v9587 = vpop.f32.mrb[0].mxu0
  %v9588 = vadd.f32 %v8967, %v9587
  %v9589 = vpop.f32.mrb[0].mxu0
  %v9590 = vadd.f32 %v8971, %v9589
  %9591 = vmatprep.mubr.bf16.mxu0 %v8873
  %9592 = vmatmul.mubr.bf16.gmra.mrb[0].mxu0 %v8872
  %v9593 = vpop.f32.mrb[0].mxu0
  %v9594 = vadd.f32 %v8967, %v9593
  %v9595 = vpop.f32.mrb[0].mxu0
  %v9596 = vadd.f32 %v8971, %v9595
  %v9597 = vpop.f32.mrb[0].mxu0
  %v9598 = vadd.f32 %v8967, %v9597
  %v9599 = vpop.f32.mrb[0].mxu0
  %v9600 = vadd.f32 %v8971, %v9599
  %9601 = vmatprep.mubr.bf16.mxu0 %v8875
  %9602 = vmatmul.mubr.bf16.gmra.mrb[0].mxu0 %v8874
  %v9603 = vpop.f32.mrb[0].mxu0
  %v9604 = vadd.f32 %v8967, %v9603
  %v9605 = vpop.f32.mrb[0].mxu0
  %v9606 = vadd.f32 %v8971, %v9605
  %v9607 = vpop.f32.mrb[0].mxu0
  %v9608 = vadd.f32 %v8967, %v9607
  %v9609 = vpop.f32.mrb[0].mxu0
  %v9610 = vadd.f32 %v8971, %v9609
  %9611 = vmatprep.mubr.bf16.mxu0 %v8877
  %9612 = vmatmul.mubr.bf16.gmra.mrb[0].mxu0 %v8876
  %v9613 = vpop.f32.mrb[0].mxu0
  %v9614 = vadd.f32 %v8967, %v9613
  %v9615 = vpop.f32.mrb[0].mxu0
  %v9616 = vadd.f32 %v8971, %v9615
  %v9617 = vpop.f32.mrb[0].mxu0
  %v9618 = vadd.f32 %v8967, %v9617
  %v9619 = vpop.f32.mrb[0].mxu0
  %v9620 = vadd.f32 %v8971, %v9619
  %9621 = vmatprep.mubr.bf16.mxu0 %v8879
  %9622 = vmatmul.mubr.bf16.gmra.mrb[0].mxu0 %v8878
  %v9623 = vpop.f32.mrb[0].mxu0
  %v9624 = vadd.f32 %v8967, %v9623
  %v9625 = vpop.f32.mrb[0].mxu0
  %v9626 = vadd.f32 %v8971, %v9625
  %v9627 = vpop.f32.mrb[0].mxu0
  %v9628 = vadd.f32 %v8967, %v9627
  %v9629 = vpop.f32.mrb[0].mxu0
  %v9630 = vadd.f32 %v8971, %v9629
  %9631 = vmatprep.mubr.bf16.mxu0 %v8881
  %9632 = vmatmul.mubr.bf16.gmra.mrb[0].mxu0 %v8880
  %v9633 = vpop.f32.mrb[0].mxu0
  %v9634 = vadd.f32 %v8967, %v9633
  %v9635 = vpop.f32.mrb[0].mxu0
  %v9636 = vadd.f32 %v8971, %v9635
  %v9637 = vpop.f32.mrb[0].mxu0
  %v9638 = vadd.f32 %v8967, %v9637
  %v9639 = vpop.f32.mrb[0].mxu0
  %v9640 = vadd.f32 %v8971, %v9639
  %9641 = vmatprep.mubr.bf16.mxu0 %v8883
  %9642 = vmatmul.mubr.bf16.gmra.mrb[0].mxu0 %v8882
  %v9643 = vpop.f32.mrb[0].mxu0
  %v9644 = vadd.f32 %v8967, %v9643
  %v9645 = vpop.f32.mrb[0].mxu0
  %v9646 = vadd.f32 %v8971, %v9645
  %v9647 = vpop.f32.mrb[0].mxu0
  %v9648 = vadd.f32 %v8967, %v9647
  %v9649 = vpop.f32.mrb[0].mxu0
  %v9650 = vadd.f32 %v8971, %v9649
  %9651 = vmatprep.mubr.bf16.mxu0 %v8885
  %9652 = vmatmul.mubr.bf16.gmra.mrb[0].mxu0 %v8884
  %v9653 = vpop.f32.mrb[0].mxu0
  %v9654 = vadd.f32 %v8967, %v9653
  %v9655 = vpop.f32.mrb[0].mxu0
  %v9656 = vadd.f32 %v8971, %v9655
  %v9657 = vpop.f32.mrb[0].mxu0
  %v9658 = vadd.f32 %v8967, %v9657
  %v9659 = vpop.f32.mrb[0].mxu0
  %v9660 = vadd.f32 %v8971, %v9659
  %9661 = vmatprep.mubr.bf16.mxu0 %v8887
  %9662 = vmatmul.mubr.bf16.gmra.mrb[0].mxu0 %v8886
  %v9663 = vpop.f32.mrb[0].mxu0
  %v9664 = vadd.f32 %v8967, %v9663
  %v9665 = vpop.f32.mrb[0].mxu0
  %v9666 = vadd.f32 %v8971, %v9665
  %v9667 = vpop.f32.mrb[0].mxu0
  %v9668 = vadd.f32 %v8967, %v9667
  %v9669 = vpop.f32.mrb[0].mxu0
  %v9670 = vadd.f32 %v8971, %v9669
  %9671 = vmatprep.mubr.bf16.mxu0 %v8889
  %9672 = vmatmul.mubr.bf16.gmra.mrb[0].mxu0 %v8888
  %v9673 = vpop.f32.mrb[0].mxu0
  %v9674 = vadd.f32 %v8967, %v9673
  %v9675 = vpop.f32.mrb[0].mxu0
  %v9676 = vadd.f32 %v8971, %v9675
  %v9677 = vpop.f32.mrb[0].mxu0
  %v9678 = vadd.f32 %v8967, %v9677
  %v9679 = vpop.f32.mrb[0].mxu0
  %v9680 = vadd.f32 %v8971, %v9679
  %9681 = vdwg.mxu0
  %v9682 = vpack.c.bf16 %v9335, %v9331
  %v9683 = vpack.c.bf16 %v9337, %v9333
  %v9684 = vpack.c.bf16 %v9528, %v9524
  %v9685 = vpack.c.bf16 %v9530, %v9526
  %v9686 = vpack.c.bf16 %v9345, %v9341
  %v9687 = vpack.c.bf16 %v9347, %v9343
  %v9688 = vpack.c.bf16 %v9538, %v9534
  %v9689 = vpack.c.bf16 %v9540, %v9536
  %v9690 = vpack.c.bf16 %v9355, %v9351
  %v9691 = vpack.c.bf16 %v9357, %v9353
  %v9692 = vpack.c.bf16 %v9548, %v9544
  %v9693 = vpack.c.bf16 %v9550, %v9546
  %v9694 = vpack.c.bf16 %v9365, %v9361
  %v9695 = vpack.c.bf16 %v9367, %v9363
  %v9696 = vpack.c.bf16 %v9558, %v9554
  %v9697 = vpack.c.bf16 %v9560, %v9556
  %v9698 = vpack.c.bf16 %v9375, %v9371
  %v9699 = vpack.c.bf16 %v9377, %v9373
  %v9700 = vpack.c.bf16 %v9568, %v9564
  %v9701 = vpack.c.bf16 %v9570, %v9566
  %v9702 = vpack.c.bf16 %v9385, %v9381
  %v9703 = vpack.c.bf16 %v9387, %v9383
  %v9704 = vpack.c.bf16 %v9578, %v9574
  %v9705 = vpack.c.bf16 %v9580, %v9576
  %v9706 = vpack.c.bf16 %v9395, %v9391
  %v9707 = vpack.c.bf16 %v9397, %v9393
  %v9708 = vpack.c.bf16 %v9588, %v9584
  %v9709 = vpack.c.bf16 %v9590, %v9586
  %v9710 = vpack.c.bf16 %v9405, %v9401
  %v9711 = vpack.c.bf16 %v9407, %v9403
  %v9712 = vpack.c.bf16 %v9598, %v9594
  %v9713 = vpack.c.bf16 %v9600, %v9596
  %v9714 = vpack.c.bf16 %v9415, %v9411
  %v9715 = vpack.c.bf16 %v9417, %v9413
  %v9716 = vpack.c.bf16 %v9608, %v9604
  %v9717 = vpack.c.bf16 %v9610, %v9606
  %v9718 = vpack.c.bf16 %v9425, %v9421
  %v9719 = vpack.c.bf16 %v9427, %v9423
  %v9720 = vpack.c.bf16 %v9618, %v9614
  %v9721 = vpack.c.bf16 %v9620, %v9616
  %v9722 = vpack.c.bf16 %v9435, %v9431
  %v9723 = vpack.c.bf16 %v9437, %v9433
  %v9724 = vpack.c.bf16 %v9628, %v9624
  %v9725 = vpack.c.bf16 %v9630, %v9626
  %v9726 = vpack.c.bf16 %v9445, %v9441
  %v9727 = vpack.c.bf16 %v9447, %v9443
  %v9728 = vpack.c.bf16 %v9638, %v9634
  %v9729 = vpack.c.bf16 %v9640, %v9636
  %v9730 = vpack.c.bf16 %v9455, %v9451
  %v9731 = vpack.c.bf16 %v9457, %v9453
  %v9732 = vpack.c.bf16 %v9648, %v9644
  %v9733 = vpack.c.bf16 %v9650, %v9646
  %v9734 = vpack.c.bf16 %v9465, %v9461
  %v9735 = vpack.c.bf16 %v9467, %v9463
  %v9736 = vpack.c.bf16 %v9658, %v9654
  %v9737 = vpack.c.bf16 %v9660, %v9656
  %v9738 = vpack.c.bf16 %v9475, %v9471
  %v9739 = vpack.c.bf16 %v9477, %v9473
  %v9740 = vpack.c.bf16 %v9668, %v9664
  %v9741 = vpack.c.bf16 %v9670, %v9666
  %v9742 = vpack.c.bf16 %v9485, %v9481
  %v9743 = vpack.c.bf16 %v9487, %v9483
  %v9744 = vpack.c.bf16 %v9678, %v9674
  %v9745 = vpack.c.bf16 %v9680, %v9676
  %v9746 = vmul.bf16 %v9682, 1056980736
  %v9747 = vmul.bf16 %v9683, 1056980736
  %v9748 = vmul.bf16 %v9684, 1056980736
  %v9749 = vmul.bf16 %v9685, 1056980736
  %v9750 = vmul.bf16 %v9686, 1056980736
  %v9751 = vmul.bf16 %v9687, 1056980736
  %v9752 = vmul.bf16 %v9688, 1056980736
  %v9753 = vmul.bf16 %v9689, 1056980736
  %v9754 = vmul.bf16 %v9690, 1056980736
  %v9755 = vmul.bf16 %v9691, 1056980736
  %v9756 = vmul.bf16 %v9692, 1056980736
  %v9757 = vmul.bf16 %v9693, 1056980736
  %v9758 = vmul.bf16 %v9694, 1056980736
  %v9759 = vmul.bf16 %v9695, 1056980736
  %v9760 = vmul.bf16 %v9696, 1056980736
  %v9761 = vmul.bf16 %v9697, 1056980736
  %v9762 = vmul.bf16 %v9698, 1056980736
  %v9763 = vmul.bf16 %v9699, 1056980736
  %v9764 = vmul.bf16 %v9700, 1056980736
  %v9765 = vmul.bf16 %v9701, 1056980736
  %v9766 = vmul.bf16 %v9702, 1056980736
  %v9767 = vmul.bf16 %v9703, 1056980736
  %v9768 = vmul.bf16 %v9704, 1056980736
  %v9769 = vmul.bf16 %v9705, 1056980736
  %v9770 = vmul.bf16 %v9706, 1056980736
  %v9771 = vmul.bf16 %v9707, 1056980736
  %v9772 = vmul.bf16 %v9708, 1056980736
  %v9773 = vmul.bf16 %v9709, 1056980736
  %v9774 = vmul.bf16 %v9710, 1056980736
  %v9775 = vmul.bf16 %v9711, 1056980736
  %v9776 = vmul.bf16 %v9712, 1056980736
  %v9777 = vmul.bf16 %v9713, 1056980736
  %v9778 = vmul.bf16 %v9714, 1056980736
  %v9779 = vmul.bf16 %v9715, 1056980736
  %v9780 = vmul.bf16 %v9716, 1056980736
  %v9781 = vmul.bf16 %v9717, 1056980736
  %v9782 = vmul.bf16 %v9718, 1056980736
  %v9783 = vmul.bf16 %v9719, 1056980736
  %v9784 = vmul.bf16 %v9720, 1056980736
  %v9785 = vmul.bf16 %v9721, 1056980736
  %v9786 = vmul.bf16 %v9722, 1056980736
  %v9787 = vmul.bf16 %v9723, 1056980736
  %v9788 = vmul.bf16 %v9724, 1056980736
  %v9789 = vmul.bf16 %v9725, 1056980736
  %v9790 = vmul.bf16 %v9726, 1056980736
  %v9791 = vmul.bf16 %v9727, 1056980736
  %v9792 = vmul.bf16 %v9728, 1056980736
  %v9793 = vmul.bf16 %v9729, 1056980736
  %v9794 = vmul.bf16 %v9730, 1056980736
  %v9795 = vmul.bf16 %v9731, 1056980736
  %v9796 = vmul.bf16 %v9732, 1056980736
  %v9797 = vmul.bf16 %v9733, 1056980736
  %v9798 = vmul.bf16 %v9734, 1056980736
  %v9799 = vmul.bf16 %v9735, 1056980736
  %v9800 = vmul.bf16 %v9736, 1056980736
  %v9801 = vmul.bf16 %v9737, 1056980736
  %v9802 = vmul.bf16 %v9738, 1056980736
  %v9803 = vmul.bf16 %v9739, 1056980736
  %v9804 = vmul.bf16 %v9740, 1056980736
  %v9805 = vmul.bf16 %v9741, 1056980736
  %v9806 = vmul.bf16 %v9742, 1056980736
  %v9807 = vmul.bf16 %v9743, 1056980736
  %v9808 = vmul.bf16 %v9744, 1056980736
  %v9809 = vmul.bf16 %v9745, 1056980736
  %v9810 = vmul.bf16 %v9682, 1027030327
  %v9811 = vmul.bf16 %v9683, 1027030327
  %v9812 = vmul.bf16 %v9684, 1027030327
  %v9813 = vmul.bf16 %v9685, 1027030327
  %v9814 = vmul.bf16 %v9686, 1027030327
  %v9815 = vmul.bf16 %v9687, 1027030327
  %v9816 = vmul.bf16 %v9688, 1027030327
  %v9817 = vmul.bf16 %v9689, 1027030327
  %v9818 = vmul.bf16 %v9690, 1027030327
  %v9819 = vmul.bf16 %v9691, 1027030327
  %v9820 = vmul.bf16 %v9692, 1027030327
  %v9821 = vmul.bf16 %v9693, 1027030327
  %v9822 = vmul.bf16 %v9694, 1027030327
  %v9823 = vmul.bf16 %v9695, 1027030327
  %v9824 = vmul.bf16 %v9696, 1027030327
  %v9825 = vmul.bf16 %v9697, 1027030327
  %v9826 = vmul.bf16 %v9698, 1027030327
  %v9827 = vmul.bf16 %v9699, 1027030327
  %v9828 = vmul.bf16 %v9700, 1027030327
  %v9829 = vmul.bf16 %v9701, 1027030327
  %v9830 = vmul.bf16 %v9702, 1027030327
  %v9831 = vmul.bf16 %v9703, 1027030327
  %v9832 = vmul.bf16 %v9704, 1027030327
  %v9833 = vmul.bf16 %v9705, 1027030327
  %v9834 = vmul.bf16 %v9706, 1027030327
  %v9835 = vmul.bf16 %v9707, 1027030327
  %v9836 = vmul.bf16 %v9708, 1027030327
  %v9837 = vmul.bf16 %v9709, 1027030327
  %v9838 = vmul.bf16 %v9710, 1027030327
  %v9839 = vmul.bf16 %v9711, 1027030327
  %v9840 = vmul.bf16 %v9712, 1027030327
  %v9841 = vmul.bf16 %v9713, 1027030327
  %v9842 = vmul.bf16 %v9714, 1027030327
  %v9843 = vmul.bf16 %v9715, 1027030327
  %v9844 = vmul.bf16 %v9716, 1027030327
  %v9845 = vmul.bf16 %v9717, 1027030327
  %v9846 = vmul.bf16 %v9718, 1027030327
  %v9847 = vmul.bf16 %v9719, 1027030327
  %v9848 = vmul.bf16 %v9720, 1027030327
  %v9849 = vmul.bf16 %v9721, 1027030327
  %v9850 = vmul.bf16 %v9722, 1027030327
  %v9851 = vmul.bf16 %v9723, 1027030327
  %v9852 = vmul.bf16 %v9724, 1027030327
  %v9853 = vmul.bf16 %v9725, 1027030327
  %v9854 = vmul.bf16 %v9726, 1027030327
  %v9855 = vmul.bf16 %v9727, 1027030327
  %v9856 = vmul.bf16 %v9728, 1027030327
  %v9857 = vmul.bf16 %v9729, 1027030327
  %v9858 = vmul.bf16 %v9730, 1027030327
  %v9859 = vmul.bf16 %v9731, 1027030327
  %v9860 = vmul.bf16 %v9732, 1027030327
  %v9861 = vmul.bf16 %v9733, 1027030327
  %v9862 = vmul.bf16 %v9734, 1027030327
  %v9863 = vmul.bf16 %v9735, 1027030327
  %v9864 = vmul.bf16 %v9736, 1027030327
  %v9865 = vmul.bf16 %v9737, 1027030327
  %v9866 = vmul.bf16 %v9738, 1027030327
  %v9867 = vmul.bf16 %v9739, 1027030327
  %v9868 = vmul.bf16 %v9740, 1027030327
  %v9869 = vmul.bf16 %v9741, 1027030327
  %v9870 = vmul.bf16 %v9742, 1027030327
  %v9871 = vmul.bf16 %v9743, 1027030327
  %v9872 = vmul.bf16 %v9744, 1027030327
  %v9873 = vmul.bf16 %v9745, 1027030327
  %v9874 = vmul.bf16 %v9810, %v9682
  %v9875 = vmul.bf16 %v9811, %v9683
  %v9876 = vmul.bf16 %v9812, %v9684
  %v9877 = vmul.bf16 %v9813, %v9685
  %v9878 = vmul.bf16 %v9814, %v9686
  %v9879 = vmul.bf16 %v9815, %v9687
  %v9880 = vmul.bf16 %v9816, %v9688
  %v9881 = vmul.bf16 %v9817, %v9689
  %v9882 = vmul.bf16 %v9818, %v9690
  %v9883 = vmul.bf16 %v9819, %v9691
  %v9884 = vmul.bf16 %v9820, %v9692
  %v9885 = vmul.bf16 %v9821, %v9693
  %v9886 = vmul.bf16 %v9822, %v9694
  %v9887 = vmul.bf16 %v9823, %v9695
  %v9888 = vmul.bf16 %v9824, %v9696
  %v9889 = vmul.bf16 %v9825, %v9697
  %v9890 = vmul.bf16 %v9826, %v9698
  %v9891 = vmul.bf16 %v9827, %v9699
  %v9892 = vmul.bf16 %v9828, %v9700
  %v9893 = vmul.bf16 %v9829, %v9701
  %v9894 = vmul.bf16 %v9830, %v9702
  %v9895 = vmul.bf16 %v9831, %v9703
  %v9896 = vmul.bf16 %v9832, %v9704
  %v9897 = vmul.bf16 %v9833, %v9705
  %v9898 = vmul.bf16 %v9834, %v9706
  %v9899 = vmul.bf16 %v9835, %v9707
  %v9900 = vmul.bf16 %v9836, %v9708
  %v9901 = vmul.bf16 %v9837, %v9709
  %v9902 = vmul.bf16 %v9838, %v9710
  %v9903 = vmul.bf16 %v9839, %v9711
  %v9904 = vmul.bf16 %v9840, %v9712
  %v9905 = vmul.bf16 %v9841, %v9713
  %v9906 = vmul.bf16 %v9842, %v9714
  %v9907 = vmul.bf16 %v9843, %v9715
  %v9908 = vmul.bf16 %v9844, %v9716
  %v9909 = vmul.bf16 %v9845, %v9717
  %v9910 = vmul.bf16 %v9846, %v9718
  %v9911 = vmul.bf16 %v9847, %v9719
  %v9912 = vmul.bf16 %v9848, %v9720
  %v9913 = vmul.bf16 %v9849, %v9721
  %v9914 = vmul.bf16 %v9850, %v9722
  %v9915 = vmul.bf16 %v9851, %v9723
  %v9916 = vmul.bf16 %v9852, %v9724
  %v9917 = vmul.bf16 %v9853, %v9725
  %v9918 = vmul.bf16 %v9854, %v9726
  %v9919 = vmul.bf16 %v9855, %v9727
  %v9920 = vmul.bf16 %v9856, %v9728
  %v9921 = vmul.bf16 %v9857, %v9729
  %v9922 = vmul.bf16 %v9858, %v9730
  %v9923 = vmul.bf16 %v9859, %v9731
  %v9924 = vmul.bf16 %v9860, %v9732
  %v9925 = vmul.bf16 %v9861, %v9733
  %v9926 = vmul.bf16 %v9862, %v9734
  %v9927 = vmul.bf16 %v9863, %v9735
  %v9928 = vmul.bf16 %v9864, %v9736
  %v9929 = vmul.bf16 %v9865, %v9737
  %v9930 = vmul.bf16 %v9866, %v9738
  %v9931 = vmul.bf16 %v9867, %v9739
  %v9932 = vmul.bf16 %v9868, %v9740
  %v9933 = vmul.bf16 %v9869, %v9741
  %v9934 = vmul.bf16 %v9870, %v9742
  %v9935 = vmul.bf16 %v9871, %v9743
  %v9936 = vmul.bf16 %v9872, %v9744
  %v9937 = vmul.bf16 %v9873, %v9745
  %v9938 = vmul.bf16 %v9874, %v9682
  %v9939 = vmul.bf16 %v9875, %v9683
  %v9940 = vmul.bf16 %v9876, %v9684
  %v9941 = vmul.bf16 %v9877, %v9685
  %v9942 = vmul.bf16 %v9878, %v9686
  %v9943 = vmul.bf16 %v9879, %v9687
  %v9944 = vmul.bf16 %v9880, %v9688
  %v9945 = vmul.bf16 %v9881, %v9689
  %v9946 = vmul.bf16 %v9882, %v9690
  %v9947 = vmul.bf16 %v9883, %v9691
  %v9948 = vmul.bf16 %v9884, %v9692
  %v9949 = vmul.bf16 %v9885, %v9693
  %v9950 = vmul.bf16 %v9886, %v9694
  %v9951 = vmul.bf16 %v9887, %v9695
  %v9952 = vmul.bf16 %v9888, %v9696
  %v9953 = vmul.bf16 %v9889, %v9697
  %v9954 = vmul.bf16 %v9890, %v9698
  %v9955 = vmul.bf16 %v9891, %v9699
  %v9956 = vmul.bf16 %v9892, %v9700
  %v9957 = vmul.bf16 %v9893, %v9701
  %v9958 = vmul.bf16 %v9894, %v9702
  %v9959 = vmul.bf16 %v9895, %v9703
  %v9960 = vmul.bf16 %v9896, %v9704
  %v9961 = vmul.bf16 %v9897, %v9705
  %v9962 = vmul.bf16 %v9898, %v9706
  %v9963 = vmul.bf16 %v9899, %v9707
  %v9964 = vmul.bf16 %v9900, %v9708
  %v9965 = vmul.bf16 %v9901, %v9709
  %v9966 = vmul.bf16 %v9902, %v9710
  %v9967 = vmul.bf16 %v9903, %v9711
  %v9968 = vmul.bf16 %v9904, %v9712
  %v9969 = vmul.bf16 %v9905, %v9713
  %v9970 = vmul.bf16 %v9906, %v9714
  %v9971 = vmul.bf16 %v9907, %v9715
  %v9972 = vmul.bf16 %v9908, %v9716
  %v9973 = vmul.bf16 %v9909, %v9717
  %v9974 = vmul.bf16 %v9910, %v9718
  %v9975 = vmul.bf16 %v9911, %v9719
  %v9976 = vmul.bf16 %v9912, %v9720
  %v9977 = vmul.bf16 %v9913, %v9721
  %v9978 = vmul.bf16 %v9914, %v9722
  %v9979 = vmul.bf16 %v9915, %v9723
  %v9980 = vmul.bf16 %v9916, %v9724
  %v9981 = vmul.bf16 %v9917, %v9725
  %v9982 = vmul.bf16 %v9918, %v9726
  %v9983 = vmul.bf16 %v9919, %v9727
  %v9984 = vmul.bf16 %v9920, %v9728
  %v9985 = vmul.bf16 %v9921, %v9729
  %v9986 = vmul.bf16 %v9922, %v9730
  %v9987 = vmul.bf16 %v9923, %v9731
  %v9988 = vmul.bf16 %v9924, %v9732
  %v9989 = vmul.bf16 %v9925, %v9733
  %v9990 = vmul.bf16 %v9926, %v9734
  %v9991 = vmul.bf16 %v9927, %v9735
  %v9992 = vmul.bf16 %v9928, %v9736
  %v9993 = vmul.bf16 %v9929, %v9737
  %v9994 = vmul.bf16 %v9930, %v9738
  %v9995 = vmul.bf16 %v9931, %v9739
  %v9996 = vmul.bf16 %v9932, %v9740
  %v9997 = vmul.bf16 %v9933, %v9741
  %v9998 = vmul.bf16 %v9934, %v9742
  %v9999 = vmul.bf16 %v9935, %v9743
  %v10000 = vmul.bf16 %v9936, %v9744
  %v10001 = vmul.bf16 %v9937, %v9745
  %v10002 = vadd.bf16 %v9682, %v9938
  %v10003 = vadd.bf16 %v9683, %v9939
  %v10004 = vadd.bf16 %v9684, %v9940
  %v10005 = vadd.bf16 %v9685, %v9941
  %v10006 = vadd.bf16 %v9686, %v9942
  %v10007 = vadd.bf16 %v9687, %v9943
  %v10008 = vadd.bf16 %v9688, %v9944
  %v10009 = vadd.bf16 %v9689, %v9945
  %v10010 = vadd.bf16 %v9690, %v9946
  %v10011 = vadd.bf16 %v9691, %v9947
  %v10012 = vadd.bf16 %v9692, %v9948
  %v10013 = vadd.bf16 %v9693, %v9949
  %v10014 = vadd.bf16 %v9694, %v9950
  %v10015 = vadd.bf16 %v9695, %v9951
  %v10016 = vadd.bf16 %v9696, %v9952
  %v10017 = vadd.bf16 %v9697, %v9953
  %v10018 = vadd.bf16 %v9698, %v9954
  %v10019 = vadd.bf16 %v9699, %v9955
  %v10020 = vadd.bf16 %v9700, %v9956
  %v10021 = vadd.bf16 %v9701, %v9957
  %v10022 = vadd.bf16 %v9702, %v9958
  %v10023 = vadd.bf16 %v9703, %v9959
  %v10024 = vadd.bf16 %v9704, %v9960
  %v10025 = vadd.bf16 %v9705, %v9961
  %v10026 = vadd.bf16 %v9706, %v9962
  %v10027 = vadd.bf16 %v9707, %v9963
  %v10028 = vadd.bf16 %v9708, %v9964
  %v10029 = vadd.bf16 %v9709, %v9965
  %v10030 = vadd.bf16 %v9710, %v9966
  %v10031 = vadd.bf16 %v9711, %v9967
  %v10032 = vadd.bf16 %v9712, %v9968
  %v10033 = vadd.bf16 %v9713, %v9969
  %v10034 = vadd.bf16 %v9714, %v9970
  %v10035 = vadd.bf16 %v9715, %v9971
  %v10036 = vadd.bf16 %v9716, %v9972
  %v10037 = vadd.bf16 %v9717, %v9973
  %v10038 = vadd.bf16 %v9718, %v9974
  %v10039 = vadd.bf16 %v9719, %v9975
  %v10040 = vadd.bf16 %v9720, %v9976
  %v10041 = vadd.bf16 %v9721, %v9977
  %v10042 = vadd.bf16 %v9722, %v9978
  %v10043 = vadd.bf16 %v9723, %v9979
  %v10044 = vadd.bf16 %v9724, %v9980
  %v10045 = vadd.bf16 %v9725, %v9981
  %v10046 = vadd.bf16 %v9726, %v9982
  %v10047 = vadd.bf16 %v9727, %v9983
  %v10048 = vadd.bf16 %v9728, %v9984
  %v10049 = vadd.bf16 %v9729, %v9985
  %v10050 = vadd.bf16 %v9730, %v9986
  %v10051 = vadd.bf16 %v9731, %v9987
  %v10052 = vadd.bf16 %v9732, %v9988
  %v10053 = vadd.bf16 %v9733, %v9989
  %v10054 = vadd.bf16 %v9734, %v9990
  %v10055 = vadd.bf16 %v9735, %v9991
  %v10056 = vadd.bf16 %v9736, %v9992
  %v10057 = vadd.bf16 %v9737, %v9993
  %v10058 = vadd.bf16 %v9738, %v9994
  %v10059 = vadd.bf16 %v9739, %v9995
  %v10060 = vadd.bf16 %v9740, %v9996
  %v10061 = vadd.bf16 %v9741, %v9997
  %v10062 = vadd.bf16 %v9742, %v9998
  %v10063 = vadd.bf16 %v9743, %v9999
  %v10064 = vadd.bf16 %v9744, %v10000
  %v10065 = vadd.bf16 %v9745, %v10001
  %v10066 = vmul.bf16 %v10002, 1061961548
  %v10067 = vmul.bf16 %v10003, 1061961548
  %v10068 = vmul.bf16 %v10004, 1061961548
  %v10069 = vmul.bf16 %v10005, 1061961548
  %v10070 = vmul.bf16 %v10006, 1061961548
  %v10071 = vmul.bf16 %v10007, 1061961548
  %v10072 = vmul.bf16 %v10008, 1061961548
  %v10073 = vmul.bf16 %v10009, 1061961548
  %v10074 = vmul.bf16 %v10010, 1061961548
  %v10075 = vmul.bf16 %v10011, 1061961548
  %v10076 = vmul.bf16 %v10012, 1061961548
  %v10077 = vmul.bf16 %v10013, 1061961548
  %v10078 = vmul.bf16 %v10014, 1061961548
  %v10079 = vmul.bf16 %v10015, 1061961548
  %v10080 = vmul.bf16 %v10016, 1061961548
  %v10081 = vmul.bf16 %v10017, 1061961548
  %v10082 = vmul.bf16 %v10018, 1061961548
  %v10083 = vmul.bf16 %v10019, 1061961548
  %v10084 = vmul.bf16 %v10020, 1061961548
  %v10085 = vmul.bf16 %v10021, 1061961548
  %v10086 = vmul.bf16 %v10022, 1061961548
  %v10087 = vmul.bf16 %v10023, 1061961548
  %v10088 = vmul.bf16 %v10024, 1061961548
  %v10089 = vmul.bf16 %v10025, 1061961548
  %v10090 = vmul.bf16 %v10026, 1061961548
  %v10091 = vmul.bf16 %v10027, 1061961548
  %v10092 = vmul.bf16 %v10028, 1061961548
  %v10093 = vmul.bf16 %v10029, 1061961548
  %v10094 = vmul.bf16 %v10030, 1061961548
  %v10095 = vmul.bf16 %v10031, 1061961548
  %v10096 = vmul.bf16 %v10032, 1061961548
  %v10097 = vmul.bf16 %v10033, 1061961548
  %v10098 = vmul.bf16 %v10034, 1061961548
  %v10099 = vmul.bf16 %v10035, 1061961548
  %v10100 = vmul.bf16 %v10036, 1061961548
  %v10101 = vmul.bf16 %v10037, 1061961548
  %v10102 = vmul.bf16 %v10038, 1061961548
  %v10103 = vmul.bf16 %v10039, 1061961548
  %v10104 = vmul.bf16 %v10040, 1061961548
  %v10105 = vmul.bf16 %v10041, 1061961548
  %v10106 = vmul.bf16 %v10042, 1061961548
  %v10107 = vmul.bf16 %v10043, 1061961548
  %v10108 = vmul.bf16 %v10044, 1061961548
  %v10109 = vmul.bf16 %v10045, 1061961548
  %v10110 = vmul.bf16 %v10046, 1061961548
  %v10111 = vmul.bf16 %v10047, 1061961548
  %v10112 = vmul.bf16 %v10048, 1061961548
  %v10113 = vmul.bf16 %v10049, 1061961548
  %v10114 = vmul.bf16 %v10050, 1061961548
  %v10115 = vmul.bf16 %v10051, 1061961548
  %v10116 = vmul.bf16 %v10052, 1061961548
  %v10117 = vmul.bf16 %v10053, 1061961548
  %v10118 = vmul.bf16 %v10054, 1061961548
  %v10119 = vmul.bf16 %v10055, 1061961548
  %v10120 = vmul.bf16 %v10056, 1061961548
  %v10121 = vmul.bf16 %v10057, 1061961548
  %v10122 = vmul.bf16 %v10058, 1061961548
  %v10123 = vmul.bf16 %v10059, 1061961548
  %v10124 = vmul.bf16 %v10060, 1061961548
  %v10125 = vmul.bf16 %v10061, 1061961548
  %v10126 = vmul.bf16 %v10062, 1061961548
  %v10127 = vmul.bf16 %v10063, 1061961548
  %v10128 = vmul.bf16 %v10064, 1061961548
  %v10129 = vmul.bf16 %v10065, 1061961548
  %v10130 = vtanh.bf16.pop %v10066
  %v10131 = vtanh.bf16.pop %v10067
  %v10132 = vtanh.bf16.pop %v10068
  %v10133 = vtanh.bf16.pop %v10069
  %v10134 = vtanh.bf16.pop %v10070
  %v10135 = vtanh.bf16.pop %v10071
  %v10136 = vtanh.bf16.pop %v10072
  %v10137 = vtanh.bf16.pop %v10073
  %v10138 = vtanh.bf16.pop %v10074
  %v10139 = vtanh.bf16.pop %v10075
  %v10140 = vtanh.bf16.pop %v10076
  %v10141 = vtanh.bf16.pop %v10077
  %v10142 = vtanh.bf16.pop %v10078
  %v10143 = vtanh.bf16.pop %v10079
  %v10144 = vtanh.bf16.pop %v10080
  %v10145 = vtanh.bf16.pop %v10081
  %v10146 = vtanh.bf16.pop %v10082
  %v10147 = vtanh.bf16.pop %v10083
  %v10148 = vtanh.bf16.pop %v10084
  %v10149 = vtanh.bf16.pop %v10085
  %v10150 = vtanh.bf16.pop %v10086
  %v10151 = vtanh.bf16.pop %v10087
  %v10152 = vtanh.bf16.pop %v10088
  %v10153 = vtanh.bf16.pop %v10089
  %v10154 = vtanh.bf16.pop %v10090
  %v10155 = vtanh.bf16.pop %v10091
  %v10156 = vtanh.bf16.pop %v10092
  %v10157 = vtanh.bf16.pop %v10093
  %v10158 = vtanh.bf16.pop %v10094
  %v10159 = vtanh.bf16.pop %v10095
  %v10160 = vtanh.bf16.pop %v10096
  %v10161 = vtanh.bf16.pop %v10097
  %v10162 = vtanh.bf16.pop %v10098
  %v10163 = vtanh.bf16.pop %v10099
  %v10164 = vtanh.bf16.pop %v10100
  %v10165 = vtanh.bf16.pop %v10101
  %v10166 = vtanh.bf16.pop %v10102
  %v10167 = vtanh.bf16.pop %v10103
  %v10168 = vtanh.bf16.pop %v10104
  %v10169 = vtanh.bf16.pop %v10105
  %v10170 = vtanh.bf16.pop %v10106
  %v10171 = vtanh.bf16.pop %v10107
  %v10172 = vtanh.bf16.pop %v10108
  %v10173 = vtanh.bf16.pop %v10109
  %v10174 = vtanh.bf16.pop %v10110
  %v10175 = vtanh.bf16.pop %v10111
  %v10176 = vtanh.bf16.pop %v10112
  %v10177 = vtanh.bf16.pop %v10113
  %v10178 = vtanh.bf16.pop %v10114
  %v10179 = vtanh.bf16.pop %v10115
  %v10180 = vtanh.bf16.pop %v10116
  %v10181 = vtanh.bf16.pop %v10117
  %v10182 = vtanh.bf16.pop %v10118
  %v10183 = vtanh.bf16.pop %v10119
  %v10184 = vtanh.bf16.pop %v10120
  %v10185 = vtanh.bf16.pop %v10121
  %v10186 = vtanh.bf16.pop %v10122
  %v10187 = vtanh.bf16.pop %v10123
  %v10188 = vtanh.bf16.pop %v10124
  %v10189 = vtanh.bf16.pop %v10125
  %v10190 = vtanh.bf16.pop %v10126
  %v10191 = vtanh.bf16.pop %v10127
  %v10192 = vtanh.bf16.pop %v10128
  %v10193 = vtanh.bf16.pop %v10129
  %v10194 = vadd.bf16 %v10130, 1065369472
  %v10195 = vadd.bf16 %v10131, 1065369472
  %v10196 = vadd.bf16 %v10132, 1065369472
  %v10197 = vadd.bf16 %v10133, 1065369472
  %v10198 = vadd.bf16 %v10134, 1065369472
  %v10199 = vadd.bf16 %v10135, 1065369472
  %v10200 = vadd.bf16 %v10136, 1065369472
  %v10201 = vadd.bf16 %v10137, 1065369472
  %v10202 = vadd.bf16 %v10138, 1065369472
  %v10203 = vadd.bf16 %v10139, 1065369472
  %v10204 = vadd.bf16 %v10140, 1065369472
  %v10205 = vadd.bf16 %v10141, 1065369472
  %v10206 = vadd.bf16 %v10142, 1065369472
  %v10207 = vadd.bf16 %v10143, 1065369472
  %v10208 = vadd.bf16 %v10144, 1065369472
  %v10209 = vadd.bf16 %v10145, 1065369472
  %v10210 = vadd.bf16 %v10146, 1065369472
  %v10211 = vadd.bf16 %v10147, 1065369472
  %v10212 = vadd.bf16 %v10148, 1065369472
  %v10213 = vadd.bf16 %v10149, 1065369472
  %v10214 = vadd.bf16 %v10150, 1065369472
  %v10215 = vadd.bf16 %v10151, 1065369472
  %v10216 = vadd.bf16 %v10152, 1065369472
  %v10217 = vadd.bf16 %v10153, 1065369472
  %v10218 = vadd.bf16 %v10154, 1065369472
  %v10219 = vadd.bf16 %v10155, 1065369472
  %v10220 = vadd.bf16 %v10156, 1065369472
  %v10221 = vadd.bf16 %v10157, 1065369472
  %v10222 = vadd.bf16 %v10158, 1065369472
  %v10223 = vadd.bf16 %v10159, 1065369472
  %v10224 = vadd.bf16 %v10160, 1065369472
  %v10225 = vadd.bf16 %v10161, 1065369472
  %v10226 = vadd.bf16 %v10162, 1065369472
  %v10227 = vadd.bf16 %v10163, 1065369472
  %v10228 = vadd.bf16 %v10164, 1065369472
  %v10229 = vadd.bf16 %v10165, 1065369472
  %v10230 = vadd.bf16 %v10166, 1065369472
  %v10231 = vadd.bf16 %v10167, 1065369472
  %v10232 = vadd.bf16 %v10168, 1065369472
  %v10233 = vadd.bf16 %v10169, 1065369472
  %v10234 = vadd.bf16 %v10170, 1065369472
  %v10235 = vadd.bf16 %v10171, 1065369472
  %v10236 = vadd.bf16 %v10172, 1065369472
  %v10237 = vadd.bf16 %v10173, 1065369472
  %v10238 = vadd.bf16 %v10174, 1065369472
  %v10239 = vadd.bf16 %v10175, 1065369472
  %v10240 = vadd.bf16 %v10176, 1065369472
  %v10241 = vadd.bf16 %v10177, 1065369472
  %v10242 = vadd.bf16 %v10178, 1065369472
  %v10243 = vadd.bf16 %v10179, 1065369472
  %v10244 = vadd.bf16 %v10180, 1065369472
  %v10245 = vadd.bf16 %v10181, 1065369472
  %v10246 = vadd.bf16 %v10182, 1065369472
  %v10247 = vadd.bf16 %v10183, 1065369472
  %v10248 = vadd.bf16 %v10184, 1065369472
  %v10249 = vadd.bf16 %v10185, 1065369472
  %v10250 = vadd.bf16 %v10186, 1065369472
  %v10251 = vadd.bf16 %v10187, 1065369472
  %v10252 = vadd.bf16 %v10188, 1065369472
  %v10253 = vadd.bf16 %v10189, 1065369472
  %v10254 = vadd.bf16 %v10190, 1065369472
  %v10255 = vadd.bf16 %v10191, 1065369472
  %v10256 = vadd.bf16 %v10192, 1065369472
  %v10257 = vadd.bf16 %v10193, 1065369472
  %v10258 = vmul.bf16 %v9746, %v10194
  %v10259 = vmul.bf16 %v9747, %v10195
  %v10260 = vmul.bf16 %v9748, %v10196
  %v10261 = vmul.bf16 %v9749, %v10197
  %v10262 = vmul.bf16 %v9750, %v10198
  %v10263 = vmul.bf16 %v9751, %v10199
  %v10264 = vmul.bf16 %v9752, %v10200
  %v10265 = vmul.bf16 %v9753, %v10201
  %v10266 = vmul.bf16 %v9754, %v10202
  %v10267 = vmul.bf16 %v9755, %v10203
  %v10268 = vmul.bf16 %v9756, %v10204
  %v10269 = vmul.bf16 %v9757, %v10205
  %v10270 = vmul.bf16 %v9758, %v10206
  %v10271 = vmul.bf16 %v9759, %v10207
  %v10272 = vmul.bf16 %v9760, %v10208
  %v10273 = vmul.bf16 %v9761, %v10209
  %v10274 = vmul.bf16 %v9762, %v10210
  %v10275 = vmul.bf16 %v9763, %v10211
  %v10276 = vmul.bf16 %v9764, %v10212
  %v10277 = vmul.bf16 %v9765, %v10213
  %v10278 = vmul.bf16 %v9766, %v10214
  %v10279 = vmul.bf16 %v9767, %v10215
  %v10280 = vmul.bf16 %v9768, %v10216
  %v10281 = vmul.bf16 %v9769, %v10217
  %v10282 = vmul.bf16 %v9770, %v10218
  %v10283 = vmul.bf16 %v9771, %v10219
  %v10284 = vmul.bf16 %v9772, %v10220
  %v10285 = vmul.bf16 %v9773, %v10221
  %v10286 = vmul.bf16 %v9774, %v10222
  %v10287 = vmul.bf16 %v9775, %v10223
  %v10288 = vmul.bf16 %v9776, %v10224
  %v10289 = vmul.bf16 %v9777, %v10225
  %v10290 = vmul.bf16 %v9778, %v10226
  %v10291 = vmul.bf16 %v9779, %v10227
  %v10292 = vmul.bf16 %v9780, %v10228
  %v10293 = vmul.bf16 %v9781, %v10229
  %v10294 = vmul.bf16 %v9782, %v10230
  %v10295 = vmul.bf16 %v9783, %v10231
  %v10296 = vmul.bf16 %v9784, %v10232
  %v10297 = vmul.bf16 %v9785, %v10233
  %v10298 = vmul.bf16 %v9786, %v10234
  %v10299 = vmul.bf16 %v9787, %v10235
  %v10300 = vmul.bf16 %v9788, %v10236
  %v10301 = vmul.bf16 %v9789, %v10237
  %v10302 = vmul.bf16 %v9790, %v10238
  %v10303 = vmul.bf16 %v9791, %v10239
  %v10304 = vmul.bf16 %v9792, %v10240
  %v10305 = vmul.bf16 %v9793, %v10241
  %v10306 = vmul.bf16 %v9794, %v10242
  %v10307 = vmul.bf16 %v9795, %v10243
  %v10308 = vmul.bf16 %v9796, %v10244
  %v10309 = vmul.bf16 %v9797, %v10245
  %v10310 = vmul.bf16 %v9798, %v10246
  %v10311 = vmul.bf16 %v9799, %v10247
  %v10312 = vmul.bf16 %v9800, %v10248
  %v10313 = vmul.bf16 %v9801, %v10249
  %v10314 = vmul.bf16 %v9802, %v10250
  %v10315 = vmul.bf16 %v9803, %v10251
  %v10316 = vmul.bf16 %v9804, %v10252
  %v10317 = vmul.bf16 %v9805, %v10253
  %v10318 = vmul.bf16 %v9806, %v10254
  %v10319 = vmul.bf16 %v9807, %v10255
  %v10320 = vmul.bf16 %v9808, %v10256
  %v10321 = vmul.bf16 %v9809, %v10257
  %v10322 = vld [vmem:[%s19] sm:$0xff]
  %v10323 = vld [vmem:[%s19 + $0x8] sm:$0xff]
  %v10324 = vld [vmem:[%s19 + $0x10] sm:$0xff]
  %v10325 = vld [vmem:[%s19 + $0x18] sm:$0xff]
  %v10326 = vld [vmem:[%s19 + $0x20] sm:$0xff]
  %v10327 = vld [vmem:[%s19 + $0x28] sm:$0xff]
  %v10328 = vld [vmem:[%s19 + $0x30] sm:$0xff]
  %v10329 = vld [vmem:[%s19 + $0x38] sm:$0xff]
  %v10330 = vld [vmem:[%s19 + $0x40] sm:$0xff]
  %v10331 = vld [vmem:[%s19 + $0x48] sm:$0xff]
  %v10332 = vld [vmem:[%s19 + $0x50] sm:$0xff]
  %v10333 = vld [vmem:[%s19 + $0x58] sm:$0xff]
  %v10334 = vld [vmem:[%s19 + $0x60] sm:$0xff]
  %v10335 = vld [vmem:[%s19 + $0x68] sm:$0xff]
  %v10336 = vld [vmem:[%s19 + $0x70] sm:$0xff]
  %v10337 = vld [vmem:[%s19 + $0x78] sm:$0xff]
  %v10338 = vld [vmem:[%s19 + $0x80] sm:$0xff]
  %v10339 = vld [vmem:[%s19 + $0x88] sm:$0xff]
  %v10340 = vld [vmem:[%s19 + $0x90] sm:$0xff]
  %v10341 = vld [vmem:[%s19 + $0x98] sm:$0xff]
  %v10342 = vld [vmem:[%s19 + $0xa0] sm:$0xff]
  %v10343 = vld [vmem:[%s19 + $0xa8] sm:$0xff]
  %v10344 = vld [vmem:[%s19 + $0xb0] sm:$0xff]
  %v10345 = vld [vmem:[%s19 + $0xb8] sm:$0xff]
  %v10346 = vld [vmem:[%s19 + $0xc0] sm:$0xff]
  %v10347 = vld [vmem:[%s19 + $0xc8] sm:$0xff]
  %v10348 = vld [vmem:[%s19 + $0xd0] sm:$0xff]
  %v10349 = vld [vmem:[%s19 + $0xd8] sm:$0xff]
  %v10350 = vld [vmem:[%s19 + $0xe0] sm:$0xff]
  %v10351 = vld [vmem:[%s19 + $0xe8] sm:$0xff]
  %v10352 = vld [vmem:[%s19 + $0xf0] sm:$0xff]
  %v10353 = vld [vmem:[%s19 + $0xf8] sm:$0xff]
  %v10354 = vld [vmem:[%s19 + $0x100] sm:$0xff]
  %v10355 = vld [vmem:[%s19 + $0x108] sm:$0xff]
  %v10356 = vld [vmem:[%s19 + $0x110] sm:$0xff]
  %v10357 = vld [vmem:[%s19 + $0x118] sm:$0xff]
  %v10358 = vld [vmem:[%s19 + $0x120] sm:$0xff]
  %v10359 = vld [vmem:[%s19 + $0x128] sm:$0xff]
  %v10360 = vld [vmem:[%s19 + $0x130] sm:$0xff]
  %v10361 = vld [vmem:[%s19 + $0x138] sm:$0xff]
  %v10362 = vld [vmem:[%s19 + $0x140] sm:$0xff]
  %v10363 = vld [vmem:[%s19 + $0x148] sm:$0xff]
  %v10364 = vld [vmem:[%s19 + $0x150] sm:$0xff]
  %v10365 = vld [vmem:[%s19 + $0x158] sm:$0xff]
  %v10366 = vld [vmem:[%s19 + $0x160] sm:$0xff]
  %v10367 = vld [vmem:[%s19 + $0x168] sm:$0xff]
  %v10368 = vld [vmem:[%s19 + $0x170] sm:$0xff]
  %v10369 = vld [vmem:[%s19 + $0x178] sm:$0xff]
  %v10370 = vld [vmem:[%s19 + $0x180] sm:$0xff]
  %v10371 = vld [vmem:[%s19 + $0x188] sm:$0xff]
  %v10372 = vld [vmem:[%s19 + $0x190] sm:$0xff]
  %v10373 = vld [vmem:[%s19 + $0x198] sm:$0xff]
  %v10374 = vld [vmem:[%s19 + $0x1a0] sm:$0xff]
  %v10375 = vld [vmem:[%s19 + $0x1a8] sm:$0xff]
  %v10376 = vld [vmem:[%s19 + $0x1b0] sm:$0xff]
  %v10377 = vld [vmem:[%s19 + $0x1b8] sm:$0xff]
  %v10378 = vld [vmem:[%s19 + $0x1c0] sm:$0xff]
  %v10379 = vld [vmem:[%s19 + $0x1c8] sm:$0xff]
  %v10380 = vld [vmem:[%s19 + $0x1d0] sm:$0xff]
  %v10381 = vld [vmem:[%s19 + $0x1d8] sm:$0xff]
  %v10382 = vld [vmem:[%s19 + $0x1e0] sm:$0xff]
  %v10383 = vld [vmem:[%s19 + $0x1e8] sm:$0xff]
  %v10384 = vld [vmem:[%s19 + $0x1f0] sm:$0xff]
  %v10385 = vld [vmem:[%s19 + $0x1f8] sm:$0xff]
  %v10450 = vunpack.c.l.b16 %v10322
  %v10451 = vunpack.c.h.b16 %v10322
  %v10452 = vunpack.c.l.b16 %v10323
  %v10453 = vunpack.c.h.b16 %v10323
  %v10454 = vunpack.c.l.b16 %v10324
  %v10455 = vunpack.c.h.b16 %v10324
  %v10456 = vunpack.c.l.b16 %v10325
  %v10457 = vunpack.c.h.b16 %v10325
  %v10458 = vunpack.c.l.b16 %v10326
  %v10459 = vunpack.c.h.b16 %v10326
  %v10460 = vunpack.c.l.b16 %v10327
  %v10461 = vunpack.c.h.b16 %v10327
  %v10462 = vunpack.c.l.b16 %v10328
  %v10463 = vunpack.c.h.b16 %v10328
  %v10464 = vunpack.c.l.b16 %v10329
  %v10465 = vunpack.c.h.b16 %v10329
  %v10466 = vunpack.c.l.b16 %v10330
  %v10467 = vunpack.c.h.b16 %v10330
  %v10468 = vunpack.c.l.b16 %v10331
  %v10469 = vunpack.c.h.b16 %v10331
  %v10470 = vunpack.c.l.b16 %v10332
  %v10471 = vunpack.c.h.b16 %v10332
  %v10472 = vunpack.c.l.b16 %v10333
  %v10473 = vunpack.c.h.b16 %v10333
  %v10474 = vunpack.c.l.b16 %v10334
  %v10475 = vunpack.c.h.b16 %v10334
  %v10476 = vunpack.c.l.b16 %v10335
  %v10477 = vunpack.c.h.b16 %v10335
  %v10478 = vunpack.c.l.b16 %v10336
  %v10479 = vunpack.c.h.b16 %v10336
  %v10480 = vunpack.c.l.b16 %v10337
  %v10481 = vunpack.c.h.b16 %v10337
  %v10482 = vunpack.c.l.b16 %v10338
  %v10483 = vunpack.c.h.b16 %v10338
  %v10484 = vunpack.c.l.b16 %v10339
  %v10485 = vunpack.c.h.b16 %v10339
  %v10486 = vunpack.c.l.b16 %v10340
  %v10487 = vunpack.c.h.b16 %v10340
  %v10488 = vunpack.c.l.b16 %v10341
  %v10489 = vunpack.c.h.b16 %v10341
  %v10490 = vunpack.c.l.b16 %v10342
  %v10491 = vunpack.c.h.b16 %v10342
  %v10492 = vunpack.c.l.b16 %v10343
  %v10493 = vunpack.c.h.b16 %v10343
  %v10494 = vunpack.c.l.b16 %v10344
  %v10495 = vunpack.c.h.b16 %v10344
  %v10496 = vunpack.c.l.b16 %v10345
  %v10497 = vunpack.c.h.b16 %v10345
  %v10498 = vunpack.c.l.b16 %v10346
  %v10499 = vunpack.c.h.b16 %v10346
  %v10500 = vunpack.c.l.b16 %v10347
  %v10501 = vunpack.c.h.b16 %v10347
  %v10502 = vunpack.c.l.b16 %v10348
  %v10503 = vunpack.c.h.b16 %v10348
  %v10504 = vunpack.c.l.b16 %v10349
  %v10505 = vunpack.c.h.b16 %v10349
  %v10506 = vunpack.c.l.b16 %v10350
  %v10507 = vunpack.c.h.b16 %v10350
  %v10508 = vunpack.c.l.b16 %v10351
  %v10509 = vunpack.c.h.b16 %v10351
  %v10510 = vunpack.c.l.b16 %v10352
  %v10511 = vunpack.c.h.b16 %v10352
  %v10512 = vunpack.c.l.b16 %v10353
  %v10513 = vunpack.c.h.b16 %v10353
  %v10514 = vunpack.c.l.b16 %v10354
  %v10515 = vunpack.c.h.b16 %v10354
  %v10516 = vunpack.c.l.b16 %v10355
  %v10517 = vunpack.c.h.b16 %v10355
  %v10518 = vunpack.c.l.b16 %v10356
  %v10519 = vunpack.c.h.b16 %v10356
  %v10520 = vunpack.c.l.b16 %v10357
  %v10521 = vunpack.c.h.b16 %v10357
  %v10522 = vunpack.c.l.b16 %v10358
  %v10523 = vunpack.c.h.b16 %v10358
  %v10524 = vunpack.c.l.b16 %v10359
  %v10525 = vunpack.c.h.b16 %v10359
  %v10526 = vunpack.c.l.b16 %v10360
  %v10527 = vunpack.c.h.b16 %v10360
  %v10528 = vunpack.c.l.b16 %v10361
  %v10529 = vunpack.c.h.b16 %v10361
  %v10530 = vunpack.c.l.b16 %v10362
  %v10531 = vunpack.c.h.b16 %v10362
  %v10532 = vunpack.c.l.b16 %v10363
  %v10533 = vunpack.c.h.b16 %v10363
  %v10534 = vunpack.c.l.b16 %v10364
  %v10535 = vunpack.c.h.b16 %v10364
  %v10536 = vunpack.c.l.b16 %v10365
  %v10537 = vunpack.c.h.b16 %v10365
  %v10538 = vunpack.c.l.b16 %v10366
  %v10539 = vunpack.c.h.b16 %v10366
  %v10540 = vunpack.c.l.b16 %v10367
  %v10541 = vunpack.c.h.b16 %v10367
  %v10542 = vunpack.c.l.b16 %v10368
  %v10543 = vunpack.c.h.b16 %v10368
  %v10544 = vunpack.c.l.b16 %v10369
  %v10545 = vunpack.c.h.b16 %v10369
  %v10546 = vunpack.c.l.b16 %v10370
  %v10547 = vunpack.c.h.b16 %v10370
  %v10548 = vunpack.c.l.b16 %v10371
  %v10549 = vunpack.c.h.b16 %v10371
  %v10550 = vunpack.c.l.b16 %v10372
  %v10551 = vunpack.c.h.b16 %v10372
  %v10552 = vunpack.c.l.b16 %v10373
  %v10553 = vunpack.c.h.b16 %v10373
  %v10554 = vunpack.c.l.b16 %v10374
  %v10555 = vunpack.c.h.b16 %v10374
  %v10556 = vunpack.c.l.b16 %v10375
  %v10557 = vunpack.c.h.b16 %v10375
  %v10558 = vunpack.c.l.b16 %v10376
  %v10559 = vunpack.c.h.b16 %v10376
  %v10560 = vunpack.c.l.b16 %v10377
  %v10561 = vunpack.c.h.b16 %v10377
  %v10562 = vunpack.c.l.b16 %v10378
  %v10563 = vunpack.c.h.b16 %v10378
  %v10564 = vunpack.c.l.b16 %v10379
  %v10565 = vunpack.c.h.b16 %v10379
  %v10566 = vunpack.c.l.b16 %v10380
  %v10567 = vunpack.c.h.b16 %v10380
  %v10568 = vunpack.c.l.b16 %v10381
  %v10569 = vunpack.c.h.b16 %v10381
  %v10570 = vunpack.c.l.b16 %v10382
  %v10571 = vunpack.c.h.b16 %v10382
  %v10572 = vunpack.c.l.b16 %v10383
  %v10573 = vunpack.c.h.b16 %v10383
  %v10574 = vunpack.c.l.b16 %v10384
  %v10575 = vunpack.c.h.b16 %v10384
  %v10576 = vunpack.c.l.b16 %v10385
  %v10577 = vunpack.c.h.b16 %v10385
  %v10578 = vpack.c.b16 %v10452, %v10450
  %v10579 = vpack.c.b16 %v10453, %v10451
  %v10580 = vpack.c.b16 %v10456, %v10454
  %v10581 = vpack.c.b16 %v10457, %v10455
  %v10582 = vpack.c.b16 %v10460, %v10458
  %v10583 = vpack.c.b16 %v10461, %v10459
  %v10584 = vpack.c.b16 %v10464, %v10462
  %v10585 = vpack.c.b16 %v10465, %v10463
  %v10586 = vpack.c.b16 %v10468, %v10466
  %v10587 = vpack.c.b16 %v10469, %v10467
  %v10588 = vpack.c.b16 %v10472, %v10470
  %v10589 = vpack.c.b16 %v10473, %v10471
  %v10590 = vpack.c.b16 %v10476, %v10474
  %v10591 = vpack.c.b16 %v10477, %v10475
  %v10592 = vpack.c.b16 %v10480, %v10478
  %v10593 = vpack.c.b16 %v10481, %v10479
  %v10594 = vpack.c.b16 %v10484, %v10482
  %v10595 = vpack.c.b16 %v10485, %v10483
  %v10596 = vpack.c.b16 %v10488, %v10486
  %v10597 = vpack.c.b16 %v10489, %v10487
  %v10598 = vpack.c.b16 %v10492, %v10490
  %v10599 = vpack.c.b16 %v10493, %v10491
  %v10600 = vpack.c.b16 %v10496, %v10494
  %v10601 = vpack.c.b16 %v10497, %v10495
  %v10602 = vpack.c.b16 %v10500, %v10498
  %v10603 = vpack.c.b16 %v10501, %v10499
  %v10604 = vpack.c.b16 %v10504, %v10502
  %v10605 = vpack.c.b16 %v10505, %v10503
  %v10606 = vpack.c.b16 %v10508, %v10506
  %v10607 = vpack.c.b16 %v10509, %v10507
  %v10608 = vpack.c.b16 %v10512, %v10510
  %v10609 = vpack.c.b16 %v10513, %v10511
  %v10610 = vpack.c.b16 %v10516, %v10514
  %v10611 = vpack.c.b16 %v10517, %v10515
  %v10612 = vpack.c.b16 %v10520, %v10518
  %v10613 = vpack.c.b16 %v10521, %v10519
  %v10614 = vpack.c.b16 %v10524, %v10522
  %v10615 = vpack.c.b16 %v10525, %v10523
  %v10616 = vpack.c.b16 %v10528, %v10526
  %v10617 = vpack.c.b16 %v10529, %v10527
  %v10618 = vpack.c.b16 %v10532, %v10530
  %v10619 = vpack.c.b16 %v10533, %v10531
  %v10620 = vpack.c.b16 %v10536, %v10534
  %v10621 = vpack.c.b16 %v10537, %v10535
  %v10622 = vpack.c.b16 %v10540, %v10538
  %v10623 = vpack.c.b16 %v10541, %v10539
  %v10624 = vpack.c.b16 %v10544, %v10542
  %v10625 = vpack.c.b16 %v10545, %v10543
  %v10626 = vpack.c.b16 %v10548, %v10546
  %v10627 = vpack.c.b16 %v10549, %v10547
  %v10628 = vpack.c.b16 %v10552, %v10550
  %v10629 = vpack.c.b16 %v10553, %v10551
  %v10630 = vpack.c.b16 %v10556, %v10554
  %v10631 = vpack.c.b16 %v10557, %v10555
  %v10632 = vpack.c.b16 %v10560, %v10558
  %v10633 = vpack.c.b16 %v10561, %v10559
  %v10634 = vpack.c.b16 %v10564, %v10562
  %v10635 = vpack.c.b16 %v10565, %v10563
  %v10636 = vpack.c.b16 %v10568, %v10566
  %v10637 = vpack.c.b16 %v10569, %v10567
  %v10638 = vpack.c.b16 %v10572, %v10570
  %v10639 = vpack.c.b16 %v10573, %v10571
  %v10640 = vpack.c.b16 %v10576, %v10574
  %v10641 = vpack.c.b16 %v10577, %v10575
  %10706 = vmatprep.subr.bf16.mxu0 %v10579
  %10707 = vmatpush1.bf16.msra.mxu0 %v10578
  %10708 = vmatprep.subr.bf16.mxu0 %v10581
  %10709 = vmatpush1.bf16.msra.mxu0 %v10580
  %10710 = vmatprep.subr.bf16.mxu0 %v10583
  %10711 = vmatpush1.bf16.msra.mxu0 %v10582
  %10712 = vmatprep.subr.bf16.mxu0 %v10585
  %10713 = vmatpush1.bf16.msra.mxu0 %v10584
  %10714 = vmatprep.subr.bf16.mxu0 %v10587
  %10715 = vmatpush1.bf16.msra.mxu0 %v10586
  %10716 = vmatprep.subr.bf16.mxu0 %v10589
  %10717 = vmatpush1.bf16.msra.mxu0 %v10588
  %10718 = vmatprep.subr.bf16.mxu0 %v10591
  %10719 = vmatpush1.bf16.msra.mxu0 %v10590
  %10720 = vmatprep.subr.bf16.mxu0 %v10593
  %10721 = vmatpush1.bf16.msra.mxu0 %v10592
  %10722 = vmatprep.subr.bf16.mxu0 %v10595
  %10723 = vmatpush1.bf16.msra.mxu0 %v10594
  %10724 = vmatprep.subr.bf16.mxu0 %v10597
  %10725 = vmatpush1.bf16.msra.mxu0 %v10596
  %10726 = vmatprep.subr.bf16.mxu0 %v10599
  %10727 = vmatpush1.bf16.msra.mxu0 %v10598
  %10728 = vmatprep.subr.bf16.mxu0 %v10601
  %10729 = vmatpush1.bf16.msra.mxu0 %v10600
  %10730 = vmatprep.subr.bf16.mxu0 %v10603
  %10731 = vmatpush1.bf16.msra.mxu0 %v10602
  %10732 = vmatprep.subr.bf16.mxu0 %v10605
  %10733 = vmatpush1.bf16.msra.mxu0 %v10604
  %10734 = vmatprep.subr.bf16.mxu0 %v10607
  %10735 = vmatpush1.bf16.msra.mxu0 %v10606
  %10736 = vmatprep.subr.bf16.mxu0 %v10609
  %10737 = vmatpush1.bf16.msra.mxu0 %v10608
  %10738 = vmatprep.mubr.bf16.mxu0 %v10259
  %10739 = vmatmul.mubr.bf16.gmra.mrb[0].mxu0 %v10258
  %v10740 = vpop.f32.mrb[0].mxu0
  %v10741 = vadd.f32 0.0, %v10740
  %v10742 = vpop.f32.mrb[0].mxu0
  %v10743 = vadd.f32 0.0, %v10742
  %v10744 = vpop.f32.mrb[0].mxu0
  %v10745 = vadd.f32 0.0, %v10744
  %v10746 = vpop.f32.mrb[0].mxu0
  %v10747 = vadd.f32 0.0, %v10746
  %10748 = vmatprep.mubr.bf16.mxu0 %v10263
  %10749 = vmatmul.mubr.bf16.gmra.mrb[0].mxu0 %v10262
  %v10750 = vpop.f32.mrb[0].mxu0
  %v10751 = vadd.f32 0.0, %v10750
  %v10752 = vpop.f32.mrb[0].mxu0
  %v10753 = vadd.f32 0.0, %v10752
  %v10754 = vpop.f32.mrb[0].mxu0
  %v10755 = vadd.f32 0.0, %v10754
  %v10756 = vpop.f32.mrb[0].mxu0
  %v10757 = vadd.f32 0.0, %v10756
  %10758 = vmatprep.mubr.bf16.mxu0 %v10267
  %10759 = vmatmul.mubr.bf16.gmra.mrb[0].mxu0 %v10266
  %v10760 = vpop.f32.mrb[0].mxu0
  %v10761 = vadd.f32 0.0, %v10760
  %v10762 = vpop.f32.mrb[0].mxu0
  %v10763 = vadd.f32 0.0, %v10762
  %v10764 = vpop.f32.mrb[0].mxu0
  %v10765 = vadd.f32 0.0, %v10764
  %v10766 = vpop.f32.mrb[0].mxu0
  %v10767 = vadd.f32 0.0, %v10766
  %10768 = vmatprep.mubr.bf16.mxu0 %v10271
  %10769 = vmatmul.mubr.bf16.gmra.mrb[0].mxu0 %v10270
  %v10770 = vpop.f32.mrb[0].mxu0
  %v10771 = vadd.f32 0.0, %v10770
  %v10772 = vpop.f32.mrb[0].mxu0
  %v10773 = vadd.f32 0.0, %v10772
  %v10774 = vpop.f32.mrb[0].mxu0
  %v10775 = vadd.f32 0.0, %v10774
  %v10776 = vpop.f32.mrb[0].mxu0
  %v10777 = vadd.f32 0.0, %v10776
  %10778 = vmatprep.mubr.bf16.mxu0 %v10275
  %10779 = vmatmul.mubr.bf16.gmra.mrb[0].mxu0 %v10274
  %v10780 = vpop.f32.mrb[0].mxu0
  %v10781 = vadd.f32 0.0, %v10780
  %v10782 = vpop.f32.mrb[0].mxu0
  %v10783 = vadd.f32 0.0, %v10782
  %v10784 = vpop.f32.mrb[0].mxu0
  %v10785 = vadd.f32 0.0, %v10784
  %v10786 = vpop.f32.mrb[0].mxu0
  %v10787 = vadd.f32 0.0, %v10786
  %10788 = vmatprep.mubr.bf16.mxu0 %v10279
  %10789 = vmatmul.mubr.bf16.gmra.mrb[0].mxu0 %v10278
  %v10790 = vpop.f32.mrb[0].mxu0
  %v10791 = vadd.f32 0.0, %v10790
  %v10792 = vpop.f32.mrb[0].mxu0
  %v10793 = vadd.f32 0.0, %v10792
  %v10794 = vpop.f32.mrb[0].mxu0
  %v10795 = vadd.f32 0.0, %v10794
  %v10796 = vpop.f32.mrb[0].mxu0
  %v10797 = vadd.f32 0.0, %v10796
  %10798 = vmatprep.mubr.bf16.mxu0 %v10283
  %10799 = vmatmul.mubr.bf16.gmra.mrb[0].mxu0 %v10282
  %v10800 = vpop.f32.mrb[0].mxu0
  %v10801 = vadd.f32 0.0, %v10800
  %v10802 = vpop.f32.mrb[0].mxu0
  %v10803 = vadd.f32 0.0, %v10802
  %v10804 = vpop.f32.mrb[0].mxu0
  %v10805 = vadd.f32 0.0, %v10804
  %v10806 = vpop.f32.mrb[0].mxu0
  %v10807 = vadd.f32 0.0, %v10806
  %10808 = vmatprep.mubr.bf16.mxu0 %v10287
  %10809 = vmatmul.mubr.bf16.gmra.mrb[0].mxu0 %v10286
  %v10810 = vpop.f32.mrb[0].mxu0
  %v10811 = vadd.f32 0.0, %v10810
  %v10812 = vpop.f32.mrb[0].mxu0
  %v10813 = vadd.f32 0.0, %v10812
  %v10814 = vpop.f32.mrb[0].mxu0
  %v10815 = vadd.f32 0.0, %v10814
  %v10816 = vpop.f32.mrb[0].mxu0
  %v10817 = vadd.f32 0.0, %v10816
  %10818 = vmatprep.mubr.bf16.mxu0 %v10291
  %10819 = vmatmul.mubr.bf16.gmra.mrb[0].mxu0 %v10290
  %v10820 = vpop.f32.mrb[0].mxu0
  %v10821 = vadd.f32 0.0, %v10820
  %v10822 = vpop.f32.mrb[0].mxu0
  %v10823 = vadd.f32 0.0, %v10822
  %v10824 = vpop.f32.mrb[0].mxu0
  %v10825 = vadd.f32 0.0, %v10824
  %v10826 = vpop.f32.mrb[0].mxu0
  %v10827 = vadd.f32 0.0, %v10826
  %10828 = vmatprep.mubr.bf16.mxu0 %v10295
  %10829 = vmatmul.mubr.bf16.gmra.mrb[0].mxu0 %v10294
  %v10830 = vpop.f32.mrb[0].mxu0
  %v10831 = vadd.f32 0.0, %v10830
  %v10832 = vpop.f32.mrb[0].mxu0
  %v10833 = vadd.f32 0.0, %v10832
  %v10834 = vpop.f32.mrb[0].mxu0
  %v10835 = vadd.f32 0.0, %v10834
  %v10836 = vpop.f32.mrb[0].mxu0
  %v10837 = vadd.f32 0.0, %v10836
  %10838 = vmatprep.mubr.bf16.mxu0 %v10299
  %10839 = vmatmul.mubr.bf16.gmra.mrb[0].mxu0 %v10298
  %v10840 = vpop.f32.mrb[0].mxu0
  %v10841 = vadd.f32 0.0, %v10840
  %v10842 = vpop.f32.mrb[0].mxu0
  %v10843 = vadd.f32 0.0, %v10842
  %v10844 = vpop.f32.mrb[0].mxu0
  %v10845 = vadd.f32 0.0, %v10844
  %v10846 = vpop.f32.mrb[0].mxu0
  %v10847 = vadd.f32 0.0, %v10846
  %10848 = vmatprep.mubr.bf16.mxu0 %v10303
  %10849 = vmatmul.mubr.bf16.gmra.mrb[0].mxu0 %v10302
  %v10850 = vpop.f32.mrb[0].mxu0
  %v10851 = vadd.f32 0.0, %v10850
  %v10852 = vpop.f32.mrb[0].mxu0
  %v10853 = vadd.f32 0.0, %v10852
  %v10854 = vpop.f32.mrb[0].mxu0
  %v10855 = vadd.f32 0.0, %v10854
  %v10856 = vpop.f32.mrb[0].mxu0
  %v10857 = vadd.f32 0.0, %v10856
  %10858 = vmatprep.mubr.bf16.mxu0 %v10307
  %10859 = vmatmul.mubr.bf16.gmra.mrb[0].mxu0 %v10306
  %v10860 = vpop.f32.mrb[0].mxu0
  %v10861 = vadd.f32 0.0, %v10860
  %v10862 = vpop.f32.mrb[0].mxu0
  %v10863 = vadd.f32 0.0, %v10862
  %v10864 = vpop.f32.mrb[0].mxu0
  %v10865 = vadd.f32 0.0, %v10864
  %v10866 = vpop.f32.mrb[0].mxu0
  %v10867 = vadd.f32 0.0, %v10866
  %10868 = vmatprep.mubr.bf16.mxu0 %v10311
  %10869 = vmatmul.mubr.bf16.gmra.mrb[0].mxu0 %v10310
  %v10870 = vpop.f32.mrb[0].mxu0
  %v10871 = vadd.f32 0.0, %v10870
  %v10872 = vpop.f32.mrb[0].mxu0
  %v10873 = vadd.f32 0.0, %v10872
  %v10874 = vpop.f32.mrb[0].mxu0
  %v10875 = vadd.f32 0.0, %v10874
  %v10876 = vpop.f32.mrb[0].mxu0
  %v10877 = vadd.f32 0.0, %v10876
  %10878 = vmatprep.mubr.bf16.mxu0 %v10315
  %10879 = vmatmul.mubr.bf16.gmra.mrb[0].mxu0 %v10314
  %v10880 = vpop.f32.mrb[0].mxu0
  %v10881 = vadd.f32 0.0, %v10880
  %v10882 = vpop.f32.mrb[0].mxu0
  %v10883 = vadd.f32 0.0, %v10882
  %v10884 = vpop.f32.mrb[0].mxu0
  %v10885 = vadd.f32 0.0, %v10884
  %v10886 = vpop.f32.mrb[0].mxu0
  %v10887 = vadd.f32 0.0, %v10886
  %10888 = vmatprep.mubr.bf16.mxu0 %v10319
  %10889 = vmatmul.mubr.bf16.gmra.mrb[0].mxu0 %v10318
  %v10890 = vpop.f32.mrb[0].mxu0
  %v10891 = vadd.f32 0.0, %v10890
  %v10892 = vpop.f32.mrb[0].mxu0
  %v10893 = vadd.f32 0.0, %v10892
  %v10894 = vpop.f32.mrb[0].mxu0
  %v10895 = vadd.f32 0.0, %v10894
  %v10896 = vpop.f32.mrb[0].mxu0
  %v10897 = vadd.f32 0.0, %v10896
  %10898 = vdwg.mxu0
  %10899 = vmatprep.subr.bf16.mxu0 %v10611
  %10900 = vmatpush1.bf16.msra.mxu0 %v10610
  %10901 = vmatprep.subr.bf16.mxu0 %v10613
  %10902 = vmatpush1.bf16.msra.mxu0 %v10612
  %10903 = vmatprep.subr.bf16.mxu0 %v10615
  %10904 = vmatpush1.bf16.msra.mxu0 %v10614
  %10905 = vmatprep.subr.bf16.mxu0 %v10617
  %10906 = vmatpush1.bf16.msra.mxu0 %v10616
  %10907 = vmatprep.subr.bf16.mxu0 %v10619
  %10908 = vmatpush1.bf16.msra.mxu0 %v10618
  %10909 = vmatprep.subr.bf16.mxu0 %v10621
  %10910 = vmatpush1.bf16.msra.mxu0 %v10620
  %10911 = vmatprep.subr.bf16.mxu0 %v10623
  %10912 = vmatpush1.bf16.msra.mxu0 %v10622
  %10913 = vmatprep.subr.bf16.mxu0 %v10625
  %10914 = vmatpush1.bf16.msra.mxu0 %v10624
  %10915 = vmatprep.subr.bf16.mxu0 %v10627
  %10916 = vmatpush1.bf16.msra.mxu0 %v10626
  %10917 = vmatprep.subr.bf16.mxu0 %v10629
  %10918 = vmatpush1.bf16.msra.mxu0 %v10628
  %10919 = vmatprep.subr.bf16.mxu0 %v10631
  %10920 = vmatpush1.bf16.msra.mxu0 %v10630
  %10921 = vmatprep.subr.bf16.mxu0 %v10633
  %10922 = vmatpush1.bf16.msra.mxu0 %v10632
  %10923 = vmatprep.subr.bf16.mxu0 %v10635
  %10924 = vmatpush1.bf16.msra.mxu0 %v10634
  %10925 = vmatprep.subr.bf16.mxu0 %v10637
  %10926 = vmatpush1.bf16.msra.mxu0 %v10636
  %10927 = vmatprep.subr.bf16.mxu0 %v10639
  %10928 = vmatpush1.bf16.msra.mxu0 %v10638
  %10929 = vmatprep.subr.bf16.mxu0 %v10641
  %10930 = vmatpush1.bf16.msra.mxu0 %v10640
  %10931 = vmatprep.mubr.bf16.mxu0 %v10261
  %10932 = vmatmul.mubr.bf16.gmra.mrb[0].mxu0 %v10260
  %v10933 = vpop.f32.mrb[0].mxu0
  %v10934 = vadd.f32 %v10741, %v10933
  %v10935 = vpop.f32.mrb[0].mxu0
  %v10936 = vadd.f32 %v10743, %v10935
  %v10937 = vpop.f32.mrb[0].mxu0
  %v10938 = vadd.f32 %v10745, %v10937
  %v10939 = vpop.f32.mrb[0].mxu0
  %v10940 = vadd.f32 %v10747, %v10939
  %10941 = vmatprep.mubr.bf16.mxu0 %v10265
  %10942 = vmatmul.mubr.bf16.gmra.mrb[0].mxu0 %v10264
  %v10943 = vpop.f32.mrb[0].mxu0
  %v10944 = vadd.f32 %v10751, %v10943
  %v10945 = vpop.f32.mrb[0].mxu0
  %v10946 = vadd.f32 %v10753, %v10945
  %v10947 = vpop.f32.mrb[0].mxu0
  %v10948 = vadd.f32 %v10755, %v10947
  %v10949 = vpop.f32.mrb[0].mxu0
  %v10950 = vadd.f32 %v10757, %v10949
  %10951 = vmatprep.mubr.bf16.mxu0 %v10269
  %10952 = vmatmul.mubr.bf16.gmra.mrb[0].mxu0 %v10268
  %v10953 = vpop.f32.mrb[0].mxu0
  %v10954 = vadd.f32 %v10761, %v10953
  %v10955 = vpop.f32.mrb[0].mxu0
  %v10956 = vadd.f32 %v10763, %v10955
  %v10957 = vpop.f32.mrb[0].mxu0
  %v10958 = vadd.f32 %v10765, %v10957
  %v10959 = vpop.f32.mrb[0].mxu0
  %v10960 = vadd.f32 %v10767, %v10959
  %10961 = vmatprep.mubr.bf16.mxu0 %v10273
  %10962 = vmatmul.mubr.bf16.gmra.mrb[0].mxu0 %v10272
  %v10963 = vpop.f32.mrb[0].mxu0
  %v10964 = vadd.f32 %v10771, %v10963
  %v10965 = vpop.f32.mrb[0].mxu0
  %v10966 = vadd.f32 %v10773, %v10965
  %v10967 = vpop.f32.mrb[0].mxu0
  %v10968 = vadd.f32 %v10775, %v10967
  %v10969 = vpop.f32.mrb[0].mxu0
  %v10970 = vadd.f32 %v10777, %v10969
  %10971 = vmatprep.mubr.bf16.mxu0 %v10277
  %10972 = vmatmul.mubr.bf16.gmra.mrb[0].mxu0 %v10276
  %v10973 = vpop.f32.mrb[0].mxu0
  %v10974 = vadd.f32 %v10781, %v10973
  %v10975 = vpop.f32.mrb[0].mxu0
  %v10976 = vadd.f32 %v10783, %v10975
  %v10977 = vpop.f32.mrb[0].mxu0
  %v10978 = vadd.f32 %v10785, %v10977
  %v10979 = vpop.f32.mrb[0].mxu0
  %v10980 = vadd.f32 %v10787, %v10979
  %10981 = vmatprep.mubr.bf16.mxu0 %v10281
  %10982 = vmatmul.mubr.bf16.gmra.mrb[0].mxu0 %v10280
  %v10983 = vpop.f32.mrb[0].mxu0
  %v10984 = vadd.f32 %v10791, %v10983
  %v10985 = vpop.f32.mrb[0].mxu0
  %v10986 = vadd.f32 %v10793, %v10985
  %v10987 = vpop.f32.mrb[0].mxu0
  %v10988 = vadd.f32 %v10795, %v10987
  %v10989 = vpop.f32.mrb[0].mxu0
  %v10990 = vadd.f32 %v10797, %v10989
  %10991 = vmatprep.mubr.bf16.mxu0 %v10285
  %10992 = vmatmul.mubr.bf16.gmra.mrb[0].mxu0 %v10284
  %v10993 = vpop.f32.mrb[0].mxu0
  %v10994 = vadd.f32 %v10801, %v10993
  %v10995 = vpop.f32.mrb[0].mxu0
  %v10996 = vadd.f32 %v10803, %v10995
  %v10997 = vpop.f32.mrb[0].mxu0
  %v10998 = vadd.f32 %v10805, %v10997
  %v10999 = vpop.f32.mrb[0].mxu0
  %v11000 = vadd.f32 %v10807, %v10999
  %11001 = vmatprep.mubr.bf16.mxu0 %v10289
  %11002 = vmatmul.mubr.bf16.gmra.mrb[0].mxu0 %v10288
  %v11003 = vpop.f32.mrb[0].mxu0
  %v11004 = vadd.f32 %v10811, %v11003
  %v11005 = vpop.f32.mrb[0].mxu0
  %v11006 = vadd.f32 %v10813, %v11005
  %v11007 = vpop.f32.mrb[0].mxu0
  %v11008 = vadd.f32 %v10815, %v11007
  %v11009 = vpop.f32.mrb[0].mxu0
  %v11010 = vadd.f32 %v10817, %v11009
  %11011 = vmatprep.mubr.bf16.mxu0 %v10293
  %11012 = vmatmul.mubr.bf16.gmra.mrb[0].mxu0 %v10292
  %v11013 = vpop.f32.mrb[0].mxu0
  %v11014 = vadd.f32 %v10821, %v11013
  %v11015 = vpop.f32.mrb[0].mxu0
  %v11016 = vadd.f32 %v10823, %v11015
  %v11017 = vpop.f32.mrb[0].mxu0
  %v11018 = vadd.f32 %v10825, %v11017
  %v11019 = vpop.f32.mrb[0].mxu0
  %v11020 = vadd.f32 %v10827, %v11019
  %11021 = vmatprep.mubr.bf16.mxu0 %v10297
  %11022 = vmatmul.mubr.bf16.gmra.mrb[0].mxu0 %v10296
  %v11023 = vpop.f32.mrb[0].mxu0
  %v11024 = vadd.f32 %v10831, %v11023
  %v11025 = vpop.f32.mrb[0].mxu0
  %v11026 = vadd.f32 %v10833, %v11025
  %v11027 = vpop.f32.mrb[0].mxu0
  %v11028 = vadd.f32 %v10835, %v11027
  %v11029 = vpop.f32.mrb[0].mxu0
  %v11030 = vadd.f32 %v10837, %v11029
  %11031 = vmatprep.mubr.bf16.mxu0 %v10301
  %11032 = vmatmul.mubr.bf16.gmra.mrb[0].mxu0 %v10300
  %v11033 = vpop.f32.mrb[0].mxu0
  %v11034 = vadd.f32 %v10841, %v11033
  %v11035 = vpop.f32.mrb[0].mxu0
  %v11036 = vadd.f32 %v10843, %v11035
  %v11037 = vpop.f32.mrb[0].mxu0
  %v11038 = vadd.f32 %v10845, %v11037
  %v11039 = vpop.f32.mrb[0].mxu0
  %v11040 = vadd.f32 %v10847, %v11039
  %11041 = vmatprep.mubr.bf16.mxu0 %v10305
  %11042 = vmatmul.mubr.bf16.gmra.mrb[0].mxu0 %v10304
  %v11043 = vpop.f32.mrb[0].mxu0
  %v11044 = vadd.f32 %v10851, %v11043
  %v11045 = vpop.f32.mrb[0].mxu0
  %v11046 = vadd.f32 %v10853, %v11045
  %v11047 = vpop.f32.mrb[0].mxu0
  %v11048 = vadd.f32 %v10855, %v11047
  %v11049 = vpop.f32.mrb[0].mxu0
  %v11050 = vadd.f32 %v10857, %v11049
  %11051 = vmatprep.mubr.bf16.mxu0 %v10309
  %11052 = vmatmul.mubr.bf16.gmra.mrb[0].mxu0 %v10308
  %v11053 = vpop.f32.mrb[0].mxu0
  %v11054 = vadd.f32 %v10861, %v11053
  %v11055 = vpop.f32.mrb[0].mxu0
  %v11056 = vadd.f32 %v10863, %v11055
  %v11057 = vpop.f32.mrb[0].mxu0
  %v11058 = vadd.f32 %v10865, %v11057
  %v11059 = vpop.f32.mrb[0].mxu0
  %v11060 = vadd.f32 %v10867, %v11059
  %11061 = vmatprep.mubr.bf16.mxu0 %v10313
  %11062 = vmatmul.mubr.bf16.gmra.mrb[0].mxu0 %v10312
  %v11063 = vpop.f32.mrb[0].mxu0
  %v11064 = vadd.f32 %v10871, %v11063
  %v11065 = vpop.f32.mrb[0].mxu0
  %v11066 = vadd.f32 %v10873, %v11065
  %v11067 = vpop.f32.mrb[0].mxu0
  %v11068 = vadd.f32 %v10875, %v11067
  %v11069 = vpop.f32.mrb[0].mxu0
  %v11070 = vadd.f32 %v10877, %v11069
  %11071 = vmatprep.mubr.bf16.mxu0 %v10317
  %11072 = vmatmul.mubr.bf16.gmra.mrb[0].mxu0 %v10316
  %v11073 = vpop.f32.mrb[0].mxu0
  %v11074 = vadd.f32 %v10881, %v11073
  %v11075 = vpop.f32.mrb[0].mxu0
  %v11076 = vadd.f32 %v10883, %v11075
  %v11077 = vpop.f32.mrb[0].mxu0
  %v11078 = vadd.f32 %v10885, %v11077
  %v11079 = vpop.f32.mrb[0].mxu0
  %v11080 = vadd.f32 %v10887, %v11079
  %11081 = vmatprep.mubr.bf16.mxu0 %v10321
  %11082 = vmatmul.mubr.bf16.gmra.mrb[0].mxu0 %v10320
  %v11083 = vpop.f32.mrb[0].mxu0
  %v11084 = vadd.f32 %v10891, %v11083
  %v11085 = vpop.f32.mrb[0].mxu0
  %v11086 = vadd.f32 %v10893, %v11085
  %v11087 = vpop.f32.mrb[0].mxu0
  %v11088 = vadd.f32 %v10895, %v11087
  %v11089 = vpop.f32.mrb[0].mxu0
  %v11090 = vadd.f32 %v10897, %v11089
  %11091 = vdwg.mxu0
  %v11092 = vadd.f32 %v8130, %v10934
  %v11093 = vadd.f32 %v8131, %v10936
  %v11094 = vadd.f32 %v8132, %v10938
  %v11095 = vadd.f32 %v8133, %v10940
  %v11096 = vadd.f32 %v8134, %v10944
  %v11097 = vadd.f32 %v8135, %v10946
  %v11098 = vadd.f32 %v8136, %v10948
  %v11099 = vadd.f32 %v8137, %v10950
  %v11100 = vadd.f32 %v8138, %v10954
  %v11101 = vadd.f32 %v8139, %v10956
  %v11102 = vadd.f32 %v8140, %v10958
  %v11103 = vadd.f32 %v8141, %v10960
  %v11104 = vadd.f32 %v8142, %v10964
  %v11105 = vadd.f32 %v8143, %v10966
  %v11106 = vadd.f32 %v8144, %v10968
  %v11107 = vadd.f32 %v8145, %v10970
  %v11108 = vadd.f32 %v8146, %v10974
  %v11109 = vadd.f32 %v8147, %v10976
  %v11110 = vadd.f32 %v8148, %v10978
  %v11111 = vadd.f32 %v8149, %v10980
  %v11112 = vadd.f32 %v8150, %v10984
  %v11113 = vadd.f32 %v8151, %v10986
  %v11114 = vadd.f32 %v8152, %v10988
  %v11115 = vadd.f32 %v8153, %v10990
  %v11116 = vadd.f32 %v8154, %v10994
  %v11117 = vadd.f32 %v8155, %v10996
  %v11118 = vadd.f32 %v8156, %v10998
  %v11119 = vadd.f32 %v8157, %v11000
  %v11120 = vadd.f32 %v8158, %v11004
  %v11121 = vadd.f32 %v8159, %v11006
  %v11122 = vadd.f32 %v8160, %v11008
  %v11123 = vadd.f32 %v8161, %v11010
  %v11124 = vadd.f32 %v8162, %v11014
  %v11125 = vadd.f32 %v8163, %v11016
  %v11126 = vadd.f32 %v8164, %v11018
  %v11127 = vadd.f32 %v8165, %v11020
  %v11128 = vadd.f32 %v8166, %v11024
  %v11129 = vadd.f32 %v8167, %v11026
  %v11130 = vadd.f32 %v8168, %v11028
  %v11131 = vadd.f32 %v8169, %v11030
  %v11132 = vadd.f32 %v8170, %v11034
  %v11133 = vadd.f32 %v8171, %v11036
  %v11134 = vadd.f32 %v8172, %v11038
  %v11135 = vadd.f32 %v8173, %v11040
  %v11136 = vadd.f32 %v8174, %v11044
  %v11137 = vadd.f32 %v8175, %v11046
  %v11138 = vadd.f32 %v8176, %v11048
  %v11139 = vadd.f32 %v8177, %v11050
  %v11140 = vadd.f32 %v8178, %v11054
  %v11141 = vadd.f32 %v8179, %v11056
  %v11142 = vadd.f32 %v8180, %v11058
  %v11143 = vadd.f32 %v8181, %v11060
  %v11144 = vadd.f32 %v8182, %v11064
  %v11145 = vadd.f32 %v8183, %v11066
  %v11146 = vadd.f32 %v8184, %v11068
  %v11147 = vadd.f32 %v8185, %v11070
  %v11148 = vadd.f32 %v8186, %v11074
  %v11149 = vadd.f32 %v8187, %v11076
  %v11150 = vadd.f32 %v8188, %v11078
  %v11151 = vadd.f32 %v8189, %v11080
  %v11152 = vadd.f32 %v8190, %v11084
  %v11153 = vadd.f32 %v8191, %v11086
  %v11154 = vadd.f32 %v8192, %v11088
  %v11155 = vadd.f32 %v8193, %v11090
  %v11156 = vld [vmem:[%s20] sm:$0x3]
  %v11158 = vlaneseq
  %v11159 = vshrl.u32 %v11158, 7
  %v11160 = vsub.s32 0, %v11159
  %v11161 = vrot.slane %v11156, %v11160
  %v11162 = vlaneseq
  %v11163 = vshrl.u32 %v11162, 7
  %v11164 = vsub.s32 1, %v11163
  %v11165 = vrot.slane %v11156, %v11164
  %v11168 = vadd.f32 %v11092, %v11161
  %v11169 = vadd.f32 %v11093, %v11165
  %v11170 = vadd.f32 %v11094, %v11161
  %v11171 = vadd.f32 %v11095, %v11165
  %v11172 = vadd.f32 %v11096, %v11161
  %v11173 = vadd.f32 %v11097, %v11165
  %v11174 = vadd.f32 %v11098, %v11161
  %v11175 = vadd.f32 %v11099, %v11165
  %v11176 = vadd.f32 %v11100, %v11161
  %v11177 = vadd.f32 %v11101, %v11165
  %v11178 = vadd.f32 %v11102, %v11161
  %v11179 = vadd.f32 %v11103, %v11165
  %v11180 = vadd.f32 %v11104, %v11161
  %v11181 = vadd.f32 %v11105, %v11165
  %v11182 = vadd.f32 %v11106, %v11161
  %v11183 = vadd.f32 %v11107, %v11165
  %v11184 = vadd.f32 %v11108, %v11161
  %v11185 = vadd.f32 %v11109, %v11165
  %v11186 = vadd.f32 %v11110, %v11161
  %v11187 = vadd.f32 %v11111, %v11165
  %v11188 = vadd.f32 %v11112, %v11161
  %v11189 = vadd.f32 %v11113, %v11165
  %v11190 = vadd.f32 %v11114, %v11161
  %v11191 = vadd.f32 %v11115, %v11165
  %v11192 = vadd.f32 %v11116, %v11161
  %v11193 = vadd.f32 %v11117, %v11165
  %v11194 = vadd.f32 %v11118, %v11161
  %v11195 = vadd.f32 %v11119, %v11165
  %v11196 = vadd.f32 %v11120, %v11161
  %v11197 = vadd.f32 %v11121, %v11165
  %v11198 = vadd.f32 %v11122, %v11161
  %v11199 = vadd.f32 %v11123, %v11165
  %v11200 = vadd.f32 %v11124, %v11161
  %v11201 = vadd.f32 %v11125, %v11165
  %v11202 = vadd.f32 %v11126, %v11161
  %v11203 = vadd.f32 %v11127, %v11165
  %v11204 = vadd.f32 %v11128, %v11161
  %v11205 = vadd.f32 %v11129, %v11165
  %v11206 = vadd.f32 %v11130, %v11161
  %v11207 = vadd.f32 %v11131, %v11165
  %v11208 = vadd.f32 %v11132, %v11161
  %v11209 = vadd.f32 %v11133, %v11165
  %v11210 = vadd.f32 %v11134, %v11161
  %v11211 = vadd.f32 %v11135, %v11165
  %v11212 = vadd.f32 %v11136, %v11161
  %v11213 = vadd.f32 %v11137, %v11165
  %v11214 = vadd.f32 %v11138, %v11161
  %v11215 = vadd.f32 %v11139, %v11165
  %v11216 = vadd.f32 %v11140, %v11161
  %v11217 = vadd.f32 %v11141, %v11165
  %v11218 = vadd.f32 %v11142, %v11161
  %v11219 = vadd.f32 %v11143, %v11165
  %v11220 = vadd.f32 %v11144, %v11161
  %v11221 = vadd.f32 %v11145, %v11165
  %v11222 = vadd.f32 %v11146, %v11161
  %v11223 = vadd.f32 %v11147, %v11165
  %v11224 = vadd.f32 %v11148, %v11161
  %v11225 = vadd.f32 %v11149, %v11165
  %v11226 = vadd.f32 %v11150, %v11161
  %v11227 = vadd.f32 %v11151, %v11165
  %v11228 = vadd.f32 %v11152, %v11161
  %v11229 = vadd.f32 %v11153, %v11165
  %v11230 = vadd.f32 %v11154, %v11161
  %v11231 = vadd.f32 %v11155, %v11165
  %v11232 = vld [vmem:[%s2] sm:$0xff]
  %v11233 = vld [vmem:[%s2 + $0x8] sm:$0xff]
  %v11234 = vpack.c.bf16 %v11170, %v11168
  %v11235 = vpack.c.bf16 %v11171, %v11169
  %v11236 = vpack.c.bf16 %v11174, %v11172
  %v11237 = vpack.c.bf16 %v11175, %v11173
  %v11238 = vpack.c.bf16 %v11178, %v11176
  %v11239 = vpack.c.bf16 %v11179, %v11177
  %v11240 = vpack.c.bf16 %v11182, %v11180
  %v11241 = vpack.c.bf16 %v11183, %v11181
  %v11242 = vpack.c.bf16 %v11186, %v11184
  %v11243 = vpack.c.bf16 %v11187, %v11185
  %v11244 = vpack.c.bf16 %v11190, %v11188
  %v11245 = vpack.c.bf16 %v11191, %v11189
  %v11246 = vpack.c.bf16 %v11194, %v11192
  %v11247 = vpack.c.bf16 %v11195, %v11193
  %v11248 = vpack.c.bf16 %v11198, %v11196
  %v11249 = vpack.c.bf16 %v11199, %v11197
  %v11250 = vpack.c.bf16 %v11202, %v11200
  %v11251 = vpack.c.bf16 %v11203, %v11201
  %v11252 = vpack.c.bf16 %v11206, %v11204
  %v11253 = vpack.c.bf16 %v11207, %v11205
  %v11254 = vpack.c.bf16 %v11210, %v11208
  %v11255 = vpack.c.bf16 %v11211, %v11209
  %v11256 = vpack.c.bf16 %v11214, %v11212
  %v11257 = vpack.c.bf16 %v11215, %v11213
  %v11258 = vpack.c.bf16 %v11218, %v11216
  %v11259 = vpack.c.bf16 %v11219, %v11217
  %v11260 = vpack.c.bf16 %v11222, %v11220
  %v11261 = vpack.c.bf16 %v11223, %v11221
  %v11262 = vpack.c.bf16 %v11226, %v11224
  %v11263 = vpack.c.bf16 %v11227, %v11225
  %v11264 = vpack.c.bf16 %v11230, %v11228
  %v11265 = vpack.c.bf16 %v11231, %v11229
  %v11268 = vunpack.c.l.b16 %v11232
  %v11269 = vunpack.c.h.b16 %v11232
  %v11270 = vunpack.c.l.b16 %v11233
  %v11271 = vunpack.c.h.b16 %v11233
  %v11272 = vpack.c.b16 %v11270, %v11268
  %v11273 = vpack.c.b16 %v11271, %v11269
  %11276 = vmatprep.subr.bf16.mxu0 %v11235
  %11277 = vmatpush1.bf16.msra.mxu0 %v11234
  %11278 = vmatprep.subr.bf16.mxu0 %v11237
  %11279 = vmatpush1.bf16.msra.mxu0 %v11236
  %11280 = vmatprep.subr.bf16.mxu0 %v11239
  %11281 = vmatpush1.bf16.msra.mxu0 %v11238
  %11282 = vmatprep.subr.bf16.mxu0 %v11241
  %11283 = vmatpush1.bf16.msra.mxu0 %v11240
  %11284 = vmatprep.subr.bf16.mxu0 %v11243
  %11285 = vmatpush1.bf16.msra.mxu0 %v11242
  %11286 = vmatprep.subr.bf16.mxu0 %v11245
  %11287 = vmatpush1.bf16.msra.mxu0 %v11244
  %11288 = vmatprep.subr.bf16.mxu0 %v11247
  %11289 = vmatpush1.bf16.msra.mxu0 %v11246
  %11290 = vmatprep.subr.bf16.mxu0 %v11249
  %11291 = vmatpush1.bf16.msra.mxu0 %v11248
  %11292 = vmatprep.subr.bf16.mxu0 %v11251
  %11293 = vmatpush1.bf16.msra.mxu0 %v11250
  %11294 = vmatprep.subr.bf16.mxu0 %v11253
  %11295 = vmatpush1.bf16.msra.mxu0 %v11252
  %11296 = vmatprep.subr.bf16.mxu0 %v11255
  %11297 = vmatpush1.bf16.msra.mxu0 %v11254
  %11298 = vmatprep.subr.bf16.mxu0 %v11257
  %11299 = vmatpush1.bf16.msra.mxu0 %v11256
  %11300 = vmatprep.subr.bf16.mxu0 %v11259
  %11301 = vmatpush1.bf16.msra.mxu0 %v11258
  %11302 = vmatprep.subr.bf16.mxu0 %v11261
  %11303 = vmatpush1.bf16.msra.mxu0 %v11260
  %11304 = vmatprep.subr.bf16.mxu0 %v11263
  %11305 = vmatpush1.bf16.msra.mxu0 %v11262
  %11306 = vmatprep.subr.bf16.mxu0 %v11265
  %11307 = vmatpush1.bf16.msra.mxu0 %v11264
  %11308 = vmatprep.mubr.bf16.mxu0 %v11273
  %11309 = vmatmul.mubr.bf16.gmra.mrb[0].mxu0 %v11272
  %v11310 = vpop.f32.mrb[0].mxu0
  %v11311 = vadd.f32 0.0, %v11310
  %v11312 = vpop.f32.mrb[0].mxu0
  %v11313 = vadd.f32 0.0, %v11312
  %v11314 = vpop.f32.mrb[0].mxu0
  %v11315 = vadd.f32 0.0, %v11314
  %v11316 = vpop.f32.mrb[0].mxu0
  %v11317 = vadd.f32 0.0, %v11316
  %11318 = vdwg.mxu0
  %11319 = vst [vmem:[%s21] sm:$0xff] %v11311
  %11320 = vst [vmem:[%s21 + $0x8] sm:$0xff] %v11313
  %11321 = vst [vmem:[%s21 + $0x10] sm:$0xff] %v11315
  %11322 = vst [vmem:[%s21 + $0x18] sm:$0xff] %v11317
  // Predicated region
  $region86: #{_forward.1} parent=0 // pred_check
    _
  $region87: #{_forward.1} parent=0 // pred_check_branch
    %11324 = sbr.rel (0) target = $region89
  $region88: #{_forward.1} parent=0 // pred_region
    _
  $region89: #{_forward.1} parent=0 // pred_fallthru
    _
  // Predicated region
  $region90: #{_forward.1} parent=0 // pred_check
    _
  $region91: #{_forward.1} parent=0 // pred_check_branch
    %11326 = sbr.rel (0) target = $region93
  $region92: #{_forward.1} parent=0 // pred_region
    _
  $region93: #{_forward.1} parent=0 // pred_fallthru
    _

</llo_original>
